<compile_context>
chip_gen: v5e
topology: v5e:2x2
jax: 0.10.0
libtpu: 0.0.40
codegen_flags: <defaults>
</compile_context>

<pallas_src>
import functools
import numpy as np

import jax
import jax.numpy as jnp
from jax.experimental import pallas as pl
from jax.experimental.pallas import tpu as pltpu


# -----------------------------------------------------------------------------
# Pallas kernel: (optionally batched) matmul, K-tiled, accumulating in the
# resident f32 output block, fused (+bias [, ReLU]) epilogue on the last step.
# -----------------------------------------------------------------------------
def _bmm_kernel(*refs, relu, nk, has_bias):
    if has_bias:
        a_ref, w_ref, bias_ref, o_ref = refs
    else:
        a_ref, w_ref, o_ref = refs
        bias_ref = None

    part = jnp.dot(a_ref[...], w_ref[...], preferred_element_type=jnp.float32)

    if nk == 1:
        # Fully fused single-K-step path: one store, no o_ref re-read.
        y = part
        if has_bias:
            y = y + bias_ref[...]
        if relu:
            y = jnp.maximum(y, 0.0)
        o_ref[...] = y.astype(o_ref.dtype)
        return

    k = pl.program_id(2)

    @pl.when(k == 0)
    def _():
        o_ref[...] = part

    if nk > 2:
        @pl.when(jnp.logical_and(k > 0, k < nk - 1))
        def _():
            o_ref[...] = o_ref[...] + part

    @pl.when(k == nk - 1)
    def _():
        # Fuse the last accumulation with the epilogue (single o_ref pass).
        y = o_ref[...] + part
        if has_bias:
            y = y + bias_ref[...]
        if relu:
            y = jnp.maximum(y, 0.0)
        o_ref[...] = y.astype(o_ref.dtype)


def _pick_tile(dim, cap, align):
    """Largest t <= cap with dim % t == 0 and t % align == 0 (else full dim)."""
    if dim <= cap:
        return dim
    t = cap
    while t >= align:
        if dim % t == 0 and t % align == 0:
            return t
        t //= 2
    return dim


_VMEM_LIMIT = 48 * 1024 * 1024   # explicit (v5e default scope is 16 MiB), v7x-safe


def matmul_fused(a, w, bias=None, *, relu=False, out_dtype=jnp.float32,
                 tm_max=256, tk_max=8192):
    """out[g] = epilogue(a[g] @ w[g]); epilogue = (+ bias)[, ReLU].

    a: (G, M, K) or (M, K) shared across G; w: (G, K, N) or (K, N) shared.
    bias: None, (N,), (1, N), or (M, N). f32 accumulation on the MXU.
    """
    a_batched = a.ndim == 3
    w_batched = w.ndim == 3
    if a_batched and w_batched:
        assert a.shape[0] == w.shape[0], (a.shape, w.shape)
        G = a.shape[0]
    elif a_batched:
        G = a.shape[0]
    elif w_batched:
        G = w.shape[0]
    else:
        G = 1
    M, K = a.shape[-2:]
    Kw, N = w.shape[-2:]
    assert Kw == K, (a.shape, w.shape)

    tm = _pick_tile(M, tm_max, 8)
    tk = _pick_tile(K, tk_max, 128)
    assert M % tm == 0 and K % tk == 0, (M, K, tm, tk)
    nk = K // tk
    grid = (G, M // tm, nk)
    # Multi-step accumulation happens in the output block -> must be f32.
    assert nk == 1 or out_dtype == jnp.float32, (nk, out_dtype)

    if a_batched:
        a_spec = pl.BlockSpec((None, tm, tk), lambda g, m, k: (g, m, k))
    else:
        a_spec = pl.BlockSpec((tm, tk), lambda g, m, k: (m, k))
    if w_batched:
        w_spec = pl.BlockSpec((None, tk, N), lambda g, m, k: (g, k, 0))
    else:
        w_spec = pl.BlockSpec((tk, N), lambda g, m, k: (k, 0))

    in_specs = [a_spec, w_spec]
    args = [a, w]
    has_bias = bias is not None
    bias_rows = 0
    if has_bias:
        bias = bias.astype(jnp.float32)
        if bias.ndim == 1:
            bias = bias.reshape(1, N)
        if bias.shape[0] == 1:
            bias_rows = 1
            in_specs.append(pl.BlockSpec((1, N), lambda g, m, k: (0, 0)))
        else:
            assert bias.shape == (M, N), (bias.shape, M, N)
            bias_rows = tm
            in_specs.append(pl.BlockSpec((tm, N), lambda g, m, k: (m, 0)))
        args.append(bias)

    out_specs = pl.BlockSpec((None, tm, N), lambda g, m, k: (g, m, 0))

    # VMEM footprint guard (double-buffered inputs + output block).
    est = 2 * (tm * tk * a.dtype.itemsize + tk * N * w.dtype.itemsize
               + bias_rows * N * 4 + tm * N * jnp.dtype(out_dtype).itemsize)
    assert est <= _VMEM_LIMIT, (
        f"tile footprint {est} exceeds VMEM limit {_VMEM_LIMIT}")

    kernel = functools.partial(_bmm_kernel, relu=relu, nk=nk, has_bias=has_bias)
    out = pl.pallas_call(
        kernel,
        out_shape=jax.ShapeDtypeStruct((G, M, N), out_dtype),
        grid_spec=pltpu.PrefetchScalarGridSpec(
            num_scalar_prefetch=0,
            grid=grid,
            in_specs=in_specs,
            out_specs=out_specs),
        compiler_params=pltpu.CompilerParams(
            dimension_semantics=("parallel", "parallel", "arbitrary"),
            vmem_limit_bytes=_VMEM_LIMIT),
    )(*args)
    if not (a_batched or w_batched):
        out = out[0]
    return out


# -----------------------------------------------------------------------------
# ConvTranspose2d(4, stride=2, pad=1, bias=False) via sub-pixel (phase)
# decomposition: each output-parity phase (ry, rx) is a stride-1 2x2 conv.
# out row 2q+r uses x rows {q+r-1, q+r} and kernel rows ky = 3 - r - 2*dy.
# -----------------------------------------------------------------------------
def _deconv_phase_im2col(x_nhwc):
    """x: (B, H, W, C) -> A (4, B*H*W, C*4); no structural zeros."""
    B, H, W, C = x_nhwc.shape
    xp = jnp.pad(x_nhwc, ((0, 0), (1, 1), (1, 1), (0, 0)))
    phases = []
    for ry in range(2):
        for rx in range(2):
            cols = []
            for dy in range(2):
                for dx in range(2):
                    cols.append(xp[:, ry + dy:ry + dy + H,
                                   rx + dx:rx + dx + W, :])     # (B,H,W,C)
            patch = jnp.stack(cols, axis=-1)                    # (B,H,W,C,4)
            phases.append(patch.reshape(B * H * W, C * 4))
    return jnp.stack(phases, axis=0)                            # (4, B*H*W, C*4)


def _deconv_phase_weights(w_ct):
    """PyTorch ConvTranspose2d weight (Cin, Cout, 4, 4) -> (4, Cin*4, Cout)."""
    Cin, Cout = w_ct.shape[0], w_ct.shape[1]
    ws = []
    for ry in range(2):
        for rx in range(2):
            sub = []
            for dy in range(2):
                for dx in range(2):
                    sub.append(w_ct[:, :, 3 - ry - 2 * dy, 3 - rx - 2 * dx])
            sub = jnp.stack(sub, axis=1)                        # (Cin, 4, Cout)
            ws.append(sub.reshape(Cin * 4, Cout))
    return jnp.stack(ws, axis=0)                                # (4, Cin*4, Cout)


def _deconv_bn_relu(x_nhwc, w_phases, shift, *, out_layout="nhwc"):
    """Deconv(4,2,1,bias=False)+BN(eval, scale pre-folded into weights)+ReLU."""
    B, H, W, _ = x_nhwc.shape
    Cout = w_phases.shape[-1]
    A = _deconv_phase_im2col(x_nhwc)                            # (4, BHW, Cin*4) bf16
    y = matmul_fused(A, w_phases, shift, relu=True,
                     out_dtype=jnp.bfloat16)                    # (4, BHW, Cout)
    y = y.reshape(2, 2, B, H, W, Cout)                          # (ry,rx,b,qy,qx,c)
    if out_layout == "nhwc":
        y = y.transpose(2, 3, 0, 4, 1, 5).reshape(B, 2 * H, 2 * W, Cout)
    else:  # channel-major for the transposed outConv
        y = y.transpose(2, 5, 3, 0, 4, 1).reshape(B, Cout, 2 * H, 2 * W)
    return y


def _adaptive_avgpool_matrix(H, W, OH, OW):
    """Exact adaptive_avg_pool2d semantics as a (OH*OW, H*W) averaging matrix."""
    P = np.zeros((OH * OW, H * W), np.float32)
    for oy in range(OH):
        y0, y1 = (oy * H) // OH, -((-(oy + 1) * H) // OH)
        for ox in range(OW):
            x0, x1 = (ox * W) // OW, -((-(ox + 1) * W) // OW)
            val = 1.0 / ((y1 - y0) * (x1 - x0))
            for iy in range(y0, y1):
                for ix in range(x0, x1):
                    P[oy * OW + ox, iy * W + ix] = val
    return P


# -----------------------------------------------------------------------------
# One-time parameter preparation (hoisted out of the traced forward).
# -----------------------------------------------------------------------------
def prepare_params(params, *, w_img, h_img, n_joints, feat_hw, eps=1e-5):
    Hf, Wf = feat_hw                       # feature map spatial size after Up3
    OH, OW = w_img // 8, h_img // 8
    prep = {}
    for name in ("up1", "up2", "up3"):
        gamma, beta, mean, var = params[f"{name}_bn"]
        scale = gamma / jnp.sqrt(var + eps)
        shift = beta - mean * scale
        wm = _deconv_phase_weights(params[f"{name}_w"].astype(jnp.float32))
        wm = wm * scale[None, None, :]                  # fold BN scale (f32)
        prep[f"{name}_w"] = wm.astype(jnp.bfloat16)     # (4, Cin*4, Cout)
        prep[f"{name}_shift"] = shift.reshape(1, -1).astype(jnp.float32)

    # outConv weight, transposed: (nJ, C)
    prep["out_wT"] = params["out_w"].reshape(n_joints, -1).astype(jnp.bfloat16)

    # adaptive_avg_pool2d commuted past the 1x1 outConv and folded into the
    # fused x/y head weights: Q = P^T @ [Wx; Wy]^T. Exact (pooling is linear,
    # each pooling row sums to 1, so the conv bias survives -> handled below).
    P = _adaptive_avgpool_matrix(Hf, Wf, OH, OW)                  # (OH*OW, Hf*Wf)
    w_head = jnp.concatenate([params["xvec_w"], params["yvec_w"]], axis=0).T
    b_head = jnp.concatenate([params["xvec_b"], params["yvec_b"]], axis=0)
    Q = jnp.asarray(P).T @ w_head.astype(jnp.float32)             # (Hf*Wf, w+h)
    prep["head_w"] = Q.astype(jnp.bfloat16)
    col_sum = jnp.sum(w_head.astype(jnp.float32), axis=0)         # (w+h,)
    prep["head_bias"] = (params["out_b"].astype(jnp.float32)[:, None] * col_sum[None, :]
                         + b_head.astype(jnp.float32)[None, :])   # (nJ, w+h)
    return prep


# -----------------------------------------------------------------------------
# SimCC forward (head).
# -----------------------------------------------------------------------------
def simcc_forward(f_layer4, prep, *, w_img, h_img):
    # NCHW -> NHWC + bf16 once at entry; Up stages stay NHWC/bf16.
    x = f_layer4.transpose(0, 2, 3, 1).astype(jnp.bfloat16)
    x = _deconv_bn_relu(x, prep["up1_w"], prep["up1_shift"])               # Up1
    x = _deconv_bn_relu(x, prep["up2_w"], prep["up2_shift"])               # Up2
    x = _deconv_bn_relu(x, prep["up3_w"], prep["up3_shift"],
                        out_layout="nchw")                                 # Up3

    B, C, Hf, Wf = x.shape
    f_chw = x.reshape(B, C, Hf * Wf)                       # bf16, channel-major

    # outConv (1x1) computed transposed & batched over B: lane-dense N = Hf*Wf.
    # Its bias + the pooling are folded into the head weights/bias (prep).
    outT = matmul_fused(prep["out_wT"], f_chw, out_dtype=jnp.bfloat16)  # (B,nJ,Hf*Wf)

    # Fused x/y heads with pooling folded in: (B, nJ, w+h), lane-dense.
    pred = matmul_fused(outT, prep["head_w"], prep["head_bias"])
    return pred[:, :, :w_img], pred[:, :, w_img:]


# -----------------------------------------------------------------------------
# Pure-numpy f32 reference (for a loose correctness check of the new math).
# -----------------------------------------------------------------------------
def reference_forward(f_layer4, params, *, w_img, h_img, n_joints, eps=1e-5):
    x = np.asarray(f_layer4, np.float32)

    def deconv_bn_relu_ref(x, w, bn):
        B, Cin, H, W = x.shape
        w = np.asarray(w, np.float32)
        Cout = w.shape[1]
        full = np.zeros((B, Cout, 2 * H + 2, 2 * W + 2), np.float32)
        for ky in range(4):
            for kx in range(4):
                contrib = np.einsum("bimn,io->bomn", x, w[:, :, ky, kx])
                full[:, :, ky:ky + 2 * H:2, kx:kx + 2 * W:2] += contrib
        out = full[:, :, 1:1 + 2 * H, 1:1 + 2 * W]
        gamma, beta, mean, var = [np.asarray(t, np.float32) for t in bn]
        scale = gamma / np.sqrt(var + eps)
        shift = beta - mean * scale
        out = out * scale[None, :, None, None] + shift[None, :, None, None]
        return np.maximum(out, 0.0)

    x = deconv_bn_relu_ref(x, params["up1_w"], params["up1_bn"])
    x = deconv_bn_relu_ref(x, params["up2_w"], params["up2_bn"])
    x = deconv_bn_relu_ref(x, params["up3_w"], params["up3_bn"])

    wo = np.asarray(params["out_w"], np.float32).reshape(n_joints, -1)
    bo = np.asarray(params["out_b"], np.float32)
    f = np.einsum("bchw,jc->bjhw", x, wo) + bo[None, :, None, None]

    B, J, Hf, Wf = f.shape
    OH, OW = w_img // 8, h_img // 8
    f = f.reshape(B, J, OH, Hf // OH, OW, Wf // OW).mean(axis=(3, 5))
    f = f.reshape(B, J, OH * OW)

    wx = np.asarray(params["xvec_w"], np.float32)
    wy = np.asarray(params["yvec_w"], np.float32)
    bx = np.asarray(params["xvec_b"], np.float32)
    by = np.asarray(params["yvec_b"], np.float32)
    return f @ wx.T + bx, f @ wy.T + by


# -----------------------------------------------------------------------------
# Deterministic synthetic parameters + example run.
# -----------------------------------------------------------------------------
if __name__ == "__main__":
    W_IMG = H_IMG = 64          # module's (w, h); image would be (B, 3, 64, 64)
    N_JOINTS = 16
    B = 2
    Hf4, Wf4 = H_IMG // 32, W_IMG // 32   # ResNet50 layer4 spatial size

    key = jax.random.PRNGKey(0)
    ks = jax.random.split(key, 16)

    def bn_params(k, c):
        k1, k2, k3, k4 = jax.random.split(k, 4)
        gamma = 1.0 + 0.05 * jax.random.normal(k1, (c,), jnp.float32)
        beta = 0.05 * jax.random.normal(k2, (c,), jnp.float32)
        mean = 0.01 * jax.random.normal(k3, (c,), jnp.float32)
        var = 1.0 + 0.1 * jax.random.uniform(k4, (c,), jnp.float32)
        return (gamma, beta, mean, var)

    in_feat = (W_IMG // 8) * (H_IMG // 8)
    params = dict(
        up1_w=0.02 * jax.random.normal(ks[0], (2048, 256, 4, 4), jnp.float32),
        up1_bn=bn_params(ks[1], 256),
        up2_w=0.02 * jax.random.normal(ks[2], (256, 256, 4, 4), jnp.float32),
        up2_bn=bn_params(ks[3], 256),
        up3_w=0.02 * jax.random.normal(ks[4], (256, 256, 4, 4), jnp.float32),
        up3_bn=bn_params(ks[5], 256),
        # outConv: std=0.001 weight; bias made (slightly) nonzero here to also
        # exercise the folded-bias path (module init would set it to 0).
        out_w=0.001 * jax.random.normal(ks[6], (N_JOINTS, 256, 1, 1), jnp.float32),
        out_b=0.01 * jax.random.normal(ks[12], (N_JOINTS,), jnp.float32),
        # nn.Linear weights stored in PyTorch layout (out_features, in_features)
        xvec_w=0.05 * jax.random.normal(ks[7], (W_IMG, in_feat), jnp.float32),
        xvec_b=0.01 * jax.random.normal(ks[8], (W_IMG,), jnp.float32),
        yvec_w=0.05 * jax.random.normal(ks[9], (H_IMG, in_feat), jnp.float32),
        yvec_b=0.01 * jax.random.normal(ks[10], (H_IMG,), jnp.float32),
    )

    f_layer4 = jax.random.normal(ks[11], (B, 2048, Hf4, Wf4), jnp.float32)

    # One-time parameter prep (outside the traced forward).
    prep = prepare_params(params, w_img=W_IMG, h_img=H_IMG, n_joints=N_JOINTS,
                          feat_hw=(Hf4 * 8, Wf4 * 8))

    fwd = jax.jit(functools.partial(simcc_forward, w_img=W_IMG, h_img=H_IMG))
    pred_x, pred_y = fwd(f_layer4, prep)
    jax.block_until_ready((pred_x, pred_y))

    assert pred_x.shape == (B, N_JOINTS, W_IMG), pred_x.shape
    assert pred_y.shape == (B, N_JOINTS, H_IMG), pred_y.shape
    assert bool(jnp.all(jnp.isfinite(pred_x))) and bool(jnp.all(jnp.isfinite(pred_y)))

    # Loose check vs. an f32 numpy reference (device path is bf16 -> only
    # structural errors would exceed this tolerance).
    ref_x, ref_y = reference_forward(f_layer4, params, w_img=W_IMG, h_img=H_IMG,
                                     n_joints=N_JOINTS)
    pred = np.concatenate([np.asarray(pred_x), np.asarray(pred_y)], axis=-1)
    ref = np.concatenate([ref_x, ref_y], axis=-1)
    err = float(np.max(np.abs(pred - ref)))
    denom = float(np.max(np.abs(ref)))
    assert err <= 0.08 * denom + 1e-3, (err, denom)

    print("KERNEL_OK")
</pallas_src>

<mosaic_0001>
module attributes {stable_mosaic.version = 11 : i64} {
  func.func @_bmm_kernel(%arg0: i32, %arg1: i32, %arg2: i32, %arg3: memref<1x8x8192xbf16, #tpu.memory_space<vmem>>, %arg4: memref<1x8192x256xbf16, #tpu.memory_space<vmem>>, %arg5: memref<1x256xf32, #tpu.memory_space<vmem>>, %arg6: memref<1x8x256xbf16, #tpu.memory_space<vmem>>) attributes {dimension_semantics = [#tpu.dimension_semantics<parallel>, #tpu.dimension_semantics<parallel>, #tpu.dimension_semantics<arbitrary>], iteration_bounds = array<i64: 4, 1, 1>, scalar_prefetch = 0 : i64, scratch_operands = 0 : i64, tpu.core_type = #tpu.core_type<tc>, window_params = [{transform_indices = @transform_0, window_bounds = array<i64: 1, 8, 8192>}, {transform_indices = @transform_1, window_bounds = array<i64: 1, 8192, 256>}, {pipeline_mode = #tpu.pipeline_mode<synchronous>, transform_indices = @transform_2, window_bounds = array<i64: 1, 256>}, {transform_indices = @transform_3, window_bounds = array<i64: 1, 8, 256>}]} {
    %c0 = arith.constant 0 : index
    %c0_0 = arith.constant 0 : index
    %c0_1 = arith.constant 0 : index
    %0 = vector.load %arg3[%c0, %c0_0, %c0_1] : memref<1x8x8192xbf16, #tpu.memory_space<vmem>>, vector<1x8x8192xbf16>
    %1 = vector.shape_cast %0 : vector<1x8x8192xbf16> to vector<8x8192xbf16>
    %c0_2 = arith.constant 0 : index
    %c0_3 = arith.constant 0 : index
    %c0_4 = arith.constant 0 : index
    %2 = vector.load %arg4[%c0_2, %c0_3, %c0_4] : memref<1x8192x256xbf16, #tpu.memory_space<vmem>>, vector<1x8192x256xbf16>
    %3 = vector.shape_cast %2 : vector<1x8192x256xbf16> to vector<8192x256xbf16>
    %cst = arith.constant dense<0.000000e+00> : vector<8x256xf32>
    %4 = tpu.matmul %1, %3, %cst {dimension_numbers = #tpu.dot_dimension_numbers<[1], [0], [0], [1], [0, 0, 1, 1], [], []>} : vector<8x8192xbf16>, vector<8192x256xbf16>, vector<8x256xf32> -> vector<8x256xf32>
    %c0_5 = arith.constant 0 : index
    %c0_6 = arith.constant 0 : index
    %5 = vector.load %arg5[%c0_5, %c0_6] : memref<1x256xf32, #tpu.memory_space<vmem>>, vector<1x256xf32>
    %6 = vector.broadcast %5 : vector<1x256xf32> to vector<8x256xf32>
    %7 = arith.addf %4, %6 : vector<8x256xf32>
    %cst_7 = arith.constant 0.000000e+00 : f32
    %8 = vector.broadcast %cst_7 : f32 to vector<8x256xf32>
    %9 = arith.maximumf %7, %8 : vector<8x256xf32>
    %10 = arith.truncf %9 : vector<8x256xf32> to vector<8x256xbf16>
    %c0_8 = arith.constant 0 : index
    %c0_9 = arith.constant 0 : index
    %c0_10 = arith.constant 0 : index
    %11 = vector.load %arg6[%c0_8, %c0_9, %c0_10] : memref<1x8x256xbf16, #tpu.memory_space<vmem>>, vector<1x8x256xbf16>
    %12 = vector.shape_cast %11 : vector<1x8x256xbf16> to vector<8x256xbf16>
    %13 = vector.shape_cast %10 : vector<8x256xbf16> to vector<1x8x256xbf16>
    tpu.vector_store %arg6[%c0_8, %c0_9, %c0_10], %13 {strides = array<i32>} : memref<1x8x256xbf16, #tpu.memory_space<vmem>>, vector<1x8x256xbf16>,
    return
  }
  func.func @transform_0(%arg0: i32, %arg1: i32, %arg2: i32) -> (i32, i32, i32) {
    %c0_i32 = arith.constant 0 : i32
    return %arg0, %arg1, %arg2 : i32, i32, i32
  }
  func.func @transform_1(%arg0: i32, %arg1: i32, %arg2: i32) -> (i32, i32, i32) {
    %c0_i32 = arith.constant 0 : i32
    %c0_i32_0 = arith.constant 0 : i32
    return %arg0, %arg2, %c0_i32 : i32, i32, i32
  }
  func.func @transform_2(%arg0: i32, %arg1: i32, %arg2: i32) -> (i32, i32) {
    %c0_i32 = arith.constant 0 : i32
    %c0_i32_0 = arith.constant 0 : i32
    %c0_i32_1 = arith.constant 0 : i32
    return %c0_i32, %c0_i32_0 : i32, i32
  }
  func.func @transform_3(%arg0: i32, %arg1: i32, %arg2: i32) -> (i32, i32, i32) {
    %c0_i32 = arith.constant 0 : i32
    %c0_i32_0 = arith.constant 0 : i32
    return %arg0, %arg1, %c0_i32 : i32, i32, i32
  }
}

module attributes {stable_mosaic.version = 11 : i64} {
  func.func @_bmm_kernel(%arg0: i32, %arg1: i32, %arg2: i32, %arg3: memref<1x32x1024xbf16, #tpu.memory_space<vmem>>, %arg4: memref<1x1024x256xbf16, #tpu.memory_space<vmem>>, %arg5: memref<1x256xf32, #tpu.memory_space<vmem>>, %arg6: memref<1x32x256xbf16, #tpu.memory_space<vmem>>) attributes {dimension_semantics = [#tpu.dimension_semantics<parallel>, #tpu.dimension_semantics<parallel>, #tpu.dimension_semantics<arbitrary>], iteration_bounds = array<i64: 4, 1, 1>, scalar_prefetch = 0 : i64, scratch_operands = 0 : i64, tpu.core_type = #tpu.core_type<tc>, window_params = [{transform_indices = @transform_0, window_bounds = array<i64: 1, 32, 1024>}, {transform_indices = @transform_1, window_bounds = array<i64: 1, 1024, 256>}, {pipeline_mode = #tpu.pipeline_mode<synchronous>, transform_indices = @transform_2, window_bounds = array<i64: 1, 256>}, {transform_indices = @transform_3, window_bounds = array<i64: 1, 32, 256>}]} {
    %c0 = arith.constant 0 : index
    %c0_0 = arith.constant 0 : index
    %c0_1 = arith.constant 0 : index
    %0 = vector.load %arg3[%c0, %c0_0, %c0_1] : memref<1x32x1024xbf16, #tpu.memory_space<vmem>>, vector<1x32x1024xbf16>
    %1 = vector.shape_cast %0 : vector<1x32x1024xbf16> to vector<32x1024xbf16>
    %c0_2 = arith.constant 0 : index
    %c0_3 = arith.constant 0 : index
    %c0_4 = arith.constant 0 : index
    %2 = vector.load %arg4[%c0_2, %c0_3, %c0_4] : memref<1x1024x256xbf16, #tpu.memory_space<vmem>>, vector<1x1024x256xbf16>
    %3 = vector.shape_cast %2 : vector<1x1024x256xbf16> to vector<1024x256xbf16>
    %cst = arith.constant dense<0.000000e+00> : vector<32x256xf32>
    %4 = tpu.matmul %1, %3, %cst {dimension_numbers = #tpu.dot_dimension_numbers<[1], [0], [0], [1], [0, 0, 1, 1], [], []>} : vector<32x1024xbf16>, vector<1024x256xbf16>, vector<32x256xf32> -> vector<32x256xf32>
    %c0_5 = arith.constant 0 : index
    %c0_6 = arith.constant 0 : index
    %5 = vector.load %arg5[%c0_5, %c0_6] : memref<1x256xf32, #tpu.memory_space<vmem>>, vector<1x256xf32>
    %6 = vector.broadcast %5 : vector<1x256xf32> to vector<32x256xf32>
    %7 = arith.addf %4, %6 : vector<32x256xf32>
    %cst_7 = arith.constant 0.000000e+00 : f32
    %8 = vector.broadcast %cst_7 : f32 to vector<32x256xf32>
    %9 = arith.maximumf %7, %8 : vector<32x256xf32>
    %10 = arith.truncf %9 : vector<32x256xf32> to vector<32x256xbf16>
    %c0_8 = arith.constant 0 : index
    %c0_9 = arith.constant 0 : index
    %c0_10 = arith.constant 0 : index
    %11 = vector.load %arg6[%c0_8, %c0_9, %c0_10] : memref<1x32x256xbf16, #tpu.memory_space<vmem>>, vector<1x32x256xbf16>
    %12 = vector.shape_cast %11 : vector<1x32x256xbf16> to vector<32x256xbf16>
    %13 = vector.shape_cast %10 : vector<32x256xbf16> to vector<1x32x256xbf16>
    tpu.vector_store %arg6[%c0_8, %c0_9, %c0_10], %13 {strides = array<i32>} : memref<1x32x256xbf16, #tpu.memory_space<vmem>>, vector<1x32x256xbf16>,
    return
  }
  func.func @transform_0(%arg0: i32, %arg1: i32, %arg2: i32) -> (i32, i32, i32) {
    %c0_i32 = arith.constant 0 : i32
    return %arg0, %arg1, %arg2 : i32, i32, i32
  }
  func.func @transform_1(%arg0: i32, %arg1: i32, %arg2: i32) -> (i32, i32, i32) {
    %c0_i32 = arith.constant 0 : i32
    %c0_i32_0 = arith.constant 0 : i32
    return %arg0, %arg2, %c0_i32 : i32, i32, i32
  }
  func.func @transform_2(%arg0: i32, %arg1: i32, %arg2: i32) -> (i32, i32) {
    %c0_i32 = arith.constant 0 : i32
    %c0_i32_0 = arith.constant 0 : i32
    %c0_i32_1 = arith.constant 0 : i32
    return %c0_i32, %c0_i32_0 : i32, i32
  }
  func.func @transform_3(%arg0: i32, %arg1: i32, %arg2: i32) -> (i32, i32, i32) {
    %c0_i32 = arith.constant 0 : i32
    %c0_i32_0 = arith.constant 0 : i32
    return %arg0, %arg1, %c0_i32 : i32, i32, i32
  }
}

module attributes {stable_mosaic.version = 11 : i64} {
  func.func @_bmm_kernel(%arg0: i32, %arg1: i32, %arg2: i32, %arg3: memref<1x128x1024xbf16, #tpu.memory_space<vmem>>, %arg4: memref<1x1024x256xbf16, #tpu.memory_space<vmem>>, %arg5: memref<1x256xf32, #tpu.memory_space<vmem>>, %arg6: memref<1x128x256xbf16, #tpu.memory_space<vmem>>) attributes {dimension_semantics = [#tpu.dimension_semantics<parallel>, #tpu.dimension_semantics<parallel>, #tpu.dimension_semantics<arbitrary>], iteration_bounds = array<i64: 4, 1, 1>, scalar_prefetch = 0 : i64, scratch_operands = 0 : i64, tpu.core_type = #tpu.core_type<tc>, window_params = [{transform_indices = @transform_0, window_bounds = array<i64: 1, 128, 1024>}, {transform_indices = @transform_1, window_bounds = array<i64: 1, 1024, 256>}, {pipeline_mode = #tpu.pipeline_mode<synchronous>, transform_indices = @transform_2, window_bounds = array<i64: 1, 256>}, {transform_indices = @transform_3, window_bounds = array<i64: 1, 128, 256>}]} {
    %c0 = arith.constant 0 : index
    %c0_0 = arith.constant 0 : index
    %c0_1 = arith.constant 0 : index
    %0 = vector.load %arg3[%c0, %c0_0, %c0_1] : memref<1x128x1024xbf16, #tpu.memory_space<vmem>>, vector<1x128x1024xbf16>
    %1 = vector.shape_cast %0 : vector<1x128x1024xbf16> to vector<128x1024xbf16>
    %c0_2 = arith.constant 0 : index
    %c0_3 = arith.constant 0 : index
    %c0_4 = arith.constant 0 : index
    %2 = vector.load %arg4[%c0_2, %c0_3, %c0_4] : memref<1x1024x256xbf16, #tpu.memory_space<vmem>>, vector<1x1024x256xbf16>
    %3 = vector.shape_cast %2 : vector<1x1024x256xbf16> to vector<1024x256xbf16>
    %cst = arith.constant dense<0.000000e+00> : vector<128x256xf32>
    %4 = tpu.matmul %1, %3, %cst {dimension_numbers = #tpu.dot_dimension_numbers<[1], [0], [0], [1], [0, 0, 1, 1], [], []>} : vector<128x1024xbf16>, vector<1024x256xbf16>, vector<128x256xf32> -> vector<128x256xf32>
    %c0_5 = arith.constant 0 : index
    %c0_6 = arith.constant 0 : index
    %5 = vector.load %arg5[%c0_5, %c0_6] : memref<1x256xf32, #tpu.memory_space<vmem>>, vector<1x256xf32>
    %6 = vector.broadcast %5 : vector<1x256xf32> to vector<128x256xf32>
    %7 = arith.addf %4, %6 : vector<128x256xf32>
    %cst_7 = arith.constant 0.000000e+00 : f32
    %8 = vector.broadcast %cst_7 : f32 to vector<128x256xf32>
    %9 = arith.maximumf %7, %8 : vector<128x256xf32>
    %10 = arith.truncf %9 : vector<128x256xf32> to vector<128x256xbf16>
    %c0_8 = arith.constant 0 : index
    %c0_9 = arith.constant 0 : index
    %c0_10 = arith.constant 0 : index
    %11 = vector.load %arg6[%c0_8, %c0_9, %c0_10] : memref<1x128x256xbf16, #tpu.memory_space<vmem>>, vector<1x128x256xbf16>
    %12 = vector.shape_cast %11 : vector<1x128x256xbf16> to vector<128x256xbf16>
    %13 = vector.shape_cast %10 : vector<128x256xbf16> to vector<1x128x256xbf16>
    tpu.vector_store %arg6[%c0_8, %c0_9, %c0_10], %13 {strides = array<i32>} : memref<1x128x256xbf16, #tpu.memory_space<vmem>>, vector<1x128x256xbf16>,
    return
  }
  func.func @transform_0(%arg0: i32, %arg1: i32, %arg2: i32) -> (i32, i32, i32) {
    %c0_i32 = arith.constant 0 : i32
    return %arg0, %arg1, %arg2 : i32, i32, i32
  }
  func.func @transform_1(%arg0: i32, %arg1: i32, %arg2: i32) -> (i32, i32, i32) {
    %c0_i32 = arith.constant 0 : i32
    %c0_i32_0 = arith.constant 0 : i32
    return %arg0, %arg2, %c0_i32 : i32, i32, i32
  }
  func.func @transform_2(%arg0: i32, %arg1: i32, %arg2: i32) -> (i32, i32) {
    %c0_i32 = arith.constant 0 : i32
    %c0_i32_0 = arith.constant 0 : i32
    %c0_i32_1 = arith.constant 0 : i32
    return %c0_i32, %c0_i32_0 : i32, i32
  }
  func.func @transform_3(%arg0: i32, %arg1: i32, %arg2: i32) -> (i32, i32, i32) {
    %c0_i32 = arith.constant 0 : i32
    %c0_i32_0 = arith.constant 0 : i32
    return %arg0, %arg1, %c0_i32 : i32, i32, i32
  }
}

module attributes {stable_mosaic.version = 11 : i64} {
  func.func @_bmm_kernel(%arg0: i32, %arg1: i32, %arg2: i32, %arg3: memref<16x256xbf16, #tpu.memory_space<vmem>>, %arg4: memref<1x256x256xbf16, #tpu.memory_space<vmem>>, %arg5: memref<1x16x256xbf16, #tpu.memory_space<vmem>>) attributes {dimension_semantics = [#tpu.dimension_semantics<parallel>, #tpu.dimension_semantics<parallel>, #tpu.dimension_semantics<arbitrary>], iteration_bounds = array<i64: 2, 1, 1>, scalar_prefetch = 0 : i64, scratch_operands = 0 : i64, tpu.core_type = #tpu.core_type<tc>, window_params = [{transform_indices = @transform_0, window_bounds = array<i64: 16, 256>}, {transform_indices = @transform_1, window_bounds = array<i64: 1, 256, 256>}, {transform_indices = @transform_2, window_bounds = array<i64: 1, 16, 256>}]} {
    %c0 = arith.constant 0 : index
    %c0_0 = arith.constant 0 : index
    %0 = vector.load %arg3[%c0, %c0_0] : memref<16x256xbf16, #tpu.memory_space<vmem>>, vector<16x256xbf16>
    %c0_1 = arith.constant 0 : index
    %c0_2 = arith.constant 0 : index
    %c0_3 = arith.constant 0 : index
    %1 = vector.load %arg4[%c0_1, %c0_2, %c0_3] : memref<1x256x256xbf16, #tpu.memory_space<vmem>>, vector<1x256x256xbf16>
    %2 = vector.shape_cast %1 : vector<1x256x256xbf16> to vector<256x256xbf16>
    %cst = arith.constant dense<0.000000e+00> : vector<16x256xf32>
    %3 = tpu.matmul %0, %2, %cst {dimension_numbers = #tpu.dot_dimension_numbers<[1], [0], [0], [1], [0, 0, 1, 1], [], []>} : vector<16x256xbf16>, vector<256x256xbf16>, vector<16x256xf32> -> vector<16x256xf32>
    %4 = arith.truncf %3 : vector<16x256xf32> to vector<16x256xbf16>
    %c0_4 = arith.constant 0 : index
    %c0_5 = arith.constant 0 : index
    %c0_6 = arith.constant 0 : index
    %5 = vector.load %arg5[%c0_4, %c0_5, %c0_6] : memref<1x16x256xbf16, #tpu.memory_space<vmem>>, vector<1x16x256xbf16>
    %6 = vector.shape_cast %5 : vector<1x16x256xbf16> to vector<16x256xbf16>
    %7 = vector.shape_cast %4 : vector<16x256xbf16> to vector<1x16x256xbf16>
    tpu.vector_store %arg5[%c0_4, %c0_5, %c0_6], %7 {strides = array<i32>} : memref<1x16x256xbf16, #tpu.memory_space<vmem>>, vector<1x16x256xbf16>,
    return
  }
  func.func @transform_0(%arg0: i32, %arg1: i32, %arg2: i32) -> (i32, i32) {
    %c0_i32 = arith.constant 0 : i32
    return %arg1, %arg2 : i32, i32
  }
  func.func @transform_1(%arg0: i32, %arg1: i32, %arg2: i32) -> (i32, i32, i32) {
    %c0_i32 = arith.constant 0 : i32
    %c0_i32_0 = arith.constant 0 : i32
    return %arg0, %arg2, %c0_i32 : i32, i32, i32
  }
  func.func @transform_2(%arg0: i32, %arg1: i32, %arg2: i32) -> (i32, i32, i32) {
    %c0_i32 = arith.constant 0 : i32
    %c0_i32_0 = arith.constant 0 : i32
    return %arg0, %arg1, %c0_i32 : i32, i32, i32
  }
}

module attributes {stable_mosaic.version = 11 : i64} {
  func.func @_bmm_kernel(%arg0: i32, %arg1: i32, %arg2: i32, %arg3: memref<1x16x256xbf16, #tpu.memory_space<vmem>>, %arg4: memref<256x128xbf16, #tpu.memory_space<vmem>>, %arg5: memref<16x128xf32, #tpu.memory_space<vmem>>, %arg6: memref<1x16x128xf32, #tpu.memory_space<vmem>>) attributes {dimension_semantics = [#tpu.dimension_semantics<parallel>, #tpu.dimension_semantics<parallel>, #tpu.dimension_semantics<arbitrary>], iteration_bounds = array<i64: 2, 1, 1>, scalar_prefetch = 0 : i64, scratch_operands = 0 : i64, tpu.core_type = #tpu.core_type<tc>, window_params = [{transform_indices = @transform_0, window_bounds = array<i64: 1, 16, 256>}, {transform_indices = @transform_1, window_bounds = array<i64: 256, 128>}, {transform_indices = @transform_2, window_bounds = array<i64: 16, 128>}, {transform_indices = @transform_3, window_bounds = array<i64: 1, 16, 128>}]} {
    %c0 = arith.constant 0 : index
    %c0_0 = arith.constant 0 : index
    %c0_1 = arith.constant 0 : index
    %0 = vector.load %arg3[%c0, %c0_0, %c0_1] : memref<1x16x256xbf16, #tpu.memory_space<vmem>>, vector<1x16x256xbf16>
    %1 = vector.shape_cast %0 : vector<1x16x256xbf16> to vector<16x256xbf16>
    %c0_2 = arith.constant 0 : index
    %c0_3 = arith.constant 0 : index
    %2 = vector.load %arg4[%c0_2, %c0_3] : memref<256x128xbf16, #tpu.memory_space<vmem>>, vector<256x128xbf16>
    %cst = arith.constant dense<0.000000e+00> : vector<16x128xf32>
    %3 = tpu.matmul %1, %2, %cst {dimension_numbers = #tpu.dot_dimension_numbers<[1], [0], [0], [1], [0, 0, 1, 1], [], []>} : vector<16x256xbf16>, vector<256x128xbf16>, vector<16x128xf32> -> vector<16x128xf32>
    %c0_4 = arith.constant 0 : index
    %c0_5 = arith.constant 0 : index
    %4 = vector.load %arg5[%c0_4, %c0_5] : memref<16x128xf32, #tpu.memory_space<vmem>>, vector<16x128xf32>
    %5 = arith.addf %3, %4 : vector<16x128xf32>
    %c0_6 = arith.constant 0 : index
    %c0_7 = arith.constant 0 : index
    %c0_8 = arith.constant 0 : index
    %6 = vector.load %arg6[%c0_6, %c0_7, %c0_8] : memref<1x16x128xf32, #tpu.memory_space<vmem>>, vector<1x16x128xf32>
    %7 = vector.shape_cast %6 : vector<1x16x128xf32> to vector<16x128xf32>
    %8 = vector.shape_cast %5 : vector<16x128xf32> to vector<1x16x128xf32>
    tpu.vector_store %arg6[%c0_6, %c0_7, %c0_8], %8 {strides = array<i32>} : memref<1x16x128xf32, #tpu.memory_space<vmem>>, vector<1x16x128xf32>,
    return
  }
  func.func @transform_0(%arg0: i32, %arg1: i32, %arg2: i32) -> (i32, i32, i32) {
    %c0_i32 = arith.constant 0 : i32
    return %arg0, %arg1, %arg2 : i32, i32, i32
  }
  func.func @transform_1(%arg0: i32, %arg1: i32, %arg2: i32) -> (i32, i32) {
    %c0_i32 = arith.constant 0 : i32
    %c0_i32_0 = arith.constant 0 : i32
    return %arg2, %c0_i32 : i32, i32
  }
  func.func @transform_2(%arg0: i32, %arg1: i32, %arg2: i32) -> (i32, i32) {
    %c0_i32 = arith.constant 0 : i32
    %c0_i32_0 = arith.constant 0 : i32
    return %arg1, %c0_i32 : i32, i32
  }
  func.func @transform_3(%arg0: i32, %arg1: i32, %arg2: i32) -> (i32, i32, i32) {
    %c0_i32 = arith.constant 0 : i32
    %c0_i32_0 = arith.constant 0 : i32
    return %arg0, %arg1, %c0_i32 : i32, i32, i32
  }
}

</mosaic_0001>

<llo_original>
// kernel: simcc_forward.6
$region0: #{simcc_forward.6}
  #allocation0 [shape = 'u32[]', space=smem, size = 0x4, offset = 0x4, fixed_abs, tag = 'smem constant byte address 0x4 - core index']
  #allocation1 [shape = 'u32[72,128]{1,0:T(1,128)}', space=vmem, size = 0x9000, scoped, tag = 'internal scratch']
  %s0 = inlined_call_operand.vmem [shape: bf16[4,32,1024], index: 0, kind: input, shape index: {}]
  %s1 = inlined_call_operand.vmem [shape: bf16[4,1024,256], index: 1, kind: input, shape index: {}]
  %s2 = inlined_call_operand.vmem [shape: f32[1,256], index: 2, kind: input, shape index: {}]
  %s3 = inlined_call_operand.vmem [shape: bf16[4,32,256], index: 3, kind: output, shape index: {}]
  %s4 = sld [smem:[#allocation0]]
  $region45: #{simcc_forward.6} parent=0
    _
  %s6 = ssub.s32 1, %s4
  %s7 = scalar_select 0, %s6, %s4
  loop: start=0, step=1, limit=6
  $region2: #{simcc_forward.6} parent=0 // loop_pre_header
    _
  $region3: #{simcc_forward.6} parent=0 // loop_header
    %s9 = sphi 0, %s13
    %p10 = scmp.ge.s32.totalorder %s9, 6
    %s16 = sphi 0, %s35
    %s17 = sphi 0, %s31
    %s18 = sphi 0, %s27
    %s19 = sphi 0, %s16
    %s20 = sphi 0, %s17
    %s21 = sphi 0, %s18
    %s22 = sphi 0, %s19
    %s23 = sphi 0, %s20
    %s24 = sphi 0, %s21
    %s42 = sphi 0, %s44
    %s45 = sphi 0, %s42
    %s46 = sphi 0, %s45
    %s62 = sphi 0, %s46
    %s70 = sphi 0, %s72
    %s73 = sphi 0, %s70
    %s74 = sphi 0, %s73
    %s90 = sphi 0, %s74
    %s94 = sphi 0, %s94
    %s96 = sphi 0, %s94
    %s97 = sphi 0, %s96
    %s111 = sphi 0, %s97
    %s119 = sphi 0, %s121
    %s122 = sphi 0, %s119
    %s123 = sphi 0, %s122
    %s139 = sphi 0, %s123
  $region4: #{simcc_forward.6} parent=0 // loop_header_branch
    %12 = sbr.rel (%p10) target = $region8
  $region5: #{simcc_forward.6} parent=0 // loop_body
    %s14 = ssub.s32 %s9, 1
    %s15 = ssub.s32 %s9, 2
    %s25 = sadd.s32 1, %s18
    %p26 = scmp.ge.s32.totalorder %s25, 1
    %s27 = scalar_select %p26, 0, %s25
    %s28 = sadd.s32 1, %s17
    %s29 = scalar_select %p26, %s28, %s17
    %p30 = scmp.ge.s32.totalorder %s29, 1
    %s31 = scalar_select %p30, 0, %s29
    %s32 = sadd.s32 1, %s16
    %s33 = scalar_select %p30, %s32, %s16
    %p34 = scmp.ge.s32.totalorder %s33, 4
    %s35 = scalar_select %p34, 0, %s33
    %s36 = ssub.s32 %s16, %s35
    %s37 = ssub.s32 %s17, %s31
    %s38 = sor.u32 %s36, %s37
    %s39 = ssub.s32 %s18, %s27
    %s40 = sor.u32 %s38, %s39
    %p41 = scmp.eq.s32.totalorder %s40, 0
    %s43 = sadd.s32 %s42, 1
    %s44 = scalar_select %p41, %s42, %s43
    %p47 = pneg %p41
    %p48 = scmp.eq.s32.totalorder %s9, 3
    %p49 = por %p47, %p48
    %p50 = scmp.ne.s32.totalorder %s42, %s45
    %p51 = scmp.eq.s32.totalorder %s9, 0
    %p52 = por %p50, %p51
    %p53 = scmp.ne.s32.totalorder %s42, %s45
    %p54 = scmp.eq.s32.totalorder %s14, 3
    %p55 = por %p53, %p54
    %p56 = scmp.ne.s32.totalorder %s45, %s46
    %p57 = scmp.eq.s32.totalorder %s14, 0
    %p58 = por %p56, %p57
    %p59 = scmp.ne.s32.totalorder %s45, %s46
    %p60 = scmp.eq.s32.totalorder %s15, 3
    %p61 = por %p59, %p60
    %p63 = scmp.ne.s32.totalorder %s46, %s62
    %p64 = scmp.eq.s32.totalorder %s15, 0
    %p65 = por %p63, %p64
    %s66 = ssub.s32 %s16, %s35
    %s67 = ssub.s32 %s18, %s27
    %s68 = sor.u32 %s66, %s67
    %p69 = scmp.eq.s32.totalorder %s68, 0
    %s71 = sadd.s32 %s70, 1
    %s72 = scalar_select %p69, %s70, %s71
    %p75 = pneg %p69
    %p76 = scmp.eq.s32.totalorder %s9, 3
    %p77 = por %p75, %p76
    %p78 = scmp.ne.s32.totalorder %s70, %s73
    %p79 = scmp.eq.s32.totalorder %s9, 0
    %p80 = por %p78, %p79
    %p81 = scmp.ne.s32.totalorder %s70, %s73
    %p82 = scmp.eq.s32.totalorder %s14, 3
    %p83 = por %p81, %p82
    %p84 = scmp.ne.s32.totalorder %s73, %s74
    %p85 = scmp.eq.s32.totalorder %s14, 0
    %p86 = por %p84, %p85
    %p87 = scmp.ne.s32.totalorder %s73, %s74
    %p88 = scmp.eq.s32.totalorder %s15, 3
    %p89 = por %p87, %p88
    %p91 = scmp.ne.s32.totalorder %s74, %s90
    %p92 = scmp.eq.s32.totalorder %s15, 0
    %p93 = por %p91, %p92
    %s95 = sadd.s32 %s94, 1
    %p98 = scmp.eq.s32.totalorder %s9, 3
    %p99 = scmp.ne.s32.totalorder %s94, %s96
    %p100 = scmp.eq.s32.totalorder %s9, 0
    %p101 = por %p99, %p100
    %p102 = scmp.ne.s32.totalorder %s94, %s96
    %p103 = scmp.eq.s32.totalorder %s14, 3
    %p104 = por %p102, %p103
    %p105 = scmp.ne.s32.totalorder %s96, %s97
    %p106 = scmp.eq.s32.totalorder %s14, 0
    %p107 = por %p105, %p106
    %p108 = scmp.ne.s32.totalorder %s96, %s97
    %p109 = scmp.eq.s32.totalorder %s15, 3
    %p110 = por %p108, %p109
    %p112 = scmp.ne.s32.totalorder %s97, %s111
    %p113 = scmp.eq.s32.totalorder %s15, 0
    %p114 = por %p112, %p113
    %s115 = ssub.s32 %s16, %s35
    %s116 = ssub.s32 %s17, %s31
    %s117 = sor.u32 %s115, %s116
    %p118 = scmp.eq.s32.totalorder %s117, 0
    %s120 = sadd.s32 %s119, 1
    %s121 = scalar_select %p118, %s119, %s120
    %p124 = pneg %p118
    %p125 = scmp.eq.s32.totalorder %s9, 3
    %p126 = por %p124, %p125
    %p127 = scmp.ne.s32.totalorder %s119, %s122
    %p128 = scmp.eq.s32.totalorder %s9, 0
    %p129 = por %p127, %p128
    %p130 = scmp.ne.s32.totalorder %s119, %s122
    %p131 = scmp.eq.s32.totalorder %s14, 3
    %p132 = por %p130, %p131
    %p133 = scmp.ne.s32.totalorder %s122, %s123
    %p134 = scmp.eq.s32.totalorder %s14, 0
    %p135 = por %p133, %p134
    %p136 = scmp.ne.s32.totalorder %s122, %s123
    %p137 = scmp.eq.s32.totalorder %s15, 3
    %p138 = por %p136, %p137
    %p140 = scmp.ne.s32.totalorder %s123, %s139
    %p141 = scmp.eq.s32.totalorder %s15, 0
    %p142 = por %p140, %p141
    %p143 = scmp.le.s32.totalorder 1, %s9
    %p144 = scmp.lt.s32.totalorder %s9, 5
    %p145 = pnand %p143, %p144
    %p146 = pneg %p145
    // Predicated region
    $region9: #{simcc_forward.6} parent=5 // pred_check
      _
    $region10: #{simcc_forward.6} parent=5 // pred_check_branch
      %148 = sbr.rel (%p145) target = $region12
    $region11: #{simcc_forward.6} parent=5 // pred_region
      %s149 = ssub.s32 %s9, 1
      // Predicated region
      $region13: #{simcc_forward.6} parent=11 // pred_check
        %p150 = pneg %p107
      $region14: #{simcc_forward.6} parent=11 // pred_check_branch
        %152 = sbr.rel (%p150) target = $region16
      $region15: #{simcc_forward.6} parent=11 // pred_region
        _
      $region16: #{simcc_forward.6} parent=11 // pred_fallthru
        _
    $region12: #{simcc_forward.6} parent=5 // pred_fallthru
      _
    %p153 = scmp.lt.s32.totalorder %s9, 4
    // Predicated region
    $region17: #{simcc_forward.6} parent=5 // pred_check
      %p154 = pneg %p153
    $region18: #{simcc_forward.6} parent=5 // pred_check_branch
      %156 = sbr.rel (%p154) target = $region20
    $region19: #{simcc_forward.6} parent=5 // pred_region
      // Predicated region
      $region21: #{simcc_forward.6} parent=19 // pred_check
        %p157 = pneg %p52
      $region22: #{simcc_forward.6} parent=19 // pred_check_branch
        %159 = sbr.rel (%p157) target = $region24
      $region23: #{simcc_forward.6} parent=19 // pred_region
        %s160 = smul.u32 4, %s17
        %s161 = smul.u32 8, %s18
        %p162 = scmp.lt.s32.totalorder %s16, 3
        %s163 = scalar_select %p162, %s16, 3
        %p164 = scmp.lt.s32.totalorder %s160, 3
        %s165 = scalar_select %p164, %s160, 3
        %p166 = scmp.lt.s32.totalorder %s161, 7
        %s167 = scalar_select %p166, %s161, 7
        %s168 = smul.addr %s165, 8
        %s169 = sadd.s32 %s167, %s168
        %s170 = smul.addr %s163, 32
        %s171 = sadd.s32 %s169, %s170
        %s172 = smul.addr %s171, 4
        %s173 = scalar_lea.vmem %s0, %s172
        %s174 = smul.u32 4, %s17
        %s175 = smul.u32 8, %s18
      $region24: #{simcc_forward.6} parent=19 // pred_fallthru
        _
      // Predicated region
      $region25: #{simcc_forward.6} parent=19 // pred_check
        %p176 = pneg %p80
      $region26: #{simcc_forward.6} parent=19 // pred_check_branch
        %178 = sbr.rel (%p176) target = $region28
      $region27: #{simcc_forward.6} parent=19 // pred_region
        %s179 = smul.u32 128, %s18
        %p180 = scmp.lt.s32.totalorder %s16, 3
        %s181 = scalar_select %p180, %s16, 3
        %p182 = scmp.lt.s32.totalorder %s179, 127
        %s183 = scalar_select %p182, %s179, 127
        %s184 = smul.addr %s183, 2
        %s185 = smul.addr %s181, 256
        %s186 = sadd.s32 %s184, %s185
        %s187 = smul.addr %s186, 4
        %s188 = scalar_lea.vmem %s1, %s187
        %s189 = smul.u32 128, %s18
      $region28: #{simcc_forward.6} parent=19 // pred_fallthru
        _
    $region20: #{simcc_forward.6} parent=5 // pred_fallthru
      _
    %p190 = scmp.le.s32.totalorder 1, %s9
    %p191 = scmp.lt.s32.totalorder %s9, 5
    %p192 = pnand %p190, %p191
    %p193 = pneg %p192
    // Predicated region
    $region29: #{simcc_forward.6} parent=5 // pred_check
      _
    $region30: #{simcc_forward.6} parent=5 // pred_check_branch
      %195 = sbr.rel (%p192) target = $region32
    $region31: #{simcc_forward.6} parent=5 // pred_region
      %s196 = ssub.s32 %s9, 1
      %s197 = smul.u32 4, %s20
      %s198 = smul.u32 8, %s21
      %p199 = scmp.lt.s32.totalorder %s19, 3
      %s200 = scalar_select %p199, %s19, 3
      %p201 = scmp.lt.s32.totalorder %s197, 3
      %s202 = scalar_select %p201, %s197, 3
      %p203 = scmp.lt.s32.totalorder %s198, 7
      %s204 = scalar_select %p203, %s198, 7
      %s205 = smul.addr %s202, 8
      %s206 = sadd.s32 %s204, %s205
      %s207 = smul.addr %s200, 32
      %s208 = sadd.s32 %s206, %s207
      %s209 = smul.addr %s208, 4
      %s210 = scalar_lea.vmem %s0, %s209
      %p211 = pneg %p58
      %p212 = pneg %p55
      %s213 = smul.u32 128, %s21
      %p214 = scmp.lt.s32.totalorder %s19, 3
      %s215 = scalar_select %p214, %s19, 3
      %p216 = scmp.lt.s32.totalorder %s213, 127
      %s217 = scalar_select %p216, %s213, 127
      %s218 = smul.addr %s217, 2
      %s219 = smul.addr %s215, 256
      %s220 = sadd.s32 %s218, %s219
      %s221 = smul.addr %s220, 4
      %s222 = scalar_lea.vmem %s1, %s221
      %p223 = pneg %p86
      %p224 = pneg %p83
      %p225 = pneg %p107
      %p226 = pneg %p104
      %p227 = pneg %p135
      %p228 = pneg %p132
      %s229 = smul.u32 4, %s20
      %p230 = scmp.lt.s32.totalorder %s19, 3
      %s231 = scalar_select %p230, %s19, 3
      %p232 = scmp.lt.s32.totalorder %s229, 3
      %s233 = scalar_select %p232, %s229, 3
      %s234 = smul.addr %s233, 2
      %s235 = smul.addr %s231, 8
      %s236 = sadd.s32 %s234, %s235
      %s237 = smul.addr %s236, 4
      %s238 = scalar_lea.vmem %s3, %s237
      %s239 = smul.u32 4, %s20
      %s240 = smul.u32 8, %s21
      %p241 = scmp.lt.s32.totalorder %s19, 3
      %s242 = scalar_select %p241, %s19, 3
      %p243 = scmp.lt.s32.totalorder %s239, 3
      %s244 = scalar_select %p243, %s239, 3
      %p245 = scmp.lt.s32.totalorder %s240, 7
      %s246 = scalar_select %p245, %s240, 7
      %s247 = smul.addr %s244, 8
      %s248 = sadd.s32 %s246, %s247
      %s249 = smul.addr %s242, 32
      %s250 = sadd.s32 %s248, %s249
      %s251 = smul.addr %s250, 4
      %s252 = scalar_lea.vmem %s0, %s251
      %s253 = smul.u32 4, %s20
      %s254 = smul.u32 8, %s21
      %s255 = smul.u32 128, %s21
      %p256 = scmp.lt.s32.totalorder %s19, 3
      %s257 = scalar_select %p256, %s19, 3
      %p258 = scmp.lt.s32.totalorder %s255, 127
      %s259 = scalar_select %p258, %s255, 127
      %s260 = smul.addr %s259, 2
      %s261 = smul.addr %s257, 256
      %s262 = sadd.s32 %s260, %s261
      %s263 = smul.addr %s262, 4
      %s264 = scalar_lea.vmem %s1, %s263
      %s265 = smul.u32 128, %s21
      %s266 = smul.u32 4, %s20
      %p267 = scmp.lt.s32.totalorder %s19, 3
      %s268 = scalar_select %p267, %s19, 3
      %p269 = scmp.lt.s32.totalorder %s266, 3
      %s270 = scalar_select %p269, %s266, 3
      %s271 = smul.addr %s270, 2
      %s272 = smul.addr %s268, 8
      %s273 = sadd.s32 %s271, %s272
      %s274 = smul.addr %s273, 4
      %s275 = scalar_lea.vmem %s3, %s274
      %s276 = smul.u32 4, %s20
      %v277 = vld [vmem:[%s252] sm:$0xff]
      %v278 = vld [vmem:[%s252 + $0x8] sm:$0xff]
      %v279 = vld [vmem:[%s252 + $0x10] sm:$0xff]
      %v280 = vld [vmem:[%s252 + $0x18] sm:$0xff]
      %v281 = vld [vmem:[%s252 + $0x20] sm:$0xff]
      %v282 = vld [vmem:[%s252 + $0x28] sm:$0xff]
      %v283 = vld [vmem:[%s252 + $0x30] sm:$0xff]
      %v284 = vld [vmem:[%s252 + $0x38] sm:$0xff]
      %v285 = vld [vmem:[%s252 + $0x40] sm:$0xff]
      %v286 = vld [vmem:[%s252 + $0x48] sm:$0xff]
      %v287 = vld [vmem:[%s252 + $0x50] sm:$0xff]
      %v288 = vld [vmem:[%s252 + $0x58] sm:$0xff]
      %v289 = vld [vmem:[%s252 + $0x60] sm:$0xff]
      %v290 = vld [vmem:[%s252 + $0x68] sm:$0xff]
      %v291 = vld [vmem:[%s252 + $0x70] sm:$0xff]
      %v292 = vld [vmem:[%s252 + $0x78] sm:$0xff]
      %v293 = vld [vmem:[%s264] sm:$0xff]
      %v294 = vld [vmem:[%s264 + $0x8] sm:$0xff]
      %v295 = vld [vmem:[%s264 + $0x10] sm:$0xff]
      %v296 = vld [vmem:[%s264 + $0x18] sm:$0xff]
      %v297 = vld [vmem:[%s264 + $0x20] sm:$0xff]
      %v298 = vld [vmem:[%s264 + $0x28] sm:$0xff]
      %v299 = vld [vmem:[%s264 + $0x30] sm:$0xff]
      %v300 = vld [vmem:[%s264 + $0x38] sm:$0xff]
      %v301 = vld [vmem:[%s264 + $0x40] sm:$0xff]
      %v302 = vld [vmem:[%s264 + $0x48] sm:$0xff]
      %v303 = vld [vmem:[%s264 + $0x50] sm:$0xff]
      %v304 = vld [vmem:[%s264 + $0x58] sm:$0xff]
      %v305 = vld [vmem:[%s264 + $0x60] sm:$0xff]
      %v306 = vld [vmem:[%s264 + $0x68] sm:$0xff]
      %v307 = vld [vmem:[%s264 + $0x70] sm:$0xff]
      %v308 = vld [vmem:[%s264 + $0x78] sm:$0xff]
      %v309 = vld [vmem:[%s264 + $0x80] sm:$0xff]
      %v310 = vld [vmem:[%s264 + $0x88] sm:$0xff]
      %v311 = vld [vmem:[%s264 + $0x90] sm:$0xff]
      %v312 = vld [vmem:[%s264 + $0x98] sm:$0xff]
      %v313 = vld [vmem:[%s264 + $0xa0] sm:$0xff]
      %v314 = vld [vmem:[%s264 + $0xa8] sm:$0xff]
      %v315 = vld [vmem:[%s264 + $0xb0] sm:$0xff]
      %v316 = vld [vmem:[%s264 + $0xb8] sm:$0xff]
      %v317 = vld [vmem:[%s264 + $0xc0] sm:$0xff]
      %v318 = vld [vmem:[%s264 + $0xc8] sm:$0xff]
      %v319 = vld [vmem:[%s264 + $0xd0] sm:$0xff]
      %v320 = vld [vmem:[%s264 + $0xd8] sm:$0xff]
      %v321 = vld [vmem:[%s264 + $0xe0] sm:$0xff]
      %v322 = vld [vmem:[%s264 + $0xe8] sm:$0xff]
      %v323 = vld [vmem:[%s264 + $0xf0] sm:$0xff]
      %v324 = vld [vmem:[%s264 + $0xf8] sm:$0xff]
      %v325 = vld [vmem:[%s264 + $0x100] sm:$0xff]
      %v326 = vld [vmem:[%s264 + $0x108] sm:$0xff]
      %v327 = vld [vmem:[%s264 + $0x110] sm:$0xff]
      %v328 = vld [vmem:[%s264 + $0x118] sm:$0xff]
      %v329 = vld [vmem:[%s264 + $0x120] sm:$0xff]
      %v330 = vld [vmem:[%s264 + $0x128] sm:$0xff]
      %v331 = vld [vmem:[%s264 + $0x130] sm:$0xff]
      %v332 = vld [vmem:[%s264 + $0x138] sm:$0xff]
      %v333 = vld [vmem:[%s264 + $0x140] sm:$0xff]
      %v334 = vld [vmem:[%s264 + $0x148] sm:$0xff]
      %v335 = vld [vmem:[%s264 + $0x150] sm:$0xff]
      %v336 = vld [vmem:[%s264 + $0x158] sm:$0xff]
      %v337 = vld [vmem:[%s264 + $0x160] sm:$0xff]
      %v338 = vld [vmem:[%s264 + $0x168] sm:$0xff]
      %v339 = vld [vmem:[%s264 + $0x170] sm:$0xff]
      %v340 = vld [vmem:[%s264 + $0x178] sm:$0xff]
      %v341 = vld [vmem:[%s264 + $0x180] sm:$0xff]
      %v342 = vld [vmem:[%s264 + $0x188] sm:$0xff]
      %v343 = vld [vmem:[%s264 + $0x190] sm:$0xff]
      %v344 = vld [vmem:[%s264 + $0x198] sm:$0xff]
      %v345 = vld [vmem:[%s264 + $0x1a0] sm:$0xff]
      %v346 = vld [vmem:[%s264 + $0x1a8] sm:$0xff]
      %v347 = vld [vmem:[%s264 + $0x1b0] sm:$0xff]
      %v348 = vld [vmem:[%s264 + $0x1b8] sm:$0xff]
      %v349 = vld [vmem:[%s264 + $0x1c0] sm:$0xff]
      %v350 = vld [vmem:[%s264 + $0x1c8] sm:$0xff]
      %v351 = vld [vmem:[%s264 + $0x1d0] sm:$0xff]
      %v352 = vld [vmem:[%s264 + $0x1d8] sm:$0xff]
      %v353 = vld [vmem:[%s264 + $0x1e0] sm:$0xff]
      %v354 = vld [vmem:[%s264 + $0x1e8] sm:$0xff]
      %v355 = vld [vmem:[%s264 + $0x1f0] sm:$0xff]
      %v356 = vld [vmem:[%s264 + $0x1f8] sm:$0xff]
      %v357 = vld [vmem:[%s264 + $0x200] sm:$0xff]
      %v358 = vld [vmem:[%s264 + $0x208] sm:$0xff]
      %v359 = vld [vmem:[%s264 + $0x210] sm:$0xff]
      %v360 = vld [vmem:[%s264 + $0x218] sm:$0xff]
      %v361 = vld [vmem:[%s264 + $0x220] sm:$0xff]
      %v362 = vld [vmem:[%s264 + $0x228] sm:$0xff]
      %v363 = vld [vmem:[%s264 + $0x230] sm:$0xff]
      %v364 = vld [vmem:[%s264 + $0x238] sm:$0xff]
      %v365 = vld [vmem:[%s264 + $0x240] sm:$0xff]
      %v366 = vld [vmem:[%s264 + $0x248] sm:$0xff]
      %v367 = vld [vmem:[%s264 + $0x250] sm:$0xff]
      %v368 = vld [vmem:[%s264 + $0x258] sm:$0xff]
      %v369 = vld [vmem:[%s264 + $0x260] sm:$0xff]
      %v370 = vld [vmem:[%s264 + $0x268] sm:$0xff]
      %v371 = vld [vmem:[%s264 + $0x270] sm:$0xff]
      %v372 = vld [vmem:[%s264 + $0x278] sm:$0xff]
      %v373 = vld [vmem:[%s264 + $0x280] sm:$0xff]
      %v374 = vld [vmem:[%s264 + $0x288] sm:$0xff]
      %v375 = vld [vmem:[%s264 + $0x290] sm:$0xff]
      %v376 = vld [vmem:[%s264 + $0x298] sm:$0xff]
      %v377 = vld [vmem:[%s264 + $0x2a0] sm:$0xff]
      %v378 = vld [vmem:[%s264 + $0x2a8] sm:$0xff]
      %v379 = vld [vmem:[%s264 + $0x2b0] sm:$0xff]
      %v380 = vld [vmem:[%s264 + $0x2b8] sm:$0xff]
      %v381 = vld [vmem:[%s264 + $0x2c0] sm:$0xff]
      %v382 = vld [vmem:[%s264 + $0x2c8] sm:$0xff]
      %v383 = vld [vmem:[%s264 + $0x2d0] sm:$0xff]
      %v384 = vld [vmem:[%s264 + $0x2d8] sm:$0xff]
      %v385 = vld [vmem:[%s264 + $0x2e0] sm:$0xff]
      %v386 = vld [vmem:[%s264 + $0x2e8] sm:$0xff]
      %v387 = vld [vmem:[%s264 + $0x2f0] sm:$0xff]
      %v388 = vld [vmem:[%s264 + $0x2f8] sm:$0xff]
      %v389 = vld [vmem:[%s264 + $0x300] sm:$0xff]
      %v390 = vld [vmem:[%s264 + $0x308] sm:$0xff]
      %v391 = vld [vmem:[%s264 + $0x310] sm:$0xff]
      %v392 = vld [vmem:[%s264 + $0x318] sm:$0xff]
      %v393 = vld [vmem:[%s264 + $0x320] sm:$0xff]
      %v394 = vld [vmem:[%s264 + $0x328] sm:$0xff]
      %v395 = vld [vmem:[%s264 + $0x330] sm:$0xff]
      %v396 = vld [vmem:[%s264 + $0x338] sm:$0xff]
      %v397 = vld [vmem:[%s264 + $0x340] sm:$0xff]
      %v398 = vld [vmem:[%s264 + $0x348] sm:$0xff]
      %v399 = vld [vmem:[%s264 + $0x350] sm:$0xff]
      %v400 = vld [vmem:[%s264 + $0x358] sm:$0xff]
      %v401 = vld [vmem:[%s264 + $0x360] sm:$0xff]
      %v402 = vld [vmem:[%s264 + $0x368] sm:$0xff]
      %v403 = vld [vmem:[%s264 + $0x370] sm:$0xff]
      %v404 = vld [vmem:[%s264 + $0x378] sm:$0xff]
      %v405 = vld [vmem:[%s264 + $0x380] sm:$0xff]
      %v406 = vld [vmem:[%s264 + $0x388] sm:$0xff]
      %v407 = vld [vmem:[%s264 + $0x390] sm:$0xff]
      %v408 = vld [vmem:[%s264 + $0x398] sm:$0xff]
      %v409 = vld [vmem:[%s264 + $0x3a0] sm:$0xff]
      %v410 = vld [vmem:[%s264 + $0x3a8] sm:$0xff]
      %v411 = vld [vmem:[%s264 + $0x3b0] sm:$0xff]
      %v412 = vld [vmem:[%s264 + $0x3b8] sm:$0xff]
      %v413 = vld [vmem:[%s264 + $0x3c0] sm:$0xff]
      %v414 = vld [vmem:[%s264 + $0x3c8] sm:$0xff]
      %v415 = vld [vmem:[%s264 + $0x3d0] sm:$0xff]
      %v416 = vld [vmem:[%s264 + $0x3d8] sm:$0xff]
      %v417 = vld [vmem:[%s264 + $0x3e0] sm:$0xff]
      %v418 = vld [vmem:[%s264 + $0x3e8] sm:$0xff]
      %v419 = vld [vmem:[%s264 + $0x3f0] sm:$0xff]
      %v420 = vld [vmem:[%s264 + $0x3f8] sm:$0xff]
      %v421 = vld [vmem:[%s2] sm:$0x3]
      %v423 = vperm.slane %v421, 0
      %v424 = vperm.slane %v421, 1
      %v443 = vunpack.c.l.b16 %v277
      %v444 = vunpack.c.h.b16 %v277
      %v445 = vunpack.c.l.b16 %v278
      %v446 = vunpack.c.h.b16 %v278
      %v447 = vunpack.c.l.b16 %v279
      %v448 = vunpack.c.h.b16 %v279
      %v449 = vunpack.c.l.b16 %v280
      %v450 = vunpack.c.h.b16 %v280
      %v451 = vunpack.c.l.b16 %v281
      %v452 = vunpack.c.h.b16 %v281
      %v453 = vunpack.c.l.b16 %v282
      %v454 = vunpack.c.h.b16 %v282
      %v455 = vunpack.c.l.b16 %v283
      %v456 = vunpack.c.h.b16 %v283
      %v457 = vunpack.c.l.b16 %v284
      %v458 = vunpack.c.h.b16 %v284
      %v459 = vunpack.c.l.b16 %v285
      %v460 = vunpack.c.h.b16 %v285
      %v461 = vunpack.c.l.b16 %v286
      %v462 = vunpack.c.h.b16 %v286
      %v463 = vunpack.c.l.b16 %v287
      %v464 = vunpack.c.h.b16 %v287
      %v465 = vunpack.c.l.b16 %v288
      %v466 = vunpack.c.h.b16 %v288
      %v467 = vunpack.c.l.b16 %v289
      %v468 = vunpack.c.h.b16 %v289
      %v469 = vunpack.c.l.b16 %v290
      %v470 = vunpack.c.h.b16 %v290
      %v471 = vunpack.c.l.b16 %v291
      %v472 = vunpack.c.h.b16 %v291
      %v473 = vunpack.c.l.b16 %v292
      %v474 = vunpack.c.h.b16 %v292
      %v475 = vpack.c.b16 %v451, %v443
      %v476 = vpack.c.b16 %v452, %v444
      %v477 = vpack.c.b16 %v453, %v445
      %v478 = vpack.c.b16 %v454, %v446
      %v479 = vpack.c.b16 %v455, %v447
      %v480 = vpack.c.b16 %v456, %v448
      %v481 = vpack.c.b16 %v457, %v449
      %v482 = vpack.c.b16 %v458, %v450
      %v483 = vpack.c.b16 %v467, %v459
      %v484 = vpack.c.b16 %v468, %v460
      %v485 = vpack.c.b16 %v469, %v461
      %v486 = vpack.c.b16 %v470, %v462
      %v487 = vpack.c.b16 %v471, %v463
      %v488 = vpack.c.b16 %v472, %v464
      %v489 = vpack.c.b16 %v473, %v465
      %v490 = vpack.c.b16 %v474, %v466
      %v635 = vunpack.c.l.b16 %v293
      %v636 = vunpack.c.h.b16 %v293
      %v637 = vunpack.c.l.b16 %v294
      %v638 = vunpack.c.h.b16 %v294
      %v639 = vunpack.c.l.b16 %v295
      %v640 = vunpack.c.h.b16 %v295
      %v641 = vunpack.c.l.b16 %v296
      %v642 = vunpack.c.h.b16 %v296
      %v643 = vunpack.c.l.b16 %v297
      %v644 = vunpack.c.h.b16 %v297
      %v645 = vunpack.c.l.b16 %v298
      %v646 = vunpack.c.h.b16 %v298
      %v647 = vunpack.c.l.b16 %v299
      %v648 = vunpack.c.h.b16 %v299
      %v649 = vunpack.c.l.b16 %v300
      %v650 = vunpack.c.h.b16 %v300
      %v651 = vunpack.c.l.b16 %v301
      %v652 = vunpack.c.h.b16 %v301
      %v653 = vunpack.c.l.b16 %v302
      %v654 = vunpack.c.h.b16 %v302
      %v655 = vunpack.c.l.b16 %v303
      %v656 = vunpack.c.h.b16 %v303
      %v657 = vunpack.c.l.b16 %v304
      %v658 = vunpack.c.h.b16 %v304
      %v659 = vunpack.c.l.b16 %v305
      %v660 = vunpack.c.h.b16 %v305
      %v661 = vunpack.c.l.b16 %v306
      %v662 = vunpack.c.h.b16 %v306
      %v663 = vunpack.c.l.b16 %v307
      %v664 = vunpack.c.h.b16 %v307
      %v665 = vunpack.c.l.b16 %v308
      %v666 = vunpack.c.h.b16 %v308
      %v667 = vunpack.c.l.b16 %v309
      %v668 = vunpack.c.h.b16 %v309
      %v669 = vunpack.c.l.b16 %v310
      %v670 = vunpack.c.h.b16 %v310
      %v671 = vunpack.c.l.b16 %v311
      %v672 = vunpack.c.h.b16 %v311
      %v673 = vunpack.c.l.b16 %v312
      %v674 = vunpack.c.h.b16 %v312
      %v675 = vunpack.c.l.b16 %v313
      %v676 = vunpack.c.h.b16 %v313
      %v677 = vunpack.c.l.b16 %v314
      %v678 = vunpack.c.h.b16 %v314
      %v679 = vunpack.c.l.b16 %v315
      %v680 = vunpack.c.h.b16 %v315
      %v681 = vunpack.c.l.b16 %v316
      %v682 = vunpack.c.h.b16 %v316
      %v683 = vunpack.c.l.b16 %v317
      %v684 = vunpack.c.h.b16 %v317
      %v685 = vunpack.c.l.b16 %v318
      %v686 = vunpack.c.h.b16 %v318
      %v687 = vunpack.c.l.b16 %v319
      %v688 = vunpack.c.h.b16 %v319
      %v689 = vunpack.c.l.b16 %v320
      %v690 = vunpack.c.h.b16 %v320
      %v691 = vunpack.c.l.b16 %v321
      %v692 = vunpack.c.h.b16 %v321
      %v693 = vunpack.c.l.b16 %v322
      %v694 = vunpack.c.h.b16 %v322
      %v695 = vunpack.c.l.b16 %v323
      %v696 = vunpack.c.h.b16 %v323
      %v697 = vunpack.c.l.b16 %v324
      %v698 = vunpack.c.h.b16 %v324
      %v699 = vunpack.c.l.b16 %v325
      %v700 = vunpack.c.h.b16 %v325
      %v701 = vunpack.c.l.b16 %v326
      %v702 = vunpack.c.h.b16 %v326
      %v703 = vunpack.c.l.b16 %v327
      %v704 = vunpack.c.h.b16 %v327
      %v705 = vunpack.c.l.b16 %v328
      %v706 = vunpack.c.h.b16 %v328
      %v707 = vunpack.c.l.b16 %v329
      %v708 = vunpack.c.h.b16 %v329
      %v709 = vunpack.c.l.b16 %v330
      %v710 = vunpack.c.h.b16 %v330
      %v711 = vunpack.c.l.b16 %v331
      %v712 = vunpack.c.h.b16 %v331
      %v713 = vunpack.c.l.b16 %v332
      %v714 = vunpack.c.h.b16 %v332
      %v715 = vunpack.c.l.b16 %v333
      %v716 = vunpack.c.h.b16 %v333
      %v717 = vunpack.c.l.b16 %v334
      %v718 = vunpack.c.h.b16 %v334
      %v719 = vunpack.c.l.b16 %v335
      %v720 = vunpack.c.h.b16 %v335
      %v721 = vunpack.c.l.b16 %v336
      %v722 = vunpack.c.h.b16 %v336
      %v723 = vunpack.c.l.b16 %v337
      %v724 = vunpack.c.h.b16 %v337
      %v725 = vunpack.c.l.b16 %v338
      %v726 = vunpack.c.h.b16 %v338
      %v727 = vunpack.c.l.b16 %v339
      %v728 = vunpack.c.h.b16 %v339
      %v729 = vunpack.c.l.b16 %v340
      %v730 = vunpack.c.h.b16 %v340
      %v731 = vunpack.c.l.b16 %v341
      %v732 = vunpack.c.h.b16 %v341
      %v733 = vunpack.c.l.b16 %v342
      %v734 = vunpack.c.h.b16 %v342
      %v735 = vunpack.c.l.b16 %v343
      %v736 = vunpack.c.h.b16 %v343
      %v737 = vunpack.c.l.b16 %v344
      %v738 = vunpack.c.h.b16 %v344
      %v739 = vunpack.c.l.b16 %v345
      %v740 = vunpack.c.h.b16 %v345
      %v741 = vunpack.c.l.b16 %v346
      %v742 = vunpack.c.h.b16 %v346
      %v743 = vunpack.c.l.b16 %v347
      %v744 = vunpack.c.h.b16 %v347
      %v745 = vunpack.c.l.b16 %v348
      %v746 = vunpack.c.h.b16 %v348
      %v747 = vunpack.c.l.b16 %v349
      %v748 = vunpack.c.h.b16 %v349
      %v749 = vunpack.c.l.b16 %v350
      %v750 = vunpack.c.h.b16 %v350
      %v751 = vunpack.c.l.b16 %v351
      %v752 = vunpack.c.h.b16 %v351
      %v753 = vunpack.c.l.b16 %v352
      %v754 = vunpack.c.h.b16 %v352
      %v755 = vunpack.c.l.b16 %v353
      %v756 = vunpack.c.h.b16 %v353
      %v757 = vunpack.c.l.b16 %v354
      %v758 = vunpack.c.h.b16 %v354
      %v759 = vunpack.c.l.b16 %v355
      %v760 = vunpack.c.h.b16 %v355
      %v761 = vunpack.c.l.b16 %v356
      %v762 = vunpack.c.h.b16 %v356
      %v763 = vunpack.c.l.b16 %v357
      %v764 = vunpack.c.h.b16 %v357
      %v765 = vunpack.c.l.b16 %v358
      %v766 = vunpack.c.h.b16 %v358
      %v767 = vunpack.c.l.b16 %v359
      %v768 = vunpack.c.h.b16 %v359
      %v769 = vunpack.c.l.b16 %v360
      %v770 = vunpack.c.h.b16 %v360
      %v771 = vunpack.c.l.b16 %v361
      %v772 = vunpack.c.h.b16 %v361
      %v773 = vunpack.c.l.b16 %v362
      %v774 = vunpack.c.h.b16 %v362
      %v775 = vunpack.c.l.b16 %v363
      %v776 = vunpack.c.h.b16 %v363
      %v777 = vunpack.c.l.b16 %v364
      %v778 = vunpack.c.h.b16 %v364
      %v779 = vunpack.c.l.b16 %v365
      %v780 = vunpack.c.h.b16 %v365
      %v781 = vunpack.c.l.b16 %v366
      %v782 = vunpack.c.h.b16 %v366
      %v783 = vunpack.c.l.b16 %v367
      %v784 = vunpack.c.h.b16 %v367
      %v785 = vunpack.c.l.b16 %v368
      %v786 = vunpack.c.h.b16 %v368
      %v787 = vunpack.c.l.b16 %v369
      %v788 = vunpack.c.h.b16 %v369
      %v789 = vunpack.c.l.b16 %v370
      %v790 = vunpack.c.h.b16 %v370
      %v791 = vunpack.c.l.b16 %v371
      %v792 = vunpack.c.h.b16 %v371
      %v793 = vunpack.c.l.b16 %v372
      %v794 = vunpack.c.h.b16 %v372
      %v795 = vunpack.c.l.b16 %v373
      %v796 = vunpack.c.h.b16 %v373
      %v797 = vunpack.c.l.b16 %v374
      %v798 = vunpack.c.h.b16 %v374
      %v799 = vunpack.c.l.b16 %v375
      %v800 = vunpack.c.h.b16 %v375
      %v801 = vunpack.c.l.b16 %v376
      %v802 = vunpack.c.h.b16 %v376
      %v803 = vunpack.c.l.b16 %v377
      %v804 = vunpack.c.h.b16 %v377
      %v805 = vunpack.c.l.b16 %v378
      %v806 = vunpack.c.h.b16 %v378
      %v807 = vunpack.c.l.b16 %v379
      %v808 = vunpack.c.h.b16 %v379
      %v809 = vunpack.c.l.b16 %v380
      %v810 = vunpack.c.h.b16 %v380
      %v811 = vunpack.c.l.b16 %v381
      %v812 = vunpack.c.h.b16 %v381
      %v813 = vunpack.c.l.b16 %v382
      %v814 = vunpack.c.h.b16 %v382
      %v815 = vunpack.c.l.b16 %v383
      %v816 = vunpack.c.h.b16 %v383
      %v817 = vunpack.c.l.b16 %v384
      %v818 = vunpack.c.h.b16 %v384
      %v819 = vunpack.c.l.b16 %v385
      %v820 = vunpack.c.h.b16 %v385
      %v821 = vunpack.c.l.b16 %v386
      %v822 = vunpack.c.h.b16 %v386
      %v823 = vunpack.c.l.b16 %v387
      %v824 = vunpack.c.h.b16 %v387
      %v825 = vunpack.c.l.b16 %v388
      %v826 = vunpack.c.h.b16 %v388
      %v827 = vunpack.c.l.b16 %v389
      %v828 = vunpack.c.h.b16 %v389
      %v829 = vunpack.c.l.b16 %v390
      %v830 = vunpack.c.h.b16 %v390
      %v831 = vunpack.c.l.b16 %v391
      %v832 = vunpack.c.h.b16 %v391
      %v833 = vunpack.c.l.b16 %v392
      %v834 = vunpack.c.h.b16 %v392
      %v835 = vunpack.c.l.b16 %v393
      %v836 = vunpack.c.h.b16 %v393
      %v837 = vunpack.c.l.b16 %v394
      %v838 = vunpack.c.h.b16 %v394
      %v839 = vunpack.c.l.b16 %v395
      %v840 = vunpack.c.h.b16 %v395
      %v841 = vunpack.c.l.b16 %v396
      %v842 = vunpack.c.h.b16 %v396
      %v843 = vunpack.c.l.b16 %v397
      %v844 = vunpack.c.h.b16 %v397
      %v845 = vunpack.c.l.b16 %v398
      %v846 = vunpack.c.h.b16 %v398
      %v847 = vunpack.c.l.b16 %v399
      %v848 = vunpack.c.h.b16 %v399
      %v849 = vunpack.c.l.b16 %v400
      %v850 = vunpack.c.h.b16 %v400
      %v851 = vunpack.c.l.b16 %v401
      %v852 = vunpack.c.h.b16 %v401
      %v853 = vunpack.c.l.b16 %v402
      %v854 = vunpack.c.h.b16 %v402
      %v855 = vunpack.c.l.b16 %v403
      %v856 = vunpack.c.h.b16 %v403
      %v857 = vunpack.c.l.b16 %v404
      %v858 = vunpack.c.h.b16 %v404
      %v859 = vunpack.c.l.b16 %v405
      %v860 = vunpack.c.h.b16 %v405
      %v861 = vunpack.c.l.b16 %v406
      %v862 = vunpack.c.h.b16 %v406
      %v863 = vunpack.c.l.b16 %v407
      %v864 = vunpack.c.h.b16 %v407
      %v865 = vunpack.c.l.b16 %v408
      %v866 = vunpack.c.h.b16 %v408
      %v867 = vunpack.c.l.b16 %v409
      %v868 = vunpack.c.h.b16 %v409
      %v869 = vunpack.c.l.b16 %v410
      %v870 = vunpack.c.h.b16 %v410
      %v871 = vunpack.c.l.b16 %v411
      %v872 = vunpack.c.h.b16 %v411
      %v873 = vunpack.c.l.b16 %v412
      %v874 = vunpack.c.h.b16 %v412
      %v875 = vunpack.c.l.b16 %v413
      %v876 = vunpack.c.h.b16 %v413
      %v877 = vunpack.c.l.b16 %v414
      %v878 = vunpack.c.h.b16 %v414
      %v879 = vunpack.c.l.b16 %v415
      %v880 = vunpack.c.h.b16 %v415
      %v881 = vunpack.c.l.b16 %v416
      %v882 = vunpack.c.h.b16 %v416
      %v883 = vunpack.c.l.b16 %v417
      %v884 = vunpack.c.h.b16 %v417
      %v885 = vunpack.c.l.b16 %v418
      %v886 = vunpack.c.h.b16 %v418
      %v887 = vunpack.c.l.b16 %v419
      %v888 = vunpack.c.h.b16 %v419
      %v889 = vunpack.c.l.b16 %v420
      %v890 = vunpack.c.h.b16 %v420
      %v891 = vpack.c.b16 %v637, %v635
      %v892 = vpack.c.b16 %v638, %v636
      %v893 = vpack.c.b16 %v641, %v639
      %v894 = vpack.c.b16 %v642, %v640
      %v895 = vpack.c.b16 %v645, %v643
      %v896 = vpack.c.b16 %v646, %v644
      %v897 = vpack.c.b16 %v649, %v647
      %v898 = vpack.c.b16 %v650, %v648
      %v899 = vpack.c.b16 %v653, %v651
      %v900 = vpack.c.b16 %v654, %v652
      %v901 = vpack.c.b16 %v657, %v655
      %v902 = vpack.c.b16 %v658, %v656
      %v903 = vpack.c.b16 %v661, %v659
      %v904 = vpack.c.b16 %v662, %v660
      %v905 = vpack.c.b16 %v665, %v663
      %v906 = vpack.c.b16 %v666, %v664
      %v907 = vpack.c.b16 %v669, %v667
      %v908 = vpack.c.b16 %v670, %v668
      %v909 = vpack.c.b16 %v673, %v671
      %v910 = vpack.c.b16 %v674, %v672
      %v911 = vpack.c.b16 %v677, %v675
      %v912 = vpack.c.b16 %v678, %v676
      %v913 = vpack.c.b16 %v681, %v679
      %v914 = vpack.c.b16 %v682, %v680
      %v915 = vpack.c.b16 %v685, %v683
      %v916 = vpack.c.b16 %v686, %v684
      %v917 = vpack.c.b16 %v689, %v687
      %v918 = vpack.c.b16 %v690, %v688
      %v919 = vpack.c.b16 %v693, %v691
      %v920 = vpack.c.b16 %v694, %v692
      %v921 = vpack.c.b16 %v697, %v695
      %v922 = vpack.c.b16 %v698, %v696
      %v923 = vpack.c.b16 %v701, %v699
      %v924 = vpack.c.b16 %v702, %v700
      %v925 = vpack.c.b16 %v705, %v703
      %v926 = vpack.c.b16 %v706, %v704
      %v927 = vpack.c.b16 %v709, %v707
      %v928 = vpack.c.b16 %v710, %v708
      %v929 = vpack.c.b16 %v713, %v711
      %v930 = vpack.c.b16 %v714, %v712
      %v931 = vpack.c.b16 %v717, %v715
      %v932 = vpack.c.b16 %v718, %v716
      %v933 = vpack.c.b16 %v721, %v719
      %v934 = vpack.c.b16 %v722, %v720
      %v935 = vpack.c.b16 %v725, %v723
      %v936 = vpack.c.b16 %v726, %v724
      %v937 = vpack.c.b16 %v729, %v727
      %v938 = vpack.c.b16 %v730, %v728
      %v939 = vpack.c.b16 %v733, %v731
      %v940 = vpack.c.b16 %v734, %v732
      %v941 = vpack.c.b16 %v737, %v735
      %v942 = vpack.c.b16 %v738, %v736
      %v943 = vpack.c.b16 %v741, %v739
      %v944 = vpack.c.b16 %v742, %v740
      %v945 = vpack.c.b16 %v745, %v743
      %v946 = vpack.c.b16 %v746, %v744
      %v947 = vpack.c.b16 %v749, %v747
      %v948 = vpack.c.b16 %v750, %v748
      %v949 = vpack.c.b16 %v753, %v751
      %v950 = vpack.c.b16 %v754, %v752
      %v951 = vpack.c.b16 %v757, %v755
      %v952 = vpack.c.b16 %v758, %v756
      %v953 = vpack.c.b16 %v761, %v759
      %v954 = vpack.c.b16 %v762, %v760
      %v955 = vpack.c.b16 %v765, %v763
      %v956 = vpack.c.b16 %v766, %v764
      %v957 = vpack.c.b16 %v769, %v767
      %v958 = vpack.c.b16 %v770, %v768
      %v959 = vpack.c.b16 %v773, %v771
      %v960 = vpack.c.b16 %v774, %v772
      %v961 = vpack.c.b16 %v777, %v775
      %v962 = vpack.c.b16 %v778, %v776
      %v963 = vpack.c.b16 %v781, %v779
      %v964 = vpack.c.b16 %v782, %v780
      %v965 = vpack.c.b16 %v785, %v783
      %v966 = vpack.c.b16 %v786, %v784
      %v967 = vpack.c.b16 %v789, %v787
      %v968 = vpack.c.b16 %v790, %v788
      %v969 = vpack.c.b16 %v793, %v791
      %v970 = vpack.c.b16 %v794, %v792
      %v971 = vpack.c.b16 %v797, %v795
      %v972 = vpack.c.b16 %v798, %v796
      %v973 = vpack.c.b16 %v801, %v799
      %v974 = vpack.c.b16 %v802, %v800
      %v975 = vpack.c.b16 %v805, %v803
      %v976 = vpack.c.b16 %v806, %v804
      %v977 = vpack.c.b16 %v809, %v807
      %v978 = vpack.c.b16 %v810, %v808
      %v979 = vpack.c.b16 %v813, %v811
      %v980 = vpack.c.b16 %v814, %v812
      %v981 = vpack.c.b16 %v817, %v815
      %v982 = vpack.c.b16 %v818, %v816
      %v983 = vpack.c.b16 %v821, %v819
      %v984 = vpack.c.b16 %v822, %v820
      %v985 = vpack.c.b16 %v825, %v823
      %v986 = vpack.c.b16 %v826, %v824
      %v987 = vpack.c.b16 %v829, %v827
      %v988 = vpack.c.b16 %v830, %v828
      %v989 = vpack.c.b16 %v833, %v831
      %v990 = vpack.c.b16 %v834, %v832
      %v991 = vpack.c.b16 %v837, %v835
      %v992 = vpack.c.b16 %v838, %v836
      %v993 = vpack.c.b16 %v841, %v839
      %v994 = vpack.c.b16 %v842, %v840
      %v995 = vpack.c.b16 %v845, %v843
      %v996 = vpack.c.b16 %v846, %v844
      %v997 = vpack.c.b16 %v849, %v847
      %v998 = vpack.c.b16 %v850, %v848
      %v999 = vpack.c.b16 %v853, %v851
      %v1000 = vpack.c.b16 %v854, %v852
      %v1001 = vpack.c.b16 %v857, %v855
      %v1002 = vpack.c.b16 %v858, %v856
      %v1003 = vpack.c.b16 %v861, %v859
      %v1004 = vpack.c.b16 %v862, %v860
      %v1005 = vpack.c.b16 %v865, %v863
      %v1006 = vpack.c.b16 %v866, %v864
      %v1007 = vpack.c.b16 %v869, %v867
      %v1008 = vpack.c.b16 %v870, %v868
      %v1009 = vpack.c.b16 %v873, %v871
      %v1010 = vpack.c.b16 %v874, %v872
      %v1011 = vpack.c.b16 %v877, %v875
      %v1012 = vpack.c.b16 %v878, %v876
      %v1013 = vpack.c.b16 %v881, %v879
      %v1014 = vpack.c.b16 %v882, %v880
      %v1015 = vpack.c.b16 %v885, %v883
      %v1016 = vpack.c.b16 %v886, %v884
      %v1017 = vpack.c.b16 %v889, %v887
      %v1018 = vpack.c.b16 %v890, %v888
      %1147 = vmatpush.bf16.msra.mxu0 %v905
      %1148 = vmatpush.bf16.msra.mxu0 %v903
      %1149 = vmatpush.bf16.msra.mxu0 %v901
      %1150 = vmatpush.bf16.msra.mxu0 %v899
      %1151 = vmatpush.bf16.msra.mxu0 %v897
      %1152 = vmatpush.bf16.msra.mxu0 %v895
      %1153 = vmatpush.bf16.msra.mxu0 %v893
      %1154 = vmatpush.bf16.msra.mxu0 %v891
      %1155 = vmatmul.bf16.gmra.mxu0 %v475
      %v1156 = vpop.f32.mrf.mxu0
      %v1157 = vadd.f32 %v423, %v1156
      %v1158 = vpop.f32.mrf.mxu0
      %v1159 = vadd.f32 %v423, %v1158
      %1160 = vmatmul.bf16.gmra.mxu0 %v483
      %v1161 = vpop.f32.mrf.mxu0
      %v1162 = vadd.f32 %v423, %v1161
      %v1163 = vpop.f32.mrf.mxu0
      %v1164 = vadd.f32 %v423, %v1163
      %1165 = vdwg.mxu0
      %1166 = vmatpush.bf16.msra.mxu0 %v921
      %1167 = vmatpush.bf16.msra.mxu0 %v919
      %1168 = vmatpush.bf16.msra.mxu0 %v917
      %1169 = vmatpush.bf16.msra.mxu0 %v915
      %1170 = vmatpush.bf16.msra.mxu0 %v913
      %1171 = vmatpush.bf16.msra.mxu0 %v911
      %1172 = vmatpush.bf16.msra.mxu0 %v909
      %1173 = vmatpush.bf16.msra.mxu0 %v907
      %1174 = vmatmul.bf16.gmra.mxu0 %v476
      %v1175 = vpop.f32.mrf.mxu0
      %v1176 = vadd.f32 %v1157, %v1175
      %v1177 = vpop.f32.mrf.mxu0
      %v1178 = vadd.f32 %v1159, %v1177
      %1179 = vmatmul.bf16.gmra.mxu0 %v484
      %v1180 = vpop.f32.mrf.mxu0
      %v1181 = vadd.f32 %v1162, %v1180
      %v1182 = vpop.f32.mrf.mxu0
      %v1183 = vadd.f32 %v1164, %v1182
      %1184 = vdwg.mxu0
      %1185 = vmatpush.bf16.msra.mxu0 %v937
      %1186 = vmatpush.bf16.msra.mxu0 %v935
      %1187 = vmatpush.bf16.msra.mxu0 %v933
      %1188 = vmatpush.bf16.msra.mxu0 %v931
      %1189 = vmatpush.bf16.msra.mxu0 %v929
      %1190 = vmatpush.bf16.msra.mxu0 %v927
      %1191 = vmatpush.bf16.msra.mxu0 %v925
      %1192 = vmatpush.bf16.msra.mxu0 %v923
      %1193 = vmatmul.bf16.gmra.mxu0 %v477
      %v1194 = vpop.f32.mrf.mxu0
      %v1195 = vadd.f32 %v1176, %v1194
      %v1196 = vpop.f32.mrf.mxu0
      %v1197 = vadd.f32 %v1178, %v1196
      %1198 = vmatmul.bf16.gmra.mxu0 %v485
      %v1199 = vpop.f32.mrf.mxu0
      %v1200 = vadd.f32 %v1181, %v1199
      %v1201 = vpop.f32.mrf.mxu0
      %v1202 = vadd.f32 %v1183, %v1201
      %1203 = vdwg.mxu0
      %1204 = vmatpush.bf16.msra.mxu0 %v953
      %1205 = vmatpush.bf16.msra.mxu0 %v951
      %1206 = vmatpush.bf16.msra.mxu0 %v949
      %1207 = vmatpush.bf16.msra.mxu0 %v947
      %1208 = vmatpush.bf16.msra.mxu0 %v945
      %1209 = vmatpush.bf16.msra.mxu0 %v943
      %1210 = vmatpush.bf16.msra.mxu0 %v941
      %1211 = vmatpush.bf16.msra.mxu0 %v939
      %1212 = vmatmul.bf16.gmra.mxu0 %v478
      %v1213 = vpop.f32.mrf.mxu0
      %v1214 = vadd.f32 %v1195, %v1213
      %v1215 = vpop.f32.mrf.mxu0
      %v1216 = vadd.f32 %v1197, %v1215
      %1217 = vmatmul.bf16.gmra.mxu0 %v486
      %v1218 = vpop.f32.mrf.mxu0
      %v1219 = vadd.f32 %v1200, %v1218
      %v1220 = vpop.f32.mrf.mxu0
      %v1221 = vadd.f32 %v1202, %v1220
      %1222 = vdwg.mxu0
      %1223 = vmatpush.bf16.msra.mxu0 %v969
      %1224 = vmatpush.bf16.msra.mxu0 %v967
      %1225 = vmatpush.bf16.msra.mxu0 %v965
      %1226 = vmatpush.bf16.msra.mxu0 %v963
      %1227 = vmatpush.bf16.msra.mxu0 %v961
      %1228 = vmatpush.bf16.msra.mxu0 %v959
      %1229 = vmatpush.bf16.msra.mxu0 %v957
      %1230 = vmatpush.bf16.msra.mxu0 %v955
      %1231 = vmatmul.bf16.gmra.mxu0 %v479
      %v1232 = vpop.f32.mrf.mxu0
      %v1233 = vadd.f32 %v1214, %v1232
      %v1234 = vpop.f32.mrf.mxu0
      %v1235 = vadd.f32 %v1216, %v1234
      %1236 = vmatmul.bf16.gmra.mxu0 %v487
      %v1237 = vpop.f32.mrf.mxu0
      %v1238 = vadd.f32 %v1219, %v1237
      %v1239 = vpop.f32.mrf.mxu0
      %v1240 = vadd.f32 %v1221, %v1239
      %1241 = vdwg.mxu0
      %1242 = vmatpush.bf16.msra.mxu0 %v985
      %1243 = vmatpush.bf16.msra.mxu0 %v983
      %1244 = vmatpush.bf16.msra.mxu0 %v981
      %1245 = vmatpush.bf16.msra.mxu0 %v979
      %1246 = vmatpush.bf16.msra.mxu0 %v977
      %1247 = vmatpush.bf16.msra.mxu0 %v975
      %1248 = vmatpush.bf16.msra.mxu0 %v973
      %1249 = vmatpush.bf16.msra.mxu0 %v971
      %1250 = vmatmul.bf16.gmra.mxu0 %v480
      %v1251 = vpop.f32.mrf.mxu0
      %v1252 = vadd.f32 %v1233, %v1251
      %v1253 = vpop.f32.mrf.mxu0
      %v1254 = vadd.f32 %v1235, %v1253
      %1255 = vmatmul.bf16.gmra.mxu0 %v488
      %v1256 = vpop.f32.mrf.mxu0
      %v1257 = vadd.f32 %v1238, %v1256
      %v1258 = vpop.f32.mrf.mxu0
      %v1259 = vadd.f32 %v1240, %v1258
      %1260 = vdwg.mxu0
      %1261 = vmatpush.bf16.msra.mxu0 %v1001
      %1262 = vmatpush.bf16.msra.mxu0 %v999
      %1263 = vmatpush.bf16.msra.mxu0 %v997
      %1264 = vmatpush.bf16.msra.mxu0 %v995
      %1265 = vmatpush.bf16.msra.mxu0 %v993
      %1266 = vmatpush.bf16.msra.mxu0 %v991
      %1267 = vmatpush.bf16.msra.mxu0 %v989
      %1268 = vmatpush.bf16.msra.mxu0 %v987
      %1269 = vmatmul.bf16.gmra.mxu0 %v481
      %v1270 = vpop.f32.mrf.mxu0
      %v1271 = vadd.f32 %v1252, %v1270
      %v1272 = vpop.f32.mrf.mxu0
      %v1273 = vadd.f32 %v1254, %v1272
      %1274 = vmatmul.bf16.gmra.mxu0 %v489
      %v1275 = vpop.f32.mrf.mxu0
      %v1276 = vadd.f32 %v1257, %v1275
      %v1277 = vpop.f32.mrf.mxu0
      %v1278 = vadd.f32 %v1259, %v1277
      %1279 = vdwg.mxu0
      %1280 = vmatpush.bf16.msra.mxu0 %v1017
      %1281 = vmatpush.bf16.msra.mxu0 %v1015
      %1282 = vmatpush.bf16.msra.mxu0 %v1013
      %1283 = vmatpush.bf16.msra.mxu0 %v1011
      %1284 = vmatpush.bf16.msra.mxu0 %v1009
      %1285 = vmatpush.bf16.msra.mxu0 %v1007
      %1286 = vmatpush.bf16.msra.mxu0 %v1005
      %1287 = vmatpush.bf16.msra.mxu0 %v1003
      %1288 = vmatmul.bf16.gmra.mxu0 %v482
      %v1289 = vpop.f32.mrf.mxu0
      %v1290 = vadd.f32 %v1271, %v1289
      %v1291 = vpop.f32.mrf.mxu0
      %v1292 = vadd.f32 %v1273, %v1291
      %1293 = vmatmul.bf16.gmra.mxu0 %v490
      %v1294 = vpop.f32.mrf.mxu0
      %v1295 = vadd.f32 %v1276, %v1294
      %v1296 = vpop.f32.mrf.mxu0
      %v1297 = vadd.f32 %v1278, %v1296
      %1298 = vdwg.mxu0
      %1299 = vmatpush.bf16.msra.mxu0 %v906
      %1300 = vmatpush.bf16.msra.mxu0 %v904
      %1301 = vmatpush.bf16.msra.mxu0 %v902
      %1302 = vmatpush.bf16.msra.mxu0 %v900
      %1303 = vmatpush.bf16.msra.mxu0 %v898
      %1304 = vmatpush.bf16.msra.mxu0 %v896
      %1305 = vmatpush.bf16.msra.mxu0 %v894
      %1306 = vmatpush.bf16.msra.mxu0 %v892
      %1307 = vmatmul.bf16.gmra.mxu0 %v475
      %v1308 = vpop.f32.mrf.mxu0
      %v1309 = vadd.f32 %v424, %v1308
      %v1310 = vpop.f32.mrf.mxu0
      %v1311 = vadd.f32 %v424, %v1310
      %1312 = vmatmul.bf16.gmra.mxu0 %v483
      %v1313 = vpop.f32.mrf.mxu0
      %v1314 = vadd.f32 %v424, %v1313
      %v1315 = vpop.f32.mrf.mxu0
      %v1316 = vadd.f32 %v424, %v1315
      %1317 = vdwg.mxu0
      %1318 = vmatpush.bf16.msra.mxu0 %v922
      %1319 = vmatpush.bf16.msra.mxu0 %v920
      %1320 = vmatpush.bf16.msra.mxu0 %v918
      %1321 = vmatpush.bf16.msra.mxu0 %v916
      %1322 = vmatpush.bf16.msra.mxu0 %v914
      %1323 = vmatpush.bf16.msra.mxu0 %v912
      %1324 = vmatpush.bf16.msra.mxu0 %v910
      %1325 = vmatpush.bf16.msra.mxu0 %v908
      %1326 = vmatmul.bf16.gmra.mxu0 %v476
      %v1327 = vpop.f32.mrf.mxu0
      %v1328 = vadd.f32 %v1309, %v1327
      %v1329 = vpop.f32.mrf.mxu0
      %v1330 = vadd.f32 %v1311, %v1329
      %1331 = vmatmul.bf16.gmra.mxu0 %v484
      %v1332 = vpop.f32.mrf.mxu0
      %v1333 = vadd.f32 %v1314, %v1332
      %v1334 = vpop.f32.mrf.mxu0
      %v1335 = vadd.f32 %v1316, %v1334
      %1336 = vdwg.mxu0
      %1337 = vmatpush.bf16.msra.mxu0 %v938
      %1338 = vmatpush.bf16.msra.mxu0 %v936
      %1339 = vmatpush.bf16.msra.mxu0 %v934
      %1340 = vmatpush.bf16.msra.mxu0 %v932
      %1341 = vmatpush.bf16.msra.mxu0 %v930
      %1342 = vmatpush.bf16.msra.mxu0 %v928
      %1343 = vmatpush.bf16.msra.mxu0 %v926
      %1344 = vmatpush.bf16.msra.mxu0 %v924
      %1345 = vmatmul.bf16.gmra.mxu0 %v477
      %v1346 = vpop.f32.mrf.mxu0
      %v1347 = vadd.f32 %v1328, %v1346
      %v1348 = vpop.f32.mrf.mxu0
      %v1349 = vadd.f32 %v1330, %v1348
      %1350 = vmatmul.bf16.gmra.mxu0 %v485
      %v1351 = vpop.f32.mrf.mxu0
      %v1352 = vadd.f32 %v1333, %v1351
      %v1353 = vpop.f32.mrf.mxu0
      %v1354 = vadd.f32 %v1335, %v1353
      %1355 = vdwg.mxu0
      %1356 = vmatpush.bf16.msra.mxu0 %v954
      %1357 = vmatpush.bf16.msra.mxu0 %v952
      %1358 = vmatpush.bf16.msra.mxu0 %v950
      %1359 = vmatpush.bf16.msra.mxu0 %v948
      %1360 = vmatpush.bf16.msra.mxu0 %v946
      %1361 = vmatpush.bf16.msra.mxu0 %v944
      %1362 = vmatpush.bf16.msra.mxu0 %v942
      %1363 = vmatpush.bf16.msra.mxu0 %v940
      %1364 = vmatmul.bf16.gmra.mxu0 %v478
      %v1365 = vpop.f32.mrf.mxu0
      %v1366 = vadd.f32 %v1347, %v1365
      %v1367 = vpop.f32.mrf.mxu0
      %v1368 = vadd.f32 %v1349, %v1367
      %1369 = vmatmul.bf16.gmra.mxu0 %v486
      %v1370 = vpop.f32.mrf.mxu0
      %v1371 = vadd.f32 %v1352, %v1370
      %v1372 = vpop.f32.mrf.mxu0
      %v1373 = vadd.f32 %v1354, %v1372
      %1374 = vdwg.mxu0
      %1375 = vmatpush.bf16.msra.mxu0 %v970
      %1376 = vmatpush.bf16.msra.mxu0 %v968
      %1377 = vmatpush.bf16.msra.mxu0 %v966
      %1378 = vmatpush.bf16.msra.mxu0 %v964
      %1379 = vmatpush.bf16.msra.mxu0 %v962
      %1380 = vmatpush.bf16.msra.mxu0 %v960
      %1381 = vmatpush.bf16.msra.mxu0 %v958
      %1382 = vmatpush.bf16.msra.mxu0 %v956
      %1383 = vmatmul.bf16.gmra.mxu0 %v479
      %v1384 = vpop.f32.mrf.mxu0
      %v1385 = vadd.f32 %v1366, %v1384
      %v1386 = vpop.f32.mrf.mxu0
      %v1387 = vadd.f32 %v1368, %v1386
      %1388 = vmatmul.bf16.gmra.mxu0 %v487
      %v1389 = vpop.f32.mrf.mxu0
      %v1390 = vadd.f32 %v1371, %v1389
      %v1391 = vpop.f32.mrf.mxu0
      %v1392 = vadd.f32 %v1373, %v1391
      %1393 = vdwg.mxu0
      %1394 = vmatpush.bf16.msra.mxu0 %v986
      %1395 = vmatpush.bf16.msra.mxu0 %v984
      %1396 = vmatpush.bf16.msra.mxu0 %v982
      %1397 = vmatpush.bf16.msra.mxu0 %v980
      %1398 = vmatpush.bf16.msra.mxu0 %v978
      %1399 = vmatpush.bf16.msra.mxu0 %v976
      %1400 = vmatpush.bf16.msra.mxu0 %v974
      %1401 = vmatpush.bf16.msra.mxu0 %v972
      %1402 = vmatmul.bf16.gmra.mxu0 %v480
      %v1403 = vpop.f32.mrf.mxu0
      %v1404 = vadd.f32 %v1385, %v1403
      %v1405 = vpop.f32.mrf.mxu0
      %v1406 = vadd.f32 %v1387, %v1405
      %1407 = vmatmul.bf16.gmra.mxu0 %v488
      %v1408 = vpop.f32.mrf.mxu0
      %v1409 = vadd.f32 %v1390, %v1408
      %v1410 = vpop.f32.mrf.mxu0
      %v1411 = vadd.f32 %v1392, %v1410
      %1412 = vdwg.mxu0
      %1413 = vmatpush.bf16.msra.mxu0 %v1002
      %1414 = vmatpush.bf16.msra.mxu0 %v1000
      %1415 = vmatpush.bf16.msra.mxu0 %v998
      %1416 = vmatpush.bf16.msra.mxu0 %v996
      %1417 = vmatpush.bf16.msra.mxu0 %v994
      %1418 = vmatpush.bf16.msra.mxu0 %v992
      %1419 = vmatpush.bf16.msra.mxu0 %v990
      %1420 = vmatpush.bf16.msra.mxu0 %v988
      %1421 = vmatmul.bf16.gmra.mxu0 %v481
      %v1422 = vpop.f32.mrf.mxu0
      %v1423 = vadd.f32 %v1404, %v1422
      %v1424 = vpop.f32.mrf.mxu0
      %v1425 = vadd.f32 %v1406, %v1424
      %1426 = vmatmul.bf16.gmra.mxu0 %v489
      %v1427 = vpop.f32.mrf.mxu0
      %v1428 = vadd.f32 %v1409, %v1427
      %v1429 = vpop.f32.mrf.mxu0
      %v1430 = vadd.f32 %v1411, %v1429
      %1431 = vdwg.mxu0
      %1432 = vmatpush.bf16.msra.mxu0 %v1018
      %1433 = vmatpush.bf16.msra.mxu0 %v1016
      %1434 = vmatpush.bf16.msra.mxu0 %v1014
      %1435 = vmatpush.bf16.msra.mxu0 %v1012
      %1436 = vmatpush.bf16.msra.mxu0 %v1010
      %1437 = vmatpush.bf16.msra.mxu0 %v1008
      %1438 = vmatpush.bf16.msra.mxu0 %v1006
      %1439 = vmatpush.bf16.msra.mxu0 %v1004
      %1440 = vmatmul.bf16.gmra.mxu0 %v482
      %v1441 = vpop.f32.mrf.mxu0
      %v1442 = vadd.f32 %v1423, %v1441
      %v1443 = vpop.f32.mrf.mxu0
      %v1444 = vadd.f32 %v1425, %v1443
      %1445 = vmatmul.bf16.gmra.mxu0 %v490
      %v1446 = vpop.f32.mrf.mxu0
      %v1447 = vadd.f32 %v1428, %v1446
      %v1448 = vpop.f32.mrf.mxu0
      %v1449 = vadd.f32 %v1430, %v1448
      %1450 = vdwg.mxu0
      %v1451 = vmax.f32 %v1290, 0.0
      %v1452 = vmax.f32 %v1442, 0.0
      %v1453 = vmax.f32 %v1292, 0.0
      %v1454 = vmax.f32 %v1444, 0.0
      %v1455 = vmax.f32 %v1295, 0.0
      %v1456 = vmax.f32 %v1447, 0.0
      %v1457 = vmax.f32 %v1297, 0.0
      %v1458 = vmax.f32 %v1449, 0.0
      %v1459 = vpack.c.bf16 %v1452, %v1451
      %v1460 = vpack.c.bf16 %v1454, %v1453
      %v1461 = vpack.c.bf16 %v1456, %v1455
      %v1462 = vpack.c.bf16 %v1458, %v1457
      %1463 = vst [vmem:[%s275] sm:$0xff] %v1459
      %1464 = vst [vmem:[%s275 + $0x8] sm:$0xff] %v1460
      %1465 = vst [vmem:[%s275 + $0x10] sm:$0xff] %v1461
      %1466 = vst [vmem:[%s275 + $0x18] sm:$0xff] %v1462
      %s1467 = smul.u32 4, %s20
      %p1468 = scmp.lt.s32.totalorder %s19, 3
      %s1469 = scalar_select %p1468, %s19, 3
      %p1470 = scmp.lt.s32.totalorder %s1467, 3
      %s1471 = scalar_select %p1470, %s1467, 3
      %s1472 = smul.addr %s1471, 2
      %s1473 = smul.addr %s1469, 8
      %s1474 = sadd.s32 %s1472, %s1473
      %s1475 = smul.addr %s1474, 4
      %s1476 = scalar_lea.vmem %s3, %s1475
      // Predicated region
      $region33: #{simcc_forward.6} parent=31 // pred_check
        %p1477 = pneg %p132
      $region34: #{simcc_forward.6} parent=31 // pred_check_branch
        %1479 = sbr.rel (%p1477) target = $region36
      $region35: #{simcc_forward.6} parent=31 // pred_region
        %s1480 = smul.u32 4, %s20
      $region36: #{simcc_forward.6} parent=31 // pred_fallthru
        _
    $region32: #{simcc_forward.6} parent=5 // pred_fallthru
      _
    %p1481 = scmp.le.s32.totalorder 2, %s9
    // Predicated region
    $region37: #{simcc_forward.6} parent=5 // pred_check
      %p1482 = pneg %p1481
    $region38: #{simcc_forward.6} parent=5 // pred_check_branch
      %1484 = sbr.rel (%p1482) target = $region40
    $region39: #{simcc_forward.6} parent=5 // pred_region
      %s1485 = ssub.s32 %s9, 2
      // Predicated region
      $region41: #{simcc_forward.6} parent=39 // pred_check
        %p1486 = pneg %p138
      $region42: #{simcc_forward.6} parent=39 // pred_check_branch
        %1488 = sbr.rel (%p1486) target = $region44
      $region43: #{simcc_forward.6} parent=39 // pred_region
        %s1489 = smul.u32 4, %s23
        %p1490 = scmp.lt.s32.totalorder %s22, 3
        %s1491 = scalar_select %p1490, %s22, 3
        %p1492 = scmp.lt.s32.totalorder %s1489, 3
        %s1493 = scalar_select %p1492, %s1489, 3
        %s1494 = smul.addr %s1493, 2
        %s1495 = smul.addr %s1491, 8
        %s1496 = sadd.s32 %s1494, %s1495
        %s1497 = smul.addr %s1496, 4
        %s1498 = scalar_lea.vmem %s3, %s1497
      $region44: #{simcc_forward.6} parent=39 // pred_fallthru
        _
    $region40: #{simcc_forward.6} parent=5 // pred_fallthru
      _
  $region6: #{simcc_forward.6} parent=0 // loop_footer
    %s13 = sadd.s32 1, %s9
  $region7: #{simcc_forward.6} parent=0 // loop_footer_branch
    %8 = sbr.rel target = $region3
  $region8: #{simcc_forward.6} parent=0 // loop_exit
    _

// kernel: simcc_forward.5
$region0: #{simcc_forward.5}
  #allocation0 [shape = 'u32[]', space=smem, size = 0x4, offset = 0x4, fixed_abs, tag = 'smem constant byte address 0x4 - core index']
  #allocation1 [shape = 'u32[72,128]{1,0:T(1,128)}', space=vmem, size = 0x9000, scoped, tag = 'internal scratch']
  %s0 = inlined_call_operand.vmem [shape: bf16[4,8,8192], index: 0, kind: input, shape index: {}]
  %s1 = inlined_call_operand.vmem [shape: bf16[4,8192,256], index: 1, kind: input, shape index: {}]
  %s2 = inlined_call_operand.vmem [shape: f32[1,256], index: 2, kind: input, shape index: {}]
  %s3 = inlined_call_operand.vmem [shape: bf16[4,8,256], index: 3, kind: output, shape index: {}]
  %s4 = sld [smem:[#allocation0]]
  $region45: #{simcc_forward.5} parent=0
    _
  %s6 = ssub.s32 1, %s4
  %s7 = scalar_select 0, %s6, %s4
  loop: start=0, step=1, limit=6
  $region2: #{simcc_forward.5} parent=0 // loop_pre_header
    _
  $region3: #{simcc_forward.5} parent=0 // loop_header
    %s9 = sphi 0, %s13
    %p10 = scmp.ge.s32.totalorder %s9, 6
    %s16 = sphi 0, %s35
    %s17 = sphi 0, %s31
    %s18 = sphi 0, %s27
    %s19 = sphi 0, %s16
    %s20 = sphi 0, %s17
    %s21 = sphi 0, %s18
    %s22 = sphi 0, %s19
    %s23 = sphi 0, %s20
    %s24 = sphi 0, %s21
    %s42 = sphi 0, %s44
    %s45 = sphi 0, %s42
    %s46 = sphi 0, %s45
    %s62 = sphi 0, %s46
    %s70 = sphi 0, %s72
    %s73 = sphi 0, %s70
    %s74 = sphi 0, %s73
    %s90 = sphi 0, %s74
    %s94 = sphi 0, %s94
    %s96 = sphi 0, %s94
    %s97 = sphi 0, %s96
    %s111 = sphi 0, %s97
    %s119 = sphi 0, %s121
    %s122 = sphi 0, %s119
    %s123 = sphi 0, %s122
    %s139 = sphi 0, %s123
  $region4: #{simcc_forward.5} parent=0 // loop_header_branch
    %12 = sbr.rel (%p10) target = $region8
  $region5: #{simcc_forward.5} parent=0 // loop_body
    %s14 = ssub.s32 %s9, 1
    %s15 = ssub.s32 %s9, 2
    %s25 = sadd.s32 1, %s18
    %p26 = scmp.ge.s32.totalorder %s25, 1
    %s27 = scalar_select %p26, 0, %s25
    %s28 = sadd.s32 1, %s17
    %s29 = scalar_select %p26, %s28, %s17
    %p30 = scmp.ge.s32.totalorder %s29, 1
    %s31 = scalar_select %p30, 0, %s29
    %s32 = sadd.s32 1, %s16
    %s33 = scalar_select %p30, %s32, %s16
    %p34 = scmp.ge.s32.totalorder %s33, 4
    %s35 = scalar_select %p34, 0, %s33
    %s36 = ssub.s32 %s16, %s35
    %s37 = ssub.s32 %s17, %s31
    %s38 = sor.u32 %s36, %s37
    %s39 = ssub.s32 %s18, %s27
    %s40 = sor.u32 %s38, %s39
    %p41 = scmp.eq.s32.totalorder %s40, 0
    %s43 = sadd.s32 %s42, 1
    %s44 = scalar_select %p41, %s42, %s43
    %p47 = pneg %p41
    %p48 = scmp.eq.s32.totalorder %s9, 3
    %p49 = por %p47, %p48
    %p50 = scmp.ne.s32.totalorder %s42, %s45
    %p51 = scmp.eq.s32.totalorder %s9, 0
    %p52 = por %p50, %p51
    %p53 = scmp.ne.s32.totalorder %s42, %s45
    %p54 = scmp.eq.s32.totalorder %s14, 3
    %p55 = por %p53, %p54
    %p56 = scmp.ne.s32.totalorder %s45, %s46
    %p57 = scmp.eq.s32.totalorder %s14, 0
    %p58 = por %p56, %p57
    %p59 = scmp.ne.s32.totalorder %s45, %s46
    %p60 = scmp.eq.s32.totalorder %s15, 3
    %p61 = por %p59, %p60
    %p63 = scmp.ne.s32.totalorder %s46, %s62
    %p64 = scmp.eq.s32.totalorder %s15, 0
    %p65 = por %p63, %p64
    %s66 = ssub.s32 %s16, %s35
    %s67 = ssub.s32 %s18, %s27
    %s68 = sor.u32 %s66, %s67
    %p69 = scmp.eq.s32.totalorder %s68, 0
    %s71 = sadd.s32 %s70, 1
    %s72 = scalar_select %p69, %s70, %s71
    %p75 = pneg %p69
    %p76 = scmp.eq.s32.totalorder %s9, 3
    %p77 = por %p75, %p76
    %p78 = scmp.ne.s32.totalorder %s70, %s73
    %p79 = scmp.eq.s32.totalorder %s9, 0
    %p80 = por %p78, %p79
    %p81 = scmp.ne.s32.totalorder %s70, %s73
    %p82 = scmp.eq.s32.totalorder %s14, 3
    %p83 = por %p81, %p82
    %p84 = scmp.ne.s32.totalorder %s73, %s74
    %p85 = scmp.eq.s32.totalorder %s14, 0
    %p86 = por %p84, %p85
    %p87 = scmp.ne.s32.totalorder %s73, %s74
    %p88 = scmp.eq.s32.totalorder %s15, 3
    %p89 = por %p87, %p88
    %p91 = scmp.ne.s32.totalorder %s74, %s90
    %p92 = scmp.eq.s32.totalorder %s15, 0
    %p93 = por %p91, %p92
    %s95 = sadd.s32 %s94, 1
    %p98 = scmp.eq.s32.totalorder %s9, 3
    %p99 = scmp.ne.s32.totalorder %s94, %s96
    %p100 = scmp.eq.s32.totalorder %s9, 0
    %p101 = por %p99, %p100
    %p102 = scmp.ne.s32.totalorder %s94, %s96
    %p103 = scmp.eq.s32.totalorder %s14, 3
    %p104 = por %p102, %p103
    %p105 = scmp.ne.s32.totalorder %s96, %s97
    %p106 = scmp.eq.s32.totalorder %s14, 0
    %p107 = por %p105, %p106
    %p108 = scmp.ne.s32.totalorder %s96, %s97
    %p109 = scmp.eq.s32.totalorder %s15, 3
    %p110 = por %p108, %p109
    %p112 = scmp.ne.s32.totalorder %s97, %s111
    %p113 = scmp.eq.s32.totalorder %s15, 0
    %p114 = por %p112, %p113
    %s115 = ssub.s32 %s16, %s35
    %s116 = ssub.s32 %s17, %s31
    %s117 = sor.u32 %s115, %s116
    %p118 = scmp.eq.s32.totalorder %s117, 0
    %s120 = sadd.s32 %s119, 1
    %s121 = scalar_select %p118, %s119, %s120
    %p124 = pneg %p118
    %p125 = scmp.eq.s32.totalorder %s9, 3
    %p126 = por %p124, %p125
    %p127 = scmp.ne.s32.totalorder %s119, %s122
    %p128 = scmp.eq.s32.totalorder %s9, 0
    %p129 = por %p127, %p128
    %p130 = scmp.ne.s32.totalorder %s119, %s122
    %p131 = scmp.eq.s32.totalorder %s14, 3
    %p132 = por %p130, %p131
    %p133 = scmp.ne.s32.totalorder %s122, %s123
    %p134 = scmp.eq.s32.totalorder %s14, 0
    %p135 = por %p133, %p134
    %p136 = scmp.ne.s32.totalorder %s122, %s123
    %p137 = scmp.eq.s32.totalorder %s15, 3
    %p138 = por %p136, %p137
    %p140 = scmp.ne.s32.totalorder %s123, %s139
    %p141 = scmp.eq.s32.totalorder %s15, 0
    %p142 = por %p140, %p141
    %p143 = scmp.le.s32.totalorder 1, %s9
    %p144 = scmp.lt.s32.totalorder %s9, 5
    %p145 = pnand %p143, %p144
    %p146 = pneg %p145
    // Predicated region
    $region9: #{simcc_forward.5} parent=5 // pred_check
      _
    $region10: #{simcc_forward.5} parent=5 // pred_check_branch
      %148 = sbr.rel (%p145) target = $region12
    $region11: #{simcc_forward.5} parent=5 // pred_region
      %s149 = ssub.s32 %s9, 1
      // Predicated region
      $region13: #{simcc_forward.5} parent=11 // pred_check
        %p150 = pneg %p107
      $region14: #{simcc_forward.5} parent=11 // pred_check_branch
        %152 = sbr.rel (%p150) target = $region16
      $region15: #{simcc_forward.5} parent=11 // pred_region
        _
      $region16: #{simcc_forward.5} parent=11 // pred_fallthru
        _
    $region12: #{simcc_forward.5} parent=5 // pred_fallthru
      _
    %p153 = scmp.lt.s32.totalorder %s9, 4
    // Predicated region
    $region17: #{simcc_forward.5} parent=5 // pred_check
      %p154 = pneg %p153
    $region18: #{simcc_forward.5} parent=5 // pred_check_branch
      %156 = sbr.rel (%p154) target = $region20
    $region19: #{simcc_forward.5} parent=5 // pred_region
      // Predicated region
      $region21: #{simcc_forward.5} parent=19 // pred_check
        %p157 = pneg %p52
      $region22: #{simcc_forward.5} parent=19 // pred_check_branch
        %159 = sbr.rel (%p157) target = $region24
      $region23: #{simcc_forward.5} parent=19 // pred_region
        %s160 = smul.u32 64, %s18
        %p161 = scmp.lt.s32.totalorder %s16, 3
        %s162 = scalar_select %p161, %s16, 3
        %p163 = scmp.lt.s32.totalorder %s17, 0
        %s164 = scalar_select %p163, %s17, 0
        %p165 = scmp.lt.s32.totalorder %s160, 63
        %s166 = scalar_select %p165, %s160, 63
        %s167 = smul.addr %s164, 64
        %s168 = sadd.s32 %s166, %s167
        %s169 = smul.addr %s162, 64
        %s170 = sadd.s32 %s168, %s169
        %s171 = smul.addr %s170, 4
        %s172 = scalar_lea.vmem %s0, %s171
        %s173 = smul.u32 64, %s18
      $region24: #{simcc_forward.5} parent=19 // pred_fallthru
        _
      // Predicated region
      $region25: #{simcc_forward.5} parent=19 // pred_check
        %p174 = pneg %p80
      $region26: #{simcc_forward.5} parent=19 // pred_check_branch
        %176 = sbr.rel (%p174) target = $region28
      $region27: #{simcc_forward.5} parent=19 // pred_region
        %s177 = smul.u32 1024, %s18
        %p178 = scmp.lt.s32.totalorder %s16, 3
        %s179 = scalar_select %p178, %s16, 3
        %p180 = scmp.lt.s32.totalorder %s177, 1023
        %s181 = scalar_select %p180, %s177, 1023
        %s182 = smul.addr %s181, 2
        %s183 = smul.addr %s179, 2048
        %s184 = sadd.s32 %s182, %s183
        %s185 = smul.addr %s184, 4
        %s186 = scalar_lea.vmem %s1, %s185
        %s187 = smul.u32 1024, %s18
      $region28: #{simcc_forward.5} parent=19 // pred_fallthru
        _
    $region20: #{simcc_forward.5} parent=5 // pred_fallthru
      _
    %p188 = scmp.le.s32.totalorder 1, %s9
    %p189 = scmp.lt.s32.totalorder %s9, 5
    %p190 = pnand %p188, %p189
    %p191 = pneg %p190
    // Predicated region
    $region29: #{simcc_forward.5} parent=5 // pred_check
      _
    $region30: #{simcc_forward.5} parent=5 // pred_check_branch
      %193 = sbr.rel (%p190) target = $region32
    $region31: #{simcc_forward.5} parent=5 // pred_region
      %s194 = ssub.s32 %s9, 1
      %s195 = smul.u32 64, %s21
      %p196 = scmp.lt.s32.totalorder %s19, 3
      %s197 = scalar_select %p196, %s19, 3
      %p198 = scmp.lt.s32.totalorder %s20, 0
      %s199 = scalar_select %p198, %s20, 0
      %p200 = scmp.lt.s32.totalorder %s195, 63
      %s201 = scalar_select %p200, %s195, 63
      %s202 = smul.addr %s199, 64
      %s203 = sadd.s32 %s201, %s202
      %s204 = smul.addr %s197, 64
      %s205 = sadd.s32 %s203, %s204
      %s206 = smul.addr %s205, 4
      %s207 = scalar_lea.vmem %s0, %s206
      %p208 = pneg %p58
      %p209 = pneg %p55
      %s210 = smul.u32 1024, %s21
      %p211 = scmp.lt.s32.totalorder %s19, 3
      %s212 = scalar_select %p211, %s19, 3
      %p213 = scmp.lt.s32.totalorder %s210, 1023
      %s214 = scalar_select %p213, %s210, 1023
      %s215 = smul.addr %s214, 2
      %s216 = smul.addr %s212, 2048
      %s217 = sadd.s32 %s215, %s216
      %s218 = smul.addr %s217, 4
      %s219 = scalar_lea.vmem %s1, %s218
      %p220 = pneg %p86
      %p221 = pneg %p83
      %p222 = pneg %p107
      %p223 = pneg %p104
      %p224 = pneg %p135
      %p225 = pneg %p132
      %p226 = scmp.lt.s32.totalorder %s19, 3
      %s227 = scalar_select %p226, %s19, 3
      %p228 = scmp.lt.s32.totalorder %s20, 0
      %s229 = scalar_select %p228, %s20, 0
      %s230 = smul.addr %s229, 2
      %s231 = smul.addr %s227, 2
      %s232 = sadd.s32 %s230, %s231
      %s233 = smul.addr %s232, 4
      %s234 = scalar_lea.vmem %s3, %s233
      %s235 = smul.u32 64, %s21
      %p236 = scmp.lt.s32.totalorder %s19, 3
      %s237 = scalar_select %p236, %s19, 3
      %p238 = scmp.lt.s32.totalorder %s20, 0
      %s239 = scalar_select %p238, %s20, 0
      %p240 = scmp.lt.s32.totalorder %s235, 63
      %s241 = scalar_select %p240, %s235, 63
      %s242 = smul.addr %s239, 64
      %s243 = sadd.s32 %s241, %s242
      %s244 = smul.addr %s237, 64
      %s245 = sadd.s32 %s243, %s244
      %s246 = smul.addr %s245, 4
      %s247 = scalar_lea.vmem %s0, %s246
      %s248 = smul.u32 64, %s21
      %s249 = smul.u32 1024, %s21
      %p250 = scmp.lt.s32.totalorder %s19, 3
      %s251 = scalar_select %p250, %s19, 3
      %p252 = scmp.lt.s32.totalorder %s249, 1023
      %s253 = scalar_select %p252, %s249, 1023
      %s254 = smul.addr %s253, 2
      %s255 = smul.addr %s251, 2048
      %s256 = sadd.s32 %s254, %s255
      %s257 = smul.addr %s256, 4
      %s258 = scalar_lea.vmem %s1, %s257
      %s259 = smul.u32 1024, %s21
      %p260 = scmp.lt.s32.totalorder %s19, 3
      %s261 = scalar_select %p260, %s19, 3
      %p262 = scmp.lt.s32.totalorder %s20, 0
      %s263 = scalar_select %p262, %s20, 0
      %s264 = smul.addr %s263, 2
      %s265 = smul.addr %s261, 2
      %s266 = sadd.s32 %s264, %s265
      %s267 = smul.addr %s266, 4
      %s268 = scalar_lea.vmem %s3, %s267
      %v269 = vld [vmem:[%s247] sm:$0xff]
      %v270 = vld [vmem:[%s247 + $0x8] sm:$0xff]
      %v271 = vld [vmem:[%s247 + $0x10] sm:$0xff]
      %v272 = vld [vmem:[%s247 + $0x18] sm:$0xff]
      %v273 = vld [vmem:[%s247 + $0x20] sm:$0xff]
      %v274 = vld [vmem:[%s247 + $0x28] sm:$0xff]
      %v275 = vld [vmem:[%s247 + $0x30] sm:$0xff]
      %v276 = vld [vmem:[%s247 + $0x38] sm:$0xff]
      %v277 = vld [vmem:[%s247 + $0x40] sm:$0xff]
      %v278 = vld [vmem:[%s247 + $0x48] sm:$0xff]
      %v279 = vld [vmem:[%s247 + $0x50] sm:$0xff]
      %v280 = vld [vmem:[%s247 + $0x58] sm:$0xff]
      %v281 = vld [vmem:[%s247 + $0x60] sm:$0xff]
      %v282 = vld [vmem:[%s247 + $0x68] sm:$0xff]
      %v283 = vld [vmem:[%s247 + $0x70] sm:$0xff]
      %v284 = vld [vmem:[%s247 + $0x78] sm:$0xff]
      %v285 = vld [vmem:[%s247 + $0x80] sm:$0xff]
      %v286 = vld [vmem:[%s247 + $0x88] sm:$0xff]
      %v287 = vld [vmem:[%s247 + $0x90] sm:$0xff]
      %v288 = vld [vmem:[%s247 + $0x98] sm:$0xff]
      %v289 = vld [vmem:[%s247 + $0xa0] sm:$0xff]
      %v290 = vld [vmem:[%s247 + $0xa8] sm:$0xff]
      %v291 = vld [vmem:[%s247 + $0xb0] sm:$0xff]
      %v292 = vld [vmem:[%s247 + $0xb8] sm:$0xff]
      %v293 = vld [vmem:[%s247 + $0xc0] sm:$0xff]
      %v294 = vld [vmem:[%s247 + $0xc8] sm:$0xff]
      %v295 = vld [vmem:[%s247 + $0xd0] sm:$0xff]
      %v296 = vld [vmem:[%s247 + $0xd8] sm:$0xff]
      %v297 = vld [vmem:[%s247 + $0xe0] sm:$0xff]
      %v298 = vld [vmem:[%s247 + $0xe8] sm:$0xff]
      %v299 = vld [vmem:[%s247 + $0xf0] sm:$0xff]
      %v300 = vld [vmem:[%s247 + $0xf8] sm:$0xff]
      %v301 = vld [vmem:[%s258] sm:$0xff]
      %v302 = vld [vmem:[%s258 + $0x8] sm:$0xff]
      %v303 = vld [vmem:[%s258 + $0x10] sm:$0xff]
      %v304 = vld [vmem:[%s258 + $0x18] sm:$0xff]
      %v305 = vld [vmem:[%s258 + $0x20] sm:$0xff]
      %v306 = vld [vmem:[%s258 + $0x28] sm:$0xff]
      %v307 = vld [vmem:[%s258 + $0x30] sm:$0xff]
      %v308 = vld [vmem:[%s258 + $0x38] sm:$0xff]
      %v309 = vld [vmem:[%s258 + $0x40] sm:$0xff]
      %v310 = vld [vmem:[%s258 + $0x48] sm:$0xff]
      %v311 = vld [vmem:[%s258 + $0x50] sm:$0xff]
      %v312 = vld [vmem:[%s258 + $0x58] sm:$0xff]
      %v313 = vld [vmem:[%s258 + $0x60] sm:$0xff]
      %v314 = vld [vmem:[%s258 + $0x68] sm:$0xff]
      %v315 = vld [vmem:[%s258 + $0x70] sm:$0xff]
      %v316 = vld [vmem:[%s258 + $0x78] sm:$0xff]
      %v317 = vld [vmem:[%s258 + $0x80] sm:$0xff]
      %v318 = vld [vmem:[%s258 + $0x88] sm:$0xff]
      %v319 = vld [vmem:[%s258 + $0x90] sm:$0xff]
      %v320 = vld [vmem:[%s258 + $0x98] sm:$0xff]
      %v321 = vld [vmem:[%s258 + $0xa0] sm:$0xff]
      %v322 = vld [vmem:[%s258 + $0xa8] sm:$0xff]
      %v323 = vld [vmem:[%s258 + $0xb0] sm:$0xff]
      %v324 = vld [vmem:[%s258 + $0xb8] sm:$0xff]
      %v325 = vld [vmem:[%s258 + $0xc0] sm:$0xff]
      %v326 = vld [vmem:[%s258 + $0xc8] sm:$0xff]
      %v327 = vld [vmem:[%s258 + $0xd0] sm:$0xff]
      %v328 = vld [vmem:[%s258 + $0xd8] sm:$0xff]
      %v329 = vld [vmem:[%s258 + $0xe0] sm:$0xff]
      %v330 = vld [vmem:[%s258 + $0xe8] sm:$0xff]
      %v331 = vld [vmem:[%s258 + $0xf0] sm:$0xff]
      %v332 = vld [vmem:[%s258 + $0xf8] sm:$0xff]
      %v333 = vld [vmem:[%s258 + $0x100] sm:$0xff]
      %v334 = vld [vmem:[%s258 + $0x108] sm:$0xff]
      %v335 = vld [vmem:[%s258 + $0x110] sm:$0xff]
      %v336 = vld [vmem:[%s258 + $0x118] sm:$0xff]
      %v337 = vld [vmem:[%s258 + $0x120] sm:$0xff]
      %v338 = vld [vmem:[%s258 + $0x128] sm:$0xff]
      %v339 = vld [vmem:[%s258 + $0x130] sm:$0xff]
      %v340 = vld [vmem:[%s258 + $0x138] sm:$0xff]
      %v341 = vld [vmem:[%s258 + $0x140] sm:$0xff]
      %v342 = vld [vmem:[%s258 + $0x148] sm:$0xff]
      %v343 = vld [vmem:[%s258 + $0x150] sm:$0xff]
      %v344 = vld [vmem:[%s258 + $0x158] sm:$0xff]
      %v345 = vld [vmem:[%s258 + $0x160] sm:$0xff]
      %v346 = vld [vmem:[%s258 + $0x168] sm:$0xff]
      %v347 = vld [vmem:[%s258 + $0x170] sm:$0xff]
      %v348 = vld [vmem:[%s258 + $0x178] sm:$0xff]
      %v349 = vld [vmem:[%s258 + $0x180] sm:$0xff]
      %v350 = vld [vmem:[%s258 + $0x188] sm:$0xff]
      %v351 = vld [vmem:[%s258 + $0x190] sm:$0xff]
      %v352 = vld [vmem:[%s258 + $0x198] sm:$0xff]
      %v353 = vld [vmem:[%s258 + $0x1a0] sm:$0xff]
      %v354 = vld [vmem:[%s258 + $0x1a8] sm:$0xff]
      %v355 = vld [vmem:[%s258 + $0x1b0] sm:$0xff]
      %v356 = vld [vmem:[%s258 + $0x1b8] sm:$0xff]
      %v357 = vld [vmem:[%s258 + $0x1c0] sm:$0xff]
      %v358 = vld [vmem:[%s258 + $0x1c8] sm:$0xff]
      %v359 = vld [vmem:[%s258 + $0x1d0] sm:$0xff]
      %v360 = vld [vmem:[%s258 + $0x1d8] sm:$0xff]
      %v361 = vld [vmem:[%s258 + $0x1e0] sm:$0xff]
      %v362 = vld [vmem:[%s258 + $0x1e8] sm:$0xff]
      %v363 = vld [vmem:[%s258 + $0x1f0] sm:$0xff]
      %v364 = vld [vmem:[%s258 + $0x1f8] sm:$0xff]
      %v365 = vld [vmem:[%s258 + $0x200] sm:$0xff]
      %v366 = vld [vmem:[%s258 + $0x208] sm:$0xff]
      %v367 = vld [vmem:[%s258 + $0x210] sm:$0xff]
      %v368 = vld [vmem:[%s258 + $0x218] sm:$0xff]
      %v369 = vld [vmem:[%s258 + $0x220] sm:$0xff]
      %v370 = vld [vmem:[%s258 + $0x228] sm:$0xff]
      %v371 = vld [vmem:[%s258 + $0x230] sm:$0xff]
      %v372 = vld [vmem:[%s258 + $0x238] sm:$0xff]
      %v373 = vld [vmem:[%s258 + $0x240] sm:$0xff]
      %v374 = vld [vmem:[%s258 + $0x248] sm:$0xff]
      %v375 = vld [vmem:[%s258 + $0x250] sm:$0xff]
      %v376 = vld [vmem:[%s258 + $0x258] sm:$0xff]
      %v377 = vld [vmem:[%s258 + $0x260] sm:$0xff]
      %v378 = vld [vmem:[%s258 + $0x268] sm:$0xff]
      %v379 = vld [vmem:[%s258 + $0x270] sm:$0xff]
      %v380 = vld [vmem:[%s258 + $0x278] sm:$0xff]
      %v381 = vld [vmem:[%s258 + $0x280] sm:$0xff]
      %v382 = vld [vmem:[%s258 + $0x288] sm:$0xff]
      %v383 = vld [vmem:[%s258 + $0x290] sm:$0xff]
      %v384 = vld [vmem:[%s258 + $0x298] sm:$0xff]
      %v385 = vld [vmem:[%s258 + $0x2a0] sm:$0xff]
      %v386 = vld [vmem:[%s258 + $0x2a8] sm:$0xff]
      %v387 = vld [vmem:[%s258 + $0x2b0] sm:$0xff]
      %v388 = vld [vmem:[%s258 + $0x2b8] sm:$0xff]
      %v389 = vld [vmem:[%s258 + $0x2c0] sm:$0xff]
      %v390 = vld [vmem:[%s258 + $0x2c8] sm:$0xff]
      %v391 = vld [vmem:[%s258 + $0x2d0] sm:$0xff]
      %v392 = vld [vmem:[%s258 + $0x2d8] sm:$0xff]
      %v393 = vld [vmem:[%s258 + $0x2e0] sm:$0xff]
      %v394 = vld [vmem:[%s258 + $0x2e8] sm:$0xff]
      %v395 = vld [vmem:[%s258 + $0x2f0] sm:$0xff]
      %v396 = vld [vmem:[%s258 + $0x2f8] sm:$0xff]
      %v397 = vld [vmem:[%s258 + $0x300] sm:$0xff]
      %v398 = vld [vmem:[%s258 + $0x308] sm:$0xff]
      %v399 = vld [vmem:[%s258 + $0x310] sm:$0xff]
      %v400 = vld [vmem:[%s258 + $0x318] sm:$0xff]
      %v401 = vld [vmem:[%s258 + $0x320] sm:$0xff]
      %v402 = vld [vmem:[%s258 + $0x328] sm:$0xff]
      %v403 = vld [vmem:[%s258 + $0x330] sm:$0xff]
      %v404 = vld [vmem:[%s258 + $0x338] sm:$0xff]
      %v405 = vld [vmem:[%s258 + $0x340] sm:$0xff]
      %v406 = vld [vmem:[%s258 + $0x348] sm:$0xff]
      %v407 = vld [vmem:[%s258 + $0x350] sm:$0xff]
      %v408 = vld [vmem:[%s258 + $0x358] sm:$0xff]
      %v409 = vld [vmem:[%s258 + $0x360] sm:$0xff]
      %v410 = vld [vmem:[%s258 + $0x368] sm:$0xff]
      %v411 = vld [vmem:[%s258 + $0x370] sm:$0xff]
      %v412 = vld [vmem:[%s258 + $0x378] sm:$0xff]
      %v413 = vld [vmem:[%s258 + $0x380] sm:$0xff]
      %v414 = vld [vmem:[%s258 + $0x388] sm:$0xff]
      %v415 = vld [vmem:[%s258 + $0x390] sm:$0xff]
      %v416 = vld [vmem:[%s258 + $0x398] sm:$0xff]
      %v417 = vld [vmem:[%s258 + $0x3a0] sm:$0xff]
      %v418 = vld [vmem:[%s258 + $0x3a8] sm:$0xff]
      %v419 = vld [vmem:[%s258 + $0x3b0] sm:$0xff]
      %v420 = vld [vmem:[%s258 + $0x3b8] sm:$0xff]
      %v421 = vld [vmem:[%s258 + $0x3c0] sm:$0xff]
      %v422 = vld [vmem:[%s258 + $0x3c8] sm:$0xff]
      %v423 = vld [vmem:[%s258 + $0x3d0] sm:$0xff]
      %v424 = vld [vmem:[%s258 + $0x3d8] sm:$0xff]
      %v425 = vld [vmem:[%s258 + $0x3e0] sm:$0xff]
      %v426 = vld [vmem:[%s258 + $0x3e8] sm:$0xff]
      %v427 = vld [vmem:[%s258 + $0x3f0] sm:$0xff]
      %v428 = vld [vmem:[%s258 + $0x3f8] sm:$0xff]
      %v429 = vld [vmem:[%s258 + $0x400] sm:$0xff]
      %v430 = vld [vmem:[%s258 + $0x408] sm:$0xff]
      %v431 = vld [vmem:[%s258 + $0x410] sm:$0xff]
      %v432 = vld [vmem:[%s258 + $0x418] sm:$0xff]
      %v433 = vld [vmem:[%s258 + $0x420] sm:$0xff]
      %v434 = vld [vmem:[%s258 + $0x428] sm:$0xff]
      %v435 = vld [vmem:[%s258 + $0x430] sm:$0xff]
      %v436 = vld [vmem:[%s258 + $0x438] sm:$0xff]
      %v437 = vld [vmem:[%s258 + $0x440] sm:$0xff]
      %v438 = vld [vmem:[%s258 + $0x448] sm:$0xff]
      %v439 = vld [vmem:[%s258 + $0x450] sm:$0xff]
      %v440 = vld [vmem:[%s258 + $0x458] sm:$0xff]
      %v441 = vld [vmem:[%s258 + $0x460] sm:$0xff]
      %v442 = vld [vmem:[%s258 + $0x468] sm:$0xff]
      %v443 = vld [vmem:[%s258 + $0x470] sm:$0xff]
      %v444 = vld [vmem:[%s258 + $0x478] sm:$0xff]
      %v445 = vld [vmem:[%s258 + $0x480] sm:$0xff]
      %v446 = vld [vmem:[%s258 + $0x488] sm:$0xff]
      %v447 = vld [vmem:[%s258 + $0x490] sm:$0xff]
      %v448 = vld [vmem:[%s258 + $0x498] sm:$0xff]
      %v449 = vld [vmem:[%s258 + $0x4a0] sm:$0xff]
      %v450 = vld [vmem:[%s258 + $0x4a8] sm:$0xff]
      %v451 = vld [vmem:[%s258 + $0x4b0] sm:$0xff]
      %v452 = vld [vmem:[%s258 + $0x4b8] sm:$0xff]
      %v453 = vld [vmem:[%s258 + $0x4c0] sm:$0xff]
      %v454 = vld [vmem:[%s258 + $0x4c8] sm:$0xff]
      %v455 = vld [vmem:[%s258 + $0x4d0] sm:$0xff]
      %v456 = vld [vmem:[%s258 + $0x4d8] sm:$0xff]
      %v457 = vld [vmem:[%s258 + $0x4e0] sm:$0xff]
      %v458 = vld [vmem:[%s258 + $0x4e8] sm:$0xff]
      %v459 = vld [vmem:[%s258 + $0x4f0] sm:$0xff]
      %v460 = vld [vmem:[%s258 + $0x4f8] sm:$0xff]
      %v461 = vld [vmem:[%s258 + $0x500] sm:$0xff]
      %v462 = vld [vmem:[%s258 + $0x508] sm:$0xff]
      %v463 = vld [vmem:[%s258 + $0x510] sm:$0xff]
      %v464 = vld [vmem:[%s258 + $0x518] sm:$0xff]
      %v465 = vld [vmem:[%s258 + $0x520] sm:$0xff]
      %v466 = vld [vmem:[%s258 + $0x528] sm:$0xff]
      %v467 = vld [vmem:[%s258 + $0x530] sm:$0xff]
      %v468 = vld [vmem:[%s258 + $0x538] sm:$0xff]
      %v469 = vld [vmem:[%s258 + $0x540] sm:$0xff]
      %v470 = vld [vmem:[%s258 + $0x548] sm:$0xff]
      %v471 = vld [vmem:[%s258 + $0x550] sm:$0xff]
      %v472 = vld [vmem:[%s258 + $0x558] sm:$0xff]
      %v473 = vld [vmem:[%s258 + $0x560] sm:$0xff]
      %v474 = vld [vmem:[%s258 + $0x568] sm:$0xff]
      %v475 = vld [vmem:[%s258 + $0x570] sm:$0xff]
      %v476 = vld [vmem:[%s258 + $0x578] sm:$0xff]
      %v477 = vld [vmem:[%s258 + $0x580] sm:$0xff]
      %v478 = vld [vmem:[%s258 + $0x588] sm:$0xff]
      %v479 = vld [vmem:[%s258 + $0x590] sm:$0xff]
      %v480 = vld [vmem:[%s258 + $0x598] sm:$0xff]
      %v481 = vld [vmem:[%s258 + $0x5a0] sm:$0xff]
      %v482 = vld [vmem:[%s258 + $0x5a8] sm:$0xff]
      %v483 = vld [vmem:[%s258 + $0x5b0] sm:$0xff]
      %v484 = vld [vmem:[%s258 + $0x5b8] sm:$0xff]
      %v485 = vld [vmem:[%s258 + $0x5c0] sm:$0xff]
      %v486 = vld [vmem:[%s258 + $0x5c8] sm:$0xff]
      %v487 = vld [vmem:[%s258 + $0x5d0] sm:$0xff]
      %v488 = vld [vmem:[%s258 + $0x5d8] sm:$0xff]
      %v489 = vld [vmem:[%s258 + $0x5e0] sm:$0xff]
      %v490 = vld [vmem:[%s258 + $0x5e8] sm:$0xff]
      %v491 = vld [vmem:[%s258 + $0x5f0] sm:$0xff]
      %v492 = vld [vmem:[%s258 + $0x5f8] sm:$0xff]
      %v493 = vld [vmem:[%s258 + $0x600] sm:$0xff]
      %v494 = vld [vmem:[%s258 + $0x608] sm:$0xff]
      %v495 = vld [vmem:[%s258 + $0x610] sm:$0xff]
      %v496 = vld [vmem:[%s258 + $0x618] sm:$0xff]
      %v497 = vld [vmem:[%s258 + $0x620] sm:$0xff]
      %v498 = vld [vmem:[%s258 + $0x628] sm:$0xff]
      %v499 = vld [vmem:[%s258 + $0x630] sm:$0xff]
      %v500 = vld [vmem:[%s258 + $0x638] sm:$0xff]
      %v501 = vld [vmem:[%s258 + $0x640] sm:$0xff]
      %v502 = vld [vmem:[%s258 + $0x648] sm:$0xff]
      %v503 = vld [vmem:[%s258 + $0x650] sm:$0xff]
      %v504 = vld [vmem:[%s258 + $0x658] sm:$0xff]
      %v505 = vld [vmem:[%s258 + $0x660] sm:$0xff]
      %v506 = vld [vmem:[%s258 + $0x668] sm:$0xff]
      %v507 = vld [vmem:[%s258 + $0x670] sm:$0xff]
      %v508 = vld [vmem:[%s258 + $0x678] sm:$0xff]
      %v509 = vld [vmem:[%s258 + $0x680] sm:$0xff]
      %v510 = vld [vmem:[%s258 + $0x688] sm:$0xff]
      %v511 = vld [vmem:[%s258 + $0x690] sm:$0xff]
      %v512 = vld [vmem:[%s258 + $0x698] sm:$0xff]
      %v513 = vld [vmem:[%s258 + $0x6a0] sm:$0xff]
      %v514 = vld [vmem:[%s258 + $0x6a8] sm:$0xff]
      %v515 = vld [vmem:[%s258 + $0x6b0] sm:$0xff]
      %v516 = vld [vmem:[%s258 + $0x6b8] sm:$0xff]
      %v517 = vld [vmem:[%s258 + $0x6c0] sm:$0xff]
      %v518 = vld [vmem:[%s258 + $0x6c8] sm:$0xff]
      %v519 = vld [vmem:[%s258 + $0x6d0] sm:$0xff]
      %v520 = vld [vmem:[%s258 + $0x6d8] sm:$0xff]
      %v521 = vld [vmem:[%s258 + $0x6e0] sm:$0xff]
      %v522 = vld [vmem:[%s258 + $0x6e8] sm:$0xff]
      %v523 = vld [vmem:[%s258 + $0x6f0] sm:$0xff]
      %v524 = vld [vmem:[%s258 + $0x6f8] sm:$0xff]
      %v525 = vld [vmem:[%s258 + $0x700] sm:$0xff]
      %v526 = vld [vmem:[%s258 + $0x708] sm:$0xff]
      %v527 = vld [vmem:[%s258 + $0x710] sm:$0xff]
      %v528 = vld [vmem:[%s258 + $0x718] sm:$0xff]
      %v529 = vld [vmem:[%s258 + $0x720] sm:$0xff]
      %v530 = vld [vmem:[%s258 + $0x728] sm:$0xff]
      %v531 = vld [vmem:[%s258 + $0x730] sm:$0xff]
      %v532 = vld [vmem:[%s258 + $0x738] sm:$0xff]
      %v533 = vld [vmem:[%s258 + $0x740] sm:$0xff]
      %v534 = vld [vmem:[%s258 + $0x748] sm:$0xff]
      %v535 = vld [vmem:[%s258 + $0x750] sm:$0xff]
      %v536 = vld [vmem:[%s258 + $0x758] sm:$0xff]
      %v537 = vld [vmem:[%s258 + $0x760] sm:$0xff]
      %v538 = vld [vmem:[%s258 + $0x768] sm:$0xff]
      %v539 = vld [vmem:[%s258 + $0x770] sm:$0xff]
      %v540 = vld [vmem:[%s258 + $0x778] sm:$0xff]
      %v541 = vld [vmem:[%s258 + $0x780] sm:$0xff]
      %v542 = vld [vmem:[%s258 + $0x788] sm:$0xff]
      %v543 = vld [vmem:[%s258 + $0x790] sm:$0xff]
      %v544 = vld [vmem:[%s258 + $0x798] sm:$0xff]
      %v545 = vld [vmem:[%s258 + $0x7a0] sm:$0xff]
      %v546 = vld [vmem:[%s258 + $0x7a8] sm:$0xff]
      %v547 = vld [vmem:[%s258 + $0x7b0] sm:$0xff]
      %v548 = vld [vmem:[%s258 + $0x7b8] sm:$0xff]
      %v549 = vld [vmem:[%s258 + $0x7c0] sm:$0xff]
      %v550 = vld [vmem:[%s258 + $0x7c8] sm:$0xff]
      %v551 = vld [vmem:[%s258 + $0x7d0] sm:$0xff]
      %v552 = vld [vmem:[%s258 + $0x7d8] sm:$0xff]
      %v553 = vld [vmem:[%s258 + $0x7e0] sm:$0xff]
      %v554 = vld [vmem:[%s258 + $0x7e8] sm:$0xff]
      %v555 = vld [vmem:[%s258 + $0x7f0] sm:$0xff]
      %v556 = vld [vmem:[%s258 + $0x7f8] sm:$0xff]
      %v557 = vld [vmem:[%s258 + $0x800] sm:$0xff]
      %v558 = vld [vmem:[%s258 + $0x808] sm:$0xff]
      %v559 = vld [vmem:[%s258 + $0x810] sm:$0xff]
      %v560 = vld [vmem:[%s258 + $0x818] sm:$0xff]
      %v561 = vld [vmem:[%s258 + $0x820] sm:$0xff]
      %v562 = vld [vmem:[%s258 + $0x828] sm:$0xff]
      %v563 = vld [vmem:[%s258 + $0x830] sm:$0xff]
      %v564 = vld [vmem:[%s258 + $0x838] sm:$0xff]
      %v565 = vld [vmem:[%s258 + $0x840] sm:$0xff]
      %v566 = vld [vmem:[%s258 + $0x848] sm:$0xff]
      %v567 = vld [vmem:[%s258 + $0x850] sm:$0xff]
      %v568 = vld [vmem:[%s258 + $0x858] sm:$0xff]
      %v569 = vld [vmem:[%s258 + $0x860] sm:$0xff]
      %v570 = vld [vmem:[%s258 + $0x868] sm:$0xff]
      %v571 = vld [vmem:[%s258 + $0x870] sm:$0xff]
      %v572 = vld [vmem:[%s258 + $0x878] sm:$0xff]
      %v573 = vld [vmem:[%s258 + $0x880] sm:$0xff]
      %v574 = vld [vmem:[%s258 + $0x888] sm:$0xff]
      %v575 = vld [vmem:[%s258 + $0x890] sm:$0xff]
      %v576 = vld [vmem:[%s258 + $0x898] sm:$0xff]
      %v577 = vld [vmem:[%s258 + $0x8a0] sm:$0xff]
      %v578 = vld [vmem:[%s258 + $0x8a8] sm:$0xff]
      %v579 = vld [vmem:[%s258 + $0x8b0] sm:$0xff]
      %v580 = vld [vmem:[%s258 + $0x8b8] sm:$0xff]
      %v581 = vld [vmem:[%s258 + $0x8c0] sm:$0xff]
      %v582 = vld [vmem:[%s258 + $0x8c8] sm:$0xff]
      %v583 = vld [vmem:[%s258 + $0x8d0] sm:$0xff]
      %v584 = vld [vmem:[%s258 + $0x8d8] sm:$0xff]
      %v585 = vld [vmem:[%s258 + $0x8e0] sm:$0xff]
      %v586 = vld [vmem:[%s258 + $0x8e8] sm:$0xff]
      %v587 = vld [vmem:[%s258 + $0x8f0] sm:$0xff]
      %v588 = vld [vmem:[%s258 + $0x8f8] sm:$0xff]
      %v589 = vld [vmem:[%s258 + $0x900] sm:$0xff]
      %v590 = vld [vmem:[%s258 + $0x908] sm:$0xff]
      %v591 = vld [vmem:[%s258 + $0x910] sm:$0xff]
      %v592 = vld [vmem:[%s258 + $0x918] sm:$0xff]
      %v593 = vld [vmem:[%s258 + $0x920] sm:$0xff]
      %v594 = vld [vmem:[%s258 + $0x928] sm:$0xff]
      %v595 = vld [vmem:[%s258 + $0x930] sm:$0xff]
      %v596 = vld [vmem:[%s258 + $0x938] sm:$0xff]
      %v597 = vld [vmem:[%s258 + $0x940] sm:$0xff]
      %v598 = vld [vmem:[%s258 + $0x948] sm:$0xff]
      %v599 = vld [vmem:[%s258 + $0x950] sm:$0xff]
      %v600 = vld [vmem:[%s258 + $0x958] sm:$0xff]
      %v601 = vld [vmem:[%s258 + $0x960] sm:$0xff]
      %v602 = vld [vmem:[%s258 + $0x968] sm:$0xff]
      %v603 = vld [vmem:[%s258 + $0x970] sm:$0xff]
      %v604 = vld [vmem:[%s258 + $0x978] sm:$0xff]
      %v605 = vld [vmem:[%s258 + $0x980] sm:$0xff]
      %v606 = vld [vmem:[%s258 + $0x988] sm:$0xff]
      %v607 = vld [vmem:[%s258 + $0x990] sm:$0xff]
      %v608 = vld [vmem:[%s258 + $0x998] sm:$0xff]
      %v609 = vld [vmem:[%s258 + $0x9a0] sm:$0xff]
      %v610 = vld [vmem:[%s258 + $0x9a8] sm:$0xff]
      %v611 = vld [vmem:[%s258 + $0x9b0] sm:$0xff]
      %v612 = vld [vmem:[%s258 + $0x9b8] sm:$0xff]
      %v613 = vld [vmem:[%s258 + $0x9c0] sm:$0xff]
      %v614 = vld [vmem:[%s258 + $0x9c8] sm:$0xff]
      %v615 = vld [vmem:[%s258 + $0x9d0] sm:$0xff]
      %v616 = vld [vmem:[%s258 + $0x9d8] sm:$0xff]
      %v617 = vld [vmem:[%s258 + $0x9e0] sm:$0xff]
      %v618 = vld [vmem:[%s258 + $0x9e8] sm:$0xff]
      %v619 = vld [vmem:[%s258 + $0x9f0] sm:$0xff]
      %v620 = vld [vmem:[%s258 + $0x9f8] sm:$0xff]
      %v621 = vld [vmem:[%s258 + $0xa00] sm:$0xff]
      %v622 = vld [vmem:[%s258 + $0xa08] sm:$0xff]
      %v623 = vld [vmem:[%s258 + $0xa10] sm:$0xff]
      %v624 = vld [vmem:[%s258 + $0xa18] sm:$0xff]
      %v625 = vld [vmem:[%s258 + $0xa20] sm:$0xff]
      %v626 = vld [vmem:[%s258 + $0xa28] sm:$0xff]
      %v627 = vld [vmem:[%s258 + $0xa30] sm:$0xff]
      %v628 = vld [vmem:[%s258 + $0xa38] sm:$0xff]
      %v629 = vld [vmem:[%s258 + $0xa40] sm:$0xff]
      %v630 = vld [vmem:[%s258 + $0xa48] sm:$0xff]
      %v631 = vld [vmem:[%s258 + $0xa50] sm:$0xff]
      %v632 = vld [vmem:[%s258 + $0xa58] sm:$0xff]
      %v633 = vld [vmem:[%s258 + $0xa60] sm:$0xff]
      %v634 = vld [vmem:[%s258 + $0xa68] sm:$0xff]
      %v635 = vld [vmem:[%s258 + $0xa70] sm:$0xff]
      %v636 = vld [vmem:[%s258 + $0xa78] sm:$0xff]
      %v637 = vld [vmem:[%s258 + $0xa80] sm:$0xff]
      %v638 = vld [vmem:[%s258 + $0xa88] sm:$0xff]
      %v639 = vld [vmem:[%s258 + $0xa90] sm:$0xff]
      %v640 = vld [vmem:[%s258 + $0xa98] sm:$0xff]
      %v641 = vld [vmem:[%s258 + $0xaa0] sm:$0xff]
      %v642 = vld [vmem:[%s258 + $0xaa8] sm:$0xff]
      %v643 = vld [vmem:[%s258 + $0xab0] sm:$0xff]
      %v644 = vld [vmem:[%s258 + $0xab8] sm:$0xff]
      %v645 = vld [vmem:[%s258 + $0xac0] sm:$0xff]
      %v646 = vld [vmem:[%s258 + $0xac8] sm:$0xff]
      %v647 = vld [vmem:[%s258 + $0xad0] sm:$0xff]
      %v648 = vld [vmem:[%s258 + $0xad8] sm:$0xff]
      %v649 = vld [vmem:[%s258 + $0xae0] sm:$0xff]
      %v650 = vld [vmem:[%s258 + $0xae8] sm:$0xff]
      %v651 = vld [vmem:[%s258 + $0xaf0] sm:$0xff]
      %v652 = vld [vmem:[%s258 + $0xaf8] sm:$0xff]
      %v653 = vld [vmem:[%s258 + $0xb00] sm:$0xff]
      %v654 = vld [vmem:[%s258 + $0xb08] sm:$0xff]
      %v655 = vld [vmem:[%s258 + $0xb10] sm:$0xff]
      %v656 = vld [vmem:[%s258 + $0xb18] sm:$0xff]
      %v657 = vld [vmem:[%s258 + $0xb20] sm:$0xff]
      %v658 = vld [vmem:[%s258 + $0xb28] sm:$0xff]
      %v659 = vld [vmem:[%s258 + $0xb30] sm:$0xff]
      %v660 = vld [vmem:[%s258 + $0xb38] sm:$0xff]
      %v661 = vld [vmem:[%s258 + $0xb40] sm:$0xff]
      %v662 = vld [vmem:[%s258 + $0xb48] sm:$0xff]
      %v663 = vld [vmem:[%s258 + $0xb50] sm:$0xff]
      %v664 = vld [vmem:[%s258 + $0xb58] sm:$0xff]
      %v665 = vld [vmem:[%s258 + $0xb60] sm:$0xff]
      %v666 = vld [vmem:[%s258 + $0xb68] sm:$0xff]
      %v667 = vld [vmem:[%s258 + $0xb70] sm:$0xff]
      %v668 = vld [vmem:[%s258 + $0xb78] sm:$0xff]
      %v669 = vld [vmem:[%s258 + $0xb80] sm:$0xff]
      %v670 = vld [vmem:[%s258 + $0xb88] sm:$0xff]
      %v671 = vld [vmem:[%s258 + $0xb90] sm:$0xff]
      %v672 = vld [vmem:[%s258 + $0xb98] sm:$0xff]
      %v673 = vld [vmem:[%s258 + $0xba0] sm:$0xff]
      %v674 = vld [vmem:[%s258 + $0xba8] sm:$0xff]
      %v675 = vld [vmem:[%s258 + $0xbb0] sm:$0xff]
      %v676 = vld [vmem:[%s258 + $0xbb8] sm:$0xff]
      %v677 = vld [vmem:[%s258 + $0xbc0] sm:$0xff]
      %v678 = vld [vmem:[%s258 + $0xbc8] sm:$0xff]
      %v679 = vld [vmem:[%s258 + $0xbd0] sm:$0xff]
      %v680 = vld [vmem:[%s258 + $0xbd8] sm:$0xff]
      %v681 = vld [vmem:[%s258 + $0xbe0] sm:$0xff]
      %v682 = vld [vmem:[%s258 + $0xbe8] sm:$0xff]
      %v683 = vld [vmem:[%s258 + $0xbf0] sm:$0xff]
      %v684 = vld [vmem:[%s258 + $0xbf8] sm:$0xff]
      %v685 = vld [vmem:[%s258 + $0xc00] sm:$0xff]
      %v686 = vld [vmem:[%s258 + $0xc08] sm:$0xff]
      %v687 = vld [vmem:[%s258 + $0xc10] sm:$0xff]
      %v688 = vld [vmem:[%s258 + $0xc18] sm:$0xff]
      %v689 = vld [vmem:[%s258 + $0xc20] sm:$0xff]
      %v690 = vld [vmem:[%s258 + $0xc28] sm:$0xff]
      %v691 = vld [vmem:[%s258 + $0xc30] sm:$0xff]
      %v692 = vld [vmem:[%s258 + $0xc38] sm:$0xff]
      %v693 = vld [vmem:[%s258 + $0xc40] sm:$0xff]
      %v694 = vld [vmem:[%s258 + $0xc48] sm:$0xff]
      %v695 = vld [vmem:[%s258 + $0xc50] sm:$0xff]
      %v696 = vld [vmem:[%s258 + $0xc58] sm:$0xff]
      %v697 = vld [vmem:[%s258 + $0xc60] sm:$0xff]
      %v698 = vld [vmem:[%s258 + $0xc68] sm:$0xff]
      %v699 = vld [vmem:[%s258 + $0xc70] sm:$0xff]
      %v700 = vld [vmem:[%s258 + $0xc78] sm:$0xff]
      %v701 = vld [vmem:[%s258 + $0xc80] sm:$0xff]
      %v702 = vld [vmem:[%s258 + $0xc88] sm:$0xff]
      %v703 = vld [vmem:[%s258 + $0xc90] sm:$0xff]
      %v704 = vld [vmem:[%s258 + $0xc98] sm:$0xff]
      %v705 = vld [vmem:[%s258 + $0xca0] sm:$0xff]
      %v706 = vld [vmem:[%s258 + $0xca8] sm:$0xff]
      %v707 = vld [vmem:[%s258 + $0xcb0] sm:$0xff]
      %v708 = vld [vmem:[%s258 + $0xcb8] sm:$0xff]
      %v709 = vld [vmem:[%s258 + $0xcc0] sm:$0xff]
      %v710 = vld [vmem:[%s258 + $0xcc8] sm:$0xff]
      %v711 = vld [vmem:[%s258 + $0xcd0] sm:$0xff]
      %v712 = vld [vmem:[%s258 + $0xcd8] sm:$0xff]
      %v713 = vld [vmem:[%s258 + $0xce0] sm:$0xff]
      %v714 = vld [vmem:[%s258 + $0xce8] sm:$0xff]
      %v715 = vld [vmem:[%s258 + $0xcf0] sm:$0xff]
      %v716 = vld [vmem:[%s258 + $0xcf8] sm:$0xff]
      %v717 = vld [vmem:[%s258 + $0xd00] sm:$0xff]
      %v718 = vld [vmem:[%s258 + $0xd08] sm:$0xff]
      %v719 = vld [vmem:[%s258 + $0xd10] sm:$0xff]
      %v720 = vld [vmem:[%s258 + $0xd18] sm:$0xff]
      %v721 = vld [vmem:[%s258 + $0xd20] sm:$0xff]
      %v722 = vld [vmem:[%s258 + $0xd28] sm:$0xff]
      %v723 = vld [vmem:[%s258 + $0xd30] sm:$0xff]
      %v724 = vld [vmem:[%s258 + $0xd38] sm:$0xff]
      %v725 = vld [vmem:[%s258 + $0xd40] sm:$0xff]
      %v726 = vld [vmem:[%s258 + $0xd48] sm:$0xff]
      %v727 = vld [vmem:[%s258 + $0xd50] sm:$0xff]
      %v728 = vld [vmem:[%s258 + $0xd58] sm:$0xff]
      %v729 = vld [vmem:[%s258 + $0xd60] sm:$0xff]
      %v730 = vld [vmem:[%s258 + $0xd68] sm:$0xff]
      %v731 = vld [vmem:[%s258 + $0xd70] sm:$0xff]
      %v732 = vld [vmem:[%s258 + $0xd78] sm:$0xff]
      %v733 = vld [vmem:[%s258 + $0xd80] sm:$0xff]
      %v734 = vld [vmem:[%s258 + $0xd88] sm:$0xff]
      %v735 = vld [vmem:[%s258 + $0xd90] sm:$0xff]
      %v736 = vld [vmem:[%s258 + $0xd98] sm:$0xff]
      %v737 = vld [vmem:[%s258 + $0xda0] sm:$0xff]
      %v738 = vld [vmem:[%s258 + $0xda8] sm:$0xff]
      %v739 = vld [vmem:[%s258 + $0xdb0] sm:$0xff]
      %v740 = vld [vmem:[%s258 + $0xdb8] sm:$0xff]
      %v741 = vld [vmem:[%s258 + $0xdc0] sm:$0xff]
      %v742 = vld [vmem:[%s258 + $0xdc8] sm:$0xff]
      %v743 = vld [vmem:[%s258 + $0xdd0] sm:$0xff]
      %v744 = vld [vmem:[%s258 + $0xdd8] sm:$0xff]
      %v745 = vld [vmem:[%s258 + $0xde0] sm:$0xff]
      %v746 = vld [vmem:[%s258 + $0xde8] sm:$0xff]
      %v747 = vld [vmem:[%s258 + $0xdf0] sm:$0xff]
      %v748 = vld [vmem:[%s258 + $0xdf8] sm:$0xff]
      %v749 = vld [vmem:[%s258 + $0xe00] sm:$0xff]
      %v750 = vld [vmem:[%s258 + $0xe08] sm:$0xff]
      %v751 = vld [vmem:[%s258 + $0xe10] sm:$0xff]
      %v752 = vld [vmem:[%s258 + $0xe18] sm:$0xff]
      %v753 = vld [vmem:[%s258 + $0xe20] sm:$0xff]
      %v754 = vld [vmem:[%s258 + $0xe28] sm:$0xff]
      %v755 = vld [vmem:[%s258 + $0xe30] sm:$0xff]
      %v756 = vld [vmem:[%s258 + $0xe38] sm:$0xff]
      %v757 = vld [vmem:[%s258 + $0xe40] sm:$0xff]
      %v758 = vld [vmem:[%s258 + $0xe48] sm:$0xff]
      %v759 = vld [vmem:[%s258 + $0xe50] sm:$0xff]
      %v760 = vld [vmem:[%s258 + $0xe58] sm:$0xff]
      %v761 = vld [vmem:[%s258 + $0xe60] sm:$0xff]
      %v762 = vld [vmem:[%s258 + $0xe68] sm:$0xff]
      %v763 = vld [vmem:[%s258 + $0xe70] sm:$0xff]
      %v764 = vld [vmem:[%s258 + $0xe78] sm:$0xff]
      %v765 = vld [vmem:[%s258 + $0xe80] sm:$0xff]
      %v766 = vld [vmem:[%s258 + $0xe88] sm:$0xff]
      %v767 = vld [vmem:[%s258 + $0xe90] sm:$0xff]
      %v768 = vld [vmem:[%s258 + $0xe98] sm:$0xff]
      %v769 = vld [vmem:[%s258 + $0xea0] sm:$0xff]
      %v770 = vld [vmem:[%s258 + $0xea8] sm:$0xff]
      %v771 = vld [vmem:[%s258 + $0xeb0] sm:$0xff]
      %v772 = vld [vmem:[%s258 + $0xeb8] sm:$0xff]
      %v773 = vld [vmem:[%s258 + $0xec0] sm:$0xff]
      %v774 = vld [vmem:[%s258 + $0xec8] sm:$0xff]
      %v775 = vld [vmem:[%s258 + $0xed0] sm:$0xff]
      %v776 = vld [vmem:[%s258 + $0xed8] sm:$0xff]
      %v777 = vld [vmem:[%s258 + $0xee0] sm:$0xff]
      %v778 = vld [vmem:[%s258 + $0xee8] sm:$0xff]
      %v779 = vld [vmem:[%s258 + $0xef0] sm:$0xff]
      %v780 = vld [vmem:[%s258 + $0xef8] sm:$0xff]
      %v781 = vld [vmem:[%s258 + $0xf00] sm:$0xff]
      %v782 = vld [vmem:[%s258 + $0xf08] sm:$0xff]
      %v783 = vld [vmem:[%s258 + $0xf10] sm:$0xff]
      %v784 = vld [vmem:[%s258 + $0xf18] sm:$0xff]
      %v785 = vld [vmem:[%s258 + $0xf20] sm:$0xff]
      %v786 = vld [vmem:[%s258 + $0xf28] sm:$0xff]
      %v787 = vld [vmem:[%s258 + $0xf30] sm:$0xff]
      %v788 = vld [vmem:[%s258 + $0xf38] sm:$0xff]
      %v789 = vld [vmem:[%s258 + $0xf40] sm:$0xff]
      %v790 = vld [vmem:[%s258 + $0xf48] sm:$0xff]
      %v791 = vld [vmem:[%s258 + $0xf50] sm:$0xff]
      %v792 = vld [vmem:[%s258 + $0xf58] sm:$0xff]
      %v793 = vld [vmem:[%s258 + $0xf60] sm:$0xff]
      %v794 = vld [vmem:[%s258 + $0xf68] sm:$0xff]
      %v795 = vld [vmem:[%s258 + $0xf70] sm:$0xff]
      %v796 = vld [vmem:[%s258 + $0xf78] sm:$0xff]
      %v797 = vld [vmem:[%s258 + $0xf80] sm:$0xff]
      %v798 = vld [vmem:[%s258 + $0xf88] sm:$0xff]
      %v799 = vld [vmem:[%s258 + $0xf90] sm:$0xff]
      %v800 = vld [vmem:[%s258 + $0xf98] sm:$0xff]
      %v801 = vld [vmem:[%s258 + $0xfa0] sm:$0xff]
      %v802 = vld [vmem:[%s258 + $0xfa8] sm:$0xff]
      %v803 = vld [vmem:[%s258 + $0xfb0] sm:$0xff]
      %v804 = vld [vmem:[%s258 + $0xfb8] sm:$0xff]
      %v805 = vld [vmem:[%s258 + $0xfc0] sm:$0xff]
      %v806 = vld [vmem:[%s258 + $0xfc8] sm:$0xff]
      %v807 = vld [vmem:[%s258 + $0xfd0] sm:$0xff]
      %v808 = vld [vmem:[%s258 + $0xfd8] sm:$0xff]
      %v809 = vld [vmem:[%s258 + $0xfe0] sm:$0xff]
      %v810 = vld [vmem:[%s258 + $0xfe8] sm:$0xff]
      %v811 = vld [vmem:[%s258 + $0xff0] sm:$0xff]
      %v812 = vld [vmem:[%s258 + $0xff8] sm:$0xff]
      %v813 = vld [vmem:[%s258 + $0x1000] sm:$0xff]
      %v814 = vld [vmem:[%s258 + $0x1008] sm:$0xff]
      %v815 = vld [vmem:[%s258 + $0x1010] sm:$0xff]
      %v816 = vld [vmem:[%s258 + $0x1018] sm:$0xff]
      %v817 = vld [vmem:[%s258 + $0x1020] sm:$0xff]
      %v818 = vld [vmem:[%s258 + $0x1028] sm:$0xff]
      %v819 = vld [vmem:[%s258 + $0x1030] sm:$0xff]
      %v820 = vld [vmem:[%s258 + $0x1038] sm:$0xff]
      %v821 = vld [vmem:[%s258 + $0x1040] sm:$0xff]
      %v822 = vld [vmem:[%s258 + $0x1048] sm:$0xff]
      %v823 = vld [vmem:[%s258 + $0x1050] sm:$0xff]
      %v824 = vld [vmem:[%s258 + $0x1058] sm:$0xff]
      %v825 = vld [vmem:[%s258 + $0x1060] sm:$0xff]
      %v826 = vld [vmem:[%s258 + $0x1068] sm:$0xff]
      %v827 = vld [vmem:[%s258 + $0x1070] sm:$0xff]
      %v828 = vld [vmem:[%s258 + $0x1078] sm:$0xff]
      %v829 = vld [vmem:[%s258 + $0x1080] sm:$0xff]
      %v830 = vld [vmem:[%s258 + $0x1088] sm:$0xff]
      %v831 = vld [vmem:[%s258 + $0x1090] sm:$0xff]
      %v832 = vld [vmem:[%s258 + $0x1098] sm:$0xff]
      %v833 = vld [vmem:[%s258 + $0x10a0] sm:$0xff]
      %v834 = vld [vmem:[%s258 + $0x10a8] sm:$0xff]
      %v835 = vld [vmem:[%s258 + $0x10b0] sm:$0xff]
      %v836 = vld [vmem:[%s258 + $0x10b8] sm:$0xff]
      %v837 = vld [vmem:[%s258 + $0x10c0] sm:$0xff]
      %v838 = vld [vmem:[%s258 + $0x10c8] sm:$0xff]
      %v839 = vld [vmem:[%s258 + $0x10d0] sm:$0xff]
      %v840 = vld [vmem:[%s258 + $0x10d8] sm:$0xff]
      %v841 = vld [vmem:[%s258 + $0x10e0] sm:$0xff]
      %v842 = vld [vmem:[%s258 + $0x10e8] sm:$0xff]
      %v843 = vld [vmem:[%s258 + $0x10f0] sm:$0xff]
      %v844 = vld [vmem:[%s258 + $0x10f8] sm:$0xff]
      %v845 = vld [vmem:[%s258 + $0x1100] sm:$0xff]
      %v846 = vld [vmem:[%s258 + $0x1108] sm:$0xff]
      %v847 = vld [vmem:[%s258 + $0x1110] sm:$0xff]
      %v848 = vld [vmem:[%s258 + $0x1118] sm:$0xff]
      %v849 = vld [vmem:[%s258 + $0x1120] sm:$0xff]
      %v850 = vld [vmem:[%s258 + $0x1128] sm:$0xff]
      %v851 = vld [vmem:[%s258 + $0x1130] sm:$0xff]
      %v852 = vld [vmem:[%s258 + $0x1138] sm:$0xff]
      %v853 = vld [vmem:[%s258 + $0x1140] sm:$0xff]
      %v854 = vld [vmem:[%s258 + $0x1148] sm:$0xff]
      %v855 = vld [vmem:[%s258 + $0x1150] sm:$0xff]
      %v856 = vld [vmem:[%s258 + $0x1158] sm:$0xff]
      %v857 = vld [vmem:[%s258 + $0x1160] sm:$0xff]
      %v858 = vld [vmem:[%s258 + $0x1168] sm:$0xff]
      %v859 = vld [vmem:[%s258 + $0x1170] sm:$0xff]
      %v860 = vld [vmem:[%s258 + $0x1178] sm:$0xff]
      %v861 = vld [vmem:[%s258 + $0x1180] sm:$0xff]
      %v862 = vld [vmem:[%s258 + $0x1188] sm:$0xff]
      %v863 = vld [vmem:[%s258 + $0x1190] sm:$0xff]
      %v864 = vld [vmem:[%s258 + $0x1198] sm:$0xff]
      %v865 = vld [vmem:[%s258 + $0x11a0] sm:$0xff]
      %v866 = vld [vmem:[%s258 + $0x11a8] sm:$0xff]
      %v867 = vld [vmem:[%s258 + $0x11b0] sm:$0xff]
      %v868 = vld [vmem:[%s258 + $0x11b8] sm:$0xff]
      %v869 = vld [vmem:[%s258 + $0x11c0] sm:$0xff]
      %v870 = vld [vmem:[%s258 + $0x11c8] sm:$0xff]
      %v871 = vld [vmem:[%s258 + $0x11d0] sm:$0xff]
      %v872 = vld [vmem:[%s258 + $0x11d8] sm:$0xff]
      %v873 = vld [vmem:[%s258 + $0x11e0] sm:$0xff]
      %v874 = vld [vmem:[%s258 + $0x11e8] sm:$0xff]
      %v875 = vld [vmem:[%s258 + $0x11f0] sm:$0xff]
      %v876 = vld [vmem:[%s258 + $0x11f8] sm:$0xff]
      %v877 = vld [vmem:[%s258 + $0x1200] sm:$0xff]
      %v878 = vld [vmem:[%s258 + $0x1208] sm:$0xff]
      %v879 = vld [vmem:[%s258 + $0x1210] sm:$0xff]
      %v880 = vld [vmem:[%s258 + $0x1218] sm:$0xff]
      %v881 = vld [vmem:[%s258 + $0x1220] sm:$0xff]
      %v882 = vld [vmem:[%s258 + $0x1228] sm:$0xff]
      %v883 = vld [vmem:[%s258 + $0x1230] sm:$0xff]
      %v884 = vld [vmem:[%s258 + $0x1238] sm:$0xff]
      %v885 = vld [vmem:[%s258 + $0x1240] sm:$0xff]
      %v886 = vld [vmem:[%s258 + $0x1248] sm:$0xff]
      %v887 = vld [vmem:[%s258 + $0x1250] sm:$0xff]
      %v888 = vld [vmem:[%s258 + $0x1258] sm:$0xff]
      %v889 = vld [vmem:[%s258 + $0x1260] sm:$0xff]
      %v890 = vld [vmem:[%s258 + $0x1268] sm:$0xff]
      %v891 = vld [vmem:[%s258 + $0x1270] sm:$0xff]
      %v892 = vld [vmem:[%s258 + $0x1278] sm:$0xff]
      %v893 = vld [vmem:[%s258 + $0x1280] sm:$0xff]
      %v894 = vld [vmem:[%s258 + $0x1288] sm:$0xff]
      %v895 = vld [vmem:[%s258 + $0x1290] sm:$0xff]
      %v896 = vld [vmem:[%s258 + $0x1298] sm:$0xff]
      %v897 = vld [vmem:[%s258 + $0x12a0] sm:$0xff]
      %v898 = vld [vmem:[%s258 + $0x12a8] sm:$0xff]
      %v899 = vld [vmem:[%s258 + $0x12b0] sm:$0xff]
      %v900 = vld [vmem:[%s258 + $0x12b8] sm:$0xff]
      %v901 = vld [vmem:[%s258 + $0x12c0] sm:$0xff]
      %v902 = vld [vmem:[%s258 + $0x12c8] sm:$0xff]
      %v903 = vld [vmem:[%s258 + $0x12d0] sm:$0xff]
      %v904 = vld [vmem:[%s258 + $0x12d8] sm:$0xff]
      %v905 = vld [vmem:[%s258 + $0x12e0] sm:$0xff]
      %v906 = vld [vmem:[%s258 + $0x12e8] sm:$0xff]
      %v907 = vld [vmem:[%s258 + $0x12f0] sm:$0xff]
      %v908 = vld [vmem:[%s258 + $0x12f8] sm:$0xff]
      %v909 = vld [vmem:[%s258 + $0x1300] sm:$0xff]
      %v910 = vld [vmem:[%s258 + $0x1308] sm:$0xff]
      %v911 = vld [vmem:[%s258 + $0x1310] sm:$0xff]
      %v912 = vld [vmem:[%s258 + $0x1318] sm:$0xff]
      %v913 = vld [vmem:[%s258 + $0x1320] sm:$0xff]
      %v914 = vld [vmem:[%s258 + $0x1328] sm:$0xff]
      %v915 = vld [vmem:[%s258 + $0x1330] sm:$0xff]
      %v916 = vld [vmem:[%s258 + $0x1338] sm:$0xff]
      %v917 = vld [vmem:[%s258 + $0x1340] sm:$0xff]
      %v918 = vld [vmem:[%s258 + $0x1348] sm:$0xff]
      %v919 = vld [vmem:[%s258 + $0x1350] sm:$0xff]
      %v920 = vld [vmem:[%s258 + $0x1358] sm:$0xff]
      %v921 = vld [vmem:[%s258 + $0x1360] sm:$0xff]
      %v922 = vld [vmem:[%s258 + $0x1368] sm:$0xff]
      %v923 = vld [vmem:[%s258 + $0x1370] sm:$0xff]
      %v924 = vld [vmem:[%s258 + $0x1378] sm:$0xff]
      %v925 = vld [vmem:[%s258 + $0x1380] sm:$0xff]
      %v926 = vld [vmem:[%s258 + $0x1388] sm:$0xff]
      %v927 = vld [vmem:[%s258 + $0x1390] sm:$0xff]
      %v928 = vld [vmem:[%s258 + $0x1398] sm:$0xff]
      %v929 = vld [vmem:[%s258 + $0x13a0] sm:$0xff]
      %v930 = vld [vmem:[%s258 + $0x13a8] sm:$0xff]
      %v931 = vld [vmem:[%s258 + $0x13b0] sm:$0xff]
      %v932 = vld [vmem:[%s258 + $0x13b8] sm:$0xff]
      %v933 = vld [vmem:[%s258 + $0x13c0] sm:$0xff]
      %v934 = vld [vmem:[%s258 + $0x13c8] sm:$0xff]
      %v935 = vld [vmem:[%s258 + $0x13d0] sm:$0xff]
      %v936 = vld [vmem:[%s258 + $0x13d8] sm:$0xff]
      %v937 = vld [vmem:[%s258 + $0x13e0] sm:$0xff]
      %v938 = vld [vmem:[%s258 + $0x13e8] sm:$0xff]
      %v939 = vld [vmem:[%s258 + $0x13f0] sm:$0xff]
      %v940 = vld [vmem:[%s258 + $0x13f8] sm:$0xff]
      %v941 = vld [vmem:[%s258 + $0x1400] sm:$0xff]
      %v942 = vld [vmem:[%s258 + $0x1408] sm:$0xff]
      %v943 = vld [vmem:[%s258 + $0x1410] sm:$0xff]
      %v944 = vld [vmem:[%s258 + $0x1418] sm:$0xff]
      %v945 = vld [vmem:[%s258 + $0x1420] sm:$0xff]
      %v946 = vld [vmem:[%s258 + $0x1428] sm:$0xff]
      %v947 = vld [vmem:[%s258 + $0x1430] sm:$0xff]
      %v948 = vld [vmem:[%s258 + $0x1438] sm:$0xff]
      %v949 = vld [vmem:[%s258 + $0x1440] sm:$0xff]
      %v950 = vld [vmem:[%s258 + $0x1448] sm:$0xff]
      %v951 = vld [vmem:[%s258 + $0x1450] sm:$0xff]
      %v952 = vld [vmem:[%s258 + $0x1458] sm:$0xff]
      %v953 = vld [vmem:[%s258 + $0x1460] sm:$0xff]
      %v954 = vld [vmem:[%s258 + $0x1468] sm:$0xff]
      %v955 = vld [vmem:[%s258 + $0x1470] sm:$0xff]
      %v956 = vld [vmem:[%s258 + $0x1478] sm:$0xff]
      %v957 = vld [vmem:[%s258 + $0x1480] sm:$0xff]
      %v958 = vld [vmem:[%s258 + $0x1488] sm:$0xff]
      %v959 = vld [vmem:[%s258 + $0x1490] sm:$0xff]
      %v960 = vld [vmem:[%s258 + $0x1498] sm:$0xff]
      %v961 = vld [vmem:[%s258 + $0x14a0] sm:$0xff]
      %v962 = vld [vmem:[%s258 + $0x14a8] sm:$0xff]
      %v963 = vld [vmem:[%s258 + $0x14b0] sm:$0xff]
      %v964 = vld [vmem:[%s258 + $0x14b8] sm:$0xff]
      %v965 = vld [vmem:[%s258 + $0x14c0] sm:$0xff]
      %v966 = vld [vmem:[%s258 + $0x14c8] sm:$0xff]
      %v967 = vld [vmem:[%s258 + $0x14d0] sm:$0xff]
      %v968 = vld [vmem:[%s258 + $0x14d8] sm:$0xff]
      %v969 = vld [vmem:[%s258 + $0x14e0] sm:$0xff]
      %v970 = vld [vmem:[%s258 + $0x14e8] sm:$0xff]
      %v971 = vld [vmem:[%s258 + $0x14f0] sm:$0xff]
      %v972 = vld [vmem:[%s258 + $0x14f8] sm:$0xff]
      %v973 = vld [vmem:[%s258 + $0x1500] sm:$0xff]
      %v974 = vld [vmem:[%s258 + $0x1508] sm:$0xff]
      %v975 = vld [vmem:[%s258 + $0x1510] sm:$0xff]
      %v976 = vld [vmem:[%s258 + $0x1518] sm:$0xff]
      %v977 = vld [vmem:[%s258 + $0x1520] sm:$0xff]
      %v978 = vld [vmem:[%s258 + $0x1528] sm:$0xff]
      %v979 = vld [vmem:[%s258 + $0x1530] sm:$0xff]
      %v980 = vld [vmem:[%s258 + $0x1538] sm:$0xff]
      %v981 = vld [vmem:[%s258 + $0x1540] sm:$0xff]
      %v982 = vld [vmem:[%s258 + $0x1548] sm:$0xff]
      %v983 = vld [vmem:[%s258 + $0x1550] sm:$0xff]
      %v984 = vld [vmem:[%s258 + $0x1558] sm:$0xff]
      %v985 = vld [vmem:[%s258 + $0x1560] sm:$0xff]
      %v986 = vld [vmem:[%s258 + $0x1568] sm:$0xff]
      %v987 = vld [vmem:[%s258 + $0x1570] sm:$0xff]
      %v988 = vld [vmem:[%s258 + $0x1578] sm:$0xff]
      %v989 = vld [vmem:[%s258 + $0x1580] sm:$0xff]
      %v990 = vld [vmem:[%s258 + $0x1588] sm:$0xff]
      %v991 = vld [vmem:[%s258 + $0x1590] sm:$0xff]
      %v992 = vld [vmem:[%s258 + $0x1598] sm:$0xff]
      %v993 = vld [vmem:[%s258 + $0x15a0] sm:$0xff]
      %v994 = vld [vmem:[%s258 + $0x15a8] sm:$0xff]
      %v995 = vld [vmem:[%s258 + $0x15b0] sm:$0xff]
      %v996 = vld [vmem:[%s258 + $0x15b8] sm:$0xff]
      %v997 = vld [vmem:[%s258 + $0x15c0] sm:$0xff]
      %v998 = vld [vmem:[%s258 + $0x15c8] sm:$0xff]
      %v999 = vld [vmem:[%s258 + $0x15d0] sm:$0xff]
      %v1000 = vld [vmem:[%s258 + $0x15d8] sm:$0xff]
      %v1001 = vld [vmem:[%s258 + $0x15e0] sm:$0xff]
      %v1002 = vld [vmem:[%s258 + $0x15e8] sm:$0xff]
      %v1003 = vld [vmem:[%s258 + $0x15f0] sm:$0xff]
      %v1004 = vld [vmem:[%s258 + $0x15f8] sm:$0xff]
      %v1005 = vld [vmem:[%s258 + $0x1600] sm:$0xff]
      %v1006 = vld [vmem:[%s258 + $0x1608] sm:$0xff]
      %v1007 = vld [vmem:[%s258 + $0x1610] sm:$0xff]
      %v1008 = vld [vmem:[%s258 + $0x1618] sm:$0xff]
      %v1009 = vld [vmem:[%s258 + $0x1620] sm:$0xff]
      %v1010 = vld [vmem:[%s258 + $0x1628] sm:$0xff]
      %v1011 = vld [vmem:[%s258 + $0x1630] sm:$0xff]
      %v1012 = vld [vmem:[%s258 + $0x1638] sm:$0xff]
      %v1013 = vld [vmem:[%s258 + $0x1640] sm:$0xff]
      %v1014 = vld [vmem:[%s258 + $0x1648] sm:$0xff]
      %v1015 = vld [vmem:[%s258 + $0x1650] sm:$0xff]
      %v1016 = vld [vmem:[%s258 + $0x1658] sm:$0xff]
      %v1017 = vld [vmem:[%s258 + $0x1660] sm:$0xff]
      %v1018 = vld [vmem:[%s258 + $0x1668] sm:$0xff]
      %v1019 = vld [vmem:[%s258 + $0x1670] sm:$0xff]
      %v1020 = vld [vmem:[%s258 + $0x1678] sm:$0xff]
      %v1021 = vld [vmem:[%s258 + $0x1680] sm:$0xff]
      %v1022 = vld [vmem:[%s258 + $0x1688] sm:$0xff]
      %v1023 = vld [vmem:[%s258 + $0x1690] sm:$0xff]
      %v1024 = vld [vmem:[%s258 + $0x1698] sm:$0xff]
      %v1025 = vld [vmem:[%s258 + $0x16a0] sm:$0xff]
      %v1026 = vld [vmem:[%s258 + $0x16a8] sm:$0xff]
      %v1027 = vld [vmem:[%s258 + $0x16b0] sm:$0xff]
      %v1028 = vld [vmem:[%s258 + $0x16b8] sm:$0xff]
      %v1029 = vld [vmem:[%s258 + $0x16c0] sm:$0xff]
      %v1030 = vld [vmem:[%s258 + $0x16c8] sm:$0xff]
      %v1031 = vld [vmem:[%s258 + $0x16d0] sm:$0xff]
      %v1032 = vld [vmem:[%s258 + $0x16d8] sm:$0xff]
      %v1033 = vld [vmem:[%s258 + $0x16e0] sm:$0xff]
      %v1034 = vld [vmem:[%s258 + $0x16e8] sm:$0xff]
      %v1035 = vld [vmem:[%s258 + $0x16f0] sm:$0xff]
      %v1036 = vld [vmem:[%s258 + $0x16f8] sm:$0xff]
      %v1037 = vld [vmem:[%s258 + $0x1700] sm:$0xff]
      %v1038 = vld [vmem:[%s258 + $0x1708] sm:$0xff]
      %v1039 = vld [vmem:[%s258 + $0x1710] sm:$0xff]
      %v1040 = vld [vmem:[%s258 + $0x1718] sm:$0xff]
      %v1041 = vld [vmem:[%s258 + $0x1720] sm:$0xff]
      %v1042 = vld [vmem:[%s258 + $0x1728] sm:$0xff]
      %v1043 = vld [vmem:[%s258 + $0x1730] sm:$0xff]
      %v1044 = vld [vmem:[%s258 + $0x1738] sm:$0xff]
      %v1045 = vld [vmem:[%s258 + $0x1740] sm:$0xff]
      %v1046 = vld [vmem:[%s258 + $0x1748] sm:$0xff]
      %v1047 = vld [vmem:[%s258 + $0x1750] sm:$0xff]
      %v1048 = vld [vmem:[%s258 + $0x1758] sm:$0xff]
      %v1049 = vld [vmem:[%s258 + $0x1760] sm:$0xff]
      %v1050 = vld [vmem:[%s258 + $0x1768] sm:$0xff]
      %v1051 = vld [vmem:[%s258 + $0x1770] sm:$0xff]
      %v1052 = vld [vmem:[%s258 + $0x1778] sm:$0xff]
      %v1053 = vld [vmem:[%s258 + $0x1780] sm:$0xff]
      %v1054 = vld [vmem:[%s258 + $0x1788] sm:$0xff]
      %v1055 = vld [vmem:[%s258 + $0x1790] sm:$0xff]
      %v1056 = vld [vmem:[%s258 + $0x1798] sm:$0xff]
      %v1057 = vld [vmem:[%s258 + $0x17a0] sm:$0xff]
      %v1058 = vld [vmem:[%s258 + $0x17a8] sm:$0xff]
      %v1059 = vld [vmem:[%s258 + $0x17b0] sm:$0xff]
      %v1060 = vld [vmem:[%s258 + $0x17b8] sm:$0xff]
      %v1061 = vld [vmem:[%s258 + $0x17c0] sm:$0xff]
      %v1062 = vld [vmem:[%s258 + $0x17c8] sm:$0xff]
      %v1063 = vld [vmem:[%s258 + $0x17d0] sm:$0xff]
      %v1064 = vld [vmem:[%s258 + $0x17d8] sm:$0xff]
      %v1065 = vld [vmem:[%s258 + $0x17e0] sm:$0xff]
      %v1066 = vld [vmem:[%s258 + $0x17e8] sm:$0xff]
      %v1067 = vld [vmem:[%s258 + $0x17f0] sm:$0xff]
      %v1068 = vld [vmem:[%s258 + $0x17f8] sm:$0xff]
      %v1069 = vld [vmem:[%s258 + $0x1800] sm:$0xff]
      %v1070 = vld [vmem:[%s258 + $0x1808] sm:$0xff]
      %v1071 = vld [vmem:[%s258 + $0x1810] sm:$0xff]
      %v1072 = vld [vmem:[%s258 + $0x1818] sm:$0xff]
      %v1073 = vld [vmem:[%s258 + $0x1820] sm:$0xff]
      %v1074 = vld [vmem:[%s258 + $0x1828] sm:$0xff]
      %v1075 = vld [vmem:[%s258 + $0x1830] sm:$0xff]
      %v1076 = vld [vmem:[%s258 + $0x1838] sm:$0xff]
      %v1077 = vld [vmem:[%s258 + $0x1840] sm:$0xff]
      %v1078 = vld [vmem:[%s258 + $0x1848] sm:$0xff]
      %v1079 = vld [vmem:[%s258 + $0x1850] sm:$0xff]
      %v1080 = vld [vmem:[%s258 + $0x1858] sm:$0xff]
      %v1081 = vld [vmem:[%s258 + $0x1860] sm:$0xff]
      %v1082 = vld [vmem:[%s258 + $0x1868] sm:$0xff]
      %v1083 = vld [vmem:[%s258 + $0x1870] sm:$0xff]
      %v1084 = vld [vmem:[%s258 + $0x1878] sm:$0xff]
      %v1085 = vld [vmem:[%s258 + $0x1880] sm:$0xff]
      %v1086 = vld [vmem:[%s258 + $0x1888] sm:$0xff]
      %v1087 = vld [vmem:[%s258 + $0x1890] sm:$0xff]
      %v1088 = vld [vmem:[%s258 + $0x1898] sm:$0xff]
      %v1089 = vld [vmem:[%s258 + $0x18a0] sm:$0xff]
      %v1090 = vld [vmem:[%s258 + $0x18a8] sm:$0xff]
      %v1091 = vld [vmem:[%s258 + $0x18b0] sm:$0xff]
      %v1092 = vld [vmem:[%s258 + $0x18b8] sm:$0xff]
      %v1093 = vld [vmem:[%s258 + $0x18c0] sm:$0xff]
      %v1094 = vld [vmem:[%s258 + $0x18c8] sm:$0xff]
      %v1095 = vld [vmem:[%s258 + $0x18d0] sm:$0xff]
      %v1096 = vld [vmem:[%s258 + $0x18d8] sm:$0xff]
      %v1097 = vld [vmem:[%s258 + $0x18e0] sm:$0xff]
      %v1098 = vld [vmem:[%s258 + $0x18e8] sm:$0xff]
      %v1099 = vld [vmem:[%s258 + $0x18f0] sm:$0xff]
      %v1100 = vld [vmem:[%s258 + $0x18f8] sm:$0xff]
      %v1101 = vld [vmem:[%s258 + $0x1900] sm:$0xff]
      %v1102 = vld [vmem:[%s258 + $0x1908] sm:$0xff]
      %v1103 = vld [vmem:[%s258 + $0x1910] sm:$0xff]
      %v1104 = vld [vmem:[%s258 + $0x1918] sm:$0xff]
      %v1105 = vld [vmem:[%s258 + $0x1920] sm:$0xff]
      %v1106 = vld [vmem:[%s258 + $0x1928] sm:$0xff]
      %v1107 = vld [vmem:[%s258 + $0x1930] sm:$0xff]
      %v1108 = vld [vmem:[%s258 + $0x1938] sm:$0xff]
      %v1109 = vld [vmem:[%s258 + $0x1940] sm:$0xff]
      %v1110 = vld [vmem:[%s258 + $0x1948] sm:$0xff]
      %v1111 = vld [vmem:[%s258 + $0x1950] sm:$0xff]
      %v1112 = vld [vmem:[%s258 + $0x1958] sm:$0xff]
      %v1113 = vld [vmem:[%s258 + $0x1960] sm:$0xff]
      %v1114 = vld [vmem:[%s258 + $0x1968] sm:$0xff]
      %v1115 = vld [vmem:[%s258 + $0x1970] sm:$0xff]
      %v1116 = vld [vmem:[%s258 + $0x1978] sm:$0xff]
      %v1117 = vld [vmem:[%s258 + $0x1980] sm:$0xff]
      %v1118 = vld [vmem:[%s258 + $0x1988] sm:$0xff]
      %v1119 = vld [vmem:[%s258 + $0x1990] sm:$0xff]
      %v1120 = vld [vmem:[%s258 + $0x1998] sm:$0xff]
      %v1121 = vld [vmem:[%s258 + $0x19a0] sm:$0xff]
      %v1122 = vld [vmem:[%s258 + $0x19a8] sm:$0xff]
      %v1123 = vld [vmem:[%s258 + $0x19b0] sm:$0xff]
      %v1124 = vld [vmem:[%s258 + $0x19b8] sm:$0xff]
      %v1125 = vld [vmem:[%s258 + $0x19c0] sm:$0xff]
      %v1126 = vld [vmem:[%s258 + $0x19c8] sm:$0xff]
      %v1127 = vld [vmem:[%s258 + $0x19d0] sm:$0xff]
      %v1128 = vld [vmem:[%s258 + $0x19d8] sm:$0xff]
      %v1129 = vld [vmem:[%s258 + $0x19e0] sm:$0xff]
      %v1130 = vld [vmem:[%s258 + $0x19e8] sm:$0xff]
      %v1131 = vld [vmem:[%s258 + $0x19f0] sm:$0xff]
      %v1132 = vld [vmem:[%s258 + $0x19f8] sm:$0xff]
      %v1133 = vld [vmem:[%s258 + $0x1a00] sm:$0xff]
      %v1134 = vld [vmem:[%s258 + $0x1a08] sm:$0xff]
      %v1135 = vld [vmem:[%s258 + $0x1a10] sm:$0xff]
      %v1136 = vld [vmem:[%s258 + $0x1a18] sm:$0xff]
      %v1137 = vld [vmem:[%s258 + $0x1a20] sm:$0xff]
      %v1138 = vld [vmem:[%s258 + $0x1a28] sm:$0xff]
      %v1139 = vld [vmem:[%s258 + $0x1a30] sm:$0xff]
      %v1140 = vld [vmem:[%s258 + $0x1a38] sm:$0xff]
      %v1141 = vld [vmem:[%s258 + $0x1a40] sm:$0xff]
      %v1142 = vld [vmem:[%s258 + $0x1a48] sm:$0xff]
      %v1143 = vld [vmem:[%s258 + $0x1a50] sm:$0xff]
      %v1144 = vld [vmem:[%s258 + $0x1a58] sm:$0xff]
      %v1145 = vld [vmem:[%s258 + $0x1a60] sm:$0xff]
      %v1146 = vld [vmem:[%s258 + $0x1a68] sm:$0xff]
      %v1147 = vld [vmem:[%s258 + $0x1a70] sm:$0xff]
      %v1148 = vld [vmem:[%s258 + $0x1a78] sm:$0xff]
      %v1149 = vld [vmem:[%s258 + $0x1a80] sm:$0xff]
      %v1150 = vld [vmem:[%s258 + $0x1a88] sm:$0xff]
      %v1151 = vld [vmem:[%s258 + $0x1a90] sm:$0xff]
      %v1152 = vld [vmem:[%s258 + $0x1a98] sm:$0xff]
      %v1153 = vld [vmem:[%s258 + $0x1aa0] sm:$0xff]
      %v1154 = vld [vmem:[%s258 + $0x1aa8] sm:$0xff]
      %v1155 = vld [vmem:[%s258 + $0x1ab0] sm:$0xff]
      %v1156 = vld [vmem:[%s258 + $0x1ab8] sm:$0xff]
      %v1157 = vld [vmem:[%s258 + $0x1ac0] sm:$0xff]
      %v1158 = vld [vmem:[%s258 + $0x1ac8] sm:$0xff]
      %v1159 = vld [vmem:[%s258 + $0x1ad0] sm:$0xff]
      %v1160 = vld [vmem:[%s258 + $0x1ad8] sm:$0xff]
      %v1161 = vld [vmem:[%s258 + $0x1ae0] sm:$0xff]
      %v1162 = vld [vmem:[%s258 + $0x1ae8] sm:$0xff]
      %v1163 = vld [vmem:[%s258 + $0x1af0] sm:$0xff]
      %v1164 = vld [vmem:[%s258 + $0x1af8] sm:$0xff]
      %v1165 = vld [vmem:[%s258 + $0x1b00] sm:$0xff]
      %v1166 = vld [vmem:[%s258 + $0x1b08] sm:$0xff]
      %v1167 = vld [vmem:[%s258 + $0x1b10] sm:$0xff]
      %v1168 = vld [vmem:[%s258 + $0x1b18] sm:$0xff]
      %v1169 = vld [vmem:[%s258 + $0x1b20] sm:$0xff]
      %v1170 = vld [vmem:[%s258 + $0x1b28] sm:$0xff]
      %v1171 = vld [vmem:[%s258 + $0x1b30] sm:$0xff]
      %v1172 = vld [vmem:[%s258 + $0x1b38] sm:$0xff]
      %v1173 = vld [vmem:[%s258 + $0x1b40] sm:$0xff]
      %v1174 = vld [vmem:[%s258 + $0x1b48] sm:$0xff]
      %v1175 = vld [vmem:[%s258 + $0x1b50] sm:$0xff]
      %v1176 = vld [vmem:[%s258 + $0x1b58] sm:$0xff]
      %v1177 = vld [vmem:[%s258 + $0x1b60] sm:$0xff]
      %v1178 = vld [vmem:[%s258 + $0x1b68] sm:$0xff]
      %v1179 = vld [vmem:[%s258 + $0x1b70] sm:$0xff]
      %v1180 = vld [vmem:[%s258 + $0x1b78] sm:$0xff]
      %v1181 = vld [vmem:[%s258 + $0x1b80] sm:$0xff]
      %v1182 = vld [vmem:[%s258 + $0x1b88] sm:$0xff]
      %v1183 = vld [vmem:[%s258 + $0x1b90] sm:$0xff]
      %v1184 = vld [vmem:[%s258 + $0x1b98] sm:$0xff]
      %v1185 = vld [vmem:[%s258 + $0x1ba0] sm:$0xff]
      %v1186 = vld [vmem:[%s258 + $0x1ba8] sm:$0xff]
      %v1187 = vld [vmem:[%s258 + $0x1bb0] sm:$0xff]
      %v1188 = vld [vmem:[%s258 + $0x1bb8] sm:$0xff]
      %v1189 = vld [vmem:[%s258 + $0x1bc0] sm:$0xff]
      %v1190 = vld [vmem:[%s258 + $0x1bc8] sm:$0xff]
      %v1191 = vld [vmem:[%s258 + $0x1bd0] sm:$0xff]
      %v1192 = vld [vmem:[%s258 + $0x1bd8] sm:$0xff]
      %v1193 = vld [vmem:[%s258 + $0x1be0] sm:$0xff]
      %v1194 = vld [vmem:[%s258 + $0x1be8] sm:$0xff]
      %v1195 = vld [vmem:[%s258 + $0x1bf0] sm:$0xff]
      %v1196 = vld [vmem:[%s258 + $0x1bf8] sm:$0xff]
      %v1197 = vld [vmem:[%s258 + $0x1c00] sm:$0xff]
      %v1198 = vld [vmem:[%s258 + $0x1c08] sm:$0xff]
      %v1199 = vld [vmem:[%s258 + $0x1c10] sm:$0xff]
      %v1200 = vld [vmem:[%s258 + $0x1c18] sm:$0xff]
      %v1201 = vld [vmem:[%s258 + $0x1c20] sm:$0xff]
      %v1202 = vld [vmem:[%s258 + $0x1c28] sm:$0xff]
      %v1203 = vld [vmem:[%s258 + $0x1c30] sm:$0xff]
      %v1204 = vld [vmem:[%s258 + $0x1c38] sm:$0xff]
      %v1205 = vld [vmem:[%s258 + $0x1c40] sm:$0xff]
      %v1206 = vld [vmem:[%s258 + $0x1c48] sm:$0xff]
      %v1207 = vld [vmem:[%s258 + $0x1c50] sm:$0xff]
      %v1208 = vld [vmem:[%s258 + $0x1c58] sm:$0xff]
      %v1209 = vld [vmem:[%s258 + $0x1c60] sm:$0xff]
      %v1210 = vld [vmem:[%s258 + $0x1c68] sm:$0xff]
      %v1211 = vld [vmem:[%s258 + $0x1c70] sm:$0xff]
      %v1212 = vld [vmem:[%s258 + $0x1c78] sm:$0xff]
      %v1213 = vld [vmem:[%s258 + $0x1c80] sm:$0xff]
      %v1214 = vld [vmem:[%s258 + $0x1c88] sm:$0xff]
      %v1215 = vld [vmem:[%s258 + $0x1c90] sm:$0xff]
      %v1216 = vld [vmem:[%s258 + $0x1c98] sm:$0xff]
      %v1217 = vld [vmem:[%s258 + $0x1ca0] sm:$0xff]
      %v1218 = vld [vmem:[%s258 + $0x1ca8] sm:$0xff]
      %v1219 = vld [vmem:[%s258 + $0x1cb0] sm:$0xff]
      %v1220 = vld [vmem:[%s258 + $0x1cb8] sm:$0xff]
      %v1221 = vld [vmem:[%s258 + $0x1cc0] sm:$0xff]
      %v1222 = vld [vmem:[%s258 + $0x1cc8] sm:$0xff]
      %v1223 = vld [vmem:[%s258 + $0x1cd0] sm:$0xff]
      %v1224 = vld [vmem:[%s258 + $0x1cd8] sm:$0xff]
      %v1225 = vld [vmem:[%s258 + $0x1ce0] sm:$0xff]
      %v1226 = vld [vmem:[%s258 + $0x1ce8] sm:$0xff]
      %v1227 = vld [vmem:[%s258 + $0x1cf0] sm:$0xff]
      %v1228 = vld [vmem:[%s258 + $0x1cf8] sm:$0xff]
      %v1229 = vld [vmem:[%s258 + $0x1d00] sm:$0xff]
      %v1230 = vld [vmem:[%s258 + $0x1d08] sm:$0xff]
      %v1231 = vld [vmem:[%s258 + $0x1d10] sm:$0xff]
      %v1232 = vld [vmem:[%s258 + $0x1d18] sm:$0xff]
      %v1233 = vld [vmem:[%s258 + $0x1d20] sm:$0xff]
      %v1234 = vld [vmem:[%s258 + $0x1d28] sm:$0xff]
      %v1235 = vld [vmem:[%s258 + $0x1d30] sm:$0xff]
      %v1236 = vld [vmem:[%s258 + $0x1d38] sm:$0xff]
      %v1237 = vld [vmem:[%s258 + $0x1d40] sm:$0xff]
      %v1238 = vld [vmem:[%s258 + $0x1d48] sm:$0xff]
      %v1239 = vld [vmem:[%s258 + $0x1d50] sm:$0xff]
      %v1240 = vld [vmem:[%s258 + $0x1d58] sm:$0xff]
      %v1241 = vld [vmem:[%s258 + $0x1d60] sm:$0xff]
      %v1242 = vld [vmem:[%s258 + $0x1d68] sm:$0xff]
      %v1243 = vld [vmem:[%s258 + $0x1d70] sm:$0xff]
      %v1244 = vld [vmem:[%s258 + $0x1d78] sm:$0xff]
      %v1245 = vld [vmem:[%s258 + $0x1d80] sm:$0xff]
      %v1246 = vld [vmem:[%s258 + $0x1d88] sm:$0xff]
      %v1247 = vld [vmem:[%s258 + $0x1d90] sm:$0xff]
      %v1248 = vld [vmem:[%s258 + $0x1d98] sm:$0xff]
      %v1249 = vld [vmem:[%s258 + $0x1da0] sm:$0xff]
      %v1250 = vld [vmem:[%s258 + $0x1da8] sm:$0xff]
      %v1251 = vld [vmem:[%s258 + $0x1db0] sm:$0xff]
      %v1252 = vld [vmem:[%s258 + $0x1db8] sm:$0xff]
      %v1253 = vld [vmem:[%s258 + $0x1dc0] sm:$0xff]
      %v1254 = vld [vmem:[%s258 + $0x1dc8] sm:$0xff]
      %v1255 = vld [vmem:[%s258 + $0x1dd0] sm:$0xff]
      %v1256 = vld [vmem:[%s258 + $0x1dd8] sm:$0xff]
      %v1257 = vld [vmem:[%s258 + $0x1de0] sm:$0xff]
      %v1258 = vld [vmem:[%s258 + $0x1de8] sm:$0xff]
      %v1259 = vld [vmem:[%s258 + $0x1df0] sm:$0xff]
      %v1260 = vld [vmem:[%s258 + $0x1df8] sm:$0xff]
      %v1261 = vld [vmem:[%s258 + $0x1e00] sm:$0xff]
      %v1262 = vld [vmem:[%s258 + $0x1e08] sm:$0xff]
      %v1263 = vld [vmem:[%s258 + $0x1e10] sm:$0xff]
      %v1264 = vld [vmem:[%s258 + $0x1e18] sm:$0xff]
      %v1265 = vld [vmem:[%s258 + $0x1e20] sm:$0xff]
      %v1266 = vld [vmem:[%s258 + $0x1e28] sm:$0xff]
      %v1267 = vld [vmem:[%s258 + $0x1e30] sm:$0xff]
      %v1268 = vld [vmem:[%s258 + $0x1e38] sm:$0xff]
      %v1269 = vld [vmem:[%s258 + $0x1e40] sm:$0xff]
      %v1270 = vld [vmem:[%s258 + $0x1e48] sm:$0xff]
      %v1271 = vld [vmem:[%s258 + $0x1e50] sm:$0xff]
      %v1272 = vld [vmem:[%s258 + $0x1e58] sm:$0xff]
      %v1273 = vld [vmem:[%s258 + $0x1e60] sm:$0xff]
      %v1274 = vld [vmem:[%s258 + $0x1e68] sm:$0xff]
      %v1275 = vld [vmem:[%s258 + $0x1e70] sm:$0xff]
      %v1276 = vld [vmem:[%s258 + $0x1e78] sm:$0xff]
      %v1277 = vld [vmem:[%s258 + $0x1e80] sm:$0xff]
      %v1278 = vld [vmem:[%s258 + $0x1e88] sm:$0xff]
      %v1279 = vld [vmem:[%s258 + $0x1e90] sm:$0xff]
      %v1280 = vld [vmem:[%s258 + $0x1e98] sm:$0xff]
      %v1281 = vld [vmem:[%s258 + $0x1ea0] sm:$0xff]
      %v1282 = vld [vmem:[%s258 + $0x1ea8] sm:$0xff]
      %v1283 = vld [vmem:[%s258 + $0x1eb0] sm:$0xff]
      %v1284 = vld [vmem:[%s258 + $0x1eb8] sm:$0xff]
      %v1285 = vld [vmem:[%s258 + $0x1ec0] sm:$0xff]
      %v1286 = vld [vmem:[%s258 + $0x1ec8] sm:$0xff]
      %v1287 = vld [vmem:[%s258 + $0x1ed0] sm:$0xff]
      %v1288 = vld [vmem:[%s258 + $0x1ed8] sm:$0xff]
      %v1289 = vld [vmem:[%s258 + $0x1ee0] sm:$0xff]
      %v1290 = vld [vmem:[%s258 + $0x1ee8] sm:$0xff]
      %v1291 = vld [vmem:[%s258 + $0x1ef0] sm:$0xff]
      %v1292 = vld [vmem:[%s258 + $0x1ef8] sm:$0xff]
      %v1293 = vld [vmem:[%s258 + $0x1f00] sm:$0xff]
      %v1294 = vld [vmem:[%s258 + $0x1f08] sm:$0xff]
      %v1295 = vld [vmem:[%s258 + $0x1f10] sm:$0xff]
      %v1296 = vld [vmem:[%s258 + $0x1f18] sm:$0xff]
      %v1297 = vld [vmem:[%s258 + $0x1f20] sm:$0xff]
      %v1298 = vld [vmem:[%s258 + $0x1f28] sm:$0xff]
      %v1299 = vld [vmem:[%s258 + $0x1f30] sm:$0xff]
      %v1300 = vld [vmem:[%s258 + $0x1f38] sm:$0xff]
      %v1301 = vld [vmem:[%s258 + $0x1f40] sm:$0xff]
      %v1302 = vld [vmem:[%s258 + $0x1f48] sm:$0xff]
      %v1303 = vld [vmem:[%s258 + $0x1f50] sm:$0xff]
      %v1304 = vld [vmem:[%s258 + $0x1f58] sm:$0xff]
      %v1305 = vld [vmem:[%s258 + $0x1f60] sm:$0xff]
      %v1306 = vld [vmem:[%s258 + $0x1f68] sm:$0xff]
      %v1307 = vld [vmem:[%s258 + $0x1f70] sm:$0xff]
      %v1308 = vld [vmem:[%s258 + $0x1f78] sm:$0xff]
      %v1309 = vld [vmem:[%s258 + $0x1f80] sm:$0xff]
      %v1310 = vld [vmem:[%s258 + $0x1f88] sm:$0xff]
      %v1311 = vld [vmem:[%s258 + $0x1f90] sm:$0xff]
      %v1312 = vld [vmem:[%s258 + $0x1f98] sm:$0xff]
      %v1313 = vld [vmem:[%s258 + $0x1fa0] sm:$0xff]
      %v1314 = vld [vmem:[%s258 + $0x1fa8] sm:$0xff]
      %v1315 = vld [vmem:[%s258 + $0x1fb0] sm:$0xff]
      %v1316 = vld [vmem:[%s258 + $0x1fb8] sm:$0xff]
      %v1317 = vld [vmem:[%s258 + $0x1fc0] sm:$0xff]
      %v1318 = vld [vmem:[%s258 + $0x1fc8] sm:$0xff]
      %v1319 = vld [vmem:[%s258 + $0x1fd0] sm:$0xff]
      %v1320 = vld [vmem:[%s258 + $0x1fd8] sm:$0xff]
      %v1321 = vld [vmem:[%s258 + $0x1fe0] sm:$0xff]
      %v1322 = vld [vmem:[%s258 + $0x1fe8] sm:$0xff]
      %v1323 = vld [vmem:[%s258 + $0x1ff0] sm:$0xff]
      %v1324 = vld [vmem:[%s258 + $0x1ff8] sm:$0xff]
      %v1325 = vld [vmem:[%s2] sm:$0x3]
      %v1327 = vperm.slane %v1325, 0
      %v1328 = vperm.slane %v1325, 1
      %v1363 = vunpack.c.l.b16 %v269
      %v1364 = vunpack.c.h.b16 %v269
      %v1365 = vunpack.c.l.b16 %v270
      %v1366 = vunpack.c.h.b16 %v270
      %v1367 = vunpack.c.l.b16 %v271
      %v1368 = vunpack.c.h.b16 %v271
      %v1369 = vunpack.c.l.b16 %v272
      %v1370 = vunpack.c.h.b16 %v272
      %v1371 = vunpack.c.l.b16 %v273
      %v1372 = vunpack.c.h.b16 %v273
      %v1373 = vunpack.c.l.b16 %v274
      %v1374 = vunpack.c.h.b16 %v274
      %v1375 = vunpack.c.l.b16 %v275
      %v1376 = vunpack.c.h.b16 %v275
      %v1377 = vunpack.c.l.b16 %v276
      %v1378 = vunpack.c.h.b16 %v276
      %v1379 = vunpack.c.l.b16 %v277
      %v1380 = vunpack.c.h.b16 %v277
      %v1381 = vunpack.c.l.b16 %v278
      %v1382 = vunpack.c.h.b16 %v278
      %v1383 = vunpack.c.l.b16 %v279
      %v1384 = vunpack.c.h.b16 %v279
      %v1385 = vunpack.c.l.b16 %v280
      %v1386 = vunpack.c.h.b16 %v280
      %v1387 = vunpack.c.l.b16 %v281
      %v1388 = vunpack.c.h.b16 %v281
      %v1389 = vunpack.c.l.b16 %v282
      %v1390 = vunpack.c.h.b16 %v282
      %v1391 = vunpack.c.l.b16 %v283
      %v1392 = vunpack.c.h.b16 %v283
      %v1393 = vunpack.c.l.b16 %v284
      %v1394 = vunpack.c.h.b16 %v284
      %v1395 = vunpack.c.l.b16 %v285
      %v1396 = vunpack.c.h.b16 %v285
      %v1397 = vunpack.c.l.b16 %v286
      %v1398 = vunpack.c.h.b16 %v286
      %v1399 = vunpack.c.l.b16 %v287
      %v1400 = vunpack.c.h.b16 %v287
      %v1401 = vunpack.c.l.b16 %v288
      %v1402 = vunpack.c.h.b16 %v288
      %v1403 = vunpack.c.l.b16 %v289
      %v1404 = vunpack.c.h.b16 %v289
      %v1405 = vunpack.c.l.b16 %v290
      %v1406 = vunpack.c.h.b16 %v290
      %v1407 = vunpack.c.l.b16 %v291
      %v1408 = vunpack.c.h.b16 %v291
      %v1409 = vunpack.c.l.b16 %v292
      %v1410 = vunpack.c.h.b16 %v292
      %v1411 = vunpack.c.l.b16 %v293
      %v1412 = vunpack.c.h.b16 %v293
      %v1413 = vunpack.c.l.b16 %v294
      %v1414 = vunpack.c.h.b16 %v294
      %v1415 = vunpack.c.l.b16 %v295
      %v1416 = vunpack.c.h.b16 %v295
      %v1417 = vunpack.c.l.b16 %v296
      %v1418 = vunpack.c.h.b16 %v296
      %v1419 = vunpack.c.l.b16 %v297
      %v1420 = vunpack.c.h.b16 %v297
      %v1421 = vunpack.c.l.b16 %v298
      %v1422 = vunpack.c.h.b16 %v298
      %v1423 = vunpack.c.l.b16 %v299
      %v1424 = vunpack.c.h.b16 %v299
      %v1425 = vunpack.c.l.b16 %v300
      %v1426 = vunpack.c.h.b16 %v300
      %v1427 = vpack.c.b16 %v1363, %v1363
      %v1428 = vpack.c.b16 %v1364, %v1364
      %v1429 = vpack.c.b16 %v1365, %v1365
      %v1430 = vpack.c.b16 %v1366, %v1366
      %v1431 = vpack.c.b16 %v1367, %v1367
      %v1432 = vpack.c.b16 %v1368, %v1368
      %v1433 = vpack.c.b16 %v1369, %v1369
      %v1434 = vpack.c.b16 %v1370, %v1370
      %v1435 = vpack.c.b16 %v1371, %v1371
      %v1436 = vpack.c.b16 %v1372, %v1372
      %v1437 = vpack.c.b16 %v1373, %v1373
      %v1438 = vpack.c.b16 %v1374, %v1374
      %v1439 = vpack.c.b16 %v1375, %v1375
      %v1440 = vpack.c.b16 %v1376, %v1376
      %v1441 = vpack.c.b16 %v1377, %v1377
      %v1442 = vpack.c.b16 %v1378, %v1378
      %v1443 = vpack.c.b16 %v1379, %v1379
      %v1444 = vpack.c.b16 %v1380, %v1380
      %v1445 = vpack.c.b16 %v1381, %v1381
      %v1446 = vpack.c.b16 %v1382, %v1382
      %v1447 = vpack.c.b16 %v1383, %v1383
      %v1448 = vpack.c.b16 %v1384, %v1384
      %v1449 = vpack.c.b16 %v1385, %v1385
      %v1450 = vpack.c.b16 %v1386, %v1386
      %v1451 = vpack.c.b16 %v1387, %v1387
      %v1452 = vpack.c.b16 %v1388, %v1388
      %v1453 = vpack.c.b16 %v1389, %v1389
      %v1454 = vpack.c.b16 %v1390, %v1390
      %v1455 = vpack.c.b16 %v1391, %v1391
      %v1456 = vpack.c.b16 %v1392, %v1392
      %v1457 = vpack.c.b16 %v1393, %v1393
      %v1458 = vpack.c.b16 %v1394, %v1394
      %v1459 = vpack.c.b16 %v1395, %v1395
      %v1460 = vpack.c.b16 %v1396, %v1396
      %v1461 = vpack.c.b16 %v1397, %v1397
      %v1462 = vpack.c.b16 %v1398, %v1398
      %v1463 = vpack.c.b16 %v1399, %v1399
      %v1464 = vpack.c.b16 %v1400, %v1400
      %v1465 = vpack.c.b16 %v1401, %v1401
      %v1466 = vpack.c.b16 %v1402, %v1402
      %v1467 = vpack.c.b16 %v1403, %v1403
      %v1468 = vpack.c.b16 %v1404, %v1404
      %v1469 = vpack.c.b16 %v1405, %v1405
      %v1470 = vpack.c.b16 %v1406, %v1406
      %v1471 = vpack.c.b16 %v1407, %v1407
      %v1472 = vpack.c.b16 %v1408, %v1408
      %v1473 = vpack.c.b16 %v1409, %v1409
      %v1474 = vpack.c.b16 %v1410, %v1410
      %v1475 = vpack.c.b16 %v1411, %v1411
      %v1476 = vpack.c.b16 %v1412, %v1412
      %v1477 = vpack.c.b16 %v1413, %v1413
      %v1478 = vpack.c.b16 %v1414, %v1414
      %v1479 = vpack.c.b16 %v1415, %v1415
      %v1480 = vpack.c.b16 %v1416, %v1416
      %v1481 = vpack.c.b16 %v1417, %v1417
      %v1482 = vpack.c.b16 %v1418, %v1418
      %v1483 = vpack.c.b16 %v1419, %v1419
      %v1484 = vpack.c.b16 %v1420, %v1420
      %v1485 = vpack.c.b16 %v1421, %v1421
      %v1486 = vpack.c.b16 %v1422, %v1422
      %v1487 = vpack.c.b16 %v1423, %v1423
      %v1488 = vpack.c.b16 %v1424, %v1424
      %v1489 = vpack.c.b16 %v1425, %v1425
      %v1490 = vpack.c.b16 %v1426, %v1426
      %v2579 = vunpack.c.l.b16 %v301
      %v2580 = vunpack.c.h.b16 %v301
      %v2581 = vunpack.c.l.b16 %v302
      %v2582 = vunpack.c.h.b16 %v302
      %v2583 = vunpack.c.l.b16 %v303
      %v2584 = vunpack.c.h.b16 %v303
      %v2585 = vunpack.c.l.b16 %v304
      %v2586 = vunpack.c.h.b16 %v304
      %v2587 = vunpack.c.l.b16 %v305
      %v2588 = vunpack.c.h.b16 %v305
      %v2589 = vunpack.c.l.b16 %v306
      %v2590 = vunpack.c.h.b16 %v306
      %v2591 = vunpack.c.l.b16 %v307
      %v2592 = vunpack.c.h.b16 %v307
      %v2593 = vunpack.c.l.b16 %v308
      %v2594 = vunpack.c.h.b16 %v308
      %v2595 = vunpack.c.l.b16 %v309
      %v2596 = vunpack.c.h.b16 %v309
      %v2597 = vunpack.c.l.b16 %v310
      %v2598 = vunpack.c.h.b16 %v310
      %v2599 = vunpack.c.l.b16 %v311
      %v2600 = vunpack.c.h.b16 %v311
      %v2601 = vunpack.c.l.b16 %v312
      %v2602 = vunpack.c.h.b16 %v312
      %v2603 = vunpack.c.l.b16 %v313
      %v2604 = vunpack.c.h.b16 %v313
      %v2605 = vunpack.c.l.b16 %v314
      %v2606 = vunpack.c.h.b16 %v314
      %v2607 = vunpack.c.l.b16 %v315
      %v2608 = vunpack.c.h.b16 %v315
      %v2609 = vunpack.c.l.b16 %v316
      %v2610 = vunpack.c.h.b16 %v316
      %v2611 = vunpack.c.l.b16 %v317
      %v2612 = vunpack.c.h.b16 %v317
      %v2613 = vunpack.c.l.b16 %v318
      %v2614 = vunpack.c.h.b16 %v318
      %v2615 = vunpack.c.l.b16 %v319
      %v2616 = vunpack.c.h.b16 %v319
      %v2617 = vunpack.c.l.b16 %v320
      %v2618 = vunpack.c.h.b16 %v320
      %v2619 = vunpack.c.l.b16 %v321
      %v2620 = vunpack.c.h.b16 %v321
      %v2621 = vunpack.c.l.b16 %v322
      %v2622 = vunpack.c.h.b16 %v322
      %v2623 = vunpack.c.l.b16 %v323
      %v2624 = vunpack.c.h.b16 %v323
      %v2625 = vunpack.c.l.b16 %v324
      %v2626 = vunpack.c.h.b16 %v324
      %v2627 = vunpack.c.l.b16 %v325
      %v2628 = vunpack.c.h.b16 %v325
      %v2629 = vunpack.c.l.b16 %v326
      %v2630 = vunpack.c.h.b16 %v326
      %v2631 = vunpack.c.l.b16 %v327
      %v2632 = vunpack.c.h.b16 %v327
      %v2633 = vunpack.c.l.b16 %v328
      %v2634 = vunpack.c.h.b16 %v328
      %v2635 = vunpack.c.l.b16 %v329
      %v2636 = vunpack.c.h.b16 %v329
      %v2637 = vunpack.c.l.b16 %v330
      %v2638 = vunpack.c.h.b16 %v330
      %v2639 = vunpack.c.l.b16 %v331
      %v2640 = vunpack.c.h.b16 %v331
      %v2641 = vunpack.c.l.b16 %v332
      %v2642 = vunpack.c.h.b16 %v332
      %v2643 = vunpack.c.l.b16 %v333
      %v2644 = vunpack.c.h.b16 %v333
      %v2645 = vunpack.c.l.b16 %v334
      %v2646 = vunpack.c.h.b16 %v334
      %v2647 = vunpack.c.l.b16 %v335
      %v2648 = vunpack.c.h.b16 %v335
      %v2649 = vunpack.c.l.b16 %v336
      %v2650 = vunpack.c.h.b16 %v336
      %v2651 = vunpack.c.l.b16 %v337
      %v2652 = vunpack.c.h.b16 %v337
      %v2653 = vunpack.c.l.b16 %v338
      %v2654 = vunpack.c.h.b16 %v338
      %v2655 = vunpack.c.l.b16 %v339
      %v2656 = vunpack.c.h.b16 %v339
      %v2657 = vunpack.c.l.b16 %v340
      %v2658 = vunpack.c.h.b16 %v340
      %v2659 = vunpack.c.l.b16 %v341
      %v2660 = vunpack.c.h.b16 %v341
      %v2661 = vunpack.c.l.b16 %v342
      %v2662 = vunpack.c.h.b16 %v342
      %v2663 = vunpack.c.l.b16 %v343
      %v2664 = vunpack.c.h.b16 %v343
      %v2665 = vunpack.c.l.b16 %v344
      %v2666 = vunpack.c.h.b16 %v344
      %v2667 = vunpack.c.l.b16 %v345
      %v2668 = vunpack.c.h.b16 %v345
      %v2669 = vunpack.c.l.b16 %v346
      %v2670 = vunpack.c.h.b16 %v346
      %v2671 = vunpack.c.l.b16 %v347
      %v2672 = vunpack.c.h.b16 %v347
      %v2673 = vunpack.c.l.b16 %v348
      %v2674 = vunpack.c.h.b16 %v348
      %v2675 = vunpack.c.l.b16 %v349
      %v2676 = vunpack.c.h.b16 %v349
      %v2677 = vunpack.c.l.b16 %v350
      %v2678 = vunpack.c.h.b16 %v350
      %v2679 = vunpack.c.l.b16 %v351
      %v2680 = vunpack.c.h.b16 %v351
      %v2681 = vunpack.c.l.b16 %v352
      %v2682 = vunpack.c.h.b16 %v352
      %v2683 = vunpack.c.l.b16 %v353
      %v2684 = vunpack.c.h.b16 %v353
      %v2685 = vunpack.c.l.b16 %v354
      %v2686 = vunpack.c.h.b16 %v354
      %v2687 = vunpack.c.l.b16 %v355
      %v2688 = vunpack.c.h.b16 %v355
      %v2689 = vunpack.c.l.b16 %v356
      %v2690 = vunpack.c.h.b16 %v356
      %v2691 = vunpack.c.l.b16 %v357
      %v2692 = vunpack.c.h.b16 %v357
      %v2693 = vunpack.c.l.b16 %v358
      %v2694 = vunpack.c.h.b16 %v358
      %v2695 = vunpack.c.l.b16 %v359
      %v2696 = vunpack.c.h.b16 %v359
      %v2697 = vunpack.c.l.b16 %v360
      %v2698 = vunpack.c.h.b16 %v360
      %v2699 = vunpack.c.l.b16 %v361
      %v2700 = vunpack.c.h.b16 %v361
      %v2701 = vunpack.c.l.b16 %v362
      %v2702 = vunpack.c.h.b16 %v362
      %v2703 = vunpack.c.l.b16 %v363
      %v2704 = vunpack.c.h.b16 %v363
      %v2705 = vunpack.c.l.b16 %v364
      %v2706 = vunpack.c.h.b16 %v364
      %v2707 = vunpack.c.l.b16 %v365
      %v2708 = vunpack.c.h.b16 %v365
      %v2709 = vunpack.c.l.b16 %v366
      %v2710 = vunpack.c.h.b16 %v366
      %v2711 = vunpack.c.l.b16 %v367
      %v2712 = vunpack.c.h.b16 %v367
      %v2713 = vunpack.c.l.b16 %v368
      %v2714 = vunpack.c.h.b16 %v368
      %v2715 = vunpack.c.l.b16 %v369
      %v2716 = vunpack.c.h.b16 %v369
      %v2717 = vunpack.c.l.b16 %v370
      %v2718 = vunpack.c.h.b16 %v370
      %v2719 = vunpack.c.l.b16 %v371
      %v2720 = vunpack.c.h.b16 %v371
      %v2721 = vunpack.c.l.b16 %v372
      %v2722 = vunpack.c.h.b16 %v372
      %v2723 = vunpack.c.l.b16 %v373
      %v2724 = vunpack.c.h.b16 %v373
      %v2725 = vunpack.c.l.b16 %v374
      %v2726 = vunpack.c.h.b16 %v374
      %v2727 = vunpack.c.l.b16 %v375
      %v2728 = vunpack.c.h.b16 %v375
      %v2729 = vunpack.c.l.b16 %v376
      %v2730 = vunpack.c.h.b16 %v376
      %v2731 = vunpack.c.l.b16 %v377
      %v2732 = vunpack.c.h.b16 %v377
      %v2733 = vunpack.c.l.b16 %v378
      %v2734 = vunpack.c.h.b16 %v378
      %v2735 = vunpack.c.l.b16 %v379
      %v2736 = vunpack.c.h.b16 %v379
      %v2737 = vunpack.c.l.b16 %v380
      %v2738 = vunpack.c.h.b16 %v380
      %v2739 = vunpack.c.l.b16 %v381
      %v2740 = vunpack.c.h.b16 %v381
      %v2741 = vunpack.c.l.b16 %v382
      %v2742 = vunpack.c.h.b16 %v382
      %v2743 = vunpack.c.l.b16 %v383
      %v2744 = vunpack.c.h.b16 %v383
      %v2745 = vunpack.c.l.b16 %v384
      %v2746 = vunpack.c.h.b16 %v384
      %v2747 = vunpack.c.l.b16 %v385
      %v2748 = vunpack.c.h.b16 %v385
      %v2749 = vunpack.c.l.b16 %v386
      %v2750 = vunpack.c.h.b16 %v386
      %v2751 = vunpack.c.l.b16 %v387
      %v2752 = vunpack.c.h.b16 %v387
      %v2753 = vunpack.c.l.b16 %v388
      %v2754 = vunpack.c.h.b16 %v388
      %v2755 = vunpack.c.l.b16 %v389
      %v2756 = vunpack.c.h.b16 %v389
      %v2757 = vunpack.c.l.b16 %v390
      %v2758 = vunpack.c.h.b16 %v390
      %v2759 = vunpack.c.l.b16 %v391
      %v2760 = vunpack.c.h.b16 %v391
      %v2761 = vunpack.c.l.b16 %v392
      %v2762 = vunpack.c.h.b16 %v392
      %v2763 = vunpack.c.l.b16 %v393
      %v2764 = vunpack.c.h.b16 %v393
      %v2765 = vunpack.c.l.b16 %v394
      %v2766 = vunpack.c.h.b16 %v394
      %v2767 = vunpack.c.l.b16 %v395
      %v2768 = vunpack.c.h.b16 %v395
      %v2769 = vunpack.c.l.b16 %v396
      %v2770 = vunpack.c.h.b16 %v396
      %v2771 = vunpack.c.l.b16 %v397
      %v2772 = vunpack.c.h.b16 %v397
      %v2773 = vunpack.c.l.b16 %v398
      %v2774 = vunpack.c.h.b16 %v398
      %v2775 = vunpack.c.l.b16 %v399
      %v2776 = vunpack.c.h.b16 %v399
      %v2777 = vunpack.c.l.b16 %v400
      %v2778 = vunpack.c.h.b16 %v400
      %v2779 = vunpack.c.l.b16 %v401
      %v2780 = vunpack.c.h.b16 %v401
      %v2781 = vunpack.c.l.b16 %v402
      %v2782 = vunpack.c.h.b16 %v402
      %v2783 = vunpack.c.l.b16 %v403
      %v2784 = vunpack.c.h.b16 %v403
      %v2785 = vunpack.c.l.b16 %v404
      %v2786 = vunpack.c.h.b16 %v404
      %v2787 = vunpack.c.l.b16 %v405
      %v2788 = vunpack.c.h.b16 %v405
      %v2789 = vunpack.c.l.b16 %v406
      %v2790 = vunpack.c.h.b16 %v406
      %v2791 = vunpack.c.l.b16 %v407
      %v2792 = vunpack.c.h.b16 %v407
      %v2793 = vunpack.c.l.b16 %v408
      %v2794 = vunpack.c.h.b16 %v408
      %v2795 = vunpack.c.l.b16 %v409
      %v2796 = vunpack.c.h.b16 %v409
      %v2797 = vunpack.c.l.b16 %v410
      %v2798 = vunpack.c.h.b16 %v410
      %v2799 = vunpack.c.l.b16 %v411
      %v2800 = vunpack.c.h.b16 %v411
      %v2801 = vunpack.c.l.b16 %v412
      %v2802 = vunpack.c.h.b16 %v412
      %v2803 = vunpack.c.l.b16 %v413
      %v2804 = vunpack.c.h.b16 %v413
      %v2805 = vunpack.c.l.b16 %v414
      %v2806 = vunpack.c.h.b16 %v414
      %v2807 = vunpack.c.l.b16 %v415
      %v2808 = vunpack.c.h.b16 %v415
      %v2809 = vunpack.c.l.b16 %v416
      %v2810 = vunpack.c.h.b16 %v416
      %v2811 = vunpack.c.l.b16 %v417
      %v2812 = vunpack.c.h.b16 %v417
      %v2813 = vunpack.c.l.b16 %v418
      %v2814 = vunpack.c.h.b16 %v418
      %v2815 = vunpack.c.l.b16 %v419
      %v2816 = vunpack.c.h.b16 %v419
      %v2817 = vunpack.c.l.b16 %v420
      %v2818 = vunpack.c.h.b16 %v420
      %v2819 = vunpack.c.l.b16 %v421
      %v2820 = vunpack.c.h.b16 %v421
      %v2821 = vunpack.c.l.b16 %v422
      %v2822 = vunpack.c.h.b16 %v422
      %v2823 = vunpack.c.l.b16 %v423
      %v2824 = vunpack.c.h.b16 %v423
      %v2825 = vunpack.c.l.b16 %v424
      %v2826 = vunpack.c.h.b16 %v424
      %v2827 = vunpack.c.l.b16 %v425
      %v2828 = vunpack.c.h.b16 %v425
      %v2829 = vunpack.c.l.b16 %v426
      %v2830 = vunpack.c.h.b16 %v426
      %v2831 = vunpack.c.l.b16 %v427
      %v2832 = vunpack.c.h.b16 %v427
      %v2833 = vunpack.c.l.b16 %v428
      %v2834 = vunpack.c.h.b16 %v428
      %v2835 = vunpack.c.l.b16 %v429
      %v2836 = vunpack.c.h.b16 %v429
      %v2837 = vunpack.c.l.b16 %v430
      %v2838 = vunpack.c.h.b16 %v430
      %v2839 = vunpack.c.l.b16 %v431
      %v2840 = vunpack.c.h.b16 %v431
      %v2841 = vunpack.c.l.b16 %v432
      %v2842 = vunpack.c.h.b16 %v432
      %v2843 = vunpack.c.l.b16 %v433
      %v2844 = vunpack.c.h.b16 %v433
      %v2845 = vunpack.c.l.b16 %v434
      %v2846 = vunpack.c.h.b16 %v434
      %v2847 = vunpack.c.l.b16 %v435
      %v2848 = vunpack.c.h.b16 %v435
      %v2849 = vunpack.c.l.b16 %v436
      %v2850 = vunpack.c.h.b16 %v436
      %v2851 = vunpack.c.l.b16 %v437
      %v2852 = vunpack.c.h.b16 %v437
      %v2853 = vunpack.c.l.b16 %v438
      %v2854 = vunpack.c.h.b16 %v438
      %v2855 = vunpack.c.l.b16 %v439
      %v2856 = vunpack.c.h.b16 %v439
      %v2857 = vunpack.c.l.b16 %v440
      %v2858 = vunpack.c.h.b16 %v440
      %v2859 = vunpack.c.l.b16 %v441
      %v2860 = vunpack.c.h.b16 %v441
      %v2861 = vunpack.c.l.b16 %v442
      %v2862 = vunpack.c.h.b16 %v442
      %v2863 = vunpack.c.l.b16 %v443
      %v2864 = vunpack.c.h.b16 %v443
      %v2865 = vunpack.c.l.b16 %v444
      %v2866 = vunpack.c.h.b16 %v444
      %v2867 = vunpack.c.l.b16 %v445
      %v2868 = vunpack.c.h.b16 %v445
      %v2869 = vunpack.c.l.b16 %v446
      %v2870 = vunpack.c.h.b16 %v446
      %v2871 = vunpack.c.l.b16 %v447
      %v2872 = vunpack.c.h.b16 %v447
      %v2873 = vunpack.c.l.b16 %v448
      %v2874 = vunpack.c.h.b16 %v448
      %v2875 = vunpack.c.l.b16 %v449
      %v2876 = vunpack.c.h.b16 %v449
      %v2877 = vunpack.c.l.b16 %v450
      %v2878 = vunpack.c.h.b16 %v450
      %v2879 = vunpack.c.l.b16 %v451
      %v2880 = vunpack.c.h.b16 %v451
      %v2881 = vunpack.c.l.b16 %v452
      %v2882 = vunpack.c.h.b16 %v452
      %v2883 = vunpack.c.l.b16 %v453
      %v2884 = vunpack.c.h.b16 %v453
      %v2885 = vunpack.c.l.b16 %v454
      %v2886 = vunpack.c.h.b16 %v454
      %v2887 = vunpack.c.l.b16 %v455
      %v2888 = vunpack.c.h.b16 %v455
      %v2889 = vunpack.c.l.b16 %v456
      %v2890 = vunpack.c.h.b16 %v456
      %v2891 = vunpack.c.l.b16 %v457
      %v2892 = vunpack.c.h.b16 %v457
      %v2893 = vunpack.c.l.b16 %v458
      %v2894 = vunpack.c.h.b16 %v458
      %v2895 = vunpack.c.l.b16 %v459
      %v2896 = vunpack.c.h.b16 %v459
      %v2897 = vunpack.c.l.b16 %v460
      %v2898 = vunpack.c.h.b16 %v460
      %v2899 = vunpack.c.l.b16 %v461
      %v2900 = vunpack.c.h.b16 %v461
      %v2901 = vunpack.c.l.b16 %v462
      %v2902 = vunpack.c.h.b16 %v462
      %v2903 = vunpack.c.l.b16 %v463
      %v2904 = vunpack.c.h.b16 %v463
      %v2905 = vunpack.c.l.b16 %v464
      %v2906 = vunpack.c.h.b16 %v464
      %v2907 = vunpack.c.l.b16 %v465
      %v2908 = vunpack.c.h.b16 %v465
      %v2909 = vunpack.c.l.b16 %v466
      %v2910 = vunpack.c.h.b16 %v466
      %v2911 = vunpack.c.l.b16 %v467
      %v2912 = vunpack.c.h.b16 %v467
      %v2913 = vunpack.c.l.b16 %v468
      %v2914 = vunpack.c.h.b16 %v468
      %v2915 = vunpack.c.l.b16 %v469
      %v2916 = vunpack.c.h.b16 %v469
      %v2917 = vunpack.c.l.b16 %v470
      %v2918 = vunpack.c.h.b16 %v470
      %v2919 = vunpack.c.l.b16 %v471
      %v2920 = vunpack.c.h.b16 %v471
      %v2921 = vunpack.c.l.b16 %v472
      %v2922 = vunpack.c.h.b16 %v472
      %v2923 = vunpack.c.l.b16 %v473
      %v2924 = vunpack.c.h.b16 %v473
      %v2925 = vunpack.c.l.b16 %v474
      %v2926 = vunpack.c.h.b16 %v474
      %v2927 = vunpack.c.l.b16 %v475
      %v2928 = vunpack.c.h.b16 %v475
      %v2929 = vunpack.c.l.b16 %v476
      %v2930 = vunpack.c.h.b16 %v476
      %v2931 = vunpack.c.l.b16 %v477
      %v2932 = vunpack.c.h.b16 %v477
      %v2933 = vunpack.c.l.b16 %v478
      %v2934 = vunpack.c.h.b16 %v478
      %v2935 = vunpack.c.l.b16 %v479
      %v2936 = vunpack.c.h.b16 %v479
      %v2937 = vunpack.c.l.b16 %v480
      %v2938 = vunpack.c.h.b16 %v480
      %v2939 = vunpack.c.l.b16 %v481
      %v2940 = vunpack.c.h.b16 %v481
      %v2941 = vunpack.c.l.b16 %v482
      %v2942 = vunpack.c.h.b16 %v482
      %v2943 = vunpack.c.l.b16 %v483
      %v2944 = vunpack.c.h.b16 %v483
      %v2945 = vunpack.c.l.b16 %v484
      %v2946 = vunpack.c.h.b16 %v484
      %v2947 = vunpack.c.l.b16 %v485
      %v2948 = vunpack.c.h.b16 %v485
      %v2949 = vunpack.c.l.b16 %v486
      %v2950 = vunpack.c.h.b16 %v486
      %v2951 = vunpack.c.l.b16 %v487
      %v2952 = vunpack.c.h.b16 %v487
      %v2953 = vunpack.c.l.b16 %v488
      %v2954 = vunpack.c.h.b16 %v488
      %v2955 = vunpack.c.l.b16 %v489
      %v2956 = vunpack.c.h.b16 %v489
      %v2957 = vunpack.c.l.b16 %v490
      %v2958 = vunpack.c.h.b16 %v490
      %v2959 = vunpack.c.l.b16 %v491
      %v2960 = vunpack.c.h.b16 %v491
      %v2961 = vunpack.c.l.b16 %v492
      %v2962 = vunpack.c.h.b16 %v492
      %v2963 = vunpack.c.l.b16 %v493
      %v2964 = vunpack.c.h.b16 %v493
      %v2965 = vunpack.c.l.b16 %v494
      %v2966 = vunpack.c.h.b16 %v494
      %v2967 = vunpack.c.l.b16 %v495
      %v2968 = vunpack.c.h.b16 %v495
      %v2969 = vunpack.c.l.b16 %v496
      %v2970 = vunpack.c.h.b16 %v496
      %v2971 = vunpack.c.l.b16 %v497
      %v2972 = vunpack.c.h.b16 %v497
      %v2973 = vunpack.c.l.b16 %v498
      %v2974 = vunpack.c.h.b16 %v498
      %v2975 = vunpack.c.l.b16 %v499
      %v2976 = vunpack.c.h.b16 %v499
      %v2977 = vunpack.c.l.b16 %v500
      %v2978 = vunpack.c.h.b16 %v500
      %v2979 = vunpack.c.l.b16 %v501
      %v2980 = vunpack.c.h.b16 %v501
      %v2981 = vunpack.c.l.b16 %v502
      %v2982 = vunpack.c.h.b16 %v502
      %v2983 = vunpack.c.l.b16 %v503
      %v2984 = vunpack.c.h.b16 %v503
      %v2985 = vunpack.c.l.b16 %v504
      %v2986 = vunpack.c.h.b16 %v504
      %v2987 = vunpack.c.l.b16 %v505
      %v2988 = vunpack.c.h.b16 %v505
      %v2989 = vunpack.c.l.b16 %v506
      %v2990 = vunpack.c.h.b16 %v506
      %v2991 = vunpack.c.l.b16 %v507
      %v2992 = vunpack.c.h.b16 %v507
      %v2993 = vunpack.c.l.b16 %v508
      %v2994 = vunpack.c.h.b16 %v508
      %v2995 = vunpack.c.l.b16 %v509
      %v2996 = vunpack.c.h.b16 %v509
      %v2997 = vunpack.c.l.b16 %v510
      %v2998 = vunpack.c.h.b16 %v510
      %v2999 = vunpack.c.l.b16 %v511
      %v3000 = vunpack.c.h.b16 %v511
      %v3001 = vunpack.c.l.b16 %v512
      %v3002 = vunpack.c.h.b16 %v512
      %v3003 = vunpack.c.l.b16 %v513
      %v3004 = vunpack.c.h.b16 %v513
      %v3005 = vunpack.c.l.b16 %v514
      %v3006 = vunpack.c.h.b16 %v514
      %v3007 = vunpack.c.l.b16 %v515
      %v3008 = vunpack.c.h.b16 %v515
      %v3009 = vunpack.c.l.b16 %v516
      %v3010 = vunpack.c.h.b16 %v516
      %v3011 = vunpack.c.l.b16 %v517
      %v3012 = vunpack.c.h.b16 %v517
      %v3013 = vunpack.c.l.b16 %v518
      %v3014 = vunpack.c.h.b16 %v518
      %v3015 = vunpack.c.l.b16 %v519
      %v3016 = vunpack.c.h.b16 %v519
      %v3017 = vunpack.c.l.b16 %v520
      %v3018 = vunpack.c.h.b16 %v520
      %v3019 = vunpack.c.l.b16 %v521
      %v3020 = vunpack.c.h.b16 %v521
      %v3021 = vunpack.c.l.b16 %v522
      %v3022 = vunpack.c.h.b16 %v522
      %v3023 = vunpack.c.l.b16 %v523
      %v3024 = vunpack.c.h.b16 %v523
      %v3025 = vunpack.c.l.b16 %v524
      %v3026 = vunpack.c.h.b16 %v524
      %v3027 = vunpack.c.l.b16 %v525
      %v3028 = vunpack.c.h.b16 %v525
      %v3029 = vunpack.c.l.b16 %v526
      %v3030 = vunpack.c.h.b16 %v526
      %v3031 = vunpack.c.l.b16 %v527
      %v3032 = vunpack.c.h.b16 %v527
      %v3033 = vunpack.c.l.b16 %v528
      %v3034 = vunpack.c.h.b16 %v528
      %v3035 = vunpack.c.l.b16 %v529
      %v3036 = vunpack.c.h.b16 %v529
      %v3037 = vunpack.c.l.b16 %v530
      %v3038 = vunpack.c.h.b16 %v530
      %v3039 = vunpack.c.l.b16 %v531
      %v3040 = vunpack.c.h.b16 %v531
      %v3041 = vunpack.c.l.b16 %v532
      %v3042 = vunpack.c.h.b16 %v532
      %v3043 = vunpack.c.l.b16 %v533
      %v3044 = vunpack.c.h.b16 %v533
      %v3045 = vunpack.c.l.b16 %v534
      %v3046 = vunpack.c.h.b16 %v534
      %v3047 = vunpack.c.l.b16 %v535
      %v3048 = vunpack.c.h.b16 %v535
      %v3049 = vunpack.c.l.b16 %v536
      %v3050 = vunpack.c.h.b16 %v536
      %v3051 = vunpack.c.l.b16 %v537
      %v3052 = vunpack.c.h.b16 %v537
      %v3053 = vunpack.c.l.b16 %v538
      %v3054 = vunpack.c.h.b16 %v538
      %v3055 = vunpack.c.l.b16 %v539
      %v3056 = vunpack.c.h.b16 %v539
      %v3057 = vunpack.c.l.b16 %v540
      %v3058 = vunpack.c.h.b16 %v540
      %v3059 = vunpack.c.l.b16 %v541
      %v3060 = vunpack.c.h.b16 %v541
      %v3061 = vunpack.c.l.b16 %v542
      %v3062 = vunpack.c.h.b16 %v542
      %v3063 = vunpack.c.l.b16 %v543
      %v3064 = vunpack.c.h.b16 %v543
      %v3065 = vunpack.c.l.b16 %v544
      %v3066 = vunpack.c.h.b16 %v544
      %v3067 = vunpack.c.l.b16 %v545
      %v3068 = vunpack.c.h.b16 %v545
      %v3069 = vunpack.c.l.b16 %v546
      %v3070 = vunpack.c.h.b16 %v546
      %v3071 = vunpack.c.l.b16 %v547
      %v3072 = vunpack.c.h.b16 %v547
      %v3073 = vunpack.c.l.b16 %v548
      %v3074 = vunpack.c.h.b16 %v548
      %v3075 = vunpack.c.l.b16 %v549
      %v3076 = vunpack.c.h.b16 %v549
      %v3077 = vunpack.c.l.b16 %v550
      %v3078 = vunpack.c.h.b16 %v550
      %v3079 = vunpack.c.l.b16 %v551
      %v3080 = vunpack.c.h.b16 %v551
      %v3081 = vunpack.c.l.b16 %v552
      %v3082 = vunpack.c.h.b16 %v552
      %v3083 = vunpack.c.l.b16 %v553
      %v3084 = vunpack.c.h.b16 %v553
      %v3085 = vunpack.c.l.b16 %v554
      %v3086 = vunpack.c.h.b16 %v554
      %v3087 = vunpack.c.l.b16 %v555
      %v3088 = vunpack.c.h.b16 %v555
      %v3089 = vunpack.c.l.b16 %v556
      %v3090 = vunpack.c.h.b16 %v556
      %v3091 = vunpack.c.l.b16 %v557
      %v3092 = vunpack.c.h.b16 %v557
      %v3093 = vunpack.c.l.b16 %v558
      %v3094 = vunpack.c.h.b16 %v558
      %v3095 = vunpack.c.l.b16 %v559
      %v3096 = vunpack.c.h.b16 %v559
      %v3097 = vunpack.c.l.b16 %v560
      %v3098 = vunpack.c.h.b16 %v560
      %v3099 = vunpack.c.l.b16 %v561
      %v3100 = vunpack.c.h.b16 %v561
      %v3101 = vunpack.c.l.b16 %v562
      %v3102 = vunpack.c.h.b16 %v562
      %v3103 = vunpack.c.l.b16 %v563
      %v3104 = vunpack.c.h.b16 %v563
      %v3105 = vunpack.c.l.b16 %v564
      %v3106 = vunpack.c.h.b16 %v564
      %v3107 = vunpack.c.l.b16 %v565
      %v3108 = vunpack.c.h.b16 %v565
      %v3109 = vunpack.c.l.b16 %v566
      %v3110 = vunpack.c.h.b16 %v566
      %v3111 = vunpack.c.l.b16 %v567
      %v3112 = vunpack.c.h.b16 %v567
      %v3113 = vunpack.c.l.b16 %v568
      %v3114 = vunpack.c.h.b16 %v568
      %v3115 = vunpack.c.l.b16 %v569
      %v3116 = vunpack.c.h.b16 %v569
      %v3117 = vunpack.c.l.b16 %v570
      %v3118 = vunpack.c.h.b16 %v570
      %v3119 = vunpack.c.l.b16 %v571
      %v3120 = vunpack.c.h.b16 %v571
      %v3121 = vunpack.c.l.b16 %v572
      %v3122 = vunpack.c.h.b16 %v572
      %v3123 = vunpack.c.l.b16 %v573
      %v3124 = vunpack.c.h.b16 %v573
      %v3125 = vunpack.c.l.b16 %v574
      %v3126 = vunpack.c.h.b16 %v574
      %v3127 = vunpack.c.l.b16 %v575
      %v3128 = vunpack.c.h.b16 %v575
      %v3129 = vunpack.c.l.b16 %v576
      %v3130 = vunpack.c.h.b16 %v576
      %v3131 = vunpack.c.l.b16 %v577
      %v3132 = vunpack.c.h.b16 %v577
      %v3133 = vunpack.c.l.b16 %v578
      %v3134 = vunpack.c.h.b16 %v578
      %v3135 = vunpack.c.l.b16 %v579
      %v3136 = vunpack.c.h.b16 %v579
      %v3137 = vunpack.c.l.b16 %v580
      %v3138 = vunpack.c.h.b16 %v580
      %v3139 = vunpack.c.l.b16 %v581
      %v3140 = vunpack.c.h.b16 %v581
      %v3141 = vunpack.c.l.b16 %v582
      %v3142 = vunpack.c.h.b16 %v582
      %v3143 = vunpack.c.l.b16 %v583
      %v3144 = vunpack.c.h.b16 %v583
      %v3145 = vunpack.c.l.b16 %v584
      %v3146 = vunpack.c.h.b16 %v584
      %v3147 = vunpack.c.l.b16 %v585
      %v3148 = vunpack.c.h.b16 %v585
      %v3149 = vunpack.c.l.b16 %v586
      %v3150 = vunpack.c.h.b16 %v586
      %v3151 = vunpack.c.l.b16 %v587
      %v3152 = vunpack.c.h.b16 %v587
      %v3153 = vunpack.c.l.b16 %v588
      %v3154 = vunpack.c.h.b16 %v588
      %v3155 = vunpack.c.l.b16 %v589
      %v3156 = vunpack.c.h.b16 %v589
      %v3157 = vunpack.c.l.b16 %v590
      %v3158 = vunpack.c.h.b16 %v590
      %v3159 = vunpack.c.l.b16 %v591
      %v3160 = vunpack.c.h.b16 %v591
      %v3161 = vunpack.c.l.b16 %v592
      %v3162 = vunpack.c.h.b16 %v592
      %v3163 = vunpack.c.l.b16 %v593
      %v3164 = vunpack.c.h.b16 %v593
      %v3165 = vunpack.c.l.b16 %v594
      %v3166 = vunpack.c.h.b16 %v594
      %v3167 = vunpack.c.l.b16 %v595
      %v3168 = vunpack.c.h.b16 %v595
      %v3169 = vunpack.c.l.b16 %v596
      %v3170 = vunpack.c.h.b16 %v596
      %v3171 = vunpack.c.l.b16 %v597
      %v3172 = vunpack.c.h.b16 %v597
      %v3173 = vunpack.c.l.b16 %v598
      %v3174 = vunpack.c.h.b16 %v598
      %v3175 = vunpack.c.l.b16 %v599
      %v3176 = vunpack.c.h.b16 %v599
      %v3177 = vunpack.c.l.b16 %v600
      %v3178 = vunpack.c.h.b16 %v600
      %v3179 = vunpack.c.l.b16 %v601
      %v3180 = vunpack.c.h.b16 %v601
      %v3181 = vunpack.c.l.b16 %v602
      %v3182 = vunpack.c.h.b16 %v602
      %v3183 = vunpack.c.l.b16 %v603
      %v3184 = vunpack.c.h.b16 %v603
      %v3185 = vunpack.c.l.b16 %v604
      %v3186 = vunpack.c.h.b16 %v604
      %v3187 = vunpack.c.l.b16 %v605
      %v3188 = vunpack.c.h.b16 %v605
      %v3189 = vunpack.c.l.b16 %v606
      %v3190 = vunpack.c.h.b16 %v606
      %v3191 = vunpack.c.l.b16 %v607
      %v3192 = vunpack.c.h.b16 %v607
      %v3193 = vunpack.c.l.b16 %v608
      %v3194 = vunpack.c.h.b16 %v608
      %v3195 = vunpack.c.l.b16 %v609
      %v3196 = vunpack.c.h.b16 %v609
      %v3197 = vunpack.c.l.b16 %v610
      %v3198 = vunpack.c.h.b16 %v610
      %v3199 = vunpack.c.l.b16 %v611
      %v3200 = vunpack.c.h.b16 %v611
      %v3201 = vunpack.c.l.b16 %v612
      %v3202 = vunpack.c.h.b16 %v612
      %v3203 = vunpack.c.l.b16 %v613
      %v3204 = vunpack.c.h.b16 %v613
      %v3205 = vunpack.c.l.b16 %v614
      %v3206 = vunpack.c.h.b16 %v614
      %v3207 = vunpack.c.l.b16 %v615
      %v3208 = vunpack.c.h.b16 %v615
      %v3209 = vunpack.c.l.b16 %v616
      %v3210 = vunpack.c.h.b16 %v616
      %v3211 = vunpack.c.l.b16 %v617
      %v3212 = vunpack.c.h.b16 %v617
      %v3213 = vunpack.c.l.b16 %v618
      %v3214 = vunpack.c.h.b16 %v618
      %v3215 = vunpack.c.l.b16 %v619
      %v3216 = vunpack.c.h.b16 %v619
      %v3217 = vunpack.c.l.b16 %v620
      %v3218 = vunpack.c.h.b16 %v620
      %v3219 = vunpack.c.l.b16 %v621
      %v3220 = vunpack.c.h.b16 %v621
      %v3221 = vunpack.c.l.b16 %v622
      %v3222 = vunpack.c.h.b16 %v622
      %v3223 = vunpack.c.l.b16 %v623
      %v3224 = vunpack.c.h.b16 %v623
      %v3225 = vunpack.c.l.b16 %v624
      %v3226 = vunpack.c.h.b16 %v624
      %v3227 = vunpack.c.l.b16 %v625
      %v3228 = vunpack.c.h.b16 %v625
      %v3229 = vunpack.c.l.b16 %v626
      %v3230 = vunpack.c.h.b16 %v626
      %v3231 = vunpack.c.l.b16 %v627
      %v3232 = vunpack.c.h.b16 %v627
      %v3233 = vunpack.c.l.b16 %v628
      %v3234 = vunpack.c.h.b16 %v628
      %v3235 = vunpack.c.l.b16 %v629
      %v3236 = vunpack.c.h.b16 %v629
      %v3237 = vunpack.c.l.b16 %v630
      %v3238 = vunpack.c.h.b16 %v630
      %v3239 = vunpack.c.l.b16 %v631
      %v3240 = vunpack.c.h.b16 %v631
      %v3241 = vunpack.c.l.b16 %v632
      %v3242 = vunpack.c.h.b16 %v632
      %v3243 = vunpack.c.l.b16 %v633
      %v3244 = vunpack.c.h.b16 %v633
      %v3245 = vunpack.c.l.b16 %v634
      %v3246 = vunpack.c.h.b16 %v634
      %v3247 = vunpack.c.l.b16 %v635
      %v3248 = vunpack.c.h.b16 %v635
      %v3249 = vunpack.c.l.b16 %v636
      %v3250 = vunpack.c.h.b16 %v636
      %v3251 = vunpack.c.l.b16 %v637
      %v3252 = vunpack.c.h.b16 %v637
      %v3253 = vunpack.c.l.b16 %v638
      %v3254 = vunpack.c.h.b16 %v638
      %v3255 = vunpack.c.l.b16 %v639
      %v3256 = vunpack.c.h.b16 %v639
      %v3257 = vunpack.c.l.b16 %v640
      %v3258 = vunpack.c.h.b16 %v640
      %v3259 = vunpack.c.l.b16 %v641
      %v3260 = vunpack.c.h.b16 %v641
      %v3261 = vunpack.c.l.b16 %v642
      %v3262 = vunpack.c.h.b16 %v642
      %v3263 = vunpack.c.l.b16 %v643
      %v3264 = vunpack.c.h.b16 %v643
      %v3265 = vunpack.c.l.b16 %v644
      %v3266 = vunpack.c.h.b16 %v644
      %v3267 = vunpack.c.l.b16 %v645
      %v3268 = vunpack.c.h.b16 %v645
      %v3269 = vunpack.c.l.b16 %v646
      %v3270 = vunpack.c.h.b16 %v646
      %v3271 = vunpack.c.l.b16 %v647
      %v3272 = vunpack.c.h.b16 %v647
      %v3273 = vunpack.c.l.b16 %v648
      %v3274 = vunpack.c.h.b16 %v648
      %v3275 = vunpack.c.l.b16 %v649
      %v3276 = vunpack.c.h.b16 %v649
      %v3277 = vunpack.c.l.b16 %v650
      %v3278 = vunpack.c.h.b16 %v650
      %v3279 = vunpack.c.l.b16 %v651
      %v3280 = vunpack.c.h.b16 %v651
      %v3281 = vunpack.c.l.b16 %v652
      %v3282 = vunpack.c.h.b16 %v652
      %v3283 = vunpack.c.l.b16 %v653
      %v3284 = vunpack.c.h.b16 %v653
      %v3285 = vunpack.c.l.b16 %v654
      %v3286 = vunpack.c.h.b16 %v654
      %v3287 = vunpack.c.l.b16 %v655
      %v3288 = vunpack.c.h.b16 %v655
      %v3289 = vunpack.c.l.b16 %v656
      %v3290 = vunpack.c.h.b16 %v656
      %v3291 = vunpack.c.l.b16 %v657
      %v3292 = vunpack.c.h.b16 %v657
      %v3293 = vunpack.c.l.b16 %v658
      %v3294 = vunpack.c.h.b16 %v658
      %v3295 = vunpack.c.l.b16 %v659
      %v3296 = vunpack.c.h.b16 %v659
      %v3297 = vunpack.c.l.b16 %v660
      %v3298 = vunpack.c.h.b16 %v660
      %v3299 = vunpack.c.l.b16 %v661
      %v3300 = vunpack.c.h.b16 %v661
      %v3301 = vunpack.c.l.b16 %v662
      %v3302 = vunpack.c.h.b16 %v662
      %v3303 = vunpack.c.l.b16 %v663
      %v3304 = vunpack.c.h.b16 %v663
      %v3305 = vunpack.c.l.b16 %v664
      %v3306 = vunpack.c.h.b16 %v664
      %v3307 = vunpack.c.l.b16 %v665
      %v3308 = vunpack.c.h.b16 %v665
      %v3309 = vunpack.c.l.b16 %v666
      %v3310 = vunpack.c.h.b16 %v666
      %v3311 = vunpack.c.l.b16 %v667
      %v3312 = vunpack.c.h.b16 %v667
      %v3313 = vunpack.c.l.b16 %v668
      %v3314 = vunpack.c.h.b16 %v668
      %v3315 = vunpack.c.l.b16 %v669
      %v3316 = vunpack.c.h.b16 %v669
      %v3317 = vunpack.c.l.b16 %v670
      %v3318 = vunpack.c.h.b16 %v670
      %v3319 = vunpack.c.l.b16 %v671
      %v3320 = vunpack.c.h.b16 %v671
      %v3321 = vunpack.c.l.b16 %v672
      %v3322 = vunpack.c.h.b16 %v672
      %v3323 = vunpack.c.l.b16 %v673
      %v3324 = vunpack.c.h.b16 %v673
      %v3325 = vunpack.c.l.b16 %v674
      %v3326 = vunpack.c.h.b16 %v674
      %v3327 = vunpack.c.l.b16 %v675
      %v3328 = vunpack.c.h.b16 %v675
      %v3329 = vunpack.c.l.b16 %v676
      %v3330 = vunpack.c.h.b16 %v676
      %v3331 = vunpack.c.l.b16 %v677
      %v3332 = vunpack.c.h.b16 %v677
      %v3333 = vunpack.c.l.b16 %v678
      %v3334 = vunpack.c.h.b16 %v678
      %v3335 = vunpack.c.l.b16 %v679
      %v3336 = vunpack.c.h.b16 %v679
      %v3337 = vunpack.c.l.b16 %v680
      %v3338 = vunpack.c.h.b16 %v680
      %v3339 = vunpack.c.l.b16 %v681
      %v3340 = vunpack.c.h.b16 %v681
      %v3341 = vunpack.c.l.b16 %v682
      %v3342 = vunpack.c.h.b16 %v682
      %v3343 = vunpack.c.l.b16 %v683
      %v3344 = vunpack.c.h.b16 %v683
      %v3345 = vunpack.c.l.b16 %v684
      %v3346 = vunpack.c.h.b16 %v684
      %v3347 = vunpack.c.l.b16 %v685
      %v3348 = vunpack.c.h.b16 %v685
      %v3349 = vunpack.c.l.b16 %v686
      %v3350 = vunpack.c.h.b16 %v686
      %v3351 = vunpack.c.l.b16 %v687
      %v3352 = vunpack.c.h.b16 %v687
      %v3353 = vunpack.c.l.b16 %v688
      %v3354 = vunpack.c.h.b16 %v688
      %v3355 = vunpack.c.l.b16 %v689
      %v3356 = vunpack.c.h.b16 %v689
      %v3357 = vunpack.c.l.b16 %v690
      %v3358 = vunpack.c.h.b16 %v690
      %v3359 = vunpack.c.l.b16 %v691
      %v3360 = vunpack.c.h.b16 %v691
      %v3361 = vunpack.c.l.b16 %v692
      %v3362 = vunpack.c.h.b16 %v692
      %v3363 = vunpack.c.l.b16 %v693
      %v3364 = vunpack.c.h.b16 %v693
      %v3365 = vunpack.c.l.b16 %v694
      %v3366 = vunpack.c.h.b16 %v694
      %v3367 = vunpack.c.l.b16 %v695
      %v3368 = vunpack.c.h.b16 %v695
      %v3369 = vunpack.c.l.b16 %v696
      %v3370 = vunpack.c.h.b16 %v696
      %v3371 = vunpack.c.l.b16 %v697
      %v3372 = vunpack.c.h.b16 %v697
      %v3373 = vunpack.c.l.b16 %v698
      %v3374 = vunpack.c.h.b16 %v698
      %v3375 = vunpack.c.l.b16 %v699
      %v3376 = vunpack.c.h.b16 %v699
      %v3377 = vunpack.c.l.b16 %v700
      %v3378 = vunpack.c.h.b16 %v700
      %v3379 = vunpack.c.l.b16 %v701
      %v3380 = vunpack.c.h.b16 %v701
      %v3381 = vunpack.c.l.b16 %v702
      %v3382 = vunpack.c.h.b16 %v702
      %v3383 = vunpack.c.l.b16 %v703
      %v3384 = vunpack.c.h.b16 %v703
      %v3385 = vunpack.c.l.b16 %v704
      %v3386 = vunpack.c.h.b16 %v704
      %v3387 = vunpack.c.l.b16 %v705
      %v3388 = vunpack.c.h.b16 %v705
      %v3389 = vunpack.c.l.b16 %v706
      %v3390 = vunpack.c.h.b16 %v706
      %v3391 = vunpack.c.l.b16 %v707
      %v3392 = vunpack.c.h.b16 %v707
      %v3393 = vunpack.c.l.b16 %v708
      %v3394 = vunpack.c.h.b16 %v708
      %v3395 = vunpack.c.l.b16 %v709
      %v3396 = vunpack.c.h.b16 %v709
      %v3397 = vunpack.c.l.b16 %v710
      %v3398 = vunpack.c.h.b16 %v710
      %v3399 = vunpack.c.l.b16 %v711
      %v3400 = vunpack.c.h.b16 %v711
      %v3401 = vunpack.c.l.b16 %v712
      %v3402 = vunpack.c.h.b16 %v712
      %v3403 = vunpack.c.l.b16 %v713
      %v3404 = vunpack.c.h.b16 %v713
      %v3405 = vunpack.c.l.b16 %v714
      %v3406 = vunpack.c.h.b16 %v714
      %v3407 = vunpack.c.l.b16 %v715
      %v3408 = vunpack.c.h.b16 %v715
      %v3409 = vunpack.c.l.b16 %v716
      %v3410 = vunpack.c.h.b16 %v716
      %v3411 = vunpack.c.l.b16 %v717
      %v3412 = vunpack.c.h.b16 %v717
      %v3413 = vunpack.c.l.b16 %v718
      %v3414 = vunpack.c.h.b16 %v718
      %v3415 = vunpack.c.l.b16 %v719
      %v3416 = vunpack.c.h.b16 %v719
      %v3417 = vunpack.c.l.b16 %v720
      %v3418 = vunpack.c.h.b16 %v720
      %v3419 = vunpack.c.l.b16 %v721
      %v3420 = vunpack.c.h.b16 %v721
      %v3421 = vunpack.c.l.b16 %v722
      %v3422 = vunpack.c.h.b16 %v722
      %v3423 = vunpack.c.l.b16 %v723
      %v3424 = vunpack.c.h.b16 %v723
      %v3425 = vunpack.c.l.b16 %v724
      %v3426 = vunpack.c.h.b16 %v724
      %v3427 = vunpack.c.l.b16 %v725
      %v3428 = vunpack.c.h.b16 %v725
      %v3429 = vunpack.c.l.b16 %v726
      %v3430 = vunpack.c.h.b16 %v726
      %v3431 = vunpack.c.l.b16 %v727
      %v3432 = vunpack.c.h.b16 %v727
      %v3433 = vunpack.c.l.b16 %v728
      %v3434 = vunpack.c.h.b16 %v728
      %v3435 = vunpack.c.l.b16 %v729
      %v3436 = vunpack.c.h.b16 %v729
      %v3437 = vunpack.c.l.b16 %v730
      %v3438 = vunpack.c.h.b16 %v730
      %v3439 = vunpack.c.l.b16 %v731
      %v3440 = vunpack.c.h.b16 %v731
      %v3441 = vunpack.c.l.b16 %v732
      %v3442 = vunpack.c.h.b16 %v732
      %v3443 = vunpack.c.l.b16 %v733
      %v3444 = vunpack.c.h.b16 %v733
      %v3445 = vunpack.c.l.b16 %v734
      %v3446 = vunpack.c.h.b16 %v734
      %v3447 = vunpack.c.l.b16 %v735
      %v3448 = vunpack.c.h.b16 %v735
      %v3449 = vunpack.c.l.b16 %v736
      %v3450 = vunpack.c.h.b16 %v736
      %v3451 = vunpack.c.l.b16 %v737
      %v3452 = vunpack.c.h.b16 %v737
      %v3453 = vunpack.c.l.b16 %v738
      %v3454 = vunpack.c.h.b16 %v738
      %v3455 = vunpack.c.l.b16 %v739
      %v3456 = vunpack.c.h.b16 %v739
      %v3457 = vunpack.c.l.b16 %v740
      %v3458 = vunpack.c.h.b16 %v740
      %v3459 = vunpack.c.l.b16 %v741
      %v3460 = vunpack.c.h.b16 %v741
      %v3461 = vunpack.c.l.b16 %v742
      %v3462 = vunpack.c.h.b16 %v742
      %v3463 = vunpack.c.l.b16 %v743
      %v3464 = vunpack.c.h.b16 %v743
      %v3465 = vunpack.c.l.b16 %v744
      %v3466 = vunpack.c.h.b16 %v744
      %v3467 = vunpack.c.l.b16 %v745
      %v3468 = vunpack.c.h.b16 %v745
      %v3469 = vunpack.c.l.b16 %v746
      %v3470 = vunpack.c.h.b16 %v746
      %v3471 = vunpack.c.l.b16 %v747
      %v3472 = vunpack.c.h.b16 %v747
      %v3473 = vunpack.c.l.b16 %v748
      %v3474 = vunpack.c.h.b16 %v748
      %v3475 = vunpack.c.l.b16 %v749
      %v3476 = vunpack.c.h.b16 %v749
      %v3477 = vunpack.c.l.b16 %v750
      %v3478 = vunpack.c.h.b16 %v750
      %v3479 = vunpack.c.l.b16 %v751
      %v3480 = vunpack.c.h.b16 %v751
      %v3481 = vunpack.c.l.b16 %v752
      %v3482 = vunpack.c.h.b16 %v752
      %v3483 = vunpack.c.l.b16 %v753
      %v3484 = vunpack.c.h.b16 %v753
      %v3485 = vunpack.c.l.b16 %v754
      %v3486 = vunpack.c.h.b16 %v754
      %v3487 = vunpack.c.l.b16 %v755
      %v3488 = vunpack.c.h.b16 %v755
      %v3489 = vunpack.c.l.b16 %v756
      %v3490 = vunpack.c.h.b16 %v756
      %v3491 = vunpack.c.l.b16 %v757
      %v3492 = vunpack.c.h.b16 %v757
      %v3493 = vunpack.c.l.b16 %v758
      %v3494 = vunpack.c.h.b16 %v758
      %v3495 = vunpack.c.l.b16 %v759
      %v3496 = vunpack.c.h.b16 %v759
      %v3497 = vunpack.c.l.b16 %v760
      %v3498 = vunpack.c.h.b16 %v760
      %v3499 = vunpack.c.l.b16 %v761
      %v3500 = vunpack.c.h.b16 %v761
      %v3501 = vunpack.c.l.b16 %v762
      %v3502 = vunpack.c.h.b16 %v762
      %v3503 = vunpack.c.l.b16 %v763
      %v3504 = vunpack.c.h.b16 %v763
      %v3505 = vunpack.c.l.b16 %v764
      %v3506 = vunpack.c.h.b16 %v764
      %v3507 = vunpack.c.l.b16 %v765
      %v3508 = vunpack.c.h.b16 %v765
      %v3509 = vunpack.c.l.b16 %v766
      %v3510 = vunpack.c.h.b16 %v766
      %v3511 = vunpack.c.l.b16 %v767
      %v3512 = vunpack.c.h.b16 %v767
      %v3513 = vunpack.c.l.b16 %v768
      %v3514 = vunpack.c.h.b16 %v768
      %v3515 = vunpack.c.l.b16 %v769
      %v3516 = vunpack.c.h.b16 %v769
      %v3517 = vunpack.c.l.b16 %v770
      %v3518 = vunpack.c.h.b16 %v770
      %v3519 = vunpack.c.l.b16 %v771
      %v3520 = vunpack.c.h.b16 %v771
      %v3521 = vunpack.c.l.b16 %v772
      %v3522 = vunpack.c.h.b16 %v772
      %v3523 = vunpack.c.l.b16 %v773
      %v3524 = vunpack.c.h.b16 %v773
      %v3525 = vunpack.c.l.b16 %v774
      %v3526 = vunpack.c.h.b16 %v774
      %v3527 = vunpack.c.l.b16 %v775
      %v3528 = vunpack.c.h.b16 %v775
      %v3529 = vunpack.c.l.b16 %v776
      %v3530 = vunpack.c.h.b16 %v776
      %v3531 = vunpack.c.l.b16 %v777
      %v3532 = vunpack.c.h.b16 %v777
      %v3533 = vunpack.c.l.b16 %v778
      %v3534 = vunpack.c.h.b16 %v778
      %v3535 = vunpack.c.l.b16 %v779
      %v3536 = vunpack.c.h.b16 %v779
      %v3537 = vunpack.c.l.b16 %v780
      %v3538 = vunpack.c.h.b16 %v780
      %v3539 = vunpack.c.l.b16 %v781
      %v3540 = vunpack.c.h.b16 %v781
      %v3541 = vunpack.c.l.b16 %v782
      %v3542 = vunpack.c.h.b16 %v782
      %v3543 = vunpack.c.l.b16 %v783
      %v3544 = vunpack.c.h.b16 %v783
      %v3545 = vunpack.c.l.b16 %v784
      %v3546 = vunpack.c.h.b16 %v784
      %v3547 = vunpack.c.l.b16 %v785
      %v3548 = vunpack.c.h.b16 %v785
      %v3549 = vunpack.c.l.b16 %v786
      %v3550 = vunpack.c.h.b16 %v786
      %v3551 = vunpack.c.l.b16 %v787
      %v3552 = vunpack.c.h.b16 %v787
      %v3553 = vunpack.c.l.b16 %v788
      %v3554 = vunpack.c.h.b16 %v788
      %v3555 = vunpack.c.l.b16 %v789
      %v3556 = vunpack.c.h.b16 %v789
      %v3557 = vunpack.c.l.b16 %v790
      %v3558 = vunpack.c.h.b16 %v790
      %v3559 = vunpack.c.l.b16 %v791
      %v3560 = vunpack.c.h.b16 %v791
      %v3561 = vunpack.c.l.b16 %v792
      %v3562 = vunpack.c.h.b16 %v792
      %v3563 = vunpack.c.l.b16 %v793
      %v3564 = vunpack.c.h.b16 %v793
      %v3565 = vunpack.c.l.b16 %v794
      %v3566 = vunpack.c.h.b16 %v794
      %v3567 = vunpack.c.l.b16 %v795
      %v3568 = vunpack.c.h.b16 %v795
      %v3569 = vunpack.c.l.b16 %v796
      %v3570 = vunpack.c.h.b16 %v796
      %v3571 = vunpack.c.l.b16 %v797
      %v3572 = vunpack.c.h.b16 %v797
      %v3573 = vunpack.c.l.b16 %v798
      %v3574 = vunpack.c.h.b16 %v798
      %v3575 = vunpack.c.l.b16 %v799
      %v3576 = vunpack.c.h.b16 %v799
      %v3577 = vunpack.c.l.b16 %v800
      %v3578 = vunpack.c.h.b16 %v800
      %v3579 = vunpack.c.l.b16 %v801
      %v3580 = vunpack.c.h.b16 %v801
      %v3581 = vunpack.c.l.b16 %v802
      %v3582 = vunpack.c.h.b16 %v802
      %v3583 = vunpack.c.l.b16 %v803
      %v3584 = vunpack.c.h.b16 %v803
      %v3585 = vunpack.c.l.b16 %v804
      %v3586 = vunpack.c.h.b16 %v804
      %v3587 = vunpack.c.l.b16 %v805
      %v3588 = vunpack.c.h.b16 %v805
      %v3589 = vunpack.c.l.b16 %v806
      %v3590 = vunpack.c.h.b16 %v806
      %v3591 = vunpack.c.l.b16 %v807
      %v3592 = vunpack.c.h.b16 %v807
      %v3593 = vunpack.c.l.b16 %v808
      %v3594 = vunpack.c.h.b16 %v808
      %v3595 = vunpack.c.l.b16 %v809
      %v3596 = vunpack.c.h.b16 %v809
      %v3597 = vunpack.c.l.b16 %v810
      %v3598 = vunpack.c.h.b16 %v810
      %v3599 = vunpack.c.l.b16 %v811
      %v3600 = vunpack.c.h.b16 %v811
      %v3601 = vunpack.c.l.b16 %v812
      %v3602 = vunpack.c.h.b16 %v812
      %v3603 = vunpack.c.l.b16 %v813
      %v3604 = vunpack.c.h.b16 %v813
      %v3605 = vunpack.c.l.b16 %v814
      %v3606 = vunpack.c.h.b16 %v814
      %v3607 = vunpack.c.l.b16 %v815
      %v3608 = vunpack.c.h.b16 %v815
      %v3609 = vunpack.c.l.b16 %v816
      %v3610 = vunpack.c.h.b16 %v816
      %v3611 = vunpack.c.l.b16 %v817
      %v3612 = vunpack.c.h.b16 %v817
      %v3613 = vunpack.c.l.b16 %v818
      %v3614 = vunpack.c.h.b16 %v818
      %v3615 = vunpack.c.l.b16 %v819
      %v3616 = vunpack.c.h.b16 %v819
      %v3617 = vunpack.c.l.b16 %v820
      %v3618 = vunpack.c.h.b16 %v820
      %v3619 = vunpack.c.l.b16 %v821
      %v3620 = vunpack.c.h.b16 %v821
      %v3621 = vunpack.c.l.b16 %v822
      %v3622 = vunpack.c.h.b16 %v822
      %v3623 = vunpack.c.l.b16 %v823
      %v3624 = vunpack.c.h.b16 %v823
      %v3625 = vunpack.c.l.b16 %v824
      %v3626 = vunpack.c.h.b16 %v824
      %v3627 = vunpack.c.l.b16 %v825
      %v3628 = vunpack.c.h.b16 %v825
      %v3629 = vunpack.c.l.b16 %v826
      %v3630 = vunpack.c.h.b16 %v826
      %v3631 = vunpack.c.l.b16 %v827
      %v3632 = vunpack.c.h.b16 %v827
      %v3633 = vunpack.c.l.b16 %v828
      %v3634 = vunpack.c.h.b16 %v828
      %v3635 = vunpack.c.l.b16 %v829
      %v3636 = vunpack.c.h.b16 %v829
      %v3637 = vunpack.c.l.b16 %v830
      %v3638 = vunpack.c.h.b16 %v830
      %v3639 = vunpack.c.l.b16 %v831
      %v3640 = vunpack.c.h.b16 %v831
      %v3641 = vunpack.c.l.b16 %v832
      %v3642 = vunpack.c.h.b16 %v832
      %v3643 = vunpack.c.l.b16 %v833
      %v3644 = vunpack.c.h.b16 %v833
      %v3645 = vunpack.c.l.b16 %v834
      %v3646 = vunpack.c.h.b16 %v834
      %v3647 = vunpack.c.l.b16 %v835
      %v3648 = vunpack.c.h.b16 %v835
      %v3649 = vunpack.c.l.b16 %v836
      %v3650 = vunpack.c.h.b16 %v836
      %v3651 = vunpack.c.l.b16 %v837
      %v3652 = vunpack.c.h.b16 %v837
      %v3653 = vunpack.c.l.b16 %v838
      %v3654 = vunpack.c.h.b16 %v838
      %v3655 = vunpack.c.l.b16 %v839
      %v3656 = vunpack.c.h.b16 %v839
      %v3657 = vunpack.c.l.b16 %v840
      %v3658 = vunpack.c.h.b16 %v840
      %v3659 = vunpack.c.l.b16 %v841
      %v3660 = vunpack.c.h.b16 %v841
      %v3661 = vunpack.c.l.b16 %v842
      %v3662 = vunpack.c.h.b16 %v842
      %v3663 = vunpack.c.l.b16 %v843
      %v3664 = vunpack.c.h.b16 %v843
      %v3665 = vunpack.c.l.b16 %v844
      %v3666 = vunpack.c.h.b16 %v844
      %v3667 = vunpack.c.l.b16 %v845
      %v3668 = vunpack.c.h.b16 %v845
      %v3669 = vunpack.c.l.b16 %v846
      %v3670 = vunpack.c.h.b16 %v846
      %v3671 = vunpack.c.l.b16 %v847
      %v3672 = vunpack.c.h.b16 %v847
      %v3673 = vunpack.c.l.b16 %v848
      %v3674 = vunpack.c.h.b16 %v848
      %v3675 = vunpack.c.l.b16 %v849
      %v3676 = vunpack.c.h.b16 %v849
      %v3677 = vunpack.c.l.b16 %v850
      %v3678 = vunpack.c.h.b16 %v850
      %v3679 = vunpack.c.l.b16 %v851
      %v3680 = vunpack.c.h.b16 %v851
      %v3681 = vunpack.c.l.b16 %v852
      %v3682 = vunpack.c.h.b16 %v852
      %v3683 = vunpack.c.l.b16 %v853
      %v3684 = vunpack.c.h.b16 %v853
      %v3685 = vunpack.c.l.b16 %v854
      %v3686 = vunpack.c.h.b16 %v854
      %v3687 = vunpack.c.l.b16 %v855
      %v3688 = vunpack.c.h.b16 %v855
      %v3689 = vunpack.c.l.b16 %v856
      %v3690 = vunpack.c.h.b16 %v856
      %v3691 = vunpack.c.l.b16 %v857
      %v3692 = vunpack.c.h.b16 %v857
      %v3693 = vunpack.c.l.b16 %v858
      %v3694 = vunpack.c.h.b16 %v858
      %v3695 = vunpack.c.l.b16 %v859
      %v3696 = vunpack.c.h.b16 %v859
      %v3697 = vunpack.c.l.b16 %v860
      %v3698 = vunpack.c.h.b16 %v860
      %v3699 = vunpack.c.l.b16 %v861
      %v3700 = vunpack.c.h.b16 %v861
      %v3701 = vunpack.c.l.b16 %v862
      %v3702 = vunpack.c.h.b16 %v862
      %v3703 = vunpack.c.l.b16 %v863
      %v3704 = vunpack.c.h.b16 %v863
      %v3705 = vunpack.c.l.b16 %v864
      %v3706 = vunpack.c.h.b16 %v864
      %v3707 = vunpack.c.l.b16 %v865
      %v3708 = vunpack.c.h.b16 %v865
      %v3709 = vunpack.c.l.b16 %v866
      %v3710 = vunpack.c.h.b16 %v866
      %v3711 = vunpack.c.l.b16 %v867
      %v3712 = vunpack.c.h.b16 %v867
      %v3713 = vunpack.c.l.b16 %v868
      %v3714 = vunpack.c.h.b16 %v868
      %v3715 = vunpack.c.l.b16 %v869
      %v3716 = vunpack.c.h.b16 %v869
      %v3717 = vunpack.c.l.b16 %v870
      %v3718 = vunpack.c.h.b16 %v870
      %v3719 = vunpack.c.l.b16 %v871
      %v3720 = vunpack.c.h.b16 %v871
      %v3721 = vunpack.c.l.b16 %v872
      %v3722 = vunpack.c.h.b16 %v872
      %v3723 = vunpack.c.l.b16 %v873
      %v3724 = vunpack.c.h.b16 %v873
      %v3725 = vunpack.c.l.b16 %v874
      %v3726 = vunpack.c.h.b16 %v874
      %v3727 = vunpack.c.l.b16 %v875
      %v3728 = vunpack.c.h.b16 %v875
      %v3729 = vunpack.c.l.b16 %v876
      %v3730 = vunpack.c.h.b16 %v876
      %v3731 = vunpack.c.l.b16 %v877
      %v3732 = vunpack.c.h.b16 %v877
      %v3733 = vunpack.c.l.b16 %v878
      %v3734 = vunpack.c.h.b16 %v878
      %v3735 = vunpack.c.l.b16 %v879
      %v3736 = vunpack.c.h.b16 %v879
      %v3737 = vunpack.c.l.b16 %v880
      %v3738 = vunpack.c.h.b16 %v880
      %v3739 = vunpack.c.l.b16 %v881
      %v3740 = vunpack.c.h.b16 %v881
      %v3741 = vunpack.c.l.b16 %v882
      %v3742 = vunpack.c.h.b16 %v882
      %v3743 = vunpack.c.l.b16 %v883
      %v3744 = vunpack.c.h.b16 %v883
      %v3745 = vunpack.c.l.b16 %v884
      %v3746 = vunpack.c.h.b16 %v884
      %v3747 = vunpack.c.l.b16 %v885
      %v3748 = vunpack.c.h.b16 %v885
      %v3749 = vunpack.c.l.b16 %v886
      %v3750 = vunpack.c.h.b16 %v886
      %v3751 = vunpack.c.l.b16 %v887
      %v3752 = vunpack.c.h.b16 %v887
      %v3753 = vunpack.c.l.b16 %v888
      %v3754 = vunpack.c.h.b16 %v888
      %v3755 = vunpack.c.l.b16 %v889
      %v3756 = vunpack.c.h.b16 %v889
      %v3757 = vunpack.c.l.b16 %v890
      %v3758 = vunpack.c.h.b16 %v890
      %v3759 = vunpack.c.l.b16 %v891
      %v3760 = vunpack.c.h.b16 %v891
      %v3761 = vunpack.c.l.b16 %v892
      %v3762 = vunpack.c.h.b16 %v892
      %v3763 = vunpack.c.l.b16 %v893
      %v3764 = vunpack.c.h.b16 %v893
      %v3765 = vunpack.c.l.b16 %v894
      %v3766 = vunpack.c.h.b16 %v894
      %v3767 = vunpack.c.l.b16 %v895
      %v3768 = vunpack.c.h.b16 %v895
      %v3769 = vunpack.c.l.b16 %v896
      %v3770 = vunpack.c.h.b16 %v896
      %v3771 = vunpack.c.l.b16 %v897
      %v3772 = vunpack.c.h.b16 %v897
      %v3773 = vunpack.c.l.b16 %v898
      %v3774 = vunpack.c.h.b16 %v898
      %v3775 = vunpack.c.l.b16 %v899
      %v3776 = vunpack.c.h.b16 %v899
      %v3777 = vunpack.c.l.b16 %v900
      %v3778 = vunpack.c.h.b16 %v900
      %v3779 = vunpack.c.l.b16 %v901
      %v3780 = vunpack.c.h.b16 %v901
      %v3781 = vunpack.c.l.b16 %v902
      %v3782 = vunpack.c.h.b16 %v902
      %v3783 = vunpack.c.l.b16 %v903
      %v3784 = vunpack.c.h.b16 %v903
      %v3785 = vunpack.c.l.b16 %v904
      %v3786 = vunpack.c.h.b16 %v904
      %v3787 = vunpack.c.l.b16 %v905
      %v3788 = vunpack.c.h.b16 %v905
      %v3789 = vunpack.c.l.b16 %v906
      %v3790 = vunpack.c.h.b16 %v906
      %v3791 = vunpack.c.l.b16 %v907
      %v3792 = vunpack.c.h.b16 %v907
      %v3793 = vunpack.c.l.b16 %v908
      %v3794 = vunpack.c.h.b16 %v908
      %v3795 = vunpack.c.l.b16 %v909
      %v3796 = vunpack.c.h.b16 %v909
      %v3797 = vunpack.c.l.b16 %v910
      %v3798 = vunpack.c.h.b16 %v910
      %v3799 = vunpack.c.l.b16 %v911
      %v3800 = vunpack.c.h.b16 %v911
      %v3801 = vunpack.c.l.b16 %v912
      %v3802 = vunpack.c.h.b16 %v912
      %v3803 = vunpack.c.l.b16 %v913
      %v3804 = vunpack.c.h.b16 %v913
      %v3805 = vunpack.c.l.b16 %v914
      %v3806 = vunpack.c.h.b16 %v914
      %v3807 = vunpack.c.l.b16 %v915
      %v3808 = vunpack.c.h.b16 %v915
      %v3809 = vunpack.c.l.b16 %v916
      %v3810 = vunpack.c.h.b16 %v916
      %v3811 = vunpack.c.l.b16 %v917
      %v3812 = vunpack.c.h.b16 %v917
      %v3813 = vunpack.c.l.b16 %v918
      %v3814 = vunpack.c.h.b16 %v918
      %v3815 = vunpack.c.l.b16 %v919
      %v3816 = vunpack.c.h.b16 %v919
      %v3817 = vunpack.c.l.b16 %v920
      %v3818 = vunpack.c.h.b16 %v920
      %v3819 = vunpack.c.l.b16 %v921
      %v3820 = vunpack.c.h.b16 %v921
      %v3821 = vunpack.c.l.b16 %v922
      %v3822 = vunpack.c.h.b16 %v922
      %v3823 = vunpack.c.l.b16 %v923
      %v3824 = vunpack.c.h.b16 %v923
      %v3825 = vunpack.c.l.b16 %v924
      %v3826 = vunpack.c.h.b16 %v924
      %v3827 = vunpack.c.l.b16 %v925
      %v3828 = vunpack.c.h.b16 %v925
      %v3829 = vunpack.c.l.b16 %v926
      %v3830 = vunpack.c.h.b16 %v926
      %v3831 = vunpack.c.l.b16 %v927
      %v3832 = vunpack.c.h.b16 %v927
      %v3833 = vunpack.c.l.b16 %v928
      %v3834 = vunpack.c.h.b16 %v928
      %v3835 = vunpack.c.l.b16 %v929
      %v3836 = vunpack.c.h.b16 %v929
      %v3837 = vunpack.c.l.b16 %v930
      %v3838 = vunpack.c.h.b16 %v930
      %v3839 = vunpack.c.l.b16 %v931
      %v3840 = vunpack.c.h.b16 %v931
      %v3841 = vunpack.c.l.b16 %v932
      %v3842 = vunpack.c.h.b16 %v932
      %v3843 = vunpack.c.l.b16 %v933
      %v3844 = vunpack.c.h.b16 %v933
      %v3845 = vunpack.c.l.b16 %v934
      %v3846 = vunpack.c.h.b16 %v934
      %v3847 = vunpack.c.l.b16 %v935
      %v3848 = vunpack.c.h.b16 %v935
      %v3849 = vunpack.c.l.b16 %v936
      %v3850 = vunpack.c.h.b16 %v936
      %v3851 = vunpack.c.l.b16 %v937
      %v3852 = vunpack.c.h.b16 %v937
      %v3853 = vunpack.c.l.b16 %v938
      %v3854 = vunpack.c.h.b16 %v938
      %v3855 = vunpack.c.l.b16 %v939
      %v3856 = vunpack.c.h.b16 %v939
      %v3857 = vunpack.c.l.b16 %v940
      %v3858 = vunpack.c.h.b16 %v940
      %v3859 = vunpack.c.l.b16 %v941
      %v3860 = vunpack.c.h.b16 %v941
      %v3861 = vunpack.c.l.b16 %v942
      %v3862 = vunpack.c.h.b16 %v942
      %v3863 = vunpack.c.l.b16 %v943
      %v3864 = vunpack.c.h.b16 %v943
      %v3865 = vunpack.c.l.b16 %v944
      %v3866 = vunpack.c.h.b16 %v944
      %v3867 = vunpack.c.l.b16 %v945
      %v3868 = vunpack.c.h.b16 %v945
      %v3869 = vunpack.c.l.b16 %v946
      %v3870 = vunpack.c.h.b16 %v946
      %v3871 = vunpack.c.l.b16 %v947
      %v3872 = vunpack.c.h.b16 %v947
      %v3873 = vunpack.c.l.b16 %v948
      %v3874 = vunpack.c.h.b16 %v948
      %v3875 = vunpack.c.l.b16 %v949
      %v3876 = vunpack.c.h.b16 %v949
      %v3877 = vunpack.c.l.b16 %v950
      %v3878 = vunpack.c.h.b16 %v950
      %v3879 = vunpack.c.l.b16 %v951
      %v3880 = vunpack.c.h.b16 %v951
      %v3881 = vunpack.c.l.b16 %v952
      %v3882 = vunpack.c.h.b16 %v952
      %v3883 = vunpack.c.l.b16 %v953
      %v3884 = vunpack.c.h.b16 %v953
      %v3885 = vunpack.c.l.b16 %v954
      %v3886 = vunpack.c.h.b16 %v954
      %v3887 = vunpack.c.l.b16 %v955
      %v3888 = vunpack.c.h.b16 %v955
      %v3889 = vunpack.c.l.b16 %v956
      %v3890 = vunpack.c.h.b16 %v956
      %v3891 = vunpack.c.l.b16 %v957
      %v3892 = vunpack.c.h.b16 %v957
      %v3893 = vunpack.c.l.b16 %v958
      %v3894 = vunpack.c.h.b16 %v958
      %v3895 = vunpack.c.l.b16 %v959
      %v3896 = vunpack.c.h.b16 %v959
      %v3897 = vunpack.c.l.b16 %v960
      %v3898 = vunpack.c.h.b16 %v960
      %v3899 = vunpack.c.l.b16 %v961
      %v3900 = vunpack.c.h.b16 %v961
      %v3901 = vunpack.c.l.b16 %v962
      %v3902 = vunpack.c.h.b16 %v962
      %v3903 = vunpack.c.l.b16 %v963
      %v3904 = vunpack.c.h.b16 %v963
      %v3905 = vunpack.c.l.b16 %v964
      %v3906 = vunpack.c.h.b16 %v964
      %v3907 = vunpack.c.l.b16 %v965
      %v3908 = vunpack.c.h.b16 %v965
      %v3909 = vunpack.c.l.b16 %v966
      %v3910 = vunpack.c.h.b16 %v966
      %v3911 = vunpack.c.l.b16 %v967
      %v3912 = vunpack.c.h.b16 %v967
      %v3913 = vunpack.c.l.b16 %v968
      %v3914 = vunpack.c.h.b16 %v968
      %v3915 = vunpack.c.l.b16 %v969
      %v3916 = vunpack.c.h.b16 %v969
      %v3917 = vunpack.c.l.b16 %v970
      %v3918 = vunpack.c.h.b16 %v970
      %v3919 = vunpack.c.l.b16 %v971
      %v3920 = vunpack.c.h.b16 %v971
      %v3921 = vunpack.c.l.b16 %v972
      %v3922 = vunpack.c.h.b16 %v972
      %v3923 = vunpack.c.l.b16 %v973
      %v3924 = vunpack.c.h.b16 %v973
      %v3925 = vunpack.c.l.b16 %v974
      %v3926 = vunpack.c.h.b16 %v974
      %v3927 = vunpack.c.l.b16 %v975
      %v3928 = vunpack.c.h.b16 %v975
      %v3929 = vunpack.c.l.b16 %v976
      %v3930 = vunpack.c.h.b16 %v976
      %v3931 = vunpack.c.l.b16 %v977
      %v3932 = vunpack.c.h.b16 %v977
      %v3933 = vunpack.c.l.b16 %v978
      %v3934 = vunpack.c.h.b16 %v978
      %v3935 = vunpack.c.l.b16 %v979
      %v3936 = vunpack.c.h.b16 %v979
      %v3937 = vunpack.c.l.b16 %v980
      %v3938 = vunpack.c.h.b16 %v980
      %v3939 = vunpack.c.l.b16 %v981
      %v3940 = vunpack.c.h.b16 %v981
      %v3941 = vunpack.c.l.b16 %v982
      %v3942 = vunpack.c.h.b16 %v982
      %v3943 = vunpack.c.l.b16 %v983
      %v3944 = vunpack.c.h.b16 %v983
      %v3945 = vunpack.c.l.b16 %v984
      %v3946 = vunpack.c.h.b16 %v984
      %v3947 = vunpack.c.l.b16 %v985
      %v3948 = vunpack.c.h.b16 %v985
      %v3949 = vunpack.c.l.b16 %v986
      %v3950 = vunpack.c.h.b16 %v986
      %v3951 = vunpack.c.l.b16 %v987
      %v3952 = vunpack.c.h.b16 %v987
      %v3953 = vunpack.c.l.b16 %v988
      %v3954 = vunpack.c.h.b16 %v988
      %v3955 = vunpack.c.l.b16 %v989
      %v3956 = vunpack.c.h.b16 %v989
      %v3957 = vunpack.c.l.b16 %v990
      %v3958 = vunpack.c.h.b16 %v990
      %v3959 = vunpack.c.l.b16 %v991
      %v3960 = vunpack.c.h.b16 %v991
      %v3961 = vunpack.c.l.b16 %v992
      %v3962 = vunpack.c.h.b16 %v992
      %v3963 = vunpack.c.l.b16 %v993
      %v3964 = vunpack.c.h.b16 %v993
      %v3965 = vunpack.c.l.b16 %v994
      %v3966 = vunpack.c.h.b16 %v994
      %v3967 = vunpack.c.l.b16 %v995
      %v3968 = vunpack.c.h.b16 %v995
      %v3969 = vunpack.c.l.b16 %v996
      %v3970 = vunpack.c.h.b16 %v996
      %v3971 = vunpack.c.l.b16 %v997
      %v3972 = vunpack.c.h.b16 %v997
      %v3973 = vunpack.c.l.b16 %v998
      %v3974 = vunpack.c.h.b16 %v998
      %v3975 = vunpack.c.l.b16 %v999
      %v3976 = vunpack.c.h.b16 %v999
      %v3977 = vunpack.c.l.b16 %v1000
      %v3978 = vunpack.c.h.b16 %v1000
      %v3979 = vunpack.c.l.b16 %v1001
      %v3980 = vunpack.c.h.b16 %v1001
      %v3981 = vunpack.c.l.b16 %v1002
      %v3982 = vunpack.c.h.b16 %v1002
      %v3983 = vunpack.c.l.b16 %v1003
      %v3984 = vunpack.c.h.b16 %v1003
      %v3985 = vunpack.c.l.b16 %v1004
      %v3986 = vunpack.c.h.b16 %v1004
      %v3987 = vunpack.c.l.b16 %v1005
      %v3988 = vunpack.c.h.b16 %v1005
      %v3989 = vunpack.c.l.b16 %v1006
      %v3990 = vunpack.c.h.b16 %v1006
      %v3991 = vunpack.c.l.b16 %v1007
      %v3992 = vunpack.c.h.b16 %v1007
      %v3993 = vunpack.c.l.b16 %v1008
      %v3994 = vunpack.c.h.b16 %v1008
      %v3995 = vunpack.c.l.b16 %v1009
      %v3996 = vunpack.c.h.b16 %v1009
      %v3997 = vunpack.c.l.b16 %v1010
      %v3998 = vunpack.c.h.b16 %v1010
      %v3999 = vunpack.c.l.b16 %v1011
      %v4000 = vunpack.c.h.b16 %v1011
      %v4001 = vunpack.c.l.b16 %v1012
      %v4002 = vunpack.c.h.b16 %v1012
      %v4003 = vunpack.c.l.b16 %v1013
      %v4004 = vunpack.c.h.b16 %v1013
      %v4005 = vunpack.c.l.b16 %v1014
      %v4006 = vunpack.c.h.b16 %v1014
      %v4007 = vunpack.c.l.b16 %v1015
      %v4008 = vunpack.c.h.b16 %v1015
      %v4009 = vunpack.c.l.b16 %v1016
      %v4010 = vunpack.c.h.b16 %v1016
      %v4011 = vunpack.c.l.b16 %v1017
      %v4012 = vunpack.c.h.b16 %v1017
      %v4013 = vunpack.c.l.b16 %v1018
      %v4014 = vunpack.c.h.b16 %v1018
      %v4015 = vunpack.c.l.b16 %v1019
      %v4016 = vunpack.c.h.b16 %v1019
      %v4017 = vunpack.c.l.b16 %v1020
      %v4018 = vunpack.c.h.b16 %v1020
      %v4019 = vunpack.c.l.b16 %v1021
      %v4020 = vunpack.c.h.b16 %v1021
      %v4021 = vunpack.c.l.b16 %v1022
      %v4022 = vunpack.c.h.b16 %v1022
      %v4023 = vunpack.c.l.b16 %v1023
      %v4024 = vunpack.c.h.b16 %v1023
      %v4025 = vunpack.c.l.b16 %v1024
      %v4026 = vunpack.c.h.b16 %v1024
      %v4027 = vunpack.c.l.b16 %v1025
      %v4028 = vunpack.c.h.b16 %v1025
      %v4029 = vunpack.c.l.b16 %v1026
      %v4030 = vunpack.c.h.b16 %v1026
      %v4031 = vunpack.c.l.b16 %v1027
      %v4032 = vunpack.c.h.b16 %v1027
      %v4033 = vunpack.c.l.b16 %v1028
      %v4034 = vunpack.c.h.b16 %v1028
      %v4035 = vunpack.c.l.b16 %v1029
      %v4036 = vunpack.c.h.b16 %v1029
      %v4037 = vunpack.c.l.b16 %v1030
      %v4038 = vunpack.c.h.b16 %v1030
      %v4039 = vunpack.c.l.b16 %v1031
      %v4040 = vunpack.c.h.b16 %v1031
      %v4041 = vunpack.c.l.b16 %v1032
      %v4042 = vunpack.c.h.b16 %v1032
      %v4043 = vunpack.c.l.b16 %v1033
      %v4044 = vunpack.c.h.b16 %v1033
      %v4045 = vunpack.c.l.b16 %v1034
      %v4046 = vunpack.c.h.b16 %v1034
      %v4047 = vunpack.c.l.b16 %v1035
      %v4048 = vunpack.c.h.b16 %v1035
      %v4049 = vunpack.c.l.b16 %v1036
      %v4050 = vunpack.c.h.b16 %v1036
      %v4051 = vunpack.c.l.b16 %v1037
      %v4052 = vunpack.c.h.b16 %v1037
      %v4053 = vunpack.c.l.b16 %v1038
      %v4054 = vunpack.c.h.b16 %v1038
      %v4055 = vunpack.c.l.b16 %v1039
      %v4056 = vunpack.c.h.b16 %v1039
      %v4057 = vunpack.c.l.b16 %v1040
      %v4058 = vunpack.c.h.b16 %v1040
      %v4059 = vunpack.c.l.b16 %v1041
      %v4060 = vunpack.c.h.b16 %v1041
      %v4061 = vunpack.c.l.b16 %v1042
      %v4062 = vunpack.c.h.b16 %v1042
      %v4063 = vunpack.c.l.b16 %v1043
      %v4064 = vunpack.c.h.b16 %v1043
      %v4065 = vunpack.c.l.b16 %v1044
      %v4066 = vunpack.c.h.b16 %v1044
      %v4067 = vunpack.c.l.b16 %v1045
      %v4068 = vunpack.c.h.b16 %v1045
      %v4069 = vunpack.c.l.b16 %v1046
      %v4070 = vunpack.c.h.b16 %v1046
      %v4071 = vunpack.c.l.b16 %v1047
      %v4072 = vunpack.c.h.b16 %v1047
      %v4073 = vunpack.c.l.b16 %v1048
      %v4074 = vunpack.c.h.b16 %v1048
      %v4075 = vunpack.c.l.b16 %v1049
      %v4076 = vunpack.c.h.b16 %v1049
      %v4077 = vunpack.c.l.b16 %v1050
      %v4078 = vunpack.c.h.b16 %v1050
      %v4079 = vunpack.c.l.b16 %v1051
      %v4080 = vunpack.c.h.b16 %v1051
      %v4081 = vunpack.c.l.b16 %v1052
      %v4082 = vunpack.c.h.b16 %v1052
      %v4083 = vunpack.c.l.b16 %v1053
      %v4084 = vunpack.c.h.b16 %v1053
      %v4085 = vunpack.c.l.b16 %v1054
      %v4086 = vunpack.c.h.b16 %v1054
      %v4087 = vunpack.c.l.b16 %v1055
      %v4088 = vunpack.c.h.b16 %v1055
      %v4089 = vunpack.c.l.b16 %v1056
      %v4090 = vunpack.c.h.b16 %v1056
      %v4091 = vunpack.c.l.b16 %v1057
      %v4092 = vunpack.c.h.b16 %v1057
      %v4093 = vunpack.c.l.b16 %v1058
      %v4094 = vunpack.c.h.b16 %v1058
      %v4095 = vunpack.c.l.b16 %v1059
      %v4096 = vunpack.c.h.b16 %v1059
      %v4097 = vunpack.c.l.b16 %v1060
      %v4098 = vunpack.c.h.b16 %v1060
      %v4099 = vunpack.c.l.b16 %v1061
      %v4100 = vunpack.c.h.b16 %v1061
      %v4101 = vunpack.c.l.b16 %v1062
      %v4102 = vunpack.c.h.b16 %v1062
      %v4103 = vunpack.c.l.b16 %v1063
      %v4104 = vunpack.c.h.b16 %v1063
      %v4105 = vunpack.c.l.b16 %v1064
      %v4106 = vunpack.c.h.b16 %v1064
      %v4107 = vunpack.c.l.b16 %v1065
      %v4108 = vunpack.c.h.b16 %v1065
      %v4109 = vunpack.c.l.b16 %v1066
      %v4110 = vunpack.c.h.b16 %v1066
      %v4111 = vunpack.c.l.b16 %v1067
      %v4112 = vunpack.c.h.b16 %v1067
      %v4113 = vunpack.c.l.b16 %v1068
      %v4114 = vunpack.c.h.b16 %v1068
      %v4115 = vunpack.c.l.b16 %v1069
      %v4116 = vunpack.c.h.b16 %v1069
      %v4117 = vunpack.c.l.b16 %v1070
      %v4118 = vunpack.c.h.b16 %v1070
      %v4119 = vunpack.c.l.b16 %v1071
      %v4120 = vunpack.c.h.b16 %v1071
      %v4121 = vunpack.c.l.b16 %v1072
      %v4122 = vunpack.c.h.b16 %v1072
      %v4123 = vunpack.c.l.b16 %v1073
      %v4124 = vunpack.c.h.b16 %v1073
      %v4125 = vunpack.c.l.b16 %v1074
      %v4126 = vunpack.c.h.b16 %v1074
      %v4127 = vunpack.c.l.b16 %v1075
      %v4128 = vunpack.c.h.b16 %v1075
      %v4129 = vunpack.c.l.b16 %v1076
      %v4130 = vunpack.c.h.b16 %v1076
      %v4131 = vunpack.c.l.b16 %v1077
      %v4132 = vunpack.c.h.b16 %v1077
      %v4133 = vunpack.c.l.b16 %v1078
      %v4134 = vunpack.c.h.b16 %v1078
      %v4135 = vunpack.c.l.b16 %v1079
      %v4136 = vunpack.c.h.b16 %v1079
      %v4137 = vunpack.c.l.b16 %v1080
      %v4138 = vunpack.c.h.b16 %v1080
      %v4139 = vunpack.c.l.b16 %v1081
      %v4140 = vunpack.c.h.b16 %v1081
      %v4141 = vunpack.c.l.b16 %v1082
      %v4142 = vunpack.c.h.b16 %v1082
      %v4143 = vunpack.c.l.b16 %v1083
      %v4144 = vunpack.c.h.b16 %v1083
      %v4145 = vunpack.c.l.b16 %v1084
      %v4146 = vunpack.c.h.b16 %v1084
      %v4147 = vunpack.c.l.b16 %v1085
      %v4148 = vunpack.c.h.b16 %v1085
      %v4149 = vunpack.c.l.b16 %v1086
      %v4150 = vunpack.c.h.b16 %v1086
      %v4151 = vunpack.c.l.b16 %v1087
      %v4152 = vunpack.c.h.b16 %v1087
      %v4153 = vunpack.c.l.b16 %v1088
      %v4154 = vunpack.c.h.b16 %v1088
      %v4155 = vunpack.c.l.b16 %v1089
      %v4156 = vunpack.c.h.b16 %v1089
      %v4157 = vunpack.c.l.b16 %v1090
      %v4158 = vunpack.c.h.b16 %v1090
      %v4159 = vunpack.c.l.b16 %v1091
      %v4160 = vunpack.c.h.b16 %v1091
      %v4161 = vunpack.c.l.b16 %v1092
      %v4162 = vunpack.c.h.b16 %v1092
      %v4163 = vunpack.c.l.b16 %v1093
      %v4164 = vunpack.c.h.b16 %v1093
      %v4165 = vunpack.c.l.b16 %v1094
      %v4166 = vunpack.c.h.b16 %v1094
      %v4167 = vunpack.c.l.b16 %v1095
      %v4168 = vunpack.c.h.b16 %v1095
      %v4169 = vunpack.c.l.b16 %v1096
      %v4170 = vunpack.c.h.b16 %v1096
      %v4171 = vunpack.c.l.b16 %v1097
      %v4172 = vunpack.c.h.b16 %v1097
      %v4173 = vunpack.c.l.b16 %v1098
      %v4174 = vunpack.c.h.b16 %v1098
      %v4175 = vunpack.c.l.b16 %v1099
      %v4176 = vunpack.c.h.b16 %v1099
      %v4177 = vunpack.c.l.b16 %v1100
      %v4178 = vunpack.c.h.b16 %v1100
      %v4179 = vunpack.c.l.b16 %v1101
      %v4180 = vunpack.c.h.b16 %v1101
      %v4181 = vunpack.c.l.b16 %v1102
      %v4182 = vunpack.c.h.b16 %v1102
      %v4183 = vunpack.c.l.b16 %v1103
      %v4184 = vunpack.c.h.b16 %v1103
      %v4185 = vunpack.c.l.b16 %v1104
      %v4186 = vunpack.c.h.b16 %v1104
      %v4187 = vunpack.c.l.b16 %v1105
      %v4188 = vunpack.c.h.b16 %v1105
      %v4189 = vunpack.c.l.b16 %v1106
      %v4190 = vunpack.c.h.b16 %v1106
      %v4191 = vunpack.c.l.b16 %v1107
      %v4192 = vunpack.c.h.b16 %v1107
      %v4193 = vunpack.c.l.b16 %v1108
      %v4194 = vunpack.c.h.b16 %v1108
      %v4195 = vunpack.c.l.b16 %v1109
      %v4196 = vunpack.c.h.b16 %v1109
      %v4197 = vunpack.c.l.b16 %v1110
      %v4198 = vunpack.c.h.b16 %v1110
      %v4199 = vunpack.c.l.b16 %v1111
      %v4200 = vunpack.c.h.b16 %v1111
      %v4201 = vunpack.c.l.b16 %v1112
      %v4202 = vunpack.c.h.b16 %v1112
      %v4203 = vunpack.c.l.b16 %v1113
      %v4204 = vunpack.c.h.b16 %v1113
      %v4205 = vunpack.c.l.b16 %v1114
      %v4206 = vunpack.c.h.b16 %v1114
      %v4207 = vunpack.c.l.b16 %v1115
      %v4208 = vunpack.c.h.b16 %v1115
      %v4209 = vunpack.c.l.b16 %v1116
      %v4210 = vunpack.c.h.b16 %v1116
      %v4211 = vunpack.c.l.b16 %v1117
      %v4212 = vunpack.c.h.b16 %v1117
      %v4213 = vunpack.c.l.b16 %v1118
      %v4214 = vunpack.c.h.b16 %v1118
      %v4215 = vunpack.c.l.b16 %v1119
      %v4216 = vunpack.c.h.b16 %v1119
      %v4217 = vunpack.c.l.b16 %v1120
      %v4218 = vunpack.c.h.b16 %v1120
      %v4219 = vunpack.c.l.b16 %v1121
      %v4220 = vunpack.c.h.b16 %v1121
      %v4221 = vunpack.c.l.b16 %v1122
      %v4222 = vunpack.c.h.b16 %v1122
      %v4223 = vunpack.c.l.b16 %v1123
      %v4224 = vunpack.c.h.b16 %v1123
      %v4225 = vunpack.c.l.b16 %v1124
      %v4226 = vunpack.c.h.b16 %v1124
      %v4227 = vunpack.c.l.b16 %v1125
      %v4228 = vunpack.c.h.b16 %v1125
      %v4229 = vunpack.c.l.b16 %v1126
      %v4230 = vunpack.c.h.b16 %v1126
      %v4231 = vunpack.c.l.b16 %v1127
      %v4232 = vunpack.c.h.b16 %v1127
      %v4233 = vunpack.c.l.b16 %v1128
      %v4234 = vunpack.c.h.b16 %v1128
      %v4235 = vunpack.c.l.b16 %v1129
      %v4236 = vunpack.c.h.b16 %v1129
      %v4237 = vunpack.c.l.b16 %v1130
      %v4238 = vunpack.c.h.b16 %v1130
      %v4239 = vunpack.c.l.b16 %v1131
      %v4240 = vunpack.c.h.b16 %v1131
      %v4241 = vunpack.c.l.b16 %v1132
      %v4242 = vunpack.c.h.b16 %v1132
      %v4243 = vunpack.c.l.b16 %v1133
      %v4244 = vunpack.c.h.b16 %v1133
      %v4245 = vunpack.c.l.b16 %v1134
      %v4246 = vunpack.c.h.b16 %v1134
      %v4247 = vunpack.c.l.b16 %v1135
      %v4248 = vunpack.c.h.b16 %v1135
      %v4249 = vunpack.c.l.b16 %v1136
      %v4250 = vunpack.c.h.b16 %v1136
      %v4251 = vunpack.c.l.b16 %v1137
      %v4252 = vunpack.c.h.b16 %v1137
      %v4253 = vunpack.c.l.b16 %v1138
      %v4254 = vunpack.c.h.b16 %v1138
      %v4255 = vunpack.c.l.b16 %v1139
      %v4256 = vunpack.c.h.b16 %v1139
      %v4257 = vunpack.c.l.b16 %v1140
      %v4258 = vunpack.c.h.b16 %v1140
      %v4259 = vunpack.c.l.b16 %v1141
      %v4260 = vunpack.c.h.b16 %v1141
      %v4261 = vunpack.c.l.b16 %v1142
      %v4262 = vunpack.c.h.b16 %v1142
      %v4263 = vunpack.c.l.b16 %v1143
      %v4264 = vunpack.c.h.b16 %v1143
      %v4265 = vunpack.c.l.b16 %v1144
      %v4266 = vunpack.c.h.b16 %v1144
      %v4267 = vunpack.c.l.b16 %v1145
      %v4268 = vunpack.c.h.b16 %v1145
      %v4269 = vunpack.c.l.b16 %v1146
      %v4270 = vunpack.c.h.b16 %v1146
      %v4271 = vunpack.c.l.b16 %v1147
      %v4272 = vunpack.c.h.b16 %v1147
      %v4273 = vunpack.c.l.b16 %v1148
      %v4274 = vunpack.c.h.b16 %v1148
      %v4275 = vunpack.c.l.b16 %v1149
      %v4276 = vunpack.c.h.b16 %v1149
      %v4277 = vunpack.c.l.b16 %v1150
      %v4278 = vunpack.c.h.b16 %v1150
      %v4279 = vunpack.c.l.b16 %v1151
      %v4280 = vunpack.c.h.b16 %v1151
      %v4281 = vunpack.c.l.b16 %v1152
      %v4282 = vunpack.c.h.b16 %v1152
      %v4283 = vunpack.c.l.b16 %v1153
      %v4284 = vunpack.c.h.b16 %v1153
      %v4285 = vunpack.c.l.b16 %v1154
      %v4286 = vunpack.c.h.b16 %v1154
      %v4287 = vunpack.c.l.b16 %v1155
      %v4288 = vunpack.c.h.b16 %v1155
      %v4289 = vunpack.c.l.b16 %v1156
      %v4290 = vunpack.c.h.b16 %v1156
      %v4291 = vunpack.c.l.b16 %v1157
      %v4292 = vunpack.c.h.b16 %v1157
      %v4293 = vunpack.c.l.b16 %v1158
      %v4294 = vunpack.c.h.b16 %v1158
      %v4295 = vunpack.c.l.b16 %v1159
      %v4296 = vunpack.c.h.b16 %v1159
      %v4297 = vunpack.c.l.b16 %v1160
      %v4298 = vunpack.c.h.b16 %v1160
      %v4299 = vunpack.c.l.b16 %v1161
      %v4300 = vunpack.c.h.b16 %v1161
      %v4301 = vunpack.c.l.b16 %v1162
      %v4302 = vunpack.c.h.b16 %v1162
      %v4303 = vunpack.c.l.b16 %v1163
      %v4304 = vunpack.c.h.b16 %v1163
      %v4305 = vunpack.c.l.b16 %v1164
      %v4306 = vunpack.c.h.b16 %v1164
      %v4307 = vunpack.c.l.b16 %v1165
      %v4308 = vunpack.c.h.b16 %v1165
      %v4309 = vunpack.c.l.b16 %v1166
      %v4310 = vunpack.c.h.b16 %v1166
      %v4311 = vunpack.c.l.b16 %v1167
      %v4312 = vunpack.c.h.b16 %v1167
      %v4313 = vunpack.c.l.b16 %v1168
      %v4314 = vunpack.c.h.b16 %v1168
      %v4315 = vunpack.c.l.b16 %v1169
      %v4316 = vunpack.c.h.b16 %v1169
      %v4317 = vunpack.c.l.b16 %v1170
      %v4318 = vunpack.c.h.b16 %v1170
      %v4319 = vunpack.c.l.b16 %v1171
      %v4320 = vunpack.c.h.b16 %v1171
      %v4321 = vunpack.c.l.b16 %v1172
      %v4322 = vunpack.c.h.b16 %v1172
      %v4323 = vunpack.c.l.b16 %v1173
      %v4324 = vunpack.c.h.b16 %v1173
      %v4325 = vunpack.c.l.b16 %v1174
      %v4326 = vunpack.c.h.b16 %v1174
      %v4327 = vunpack.c.l.b16 %v1175
      %v4328 = vunpack.c.h.b16 %v1175
      %v4329 = vunpack.c.l.b16 %v1176
      %v4330 = vunpack.c.h.b16 %v1176
      %v4331 = vunpack.c.l.b16 %v1177
      %v4332 = vunpack.c.h.b16 %v1177
      %v4333 = vunpack.c.l.b16 %v1178
      %v4334 = vunpack.c.h.b16 %v1178
      %v4335 = vunpack.c.l.b16 %v1179
      %v4336 = vunpack.c.h.b16 %v1179
      %v4337 = vunpack.c.l.b16 %v1180
      %v4338 = vunpack.c.h.b16 %v1180
      %v4339 = vunpack.c.l.b16 %v1181
      %v4340 = vunpack.c.h.b16 %v1181
      %v4341 = vunpack.c.l.b16 %v1182
      %v4342 = vunpack.c.h.b16 %v1182
      %v4343 = vunpack.c.l.b16 %v1183
      %v4344 = vunpack.c.h.b16 %v1183
      %v4345 = vunpack.c.l.b16 %v1184
      %v4346 = vunpack.c.h.b16 %v1184
      %v4347 = vunpack.c.l.b16 %v1185
      %v4348 = vunpack.c.h.b16 %v1185
      %v4349 = vunpack.c.l.b16 %v1186
      %v4350 = vunpack.c.h.b16 %v1186
      %v4351 = vunpack.c.l.b16 %v1187
      %v4352 = vunpack.c.h.b16 %v1187
      %v4353 = vunpack.c.l.b16 %v1188
      %v4354 = vunpack.c.h.b16 %v1188
      %v4355 = vunpack.c.l.b16 %v1189
      %v4356 = vunpack.c.h.b16 %v1189
      %v4357 = vunpack.c.l.b16 %v1190
      %v4358 = vunpack.c.h.b16 %v1190
      %v4359 = vunpack.c.l.b16 %v1191
      %v4360 = vunpack.c.h.b16 %v1191
      %v4361 = vunpack.c.l.b16 %v1192
      %v4362 = vunpack.c.h.b16 %v1192
      %v4363 = vunpack.c.l.b16 %v1193
      %v4364 = vunpack.c.h.b16 %v1193
      %v4365 = vunpack.c.l.b16 %v1194
      %v4366 = vunpack.c.h.b16 %v1194
      %v4367 = vunpack.c.l.b16 %v1195
      %v4368 = vunpack.c.h.b16 %v1195
      %v4369 = vunpack.c.l.b16 %v1196
      %v4370 = vunpack.c.h.b16 %v1196
      %v4371 = vunpack.c.l.b16 %v1197
      %v4372 = vunpack.c.h.b16 %v1197
      %v4373 = vunpack.c.l.b16 %v1198
      %v4374 = vunpack.c.h.b16 %v1198
      %v4375 = vunpack.c.l.b16 %v1199
      %v4376 = vunpack.c.h.b16 %v1199
      %v4377 = vunpack.c.l.b16 %v1200
      %v4378 = vunpack.c.h.b16 %v1200
      %v4379 = vunpack.c.l.b16 %v1201
      %v4380 = vunpack.c.h.b16 %v1201
      %v4381 = vunpack.c.l.b16 %v1202
      %v4382 = vunpack.c.h.b16 %v1202
      %v4383 = vunpack.c.l.b16 %v1203
      %v4384 = vunpack.c.h.b16 %v1203
      %v4385 = vunpack.c.l.b16 %v1204
      %v4386 = vunpack.c.h.b16 %v1204
      %v4387 = vunpack.c.l.b16 %v1205
      %v4388 = vunpack.c.h.b16 %v1205
      %v4389 = vunpack.c.l.b16 %v1206
      %v4390 = vunpack.c.h.b16 %v1206
      %v4391 = vunpack.c.l.b16 %v1207
      %v4392 = vunpack.c.h.b16 %v1207
      %v4393 = vunpack.c.l.b16 %v1208
      %v4394 = vunpack.c.h.b16 %v1208
      %v4395 = vunpack.c.l.b16 %v1209
      %v4396 = vunpack.c.h.b16 %v1209
      %v4397 = vunpack.c.l.b16 %v1210
      %v4398 = vunpack.c.h.b16 %v1210
      %v4399 = vunpack.c.l.b16 %v1211
      %v4400 = vunpack.c.h.b16 %v1211
      %v4401 = vunpack.c.l.b16 %v1212
      %v4402 = vunpack.c.h.b16 %v1212
      %v4403 = vunpack.c.l.b16 %v1213
      %v4404 = vunpack.c.h.b16 %v1213
      %v4405 = vunpack.c.l.b16 %v1214
      %v4406 = vunpack.c.h.b16 %v1214
      %v4407 = vunpack.c.l.b16 %v1215
      %v4408 = vunpack.c.h.b16 %v1215
      %v4409 = vunpack.c.l.b16 %v1216
      %v4410 = vunpack.c.h.b16 %v1216
      %v4411 = vunpack.c.l.b16 %v1217
      %v4412 = vunpack.c.h.b16 %v1217
      %v4413 = vunpack.c.l.b16 %v1218
      %v4414 = vunpack.c.h.b16 %v1218
      %v4415 = vunpack.c.l.b16 %v1219
      %v4416 = vunpack.c.h.b16 %v1219
      %v4417 = vunpack.c.l.b16 %v1220
      %v4418 = vunpack.c.h.b16 %v1220
      %v4419 = vunpack.c.l.b16 %v1221
      %v4420 = vunpack.c.h.b16 %v1221
      %v4421 = vunpack.c.l.b16 %v1222
      %v4422 = vunpack.c.h.b16 %v1222
      %v4423 = vunpack.c.l.b16 %v1223
      %v4424 = vunpack.c.h.b16 %v1223
      %v4425 = vunpack.c.l.b16 %v1224
      %v4426 = vunpack.c.h.b16 %v1224
      %v4427 = vunpack.c.l.b16 %v1225
      %v4428 = vunpack.c.h.b16 %v1225
      %v4429 = vunpack.c.l.b16 %v1226
      %v4430 = vunpack.c.h.b16 %v1226
      %v4431 = vunpack.c.l.b16 %v1227
      %v4432 = vunpack.c.h.b16 %v1227
      %v4433 = vunpack.c.l.b16 %v1228
      %v4434 = vunpack.c.h.b16 %v1228
      %v4435 = vunpack.c.l.b16 %v1229
      %v4436 = vunpack.c.h.b16 %v1229
      %v4437 = vunpack.c.l.b16 %v1230
      %v4438 = vunpack.c.h.b16 %v1230
      %v4439 = vunpack.c.l.b16 %v1231
      %v4440 = vunpack.c.h.b16 %v1231
      %v4441 = vunpack.c.l.b16 %v1232
      %v4442 = vunpack.c.h.b16 %v1232
      %v4443 = vunpack.c.l.b16 %v1233
      %v4444 = vunpack.c.h.b16 %v1233
      %v4445 = vunpack.c.l.b16 %v1234
      %v4446 = vunpack.c.h.b16 %v1234
      %v4447 = vunpack.c.l.b16 %v1235
      %v4448 = vunpack.c.h.b16 %v1235
      %v4449 = vunpack.c.l.b16 %v1236
      %v4450 = vunpack.c.h.b16 %v1236
      %v4451 = vunpack.c.l.b16 %v1237
      %v4452 = vunpack.c.h.b16 %v1237
      %v4453 = vunpack.c.l.b16 %v1238
      %v4454 = vunpack.c.h.b16 %v1238
      %v4455 = vunpack.c.l.b16 %v1239
      %v4456 = vunpack.c.h.b16 %v1239
      %v4457 = vunpack.c.l.b16 %v1240
      %v4458 = vunpack.c.h.b16 %v1240
      %v4459 = vunpack.c.l.b16 %v1241
      %v4460 = vunpack.c.h.b16 %v1241
      %v4461 = vunpack.c.l.b16 %v1242
      %v4462 = vunpack.c.h.b16 %v1242
      %v4463 = vunpack.c.l.b16 %v1243
      %v4464 = vunpack.c.h.b16 %v1243
      %v4465 = vunpack.c.l.b16 %v1244
      %v4466 = vunpack.c.h.b16 %v1244
      %v4467 = vunpack.c.l.b16 %v1245
      %v4468 = vunpack.c.h.b16 %v1245
      %v4469 = vunpack.c.l.b16 %v1246
      %v4470 = vunpack.c.h.b16 %v1246
      %v4471 = vunpack.c.l.b16 %v1247
      %v4472 = vunpack.c.h.b16 %v1247
      %v4473 = vunpack.c.l.b16 %v1248
      %v4474 = vunpack.c.h.b16 %v1248
      %v4475 = vunpack.c.l.b16 %v1249
      %v4476 = vunpack.c.h.b16 %v1249
      %v4477 = vunpack.c.l.b16 %v1250
      %v4478 = vunpack.c.h.b16 %v1250
      %v4479 = vunpack.c.l.b16 %v1251
      %v4480 = vunpack.c.h.b16 %v1251
      %v4481 = vunpack.c.l.b16 %v1252
      %v4482 = vunpack.c.h.b16 %v1252
      %v4483 = vunpack.c.l.b16 %v1253
      %v4484 = vunpack.c.h.b16 %v1253
      %v4485 = vunpack.c.l.b16 %v1254
      %v4486 = vunpack.c.h.b16 %v1254
      %v4487 = vunpack.c.l.b16 %v1255
      %v4488 = vunpack.c.h.b16 %v1255
      %v4489 = vunpack.c.l.b16 %v1256
      %v4490 = vunpack.c.h.b16 %v1256
      %v4491 = vunpack.c.l.b16 %v1257
      %v4492 = vunpack.c.h.b16 %v1257
      %v4493 = vunpack.c.l.b16 %v1258
      %v4494 = vunpack.c.h.b16 %v1258
      %v4495 = vunpack.c.l.b16 %v1259
      %v4496 = vunpack.c.h.b16 %v1259
      %v4497 = vunpack.c.l.b16 %v1260
      %v4498 = vunpack.c.h.b16 %v1260
      %v4499 = vunpack.c.l.b16 %v1261
      %v4500 = vunpack.c.h.b16 %v1261
      %v4501 = vunpack.c.l.b16 %v1262
      %v4502 = vunpack.c.h.b16 %v1262
      %v4503 = vunpack.c.l.b16 %v1263
      %v4504 = vunpack.c.h.b16 %v1263
      %v4505 = vunpack.c.l.b16 %v1264
      %v4506 = vunpack.c.h.b16 %v1264
      %v4507 = vunpack.c.l.b16 %v1265
      %v4508 = vunpack.c.h.b16 %v1265
      %v4509 = vunpack.c.l.b16 %v1266
      %v4510 = vunpack.c.h.b16 %v1266
      %v4511 = vunpack.c.l.b16 %v1267
      %v4512 = vunpack.c.h.b16 %v1267
      %v4513 = vunpack.c.l.b16 %v1268
      %v4514 = vunpack.c.h.b16 %v1268
      %v4515 = vunpack.c.l.b16 %v1269
      %v4516 = vunpack.c.h.b16 %v1269
      %v4517 = vunpack.c.l.b16 %v1270
      %v4518 = vunpack.c.h.b16 %v1270
      %v4519 = vunpack.c.l.b16 %v1271
      %v4520 = vunpack.c.h.b16 %v1271
      %v4521 = vunpack.c.l.b16 %v1272
      %v4522 = vunpack.c.h.b16 %v1272
      %v4523 = vunpack.c.l.b16 %v1273
      %v4524 = vunpack.c.h.b16 %v1273
      %v4525 = vunpack.c.l.b16 %v1274
      %v4526 = vunpack.c.h.b16 %v1274
      %v4527 = vunpack.c.l.b16 %v1275
      %v4528 = vunpack.c.h.b16 %v1275
      %v4529 = vunpack.c.l.b16 %v1276
      %v4530 = vunpack.c.h.b16 %v1276
      %v4531 = vunpack.c.l.b16 %v1277
      %v4532 = vunpack.c.h.b16 %v1277
      %v4533 = vunpack.c.l.b16 %v1278
      %v4534 = vunpack.c.h.b16 %v1278
      %v4535 = vunpack.c.l.b16 %v1279
      %v4536 = vunpack.c.h.b16 %v1279
      %v4537 = vunpack.c.l.b16 %v1280
      %v4538 = vunpack.c.h.b16 %v1280
      %v4539 = vunpack.c.l.b16 %v1281
      %v4540 = vunpack.c.h.b16 %v1281
      %v4541 = vunpack.c.l.b16 %v1282
      %v4542 = vunpack.c.h.b16 %v1282
      %v4543 = vunpack.c.l.b16 %v1283
      %v4544 = vunpack.c.h.b16 %v1283
      %v4545 = vunpack.c.l.b16 %v1284
      %v4546 = vunpack.c.h.b16 %v1284
      %v4547 = vunpack.c.l.b16 %v1285
      %v4548 = vunpack.c.h.b16 %v1285
      %v4549 = vunpack.c.l.b16 %v1286
      %v4550 = vunpack.c.h.b16 %v1286
      %v4551 = vunpack.c.l.b16 %v1287
      %v4552 = vunpack.c.h.b16 %v1287
      %v4553 = vunpack.c.l.b16 %v1288
      %v4554 = vunpack.c.h.b16 %v1288
      %v4555 = vunpack.c.l.b16 %v1289
      %v4556 = vunpack.c.h.b16 %v1289
      %v4557 = vunpack.c.l.b16 %v1290
      %v4558 = vunpack.c.h.b16 %v1290
      %v4559 = vunpack.c.l.b16 %v1291
      %v4560 = vunpack.c.h.b16 %v1291
      %v4561 = vunpack.c.l.b16 %v1292
      %v4562 = vunpack.c.h.b16 %v1292
      %v4563 = vunpack.c.l.b16 %v1293
      %v4564 = vunpack.c.h.b16 %v1293
      %v4565 = vunpack.c.l.b16 %v1294
      %v4566 = vunpack.c.h.b16 %v1294
      %v4567 = vunpack.c.l.b16 %v1295
      %v4568 = vunpack.c.h.b16 %v1295
      %v4569 = vunpack.c.l.b16 %v1296
      %v4570 = vunpack.c.h.b16 %v1296
      %v4571 = vunpack.c.l.b16 %v1297
      %v4572 = vunpack.c.h.b16 %v1297
      %v4573 = vunpack.c.l.b16 %v1298
      %v4574 = vunpack.c.h.b16 %v1298
      %v4575 = vunpack.c.l.b16 %v1299
      %v4576 = vunpack.c.h.b16 %v1299
      %v4577 = vunpack.c.l.b16 %v1300
      %v4578 = vunpack.c.h.b16 %v1300
      %v4579 = vunpack.c.l.b16 %v1301
      %v4580 = vunpack.c.h.b16 %v1301
      %v4581 = vunpack.c.l.b16 %v1302
      %v4582 = vunpack.c.h.b16 %v1302
      %v4583 = vunpack.c.l.b16 %v1303
      %v4584 = vunpack.c.h.b16 %v1303
      %v4585 = vunpack.c.l.b16 %v1304
      %v4586 = vunpack.c.h.b16 %v1304
      %v4587 = vunpack.c.l.b16 %v1305
      %v4588 = vunpack.c.h.b16 %v1305
      %v4589 = vunpack.c.l.b16 %v1306
      %v4590 = vunpack.c.h.b16 %v1306
      %v4591 = vunpack.c.l.b16 %v1307
      %v4592 = vunpack.c.h.b16 %v1307
      %v4593 = vunpack.c.l.b16 %v1308
      %v4594 = vunpack.c.h.b16 %v1308
      %v4595 = vunpack.c.l.b16 %v1309
      %v4596 = vunpack.c.h.b16 %v1309
      %v4597 = vunpack.c.l.b16 %v1310
      %v4598 = vunpack.c.h.b16 %v1310
      %v4599 = vunpack.c.l.b16 %v1311
      %v4600 = vunpack.c.h.b16 %v1311
      %v4601 = vunpack.c.l.b16 %v1312
      %v4602 = vunpack.c.h.b16 %v1312
      %v4603 = vunpack.c.l.b16 %v1313
      %v4604 = vunpack.c.h.b16 %v1313
      %v4605 = vunpack.c.l.b16 %v1314
      %v4606 = vunpack.c.h.b16 %v1314
      %v4607 = vunpack.c.l.b16 %v1315
      %v4608 = vunpack.c.h.b16 %v1315
      %v4609 = vunpack.c.l.b16 %v1316
      %v4610 = vunpack.c.h.b16 %v1316
      %v4611 = vunpack.c.l.b16 %v1317
      %v4612 = vunpack.c.h.b16 %v1317
      %v4613 = vunpack.c.l.b16 %v1318
      %v4614 = vunpack.c.h.b16 %v1318
      %v4615 = vunpack.c.l.b16 %v1319
      %v4616 = vunpack.c.h.b16 %v1319
      %v4617 = vunpack.c.l.b16 %v1320
      %v4618 = vunpack.c.h.b16 %v1320
      %v4619 = vunpack.c.l.b16 %v1321
      %v4620 = vunpack.c.h.b16 %v1321
      %v4621 = vunpack.c.l.b16 %v1322
      %v4622 = vunpack.c.h.b16 %v1322
      %v4623 = vunpack.c.l.b16 %v1323
      %v4624 = vunpack.c.h.b16 %v1323
      %v4625 = vunpack.c.l.b16 %v1324
      %v4626 = vunpack.c.h.b16 %v1324
      %v4627 = vpack.c.b16 %v2581, %v2579
      %v4628 = vpack.c.b16 %v2582, %v2580
      %v4629 = vpack.c.b16 %v2585, %v2583
      %v4630 = vpack.c.b16 %v2586, %v2584
      %v4631 = vpack.c.b16 %v2589, %v2587
      %v4632 = vpack.c.b16 %v2590, %v2588
      %v4633 = vpack.c.b16 %v2593, %v2591
      %v4634 = vpack.c.b16 %v2594, %v2592
      %v4635 = vpack.c.b16 %v2597, %v2595
      %v4636 = vpack.c.b16 %v2598, %v2596
      %v4637 = vpack.c.b16 %v2601, %v2599
      %v4638 = vpack.c.b16 %v2602, %v2600
      %v4639 = vpack.c.b16 %v2605, %v2603
      %v4640 = vpack.c.b16 %v2606, %v2604
      %v4641 = vpack.c.b16 %v2609, %v2607
      %v4642 = vpack.c.b16 %v2610, %v2608
      %v4643 = vpack.c.b16 %v2613, %v2611
      %v4644 = vpack.c.b16 %v2614, %v2612
      %v4645 = vpack.c.b16 %v2617, %v2615
      %v4646 = vpack.c.b16 %v2618, %v2616
      %v4647 = vpack.c.b16 %v2621, %v2619
      %v4648 = vpack.c.b16 %v2622, %v2620
      %v4649 = vpack.c.b16 %v2625, %v2623
      %v4650 = vpack.c.b16 %v2626, %v2624
      %v4651 = vpack.c.b16 %v2629, %v2627
      %v4652 = vpack.c.b16 %v2630, %v2628
      %v4653 = vpack.c.b16 %v2633, %v2631
      %v4654 = vpack.c.b16 %v2634, %v2632
      %v4655 = vpack.c.b16 %v2637, %v2635
      %v4656 = vpack.c.b16 %v2638, %v2636
      %v4657 = vpack.c.b16 %v2641, %v2639
      %v4658 = vpack.c.b16 %v2642, %v2640
      %v4659 = vpack.c.b16 %v2645, %v2643
      %v4660 = vpack.c.b16 %v2646, %v2644
      %v4661 = vpack.c.b16 %v2649, %v2647
      %v4662 = vpack.c.b16 %v2650, %v2648
      %v4663 = vpack.c.b16 %v2653, %v2651
      %v4664 = vpack.c.b16 %v2654, %v2652
      %v4665 = vpack.c.b16 %v2657, %v2655
      %v4666 = vpack.c.b16 %v2658, %v2656
      %v4667 = vpack.c.b16 %v2661, %v2659
      %v4668 = vpack.c.b16 %v2662, %v2660
      %v4669 = vpack.c.b16 %v2665, %v2663
      %v4670 = vpack.c.b16 %v2666, %v2664
      %v4671 = vpack.c.b16 %v2669, %v2667
      %v4672 = vpack.c.b16 %v2670, %v2668
      %v4673 = vpack.c.b16 %v2673, %v2671
      %v4674 = vpack.c.b16 %v2674, %v2672
      %v4675 = vpack.c.b16 %v2677, %v2675
      %v4676 = vpack.c.b16 %v2678, %v2676
      %v4677 = vpack.c.b16 %v2681, %v2679
      %v4678 = vpack.c.b16 %v2682, %v2680
      %v4679 = vpack.c.b16 %v2685, %v2683
      %v4680 = vpack.c.b16 %v2686, %v2684
      %v4681 = vpack.c.b16 %v2689, %v2687
      %v4682 = vpack.c.b16 %v2690, %v2688
      %v4683 = vpack.c.b16 %v2693, %v2691
      %v4684 = vpack.c.b16 %v2694, %v2692
      %v4685 = vpack.c.b16 %v2697, %v2695
      %v4686 = vpack.c.b16 %v2698, %v2696
      %v4687 = vpack.c.b16 %v2701, %v2699
      %v4688 = vpack.c.b16 %v2702, %v2700
      %v4689 = vpack.c.b16 %v2705, %v2703
      %v4690 = vpack.c.b16 %v2706, %v2704
      %v4691 = vpack.c.b16 %v2709, %v2707
      %v4692 = vpack.c.b16 %v2710, %v2708
      %v4693 = vpack.c.b16 %v2713, %v2711
      %v4694 = vpack.c.b16 %v2714, %v2712
      %v4695 = vpack.c.b16 %v2717, %v2715
      %v4696 = vpack.c.b16 %v2718, %v2716
      %v4697 = vpack.c.b16 %v2721, %v2719
      %v4698 = vpack.c.b16 %v2722, %v2720
      %v4699 = vpack.c.b16 %v2725, %v2723
      %v4700 = vpack.c.b16 %v2726, %v2724
      %v4701 = vpack.c.b16 %v2729, %v2727
      %v4702 = vpack.c.b16 %v2730, %v2728
      %v4703 = vpack.c.b16 %v2733, %v2731
      %v4704 = vpack.c.b16 %v2734, %v2732
      %v4705 = vpack.c.b16 %v2737, %v2735
      %v4706 = vpack.c.b16 %v2738, %v2736
      %v4707 = vpack.c.b16 %v2741, %v2739
      %v4708 = vpack.c.b16 %v2742, %v2740
      %v4709 = vpack.c.b16 %v2745, %v2743
      %v4710 = vpack.c.b16 %v2746, %v2744
      %v4711 = vpack.c.b16 %v2749, %v2747
      %v4712 = vpack.c.b16 %v2750, %v2748
      %v4713 = vpack.c.b16 %v2753, %v2751
      %v4714 = vpack.c.b16 %v2754, %v2752
      %v4715 = vpack.c.b16 %v2757, %v2755
      %v4716 = vpack.c.b16 %v2758, %v2756
      %v4717 = vpack.c.b16 %v2761, %v2759
      %v4718 = vpack.c.b16 %v2762, %v2760
      %v4719 = vpack.c.b16 %v2765, %v2763
      %v4720 = vpack.c.b16 %v2766, %v2764
      %v4721 = vpack.c.b16 %v2769, %v2767
      %v4722 = vpack.c.b16 %v2770, %v2768
      %v4723 = vpack.c.b16 %v2773, %v2771
      %v4724 = vpack.c.b16 %v2774, %v2772
      %v4725 = vpack.c.b16 %v2777, %v2775
      %v4726 = vpack.c.b16 %v2778, %v2776
      %v4727 = vpack.c.b16 %v2781, %v2779
      %v4728 = vpack.c.b16 %v2782, %v2780
      %v4729 = vpack.c.b16 %v2785, %v2783
      %v4730 = vpack.c.b16 %v2786, %v2784
      %v4731 = vpack.c.b16 %v2789, %v2787
      %v4732 = vpack.c.b16 %v2790, %v2788
      %v4733 = vpack.c.b16 %v2793, %v2791
      %v4734 = vpack.c.b16 %v2794, %v2792
      %v4735 = vpack.c.b16 %v2797, %v2795
      %v4736 = vpack.c.b16 %v2798, %v2796
      %v4737 = vpack.c.b16 %v2801, %v2799
      %v4738 = vpack.c.b16 %v2802, %v2800
      %v4739 = vpack.c.b16 %v2805, %v2803
      %v4740 = vpack.c.b16 %v2806, %v2804
      %v4741 = vpack.c.b16 %v2809, %v2807
      %v4742 = vpack.c.b16 %v2810, %v2808
      %v4743 = vpack.c.b16 %v2813, %v2811
      %v4744 = vpack.c.b16 %v2814, %v2812
      %v4745 = vpack.c.b16 %v2817, %v2815
      %v4746 = vpack.c.b16 %v2818, %v2816
      %v4747 = vpack.c.b16 %v2821, %v2819
      %v4748 = vpack.c.b16 %v2822, %v2820
      %v4749 = vpack.c.b16 %v2825, %v2823
      %v4750 = vpack.c.b16 %v2826, %v2824
      %v4751 = vpack.c.b16 %v2829, %v2827
      %v4752 = vpack.c.b16 %v2830, %v2828
      %v4753 = vpack.c.b16 %v2833, %v2831
      %v4754 = vpack.c.b16 %v2834, %v2832
      %v4755 = vpack.c.b16 %v2837, %v2835
      %v4756 = vpack.c.b16 %v2838, %v2836
      %v4757 = vpack.c.b16 %v2841, %v2839
      %v4758 = vpack.c.b16 %v2842, %v2840
      %v4759 = vpack.c.b16 %v2845, %v2843
      %v4760 = vpack.c.b16 %v2846, %v2844
      %v4761 = vpack.c.b16 %v2849, %v2847
      %v4762 = vpack.c.b16 %v2850, %v2848
      %v4763 = vpack.c.b16 %v2853, %v2851
      %v4764 = vpack.c.b16 %v2854, %v2852
      %v4765 = vpack.c.b16 %v2857, %v2855
      %v4766 = vpack.c.b16 %v2858, %v2856
      %v4767 = vpack.c.b16 %v2861, %v2859
      %v4768 = vpack.c.b16 %v2862, %v2860
      %v4769 = vpack.c.b16 %v2865, %v2863
      %v4770 = vpack.c.b16 %v2866, %v2864
      %v4771 = vpack.c.b16 %v2869, %v2867
      %v4772 = vpack.c.b16 %v2870, %v2868
      %v4773 = vpack.c.b16 %v2873, %v2871
      %v4774 = vpack.c.b16 %v2874, %v2872
      %v4775 = vpack.c.b16 %v2877, %v2875
      %v4776 = vpack.c.b16 %v2878, %v2876
      %v4777 = vpack.c.b16 %v2881, %v2879
      %v4778 = vpack.c.b16 %v2882, %v2880
      %v4779 = vpack.c.b16 %v2885, %v2883
      %v4780 = vpack.c.b16 %v2886, %v2884
      %v4781 = vpack.c.b16 %v2889, %v2887
      %v4782 = vpack.c.b16 %v2890, %v2888
      %v4783 = vpack.c.b16 %v2893, %v2891
      %v4784 = vpack.c.b16 %v2894, %v2892
      %v4785 = vpack.c.b16 %v2897, %v2895
      %v4786 = vpack.c.b16 %v2898, %v2896
      %v4787 = vpack.c.b16 %v2901, %v2899
      %v4788 = vpack.c.b16 %v2902, %v2900
      %v4789 = vpack.c.b16 %v2905, %v2903
      %v4790 = vpack.c.b16 %v2906, %v2904
      %v4791 = vpack.c.b16 %v2909, %v2907
      %v4792 = vpack.c.b16 %v2910, %v2908
      %v4793 = vpack.c.b16 %v2913, %v2911
      %v4794 = vpack.c.b16 %v2914, %v2912
      %v4795 = vpack.c.b16 %v2917, %v2915
      %v4796 = vpack.c.b16 %v2918, %v2916
      %v4797 = vpack.c.b16 %v2921, %v2919
      %v4798 = vpack.c.b16 %v2922, %v2920
      %v4799 = vpack.c.b16 %v2925, %v2923
      %v4800 = vpack.c.b16 %v2926, %v2924
      %v4801 = vpack.c.b16 %v2929, %v2927
      %v4802 = vpack.c.b16 %v2930, %v2928
      %v4803 = vpack.c.b16 %v2933, %v2931
      %v4804 = vpack.c.b16 %v2934, %v2932
      %v4805 = vpack.c.b16 %v2937, %v2935
      %v4806 = vpack.c.b16 %v2938, %v2936
      %v4807 = vpack.c.b16 %v2941, %v2939
      %v4808 = vpack.c.b16 %v2942, %v2940
      %v4809 = vpack.c.b16 %v2945, %v2943
      %v4810 = vpack.c.b16 %v2946, %v2944
      %v4811 = vpack.c.b16 %v2949, %v2947
      %v4812 = vpack.c.b16 %v2950, %v2948
      %v4813 = vpack.c.b16 %v2953, %v2951
      %v4814 = vpack.c.b16 %v2954, %v2952
      %v4815 = vpack.c.b16 %v2957, %v2955
      %v4816 = vpack.c.b16 %v2958, %v2956
      %v4817 = vpack.c.b16 %v2961, %v2959
      %v4818 = vpack.c.b16 %v2962, %v2960
      %v4819 = vpack.c.b16 %v2965, %v2963
      %v4820 = vpack.c.b16 %v2966, %v2964
      %v4821 = vpack.c.b16 %v2969, %v2967
      %v4822 = vpack.c.b16 %v2970, %v2968
      %v4823 = vpack.c.b16 %v2973, %v2971
      %v4824 = vpack.c.b16 %v2974, %v2972
      %v4825 = vpack.c.b16 %v2977, %v2975
      %v4826 = vpack.c.b16 %v2978, %v2976
      %v4827 = vpack.c.b16 %v2981, %v2979
      %v4828 = vpack.c.b16 %v2982, %v2980
      %v4829 = vpack.c.b16 %v2985, %v2983
      %v4830 = vpack.c.b16 %v2986, %v2984
      %v4831 = vpack.c.b16 %v2989, %v2987
      %v4832 = vpack.c.b16 %v2990, %v2988
      %v4833 = vpack.c.b16 %v2993, %v2991
      %v4834 = vpack.c.b16 %v2994, %v2992
      %v4835 = vpack.c.b16 %v2997, %v2995
      %v4836 = vpack.c.b16 %v2998, %v2996
      %v4837 = vpack.c.b16 %v3001, %v2999
      %v4838 = vpack.c.b16 %v3002, %v3000
      %v4839 = vpack.c.b16 %v3005, %v3003
      %v4840 = vpack.c.b16 %v3006, %v3004
      %v4841 = vpack.c.b16 %v3009, %v3007
      %v4842 = vpack.c.b16 %v3010, %v3008
      %v4843 = vpack.c.b16 %v3013, %v3011
      %v4844 = vpack.c.b16 %v3014, %v3012
      %v4845 = vpack.c.b16 %v3017, %v3015
      %v4846 = vpack.c.b16 %v3018, %v3016
      %v4847 = vpack.c.b16 %v3021, %v3019
      %v4848 = vpack.c.b16 %v3022, %v3020
      %v4849 = vpack.c.b16 %v3025, %v3023
      %v4850 = vpack.c.b16 %v3026, %v3024
      %v4851 = vpack.c.b16 %v3029, %v3027
      %v4852 = vpack.c.b16 %v3030, %v3028
      %v4853 = vpack.c.b16 %v3033, %v3031
      %v4854 = vpack.c.b16 %v3034, %v3032
      %v4855 = vpack.c.b16 %v3037, %v3035
      %v4856 = vpack.c.b16 %v3038, %v3036
      %v4857 = vpack.c.b16 %v3041, %v3039
      %v4858 = vpack.c.b16 %v3042, %v3040
      %v4859 = vpack.c.b16 %v3045, %v3043
      %v4860 = vpack.c.b16 %v3046, %v3044
      %v4861 = vpack.c.b16 %v3049, %v3047
      %v4862 = vpack.c.b16 %v3050, %v3048
      %v4863 = vpack.c.b16 %v3053, %v3051
      %v4864 = vpack.c.b16 %v3054, %v3052
      %v4865 = vpack.c.b16 %v3057, %v3055
      %v4866 = vpack.c.b16 %v3058, %v3056
      %v4867 = vpack.c.b16 %v3061, %v3059
      %v4868 = vpack.c.b16 %v3062, %v3060
      %v4869 = vpack.c.b16 %v3065, %v3063
      %v4870 = vpack.c.b16 %v3066, %v3064
      %v4871 = vpack.c.b16 %v3069, %v3067
      %v4872 = vpack.c.b16 %v3070, %v3068
      %v4873 = vpack.c.b16 %v3073, %v3071
      %v4874 = vpack.c.b16 %v3074, %v3072
      %v4875 = vpack.c.b16 %v3077, %v3075
      %v4876 = vpack.c.b16 %v3078, %v3076
      %v4877 = vpack.c.b16 %v3081, %v3079
      %v4878 = vpack.c.b16 %v3082, %v3080
      %v4879 = vpack.c.b16 %v3085, %v3083
      %v4880 = vpack.c.b16 %v3086, %v3084
      %v4881 = vpack.c.b16 %v3089, %v3087
      %v4882 = vpack.c.b16 %v3090, %v3088
      %v4883 = vpack.c.b16 %v3093, %v3091
      %v4884 = vpack.c.b16 %v3094, %v3092
      %v4885 = vpack.c.b16 %v3097, %v3095
      %v4886 = vpack.c.b16 %v3098, %v3096
      %v4887 = vpack.c.b16 %v3101, %v3099
      %v4888 = vpack.c.b16 %v3102, %v3100
      %v4889 = vpack.c.b16 %v3105, %v3103
      %v4890 = vpack.c.b16 %v3106, %v3104
      %v4891 = vpack.c.b16 %v3109, %v3107
      %v4892 = vpack.c.b16 %v3110, %v3108
      %v4893 = vpack.c.b16 %v3113, %v3111
      %v4894 = vpack.c.b16 %v3114, %v3112
      %v4895 = vpack.c.b16 %v3117, %v3115
      %v4896 = vpack.c.b16 %v3118, %v3116
      %v4897 = vpack.c.b16 %v3121, %v3119
      %v4898 = vpack.c.b16 %v3122, %v3120
      %v4899 = vpack.c.b16 %v3125, %v3123
      %v4900 = vpack.c.b16 %v3126, %v3124
      %v4901 = vpack.c.b16 %v3129, %v3127
      %v4902 = vpack.c.b16 %v3130, %v3128
      %v4903 = vpack.c.b16 %v3133, %v3131
      %v4904 = vpack.c.b16 %v3134, %v3132
      %v4905 = vpack.c.b16 %v3137, %v3135
      %v4906 = vpack.c.b16 %v3138, %v3136
      %v4907 = vpack.c.b16 %v3141, %v3139
      %v4908 = vpack.c.b16 %v3142, %v3140
      %v4909 = vpack.c.b16 %v3145, %v3143
      %v4910 = vpack.c.b16 %v3146, %v3144
      %v4911 = vpack.c.b16 %v3149, %v3147
      %v4912 = vpack.c.b16 %v3150, %v3148
      %v4913 = vpack.c.b16 %v3153, %v3151
      %v4914 = vpack.c.b16 %v3154, %v3152
      %v4915 = vpack.c.b16 %v3157, %v3155
      %v4916 = vpack.c.b16 %v3158, %v3156
      %v4917 = vpack.c.b16 %v3161, %v3159
      %v4918 = vpack.c.b16 %v3162, %v3160
      %v4919 = vpack.c.b16 %v3165, %v3163
      %v4920 = vpack.c.b16 %v3166, %v3164
      %v4921 = vpack.c.b16 %v3169, %v3167
      %v4922 = vpack.c.b16 %v3170, %v3168
      %v4923 = vpack.c.b16 %v3173, %v3171
      %v4924 = vpack.c.b16 %v3174, %v3172
      %v4925 = vpack.c.b16 %v3177, %v3175
      %v4926 = vpack.c.b16 %v3178, %v3176
      %v4927 = vpack.c.b16 %v3181, %v3179
      %v4928 = vpack.c.b16 %v3182, %v3180
      %v4929 = vpack.c.b16 %v3185, %v3183
      %v4930 = vpack.c.b16 %v3186, %v3184
      %v4931 = vpack.c.b16 %v3189, %v3187
      %v4932 = vpack.c.b16 %v3190, %v3188
      %v4933 = vpack.c.b16 %v3193, %v3191
      %v4934 = vpack.c.b16 %v3194, %v3192
      %v4935 = vpack.c.b16 %v3197, %v3195
      %v4936 = vpack.c.b16 %v3198, %v3196
      %v4937 = vpack.c.b16 %v3201, %v3199
      %v4938 = vpack.c.b16 %v3202, %v3200
      %v4939 = vpack.c.b16 %v3205, %v3203
      %v4940 = vpack.c.b16 %v3206, %v3204
      %v4941 = vpack.c.b16 %v3209, %v3207
      %v4942 = vpack.c.b16 %v3210, %v3208
      %v4943 = vpack.c.b16 %v3213, %v3211
      %v4944 = vpack.c.b16 %v3214, %v3212
      %v4945 = vpack.c.b16 %v3217, %v3215
      %v4946 = vpack.c.b16 %v3218, %v3216
      %v4947 = vpack.c.b16 %v3221, %v3219
      %v4948 = vpack.c.b16 %v3222, %v3220
      %v4949 = vpack.c.b16 %v3225, %v3223
      %v4950 = vpack.c.b16 %v3226, %v3224
      %v4951 = vpack.c.b16 %v3229, %v3227
      %v4952 = vpack.c.b16 %v3230, %v3228
      %v4953 = vpack.c.b16 %v3233, %v3231
      %v4954 = vpack.c.b16 %v3234, %v3232
      %v4955 = vpack.c.b16 %v3237, %v3235
      %v4956 = vpack.c.b16 %v3238, %v3236
      %v4957 = vpack.c.b16 %v3241, %v3239
      %v4958 = vpack.c.b16 %v3242, %v3240
      %v4959 = vpack.c.b16 %v3245, %v3243
      %v4960 = vpack.c.b16 %v3246, %v3244
      %v4961 = vpack.c.b16 %v3249, %v3247
      %v4962 = vpack.c.b16 %v3250, %v3248
      %v4963 = vpack.c.b16 %v3253, %v3251
      %v4964 = vpack.c.b16 %v3254, %v3252
      %v4965 = vpack.c.b16 %v3257, %v3255
      %v4966 = vpack.c.b16 %v3258, %v3256
      %v4967 = vpack.c.b16 %v3261, %v3259
      %v4968 = vpack.c.b16 %v3262, %v3260
      %v4969 = vpack.c.b16 %v3265, %v3263
      %v4970 = vpack.c.b16 %v3266, %v3264
      %v4971 = vpack.c.b16 %v3269, %v3267
      %v4972 = vpack.c.b16 %v3270, %v3268
      %v4973 = vpack.c.b16 %v3273, %v3271
      %v4974 = vpack.c.b16 %v3274, %v3272
      %v4975 = vpack.c.b16 %v3277, %v3275
      %v4976 = vpack.c.b16 %v3278, %v3276
      %v4977 = vpack.c.b16 %v3281, %v3279
      %v4978 = vpack.c.b16 %v3282, %v3280
      %v4979 = vpack.c.b16 %v3285, %v3283
      %v4980 = vpack.c.b16 %v3286, %v3284
      %v4981 = vpack.c.b16 %v3289, %v3287
      %v4982 = vpack.c.b16 %v3290, %v3288
      %v4983 = vpack.c.b16 %v3293, %v3291
      %v4984 = vpack.c.b16 %v3294, %v3292
      %v4985 = vpack.c.b16 %v3297, %v3295
      %v4986 = vpack.c.b16 %v3298, %v3296
      %v4987 = vpack.c.b16 %v3301, %v3299
      %v4988 = vpack.c.b16 %v3302, %v3300
      %v4989 = vpack.c.b16 %v3305, %v3303
      %v4990 = vpack.c.b16 %v3306, %v3304
      %v4991 = vpack.c.b16 %v3309, %v3307
      %v4992 = vpack.c.b16 %v3310, %v3308
      %v4993 = vpack.c.b16 %v3313, %v3311
      %v4994 = vpack.c.b16 %v3314, %v3312
      %v4995 = vpack.c.b16 %v3317, %v3315
      %v4996 = vpack.c.b16 %v3318, %v3316
      %v4997 = vpack.c.b16 %v3321, %v3319
      %v4998 = vpack.c.b16 %v3322, %v3320
      %v4999 = vpack.c.b16 %v3325, %v3323
      %v5000 = vpack.c.b16 %v3326, %v3324
      %v5001 = vpack.c.b16 %v3329, %v3327
      %v5002 = vpack.c.b16 %v3330, %v3328
      %v5003 = vpack.c.b16 %v3333, %v3331
      %v5004 = vpack.c.b16 %v3334, %v3332
      %v5005 = vpack.c.b16 %v3337, %v3335
      %v5006 = vpack.c.b16 %v3338, %v3336
      %v5007 = vpack.c.b16 %v3341, %v3339
      %v5008 = vpack.c.b16 %v3342, %v3340
      %v5009 = vpack.c.b16 %v3345, %v3343
      %v5010 = vpack.c.b16 %v3346, %v3344
      %v5011 = vpack.c.b16 %v3349, %v3347
      %v5012 = vpack.c.b16 %v3350, %v3348
      %v5013 = vpack.c.b16 %v3353, %v3351
      %v5014 = vpack.c.b16 %v3354, %v3352
      %v5015 = vpack.c.b16 %v3357, %v3355
      %v5016 = vpack.c.b16 %v3358, %v3356
      %v5017 = vpack.c.b16 %v3361, %v3359
      %v5018 = vpack.c.b16 %v3362, %v3360
      %v5019 = vpack.c.b16 %v3365, %v3363
      %v5020 = vpack.c.b16 %v3366, %v3364
      %v5021 = vpack.c.b16 %v3369, %v3367
      %v5022 = vpack.c.b16 %v3370, %v3368
      %v5023 = vpack.c.b16 %v3373, %v3371
      %v5024 = vpack.c.b16 %v3374, %v3372
      %v5025 = vpack.c.b16 %v3377, %v3375
      %v5026 = vpack.c.b16 %v3378, %v3376
      %v5027 = vpack.c.b16 %v3381, %v3379
      %v5028 = vpack.c.b16 %v3382, %v3380
      %v5029 = vpack.c.b16 %v3385, %v3383
      %v5030 = vpack.c.b16 %v3386, %v3384
      %v5031 = vpack.c.b16 %v3389, %v3387
      %v5032 = vpack.c.b16 %v3390, %v3388
      %v5033 = vpack.c.b16 %v3393, %v3391
      %v5034 = vpack.c.b16 %v3394, %v3392
      %v5035 = vpack.c.b16 %v3397, %v3395
      %v5036 = vpack.c.b16 %v3398, %v3396
      %v5037 = vpack.c.b16 %v3401, %v3399
      %v5038 = vpack.c.b16 %v3402, %v3400
      %v5039 = vpack.c.b16 %v3405, %v3403
      %v5040 = vpack.c.b16 %v3406, %v3404
      %v5041 = vpack.c.b16 %v3409, %v3407
      %v5042 = vpack.c.b16 %v3410, %v3408
      %v5043 = vpack.c.b16 %v3413, %v3411
      %v5044 = vpack.c.b16 %v3414, %v3412
      %v5045 = vpack.c.b16 %v3417, %v3415
      %v5046 = vpack.c.b16 %v3418, %v3416
      %v5047 = vpack.c.b16 %v3421, %v3419
      %v5048 = vpack.c.b16 %v3422, %v3420
      %v5049 = vpack.c.b16 %v3425, %v3423
      %v5050 = vpack.c.b16 %v3426, %v3424
      %v5051 = vpack.c.b16 %v3429, %v3427
      %v5052 = vpack.c.b16 %v3430, %v3428
      %v5053 = vpack.c.b16 %v3433, %v3431
      %v5054 = vpack.c.b16 %v3434, %v3432
      %v5055 = vpack.c.b16 %v3437, %v3435
      %v5056 = vpack.c.b16 %v3438, %v3436
      %v5057 = vpack.c.b16 %v3441, %v3439
      %v5058 = vpack.c.b16 %v3442, %v3440
      %v5059 = vpack.c.b16 %v3445, %v3443
      %v5060 = vpack.c.b16 %v3446, %v3444
      %v5061 = vpack.c.b16 %v3449, %v3447
      %v5062 = vpack.c.b16 %v3450, %v3448
      %v5063 = vpack.c.b16 %v3453, %v3451
      %v5064 = vpack.c.b16 %v3454, %v3452
      %v5065 = vpack.c.b16 %v3457, %v3455
      %v5066 = vpack.c.b16 %v3458, %v3456
      %v5067 = vpack.c.b16 %v3461, %v3459
      %v5068 = vpack.c.b16 %v3462, %v3460
      %v5069 = vpack.c.b16 %v3465, %v3463
      %v5070 = vpack.c.b16 %v3466, %v3464
      %v5071 = vpack.c.b16 %v3469, %v3467
      %v5072 = vpack.c.b16 %v3470, %v3468
      %v5073 = vpack.c.b16 %v3473, %v3471
      %v5074 = vpack.c.b16 %v3474, %v3472
      %v5075 = vpack.c.b16 %v3477, %v3475
      %v5076 = vpack.c.b16 %v3478, %v3476
      %v5077 = vpack.c.b16 %v3481, %v3479
      %v5078 = vpack.c.b16 %v3482, %v3480
      %v5079 = vpack.c.b16 %v3485, %v3483
      %v5080 = vpack.c.b16 %v3486, %v3484
      %v5081 = vpack.c.b16 %v3489, %v3487
      %v5082 = vpack.c.b16 %v3490, %v3488
      %v5083 = vpack.c.b16 %v3493, %v3491
      %v5084 = vpack.c.b16 %v3494, %v3492
      %v5085 = vpack.c.b16 %v3497, %v3495
      %v5086 = vpack.c.b16 %v3498, %v3496
      %v5087 = vpack.c.b16 %v3501, %v3499
      %v5088 = vpack.c.b16 %v3502, %v3500
      %v5089 = vpack.c.b16 %v3505, %v3503
      %v5090 = vpack.c.b16 %v3506, %v3504
      %v5091 = vpack.c.b16 %v3509, %v3507
      %v5092 = vpack.c.b16 %v3510, %v3508
      %v5093 = vpack.c.b16 %v3513, %v3511
      %v5094 = vpack.c.b16 %v3514, %v3512
      %v5095 = vpack.c.b16 %v3517, %v3515
      %v5096 = vpack.c.b16 %v3518, %v3516
      %v5097 = vpack.c.b16 %v3521, %v3519
      %v5098 = vpack.c.b16 %v3522, %v3520
      %v5099 = vpack.c.b16 %v3525, %v3523
      %v5100 = vpack.c.b16 %v3526, %v3524
      %v5101 = vpack.c.b16 %v3529, %v3527
      %v5102 = vpack.c.b16 %v3530, %v3528
      %v5103 = vpack.c.b16 %v3533, %v3531
      %v5104 = vpack.c.b16 %v3534, %v3532
      %v5105 = vpack.c.b16 %v3537, %v3535
      %v5106 = vpack.c.b16 %v3538, %v3536
      %v5107 = vpack.c.b16 %v3541, %v3539
      %v5108 = vpack.c.b16 %v3542, %v3540
      %v5109 = vpack.c.b16 %v3545, %v3543
      %v5110 = vpack.c.b16 %v3546, %v3544
      %v5111 = vpack.c.b16 %v3549, %v3547
      %v5112 = vpack.c.b16 %v3550, %v3548
      %v5113 = vpack.c.b16 %v3553, %v3551
      %v5114 = vpack.c.b16 %v3554, %v3552
      %v5115 = vpack.c.b16 %v3557, %v3555
      %v5116 = vpack.c.b16 %v3558, %v3556
      %v5117 = vpack.c.b16 %v3561, %v3559
      %v5118 = vpack.c.b16 %v3562, %v3560
      %v5119 = vpack.c.b16 %v3565, %v3563
      %v5120 = vpack.c.b16 %v3566, %v3564
      %v5121 = vpack.c.b16 %v3569, %v3567
      %v5122 = vpack.c.b16 %v3570, %v3568
      %v5123 = vpack.c.b16 %v3573, %v3571
      %v5124 = vpack.c.b16 %v3574, %v3572
      %v5125 = vpack.c.b16 %v3577, %v3575
      %v5126 = vpack.c.b16 %v3578, %v3576
      %v5127 = vpack.c.b16 %v3581, %v3579
      %v5128 = vpack.c.b16 %v3582, %v3580
      %v5129 = vpack.c.b16 %v3585, %v3583
      %v5130 = vpack.c.b16 %v3586, %v3584
      %v5131 = vpack.c.b16 %v3589, %v3587
      %v5132 = vpack.c.b16 %v3590, %v3588
      %v5133 = vpack.c.b16 %v3593, %v3591
      %v5134 = vpack.c.b16 %v3594, %v3592
      %v5135 = vpack.c.b16 %v3597, %v3595
      %v5136 = vpack.c.b16 %v3598, %v3596
      %v5137 = vpack.c.b16 %v3601, %v3599
      %v5138 = vpack.c.b16 %v3602, %v3600
      %v5139 = vpack.c.b16 %v3605, %v3603
      %v5140 = vpack.c.b16 %v3606, %v3604
      %v5141 = vpack.c.b16 %v3609, %v3607
      %v5142 = vpack.c.b16 %v3610, %v3608
      %v5143 = vpack.c.b16 %v3613, %v3611
      %v5144 = vpack.c.b16 %v3614, %v3612
      %v5145 = vpack.c.b16 %v3617, %v3615
      %v5146 = vpack.c.b16 %v3618, %v3616
      %v5147 = vpack.c.b16 %v3621, %v3619
      %v5148 = vpack.c.b16 %v3622, %v3620
      %v5149 = vpack.c.b16 %v3625, %v3623
      %v5150 = vpack.c.b16 %v3626, %v3624
      %v5151 = vpack.c.b16 %v3629, %v3627
      %v5152 = vpack.c.b16 %v3630, %v3628
      %v5153 = vpack.c.b16 %v3633, %v3631
      %v5154 = vpack.c.b16 %v3634, %v3632
      %v5155 = vpack.c.b16 %v3637, %v3635
      %v5156 = vpack.c.b16 %v3638, %v3636
      %v5157 = vpack.c.b16 %v3641, %v3639
      %v5158 = vpack.c.b16 %v3642, %v3640
      %v5159 = vpack.c.b16 %v3645, %v3643
      %v5160 = vpack.c.b16 %v3646, %v3644
      %v5161 = vpack.c.b16 %v3649, %v3647
      %v5162 = vpack.c.b16 %v3650, %v3648
      %v5163 = vpack.c.b16 %v3653, %v3651
      %v5164 = vpack.c.b16 %v3654, %v3652
      %v5165 = vpack.c.b16 %v3657, %v3655
      %v5166 = vpack.c.b16 %v3658, %v3656
      %v5167 = vpack.c.b16 %v3661, %v3659
      %v5168 = vpack.c.b16 %v3662, %v3660
      %v5169 = vpack.c.b16 %v3665, %v3663
      %v5170 = vpack.c.b16 %v3666, %v3664
      %v5171 = vpack.c.b16 %v3669, %v3667
      %v5172 = vpack.c.b16 %v3670, %v3668
      %v5173 = vpack.c.b16 %v3673, %v3671
      %v5174 = vpack.c.b16 %v3674, %v3672
      %v5175 = vpack.c.b16 %v3677, %v3675
      %v5176 = vpack.c.b16 %v3678, %v3676
      %v5177 = vpack.c.b16 %v3681, %v3679
      %v5178 = vpack.c.b16 %v3682, %v3680
      %v5179 = vpack.c.b16 %v3685, %v3683
      %v5180 = vpack.c.b16 %v3686, %v3684
      %v5181 = vpack.c.b16 %v3689, %v3687
      %v5182 = vpack.c.b16 %v3690, %v3688
      %v5183 = vpack.c.b16 %v3693, %v3691
      %v5184 = vpack.c.b16 %v3694, %v3692
      %v5185 = vpack.c.b16 %v3697, %v3695
      %v5186 = vpack.c.b16 %v3698, %v3696
      %v5187 = vpack.c.b16 %v3701, %v3699
      %v5188 = vpack.c.b16 %v3702, %v3700
      %v5189 = vpack.c.b16 %v3705, %v3703
      %v5190 = vpack.c.b16 %v3706, %v3704
      %v5191 = vpack.c.b16 %v3709, %v3707
      %v5192 = vpack.c.b16 %v3710, %v3708
      %v5193 = vpack.c.b16 %v3713, %v3711
      %v5194 = vpack.c.b16 %v3714, %v3712
      %v5195 = vpack.c.b16 %v3717, %v3715
      %v5196 = vpack.c.b16 %v3718, %v3716
      %v5197 = vpack.c.b16 %v3721, %v3719
      %v5198 = vpack.c.b16 %v3722, %v3720
      %v5199 = vpack.c.b16 %v3725, %v3723
      %v5200 = vpack.c.b16 %v3726, %v3724
      %v5201 = vpack.c.b16 %v3729, %v3727
      %v5202 = vpack.c.b16 %v3730, %v3728
      %v5203 = vpack.c.b16 %v3733, %v3731
      %v5204 = vpack.c.b16 %v3734, %v3732
      %v5205 = vpack.c.b16 %v3737, %v3735
      %v5206 = vpack.c.b16 %v3738, %v3736
      %v5207 = vpack.c.b16 %v3741, %v3739
      %v5208 = vpack.c.b16 %v3742, %v3740
      %v5209 = vpack.c.b16 %v3745, %v3743
      %v5210 = vpack.c.b16 %v3746, %v3744
      %v5211 = vpack.c.b16 %v3749, %v3747
      %v5212 = vpack.c.b16 %v3750, %v3748
      %v5213 = vpack.c.b16 %v3753, %v3751
      %v5214 = vpack.c.b16 %v3754, %v3752
      %v5215 = vpack.c.b16 %v3757, %v3755
      %v5216 = vpack.c.b16 %v3758, %v3756
      %v5217 = vpack.c.b16 %v3761, %v3759
      %v5218 = vpack.c.b16 %v3762, %v3760
      %v5219 = vpack.c.b16 %v3765, %v3763
      %v5220 = vpack.c.b16 %v3766, %v3764
      %v5221 = vpack.c.b16 %v3769, %v3767
      %v5222 = vpack.c.b16 %v3770, %v3768
      %v5223 = vpack.c.b16 %v3773, %v3771
      %v5224 = vpack.c.b16 %v3774, %v3772
      %v5225 = vpack.c.b16 %v3777, %v3775
      %v5226 = vpack.c.b16 %v3778, %v3776
      %v5227 = vpack.c.b16 %v3781, %v3779
      %v5228 = vpack.c.b16 %v3782, %v3780
      %v5229 = vpack.c.b16 %v3785, %v3783
      %v5230 = vpack.c.b16 %v3786, %v3784
      %v5231 = vpack.c.b16 %v3789, %v3787
      %v5232 = vpack.c.b16 %v3790, %v3788
      %v5233 = vpack.c.b16 %v3793, %v3791
      %v5234 = vpack.c.b16 %v3794, %v3792
      %v5235 = vpack.c.b16 %v3797, %v3795
      %v5236 = vpack.c.b16 %v3798, %v3796
      %v5237 = vpack.c.b16 %v3801, %v3799
      %v5238 = vpack.c.b16 %v3802, %v3800
      %v5239 = vpack.c.b16 %v3805, %v3803
      %v5240 = vpack.c.b16 %v3806, %v3804
      %v5241 = vpack.c.b16 %v3809, %v3807
      %v5242 = vpack.c.b16 %v3810, %v3808
      %v5243 = vpack.c.b16 %v3813, %v3811
      %v5244 = vpack.c.b16 %v3814, %v3812
      %v5245 = vpack.c.b16 %v3817, %v3815
      %v5246 = vpack.c.b16 %v3818, %v3816
      %v5247 = vpack.c.b16 %v3821, %v3819
      %v5248 = vpack.c.b16 %v3822, %v3820
      %v5249 = vpack.c.b16 %v3825, %v3823
      %v5250 = vpack.c.b16 %v3826, %v3824
      %v5251 = vpack.c.b16 %v3829, %v3827
      %v5252 = vpack.c.b16 %v3830, %v3828
      %v5253 = vpack.c.b16 %v3833, %v3831
      %v5254 = vpack.c.b16 %v3834, %v3832
      %v5255 = vpack.c.b16 %v3837, %v3835
      %v5256 = vpack.c.b16 %v3838, %v3836
      %v5257 = vpack.c.b16 %v3841, %v3839
      %v5258 = vpack.c.b16 %v3842, %v3840
      %v5259 = vpack.c.b16 %v3845, %v3843
      %v5260 = vpack.c.b16 %v3846, %v3844
      %v5261 = vpack.c.b16 %v3849, %v3847
      %v5262 = vpack.c.b16 %v3850, %v3848
      %v5263 = vpack.c.b16 %v3853, %v3851
      %v5264 = vpack.c.b16 %v3854, %v3852
      %v5265 = vpack.c.b16 %v3857, %v3855
      %v5266 = vpack.c.b16 %v3858, %v3856
      %v5267 = vpack.c.b16 %v3861, %v3859
      %v5268 = vpack.c.b16 %v3862, %v3860
      %v5269 = vpack.c.b16 %v3865, %v3863
      %v5270 = vpack.c.b16 %v3866, %v3864
      %v5271 = vpack.c.b16 %v3869, %v3867
      %v5272 = vpack.c.b16 %v3870, %v3868
      %v5273 = vpack.c.b16 %v3873, %v3871
      %v5274 = vpack.c.b16 %v3874, %v3872
      %v5275 = vpack.c.b16 %v3877, %v3875
      %v5276 = vpack.c.b16 %v3878, %v3876
      %v5277 = vpack.c.b16 %v3881, %v3879
      %v5278 = vpack.c.b16 %v3882, %v3880
      %v5279 = vpack.c.b16 %v3885, %v3883
      %v5280 = vpack.c.b16 %v3886, %v3884
      %v5281 = vpack.c.b16 %v3889, %v3887
      %v5282 = vpack.c.b16 %v3890, %v3888
      %v5283 = vpack.c.b16 %v3893, %v3891
      %v5284 = vpack.c.b16 %v3894, %v3892
      %v5285 = vpack.c.b16 %v3897, %v3895
      %v5286 = vpack.c.b16 %v3898, %v3896
      %v5287 = vpack.c.b16 %v3901, %v3899
      %v5288 = vpack.c.b16 %v3902, %v3900
      %v5289 = vpack.c.b16 %v3905, %v3903
      %v5290 = vpack.c.b16 %v3906, %v3904
      %v5291 = vpack.c.b16 %v3909, %v3907
      %v5292 = vpack.c.b16 %v3910, %v3908
      %v5293 = vpack.c.b16 %v3913, %v3911
      %v5294 = vpack.c.b16 %v3914, %v3912
      %v5295 = vpack.c.b16 %v3917, %v3915
      %v5296 = vpack.c.b16 %v3918, %v3916
      %v5297 = vpack.c.b16 %v3921, %v3919
      %v5298 = vpack.c.b16 %v3922, %v3920
      %v5299 = vpack.c.b16 %v3925, %v3923
      %v5300 = vpack.c.b16 %v3926, %v3924
      %v5301 = vpack.c.b16 %v3929, %v3927
      %v5302 = vpack.c.b16 %v3930, %v3928
      %v5303 = vpack.c.b16 %v3933, %v3931
      %v5304 = vpack.c.b16 %v3934, %v3932
      %v5305 = vpack.c.b16 %v3937, %v3935
      %v5306 = vpack.c.b16 %v3938, %v3936
      %v5307 = vpack.c.b16 %v3941, %v3939
      %v5308 = vpack.c.b16 %v3942, %v3940
      %v5309 = vpack.c.b16 %v3945, %v3943
      %v5310 = vpack.c.b16 %v3946, %v3944
      %v5311 = vpack.c.b16 %v3949, %v3947
      %v5312 = vpack.c.b16 %v3950, %v3948
      %v5313 = vpack.c.b16 %v3953, %v3951
      %v5314 = vpack.c.b16 %v3954, %v3952
      %v5315 = vpack.c.b16 %v3957, %v3955
      %v5316 = vpack.c.b16 %v3958, %v3956
      %v5317 = vpack.c.b16 %v3961, %v3959
      %v5318 = vpack.c.b16 %v3962, %v3960
      %v5319 = vpack.c.b16 %v3965, %v3963
      %v5320 = vpack.c.b16 %v3966, %v3964
      %v5321 = vpack.c.b16 %v3969, %v3967
      %v5322 = vpack.c.b16 %v3970, %v3968
      %v5323 = vpack.c.b16 %v3973, %v3971
      %v5324 = vpack.c.b16 %v3974, %v3972
      %v5325 = vpack.c.b16 %v3977, %v3975
      %v5326 = vpack.c.b16 %v3978, %v3976
      %v5327 = vpack.c.b16 %v3981, %v3979
      %v5328 = vpack.c.b16 %v3982, %v3980
      %v5329 = vpack.c.b16 %v3985, %v3983
      %v5330 = vpack.c.b16 %v3986, %v3984
      %v5331 = vpack.c.b16 %v3989, %v3987
      %v5332 = vpack.c.b16 %v3990, %v3988
      %v5333 = vpack.c.b16 %v3993, %v3991
      %v5334 = vpack.c.b16 %v3994, %v3992
      %v5335 = vpack.c.b16 %v3997, %v3995
      %v5336 = vpack.c.b16 %v3998, %v3996
      %v5337 = vpack.c.b16 %v4001, %v3999
      %v5338 = vpack.c.b16 %v4002, %v4000
      %v5339 = vpack.c.b16 %v4005, %v4003
      %v5340 = vpack.c.b16 %v4006, %v4004
      %v5341 = vpack.c.b16 %v4009, %v4007
      %v5342 = vpack.c.b16 %v4010, %v4008
      %v5343 = vpack.c.b16 %v4013, %v4011
      %v5344 = vpack.c.b16 %v4014, %v4012
      %v5345 = vpack.c.b16 %v4017, %v4015
      %v5346 = vpack.c.b16 %v4018, %v4016
      %v5347 = vpack.c.b16 %v4021, %v4019
      %v5348 = vpack.c.b16 %v4022, %v4020
      %v5349 = vpack.c.b16 %v4025, %v4023
      %v5350 = vpack.c.b16 %v4026, %v4024
      %v5351 = vpack.c.b16 %v4029, %v4027
      %v5352 = vpack.c.b16 %v4030, %v4028
      %v5353 = vpack.c.b16 %v4033, %v4031
      %v5354 = vpack.c.b16 %v4034, %v4032
      %v5355 = vpack.c.b16 %v4037, %v4035
      %v5356 = vpack.c.b16 %v4038, %v4036
      %v5357 = vpack.c.b16 %v4041, %v4039
      %v5358 = vpack.c.b16 %v4042, %v4040
      %v5359 = vpack.c.b16 %v4045, %v4043
      %v5360 = vpack.c.b16 %v4046, %v4044
      %v5361 = vpack.c.b16 %v4049, %v4047
      %v5362 = vpack.c.b16 %v4050, %v4048
      %v5363 = vpack.c.b16 %v4053, %v4051
      %v5364 = vpack.c.b16 %v4054, %v4052
      %v5365 = vpack.c.b16 %v4057, %v4055
      %v5366 = vpack.c.b16 %v4058, %v4056
      %v5367 = vpack.c.b16 %v4061, %v4059
      %v5368 = vpack.c.b16 %v4062, %v4060
      %v5369 = vpack.c.b16 %v4065, %v4063
      %v5370 = vpack.c.b16 %v4066, %v4064
      %v5371 = vpack.c.b16 %v4069, %v4067
      %v5372 = vpack.c.b16 %v4070, %v4068
      %v5373 = vpack.c.b16 %v4073, %v4071
      %v5374 = vpack.c.b16 %v4074, %v4072
      %v5375 = vpack.c.b16 %v4077, %v4075
      %v5376 = vpack.c.b16 %v4078, %v4076
      %v5377 = vpack.c.b16 %v4081, %v4079
      %v5378 = vpack.c.b16 %v4082, %v4080
      %v5379 = vpack.c.b16 %v4085, %v4083
      %v5380 = vpack.c.b16 %v4086, %v4084
      %v5381 = vpack.c.b16 %v4089, %v4087
      %v5382 = vpack.c.b16 %v4090, %v4088
      %v5383 = vpack.c.b16 %v4093, %v4091
      %v5384 = vpack.c.b16 %v4094, %v4092
      %v5385 = vpack.c.b16 %v4097, %v4095
      %v5386 = vpack.c.b16 %v4098, %v4096
      %v5387 = vpack.c.b16 %v4101, %v4099
      %v5388 = vpack.c.b16 %v4102, %v4100
      %v5389 = vpack.c.b16 %v4105, %v4103
      %v5390 = vpack.c.b16 %v4106, %v4104
      %v5391 = vpack.c.b16 %v4109, %v4107
      %v5392 = vpack.c.b16 %v4110, %v4108
      %v5393 = vpack.c.b16 %v4113, %v4111
      %v5394 = vpack.c.b16 %v4114, %v4112
      %v5395 = vpack.c.b16 %v4117, %v4115
      %v5396 = vpack.c.b16 %v4118, %v4116
      %v5397 = vpack.c.b16 %v4121, %v4119
      %v5398 = vpack.c.b16 %v4122, %v4120
      %v5399 = vpack.c.b16 %v4125, %v4123
      %v5400 = vpack.c.b16 %v4126, %v4124
      %v5401 = vpack.c.b16 %v4129, %v4127
      %v5402 = vpack.c.b16 %v4130, %v4128
      %v5403 = vpack.c.b16 %v4133, %v4131
      %v5404 = vpack.c.b16 %v4134, %v4132
      %v5405 = vpack.c.b16 %v4137, %v4135
      %v5406 = vpack.c.b16 %v4138, %v4136
      %v5407 = vpack.c.b16 %v4141, %v4139
      %v5408 = vpack.c.b16 %v4142, %v4140
      %v5409 = vpack.c.b16 %v4145, %v4143
      %v5410 = vpack.c.b16 %v4146, %v4144
      %v5411 = vpack.c.b16 %v4149, %v4147
      %v5412 = vpack.c.b16 %v4150, %v4148
      %v5413 = vpack.c.b16 %v4153, %v4151
      %v5414 = vpack.c.b16 %v4154, %v4152
      %v5415 = vpack.c.b16 %v4157, %v4155
      %v5416 = vpack.c.b16 %v4158, %v4156
      %v5417 = vpack.c.b16 %v4161, %v4159
      %v5418 = vpack.c.b16 %v4162, %v4160
      %v5419 = vpack.c.b16 %v4165, %v4163
      %v5420 = vpack.c.b16 %v4166, %v4164
      %v5421 = vpack.c.b16 %v4169, %v4167
      %v5422 = vpack.c.b16 %v4170, %v4168
      %v5423 = vpack.c.b16 %v4173, %v4171
      %v5424 = vpack.c.b16 %v4174, %v4172
      %v5425 = vpack.c.b16 %v4177, %v4175
      %v5426 = vpack.c.b16 %v4178, %v4176
      %v5427 = vpack.c.b16 %v4181, %v4179
      %v5428 = vpack.c.b16 %v4182, %v4180
      %v5429 = vpack.c.b16 %v4185, %v4183
      %v5430 = vpack.c.b16 %v4186, %v4184
      %v5431 = vpack.c.b16 %v4189, %v4187
      %v5432 = vpack.c.b16 %v4190, %v4188
      %v5433 = vpack.c.b16 %v4193, %v4191
      %v5434 = vpack.c.b16 %v4194, %v4192
      %v5435 = vpack.c.b16 %v4197, %v4195
      %v5436 = vpack.c.b16 %v4198, %v4196
      %v5437 = vpack.c.b16 %v4201, %v4199
      %v5438 = vpack.c.b16 %v4202, %v4200
      %v5439 = vpack.c.b16 %v4205, %v4203
      %v5440 = vpack.c.b16 %v4206, %v4204
      %v5441 = vpack.c.b16 %v4209, %v4207
      %v5442 = vpack.c.b16 %v4210, %v4208
      %v5443 = vpack.c.b16 %v4213, %v4211
      %v5444 = vpack.c.b16 %v4214, %v4212
      %v5445 = vpack.c.b16 %v4217, %v4215
      %v5446 = vpack.c.b16 %v4218, %v4216
      %v5447 = vpack.c.b16 %v4221, %v4219
      %v5448 = vpack.c.b16 %v4222, %v4220
      %v5449 = vpack.c.b16 %v4225, %v4223
      %v5450 = vpack.c.b16 %v4226, %v4224
      %v5451 = vpack.c.b16 %v4229, %v4227
      %v5452 = vpack.c.b16 %v4230, %v4228
      %v5453 = vpack.c.b16 %v4233, %v4231
      %v5454 = vpack.c.b16 %v4234, %v4232
      %v5455 = vpack.c.b16 %v4237, %v4235
      %v5456 = vpack.c.b16 %v4238, %v4236
      %v5457 = vpack.c.b16 %v4241, %v4239
      %v5458 = vpack.c.b16 %v4242, %v4240
      %v5459 = vpack.c.b16 %v4245, %v4243
      %v5460 = vpack.c.b16 %v4246, %v4244
      %v5461 = vpack.c.b16 %v4249, %v4247
      %v5462 = vpack.c.b16 %v4250, %v4248
      %v5463 = vpack.c.b16 %v4253, %v4251
      %v5464 = vpack.c.b16 %v4254, %v4252
      %v5465 = vpack.c.b16 %v4257, %v4255
      %v5466 = vpack.c.b16 %v4258, %v4256
      %v5467 = vpack.c.b16 %v4261, %v4259
      %v5468 = vpack.c.b16 %v4262, %v4260
      %v5469 = vpack.c.b16 %v4265, %v4263
      %v5470 = vpack.c.b16 %v4266, %v4264
      %v5471 = vpack.c.b16 %v4269, %v4267
      %v5472 = vpack.c.b16 %v4270, %v4268
      %v5473 = vpack.c.b16 %v4273, %v4271
      %v5474 = vpack.c.b16 %v4274, %v4272
      %v5475 = vpack.c.b16 %v4277, %v4275
      %v5476 = vpack.c.b16 %v4278, %v4276
      %v5477 = vpack.c.b16 %v4281, %v4279
      %v5478 = vpack.c.b16 %v4282, %v4280
      %v5479 = vpack.c.b16 %v4285, %v4283
      %v5480 = vpack.c.b16 %v4286, %v4284
      %v5481 = vpack.c.b16 %v4289, %v4287
      %v5482 = vpack.c.b16 %v4290, %v4288
      %v5483 = vpack.c.b16 %v4293, %v4291
      %v5484 = vpack.c.b16 %v4294, %v4292
      %v5485 = vpack.c.b16 %v4297, %v4295
      %v5486 = vpack.c.b16 %v4298, %v4296
      %v5487 = vpack.c.b16 %v4301, %v4299
      %v5488 = vpack.c.b16 %v4302, %v4300
      %v5489 = vpack.c.b16 %v4305, %v4303
      %v5490 = vpack.c.b16 %v4306, %v4304
      %v5491 = vpack.c.b16 %v4309, %v4307
      %v5492 = vpack.c.b16 %v4310, %v4308
      %v5493 = vpack.c.b16 %v4313, %v4311
      %v5494 = vpack.c.b16 %v4314, %v4312
      %v5495 = vpack.c.b16 %v4317, %v4315
      %v5496 = vpack.c.b16 %v4318, %v4316
      %v5497 = vpack.c.b16 %v4321, %v4319
      %v5498 = vpack.c.b16 %v4322, %v4320
      %v5499 = vpack.c.b16 %v4325, %v4323
      %v5500 = vpack.c.b16 %v4326, %v4324
      %v5501 = vpack.c.b16 %v4329, %v4327
      %v5502 = vpack.c.b16 %v4330, %v4328
      %v5503 = vpack.c.b16 %v4333, %v4331
      %v5504 = vpack.c.b16 %v4334, %v4332
      %v5505 = vpack.c.b16 %v4337, %v4335
      %v5506 = vpack.c.b16 %v4338, %v4336
      %v5507 = vpack.c.b16 %v4341, %v4339
      %v5508 = vpack.c.b16 %v4342, %v4340
      %v5509 = vpack.c.b16 %v4345, %v4343
      %v5510 = vpack.c.b16 %v4346, %v4344
      %v5511 = vpack.c.b16 %v4349, %v4347
      %v5512 = vpack.c.b16 %v4350, %v4348
      %v5513 = vpack.c.b16 %v4353, %v4351
      %v5514 = vpack.c.b16 %v4354, %v4352
      %v5515 = vpack.c.b16 %v4357, %v4355
      %v5516 = vpack.c.b16 %v4358, %v4356
      %v5517 = vpack.c.b16 %v4361, %v4359
      %v5518 = vpack.c.b16 %v4362, %v4360
      %v5519 = vpack.c.b16 %v4365, %v4363
      %v5520 = vpack.c.b16 %v4366, %v4364
      %v5521 = vpack.c.b16 %v4369, %v4367
      %v5522 = vpack.c.b16 %v4370, %v4368
      %v5523 = vpack.c.b16 %v4373, %v4371
      %v5524 = vpack.c.b16 %v4374, %v4372
      %v5525 = vpack.c.b16 %v4377, %v4375
      %v5526 = vpack.c.b16 %v4378, %v4376
      %v5527 = vpack.c.b16 %v4381, %v4379
      %v5528 = vpack.c.b16 %v4382, %v4380
      %v5529 = vpack.c.b16 %v4385, %v4383
      %v5530 = vpack.c.b16 %v4386, %v4384
      %v5531 = vpack.c.b16 %v4389, %v4387
      %v5532 = vpack.c.b16 %v4390, %v4388
      %v5533 = vpack.c.b16 %v4393, %v4391
      %v5534 = vpack.c.b16 %v4394, %v4392
      %v5535 = vpack.c.b16 %v4397, %v4395
      %v5536 = vpack.c.b16 %v4398, %v4396
      %v5537 = vpack.c.b16 %v4401, %v4399
      %v5538 = vpack.c.b16 %v4402, %v4400
      %v5539 = vpack.c.b16 %v4405, %v4403
      %v5540 = vpack.c.b16 %v4406, %v4404
      %v5541 = vpack.c.b16 %v4409, %v4407
      %v5542 = vpack.c.b16 %v4410, %v4408
      %v5543 = vpack.c.b16 %v4413, %v4411
      %v5544 = vpack.c.b16 %v4414, %v4412
      %v5545 = vpack.c.b16 %v4417, %v4415
      %v5546 = vpack.c.b16 %v4418, %v4416
      %v5547 = vpack.c.b16 %v4421, %v4419
      %v5548 = vpack.c.b16 %v4422, %v4420
      %v5549 = vpack.c.b16 %v4425, %v4423
      %v5550 = vpack.c.b16 %v4426, %v4424
      %v5551 = vpack.c.b16 %v4429, %v4427
      %v5552 = vpack.c.b16 %v4430, %v4428
      %v5553 = vpack.c.b16 %v4433, %v4431
      %v5554 = vpack.c.b16 %v4434, %v4432
      %v5555 = vpack.c.b16 %v4437, %v4435
      %v5556 = vpack.c.b16 %v4438, %v4436
      %v5557 = vpack.c.b16 %v4441, %v4439
      %v5558 = vpack.c.b16 %v4442, %v4440
      %v5559 = vpack.c.b16 %v4445, %v4443
      %v5560 = vpack.c.b16 %v4446, %v4444
      %v5561 = vpack.c.b16 %v4449, %v4447
      %v5562 = vpack.c.b16 %v4450, %v4448
      %v5563 = vpack.c.b16 %v4453, %v4451
      %v5564 = vpack.c.b16 %v4454, %v4452
      %v5565 = vpack.c.b16 %v4457, %v4455
      %v5566 = vpack.c.b16 %v4458, %v4456
      %v5567 = vpack.c.b16 %v4461, %v4459
      %v5568 = vpack.c.b16 %v4462, %v4460
      %v5569 = vpack.c.b16 %v4465, %v4463
      %v5570 = vpack.c.b16 %v4466, %v4464
      %v5571 = vpack.c.b16 %v4469, %v4467
      %v5572 = vpack.c.b16 %v4470, %v4468
      %v5573 = vpack.c.b16 %v4473, %v4471
      %v5574 = vpack.c.b16 %v4474, %v4472
      %v5575 = vpack.c.b16 %v4477, %v4475
      %v5576 = vpack.c.b16 %v4478, %v4476
      %v5577 = vpack.c.b16 %v4481, %v4479
      %v5578 = vpack.c.b16 %v4482, %v4480
      %v5579 = vpack.c.b16 %v4485, %v4483
      %v5580 = vpack.c.b16 %v4486, %v4484
      %v5581 = vpack.c.b16 %v4489, %v4487
      %v5582 = vpack.c.b16 %v4490, %v4488
      %v5583 = vpack.c.b16 %v4493, %v4491
      %v5584 = vpack.c.b16 %v4494, %v4492
      %v5585 = vpack.c.b16 %v4497, %v4495
      %v5586 = vpack.c.b16 %v4498, %v4496
      %v5587 = vpack.c.b16 %v4501, %v4499
      %v5588 = vpack.c.b16 %v4502, %v4500
      %v5589 = vpack.c.b16 %v4505, %v4503
      %v5590 = vpack.c.b16 %v4506, %v4504
      %v5591 = vpack.c.b16 %v4509, %v4507
      %v5592 = vpack.c.b16 %v4510, %v4508
      %v5593 = vpack.c.b16 %v4513, %v4511
      %v5594 = vpack.c.b16 %v4514, %v4512
      %v5595 = vpack.c.b16 %v4517, %v4515
      %v5596 = vpack.c.b16 %v4518, %v4516
      %v5597 = vpack.c.b16 %v4521, %v4519
      %v5598 = vpack.c.b16 %v4522, %v4520
      %v5599 = vpack.c.b16 %v4525, %v4523
      %v5600 = vpack.c.b16 %v4526, %v4524
      %v5601 = vpack.c.b16 %v4529, %v4527
      %v5602 = vpack.c.b16 %v4530, %v4528
      %v5603 = vpack.c.b16 %v4533, %v4531
      %v5604 = vpack.c.b16 %v4534, %v4532
      %v5605 = vpack.c.b16 %v4537, %v4535
      %v5606 = vpack.c.b16 %v4538, %v4536
      %v5607 = vpack.c.b16 %v4541, %v4539
      %v5608 = vpack.c.b16 %v4542, %v4540
      %v5609 = vpack.c.b16 %v4545, %v4543
      %v5610 = vpack.c.b16 %v4546, %v4544
      %v5611 = vpack.c.b16 %v4549, %v4547
      %v5612 = vpack.c.b16 %v4550, %v4548
      %v5613 = vpack.c.b16 %v4553, %v4551
      %v5614 = vpack.c.b16 %v4554, %v4552
      %v5615 = vpack.c.b16 %v4557, %v4555
      %v5616 = vpack.c.b16 %v4558, %v4556
      %v5617 = vpack.c.b16 %v4561, %v4559
      %v5618 = vpack.c.b16 %v4562, %v4560
      %v5619 = vpack.c.b16 %v4565, %v4563
      %v5620 = vpack.c.b16 %v4566, %v4564
      %v5621 = vpack.c.b16 %v4569, %v4567
      %v5622 = vpack.c.b16 %v4570, %v4568
      %v5623 = vpack.c.b16 %v4573, %v4571
      %v5624 = vpack.c.b16 %v4574, %v4572
      %v5625 = vpack.c.b16 %v4577, %v4575
      %v5626 = vpack.c.b16 %v4578, %v4576
      %v5627 = vpack.c.b16 %v4581, %v4579
      %v5628 = vpack.c.b16 %v4582, %v4580
      %v5629 = vpack.c.b16 %v4585, %v4583
      %v5630 = vpack.c.b16 %v4586, %v4584
      %v5631 = vpack.c.b16 %v4589, %v4587
      %v5632 = vpack.c.b16 %v4590, %v4588
      %v5633 = vpack.c.b16 %v4593, %v4591
      %v5634 = vpack.c.b16 %v4594, %v4592
      %v5635 = vpack.c.b16 %v4597, %v4595
      %v5636 = vpack.c.b16 %v4598, %v4596
      %v5637 = vpack.c.b16 %v4601, %v4599
      %v5638 = vpack.c.b16 %v4602, %v4600
      %v5639 = vpack.c.b16 %v4605, %v4603
      %v5640 = vpack.c.b16 %v4606, %v4604
      %v5641 = vpack.c.b16 %v4609, %v4607
      %v5642 = vpack.c.b16 %v4610, %v4608
      %v5643 = vpack.c.b16 %v4613, %v4611
      %v5644 = vpack.c.b16 %v4614, %v4612
      %v5645 = vpack.c.b16 %v4617, %v4615
      %v5646 = vpack.c.b16 %v4618, %v4616
      %v5647 = vpack.c.b16 %v4621, %v4619
      %v5648 = vpack.c.b16 %v4622, %v4620
      %v5649 = vpack.c.b16 %v4625, %v4623
      %v5650 = vpack.c.b16 %v4626, %v4624
      %6675 = vmatpush.bf16.msra.mxu0 %v4641
      %6676 = vmatpush.bf16.msra.mxu0 %v4639
      %6677 = vmatpush.bf16.msra.mxu0 %v4637
      %6678 = vmatpush.bf16.msra.mxu0 %v4635
      %6679 = vmatpush.bf16.msra.mxu0 %v4633
      %6680 = vmatpush.bf16.msra.mxu0 %v4631
      %6681 = vmatpush.bf16.msra.mxu0 %v4629
      %6682 = vmatpush.bf16.msra.mxu0 %v4627
      %6683 = vmatmul.bf16.gmra.mxu0 %v1427
      %v6684 = vpop.f32.mrf.mxu0
      %v6685 = vadd.f32 %v1327, %v6684
      %v6686 = vpop.f32.mrf.mxu0
      %6687 = vdwg.mxu0
      %6688 = vmatpush.bf16.msra.mxu0 %v4657
      %6689 = vmatpush.bf16.msra.mxu0 %v4655
      %6690 = vmatpush.bf16.msra.mxu0 %v4653
      %6691 = vmatpush.bf16.msra.mxu0 %v4651
      %6692 = vmatpush.bf16.msra.mxu0 %v4649
      %6693 = vmatpush.bf16.msra.mxu0 %v4647
      %6694 = vmatpush.bf16.msra.mxu0 %v4645
      %6695 = vmatpush.bf16.msra.mxu0 %v4643
      %6696 = vmatmul.bf16.gmra.mxu0 %v1428
      %v6697 = vpop.f32.mrf.mxu0
      %v6698 = vadd.f32 %v6685, %v6697
      %v6699 = vpop.f32.mrf.mxu0
      %6700 = vdwg.mxu0
      %6701 = vmatpush.bf16.msra.mxu0 %v4673
      %6702 = vmatpush.bf16.msra.mxu0 %v4671
      %6703 = vmatpush.bf16.msra.mxu0 %v4669
      %6704 = vmatpush.bf16.msra.mxu0 %v4667
      %6705 = vmatpush.bf16.msra.mxu0 %v4665
      %6706 = vmatpush.bf16.msra.mxu0 %v4663
      %6707 = vmatpush.bf16.msra.mxu0 %v4661
      %6708 = vmatpush.bf16.msra.mxu0 %v4659
      %6709 = vmatmul.bf16.gmra.mxu0 %v1429
      %v6710 = vpop.f32.mrf.mxu0
      %v6711 = vadd.f32 %v6698, %v6710
      %v6712 = vpop.f32.mrf.mxu0
      %6713 = vdwg.mxu0
      %6714 = vmatpush.bf16.msra.mxu0 %v4689
      %6715 = vmatpush.bf16.msra.mxu0 %v4687
      %6716 = vmatpush.bf16.msra.mxu0 %v4685
      %6717 = vmatpush.bf16.msra.mxu0 %v4683
      %6718 = vmatpush.bf16.msra.mxu0 %v4681
      %6719 = vmatpush.bf16.msra.mxu0 %v4679
      %6720 = vmatpush.bf16.msra.mxu0 %v4677
      %6721 = vmatpush.bf16.msra.mxu0 %v4675
      %6722 = vmatmul.bf16.gmra.mxu0 %v1430
      %v6723 = vpop.f32.mrf.mxu0
      %v6724 = vadd.f32 %v6711, %v6723
      %v6725 = vpop.f32.mrf.mxu0
      %6726 = vdwg.mxu0
      %6727 = vmatpush.bf16.msra.mxu0 %v4705
      %6728 = vmatpush.bf16.msra.mxu0 %v4703
      %6729 = vmatpush.bf16.msra.mxu0 %v4701
      %6730 = vmatpush.bf16.msra.mxu0 %v4699
      %6731 = vmatpush.bf16.msra.mxu0 %v4697
      %6732 = vmatpush.bf16.msra.mxu0 %v4695
      %6733 = vmatpush.bf16.msra.mxu0 %v4693
      %6734 = vmatpush.bf16.msra.mxu0 %v4691
      %6735 = vmatmul.bf16.gmra.mxu0 %v1431
      %v6736 = vpop.f32.mrf.mxu0
      %v6737 = vadd.f32 %v6724, %v6736
      %v6738 = vpop.f32.mrf.mxu0
      %6739 = vdwg.mxu0
      %6740 = vmatpush.bf16.msra.mxu0 %v4721
      %6741 = vmatpush.bf16.msra.mxu0 %v4719
      %6742 = vmatpush.bf16.msra.mxu0 %v4717
      %6743 = vmatpush.bf16.msra.mxu0 %v4715
      %6744 = vmatpush.bf16.msra.mxu0 %v4713
      %6745 = vmatpush.bf16.msra.mxu0 %v4711
      %6746 = vmatpush.bf16.msra.mxu0 %v4709
      %6747 = vmatpush.bf16.msra.mxu0 %v4707
      %6748 = vmatmul.bf16.gmra.mxu0 %v1432
      %v6749 = vpop.f32.mrf.mxu0
      %v6750 = vadd.f32 %v6737, %v6749
      %v6751 = vpop.f32.mrf.mxu0
      %6752 = vdwg.mxu0
      %6753 = vmatpush.bf16.msra.mxu0 %v4737
      %6754 = vmatpush.bf16.msra.mxu0 %v4735
      %6755 = vmatpush.bf16.msra.mxu0 %v4733
      %6756 = vmatpush.bf16.msra.mxu0 %v4731
      %6757 = vmatpush.bf16.msra.mxu0 %v4729
      %6758 = vmatpush.bf16.msra.mxu0 %v4727
      %6759 = vmatpush.bf16.msra.mxu0 %v4725
      %6760 = vmatpush.bf16.msra.mxu0 %v4723
      %6761 = vmatmul.bf16.gmra.mxu0 %v1433
      %v6762 = vpop.f32.mrf.mxu0
      %v6763 = vadd.f32 %v6750, %v6762
      %v6764 = vpop.f32.mrf.mxu0
      %6765 = vdwg.mxu0
      %6766 = vmatpush.bf16.msra.mxu0 %v4753
      %6767 = vmatpush.bf16.msra.mxu0 %v4751
      %6768 = vmatpush.bf16.msra.mxu0 %v4749
      %6769 = vmatpush.bf16.msra.mxu0 %v4747
      %6770 = vmatpush.bf16.msra.mxu0 %v4745
      %6771 = vmatpush.bf16.msra.mxu0 %v4743
      %6772 = vmatpush.bf16.msra.mxu0 %v4741
      %6773 = vmatpush.bf16.msra.mxu0 %v4739
      %6774 = vmatmul.bf16.gmra.mxu0 %v1434
      %v6775 = vpop.f32.mrf.mxu0
      %v6776 = vadd.f32 %v6763, %v6775
      %v6777 = vpop.f32.mrf.mxu0
      %6778 = vdwg.mxu0
      %6779 = vmatpush.bf16.msra.mxu0 %v4769
      %6780 = vmatpush.bf16.msra.mxu0 %v4767
      %6781 = vmatpush.bf16.msra.mxu0 %v4765
      %6782 = vmatpush.bf16.msra.mxu0 %v4763
      %6783 = vmatpush.bf16.msra.mxu0 %v4761
      %6784 = vmatpush.bf16.msra.mxu0 %v4759
      %6785 = vmatpush.bf16.msra.mxu0 %v4757
      %6786 = vmatpush.bf16.msra.mxu0 %v4755
      %6787 = vmatmul.bf16.gmra.mxu0 %v1435
      %v6788 = vpop.f32.mrf.mxu0
      %v6789 = vadd.f32 %v6776, %v6788
      %v6790 = vpop.f32.mrf.mxu0
      %6791 = vdwg.mxu0
      %6792 = vmatpush.bf16.msra.mxu0 %v4785
      %6793 = vmatpush.bf16.msra.mxu0 %v4783
      %6794 = vmatpush.bf16.msra.mxu0 %v4781
      %6795 = vmatpush.bf16.msra.mxu0 %v4779
      %6796 = vmatpush.bf16.msra.mxu0 %v4777
      %6797 = vmatpush.bf16.msra.mxu0 %v4775
      %6798 = vmatpush.bf16.msra.mxu0 %v4773
      %6799 = vmatpush.bf16.msra.mxu0 %v4771
      %6800 = vmatmul.bf16.gmra.mxu0 %v1436
      %v6801 = vpop.f32.mrf.mxu0
      %v6802 = vadd.f32 %v6789, %v6801
      %v6803 = vpop.f32.mrf.mxu0
      %6804 = vdwg.mxu0
      %6805 = vmatpush.bf16.msra.mxu0 %v4801
      %6806 = vmatpush.bf16.msra.mxu0 %v4799
      %6807 = vmatpush.bf16.msra.mxu0 %v4797
      %6808 = vmatpush.bf16.msra.mxu0 %v4795
      %6809 = vmatpush.bf16.msra.mxu0 %v4793
      %6810 = vmatpush.bf16.msra.mxu0 %v4791
      %6811 = vmatpush.bf16.msra.mxu0 %v4789
      %6812 = vmatpush.bf16.msra.mxu0 %v4787
      %6813 = vmatmul.bf16.gmra.mxu0 %v1437
      %v6814 = vpop.f32.mrf.mxu0
      %v6815 = vadd.f32 %v6802, %v6814
      %v6816 = vpop.f32.mrf.mxu0
      %6817 = vdwg.mxu0
      %6818 = vmatpush.bf16.msra.mxu0 %v4817
      %6819 = vmatpush.bf16.msra.mxu0 %v4815
      %6820 = vmatpush.bf16.msra.mxu0 %v4813
      %6821 = vmatpush.bf16.msra.mxu0 %v4811
      %6822 = vmatpush.bf16.msra.mxu0 %v4809
      %6823 = vmatpush.bf16.msra.mxu0 %v4807
      %6824 = vmatpush.bf16.msra.mxu0 %v4805
      %6825 = vmatpush.bf16.msra.mxu0 %v4803
      %6826 = vmatmul.bf16.gmra.mxu0 %v1438
      %v6827 = vpop.f32.mrf.mxu0
      %v6828 = vadd.f32 %v6815, %v6827
      %v6829 = vpop.f32.mrf.mxu0
      %6830 = vdwg.mxu0
      %6831 = vmatpush.bf16.msra.mxu0 %v4833
      %6832 = vmatpush.bf16.msra.mxu0 %v4831
      %6833 = vmatpush.bf16.msra.mxu0 %v4829
      %6834 = vmatpush.bf16.msra.mxu0 %v4827
      %6835 = vmatpush.bf16.msra.mxu0 %v4825
      %6836 = vmatpush.bf16.msra.mxu0 %v4823
      %6837 = vmatpush.bf16.msra.mxu0 %v4821
      %6838 = vmatpush.bf16.msra.mxu0 %v4819
      %6839 = vmatmul.bf16.gmra.mxu0 %v1439
      %v6840 = vpop.f32.mrf.mxu0
      %v6841 = vadd.f32 %v6828, %v6840
      %v6842 = vpop.f32.mrf.mxu0
      %6843 = vdwg.mxu0
      %6844 = vmatpush.bf16.msra.mxu0 %v4849
      %6845 = vmatpush.bf16.msra.mxu0 %v4847
      %6846 = vmatpush.bf16.msra.mxu0 %v4845
      %6847 = vmatpush.bf16.msra.mxu0 %v4843
      %6848 = vmatpush.bf16.msra.mxu0 %v4841
      %6849 = vmatpush.bf16.msra.mxu0 %v4839
      %6850 = vmatpush.bf16.msra.mxu0 %v4837
      %6851 = vmatpush.bf16.msra.mxu0 %v4835
      %6852 = vmatmul.bf16.gmra.mxu0 %v1440
      %v6853 = vpop.f32.mrf.mxu0
      %v6854 = vadd.f32 %v6841, %v6853
      %v6855 = vpop.f32.mrf.mxu0
      %6856 = vdwg.mxu0
      %6857 = vmatpush.bf16.msra.mxu0 %v4865
      %6858 = vmatpush.bf16.msra.mxu0 %v4863
      %6859 = vmatpush.bf16.msra.mxu0 %v4861
      %6860 = vmatpush.bf16.msra.mxu0 %v4859
      %6861 = vmatpush.bf16.msra.mxu0 %v4857
      %6862 = vmatpush.bf16.msra.mxu0 %v4855
      %6863 = vmatpush.bf16.msra.mxu0 %v4853
      %6864 = vmatpush.bf16.msra.mxu0 %v4851
      %6865 = vmatmul.bf16.gmra.mxu0 %v1441
      %v6866 = vpop.f32.mrf.mxu0
      %v6867 = vadd.f32 %v6854, %v6866
      %v6868 = vpop.f32.mrf.mxu0
      %6869 = vdwg.mxu0
      %6870 = vmatpush.bf16.msra.mxu0 %v4881
      %6871 = vmatpush.bf16.msra.mxu0 %v4879
      %6872 = vmatpush.bf16.msra.mxu0 %v4877
      %6873 = vmatpush.bf16.msra.mxu0 %v4875
      %6874 = vmatpush.bf16.msra.mxu0 %v4873
      %6875 = vmatpush.bf16.msra.mxu0 %v4871
      %6876 = vmatpush.bf16.msra.mxu0 %v4869
      %6877 = vmatpush.bf16.msra.mxu0 %v4867
      %6878 = vmatmul.bf16.gmra.mxu0 %v1442
      %v6879 = vpop.f32.mrf.mxu0
      %v6880 = vadd.f32 %v6867, %v6879
      %v6881 = vpop.f32.mrf.mxu0
      %6882 = vdwg.mxu0
      %6883 = vmatpush.bf16.msra.mxu0 %v4897
      %6884 = vmatpush.bf16.msra.mxu0 %v4895
      %6885 = vmatpush.bf16.msra.mxu0 %v4893
      %6886 = vmatpush.bf16.msra.mxu0 %v4891
      %6887 = vmatpush.bf16.msra.mxu0 %v4889
      %6888 = vmatpush.bf16.msra.mxu0 %v4887
      %6889 = vmatpush.bf16.msra.mxu0 %v4885
      %6890 = vmatpush.bf16.msra.mxu0 %v4883
      %6891 = vmatmul.bf16.gmra.mxu0 %v1443
      %v6892 = vpop.f32.mrf.mxu0
      %v6893 = vadd.f32 %v6880, %v6892
      %v6894 = vpop.f32.mrf.mxu0
      %6895 = vdwg.mxu0
      %6896 = vmatpush.bf16.msra.mxu0 %v4913
      %6897 = vmatpush.bf16.msra.mxu0 %v4911
      %6898 = vmatpush.bf16.msra.mxu0 %v4909
      %6899 = vmatpush.bf16.msra.mxu0 %v4907
      %6900 = vmatpush.bf16.msra.mxu0 %v4905
      %6901 = vmatpush.bf16.msra.mxu0 %v4903
      %6902 = vmatpush.bf16.msra.mxu0 %v4901
      %6903 = vmatpush.bf16.msra.mxu0 %v4899
      %6904 = vmatmul.bf16.gmra.mxu0 %v1444
      %v6905 = vpop.f32.mrf.mxu0
      %v6906 = vadd.f32 %v6893, %v6905
      %v6907 = vpop.f32.mrf.mxu0
      %6908 = vdwg.mxu0
      %6909 = vmatpush.bf16.msra.mxu0 %v4929
      %6910 = vmatpush.bf16.msra.mxu0 %v4927
      %6911 = vmatpush.bf16.msra.mxu0 %v4925
      %6912 = vmatpush.bf16.msra.mxu0 %v4923
      %6913 = vmatpush.bf16.msra.mxu0 %v4921
      %6914 = vmatpush.bf16.msra.mxu0 %v4919
      %6915 = vmatpush.bf16.msra.mxu0 %v4917
      %6916 = vmatpush.bf16.msra.mxu0 %v4915
      %6917 = vmatmul.bf16.gmra.mxu0 %v1445
      %v6918 = vpop.f32.mrf.mxu0
      %v6919 = vadd.f32 %v6906, %v6918
      %v6920 = vpop.f32.mrf.mxu0
      %6921 = vdwg.mxu0
      %6922 = vmatpush.bf16.msra.mxu0 %v4945
      %6923 = vmatpush.bf16.msra.mxu0 %v4943
      %6924 = vmatpush.bf16.msra.mxu0 %v4941
      %6925 = vmatpush.bf16.msra.mxu0 %v4939
      %6926 = vmatpush.bf16.msra.mxu0 %v4937
      %6927 = vmatpush.bf16.msra.mxu0 %v4935
      %6928 = vmatpush.bf16.msra.mxu0 %v4933
      %6929 = vmatpush.bf16.msra.mxu0 %v4931
      %6930 = vmatmul.bf16.gmra.mxu0 %v1446
      %v6931 = vpop.f32.mrf.mxu0
      %v6932 = vadd.f32 %v6919, %v6931
      %v6933 = vpop.f32.mrf.mxu0
      %6934 = vdwg.mxu0
      %6935 = vmatpush.bf16.msra.mxu0 %v4961
      %6936 = vmatpush.bf16.msra.mxu0 %v4959
      %6937 = vmatpush.bf16.msra.mxu0 %v4957
      %6938 = vmatpush.bf16.msra.mxu0 %v4955
      %6939 = vmatpush.bf16.msra.mxu0 %v4953
      %6940 = vmatpush.bf16.msra.mxu0 %v4951
      %6941 = vmatpush.bf16.msra.mxu0 %v4949
      %6942 = vmatpush.bf16.msra.mxu0 %v4947
      %6943 = vmatmul.bf16.gmra.mxu0 %v1447
      %v6944 = vpop.f32.mrf.mxu0
      %v6945 = vadd.f32 %v6932, %v6944
      %v6946 = vpop.f32.mrf.mxu0
      %6947 = vdwg.mxu0
      %6948 = vmatpush.bf16.msra.mxu0 %v4977
      %6949 = vmatpush.bf16.msra.mxu0 %v4975
      %6950 = vmatpush.bf16.msra.mxu0 %v4973
      %6951 = vmatpush.bf16.msra.mxu0 %v4971
      %6952 = vmatpush.bf16.msra.mxu0 %v4969
      %6953 = vmatpush.bf16.msra.mxu0 %v4967
      %6954 = vmatpush.bf16.msra.mxu0 %v4965
      %6955 = vmatpush.bf16.msra.mxu0 %v4963
      %6956 = vmatmul.bf16.gmra.mxu0 %v1448
      %v6957 = vpop.f32.mrf.mxu0
      %v6958 = vadd.f32 %v6945, %v6957
      %v6959 = vpop.f32.mrf.mxu0
      %6960 = vdwg.mxu0
      %6961 = vmatpush.bf16.msra.mxu0 %v4993
      %6962 = vmatpush.bf16.msra.mxu0 %v4991
      %6963 = vmatpush.bf16.msra.mxu0 %v4989
      %6964 = vmatpush.bf16.msra.mxu0 %v4987
      %6965 = vmatpush.bf16.msra.mxu0 %v4985
      %6966 = vmatpush.bf16.msra.mxu0 %v4983
      %6967 = vmatpush.bf16.msra.mxu0 %v4981
      %6968 = vmatpush.bf16.msra.mxu0 %v4979
      %6969 = vmatmul.bf16.gmra.mxu0 %v1449
      %v6970 = vpop.f32.mrf.mxu0
      %v6971 = vadd.f32 %v6958, %v6970
      %v6972 = vpop.f32.mrf.mxu0
      %6973 = vdwg.mxu0
      %6974 = vmatpush.bf16.msra.mxu0 %v5009
      %6975 = vmatpush.bf16.msra.mxu0 %v5007
      %6976 = vmatpush.bf16.msra.mxu0 %v5005
      %6977 = vmatpush.bf16.msra.mxu0 %v5003
      %6978 = vmatpush.bf16.msra.mxu0 %v5001
      %6979 = vmatpush.bf16.msra.mxu0 %v4999
      %6980 = vmatpush.bf16.msra.mxu0 %v4997
      %6981 = vmatpush.bf16.msra.mxu0 %v4995
      %6982 = vmatmul.bf16.gmra.mxu0 %v1450
      %v6983 = vpop.f32.mrf.mxu0
      %v6984 = vadd.f32 %v6971, %v6983
      %v6985 = vpop.f32.mrf.mxu0
      %6986 = vdwg.mxu0
      %6987 = vmatpush.bf16.msra.mxu0 %v5025
      %6988 = vmatpush.bf16.msra.mxu0 %v5023
      %6989 = vmatpush.bf16.msra.mxu0 %v5021
      %6990 = vmatpush.bf16.msra.mxu0 %v5019
      %6991 = vmatpush.bf16.msra.mxu0 %v5017
      %6992 = vmatpush.bf16.msra.mxu0 %v5015
      %6993 = vmatpush.bf16.msra.mxu0 %v5013
      %6994 = vmatpush.bf16.msra.mxu0 %v5011
      %6995 = vmatmul.bf16.gmra.mxu0 %v1451
      %v6996 = vpop.f32.mrf.mxu0
      %v6997 = vadd.f32 %v6984, %v6996
      %v6998 = vpop.f32.mrf.mxu0
      %6999 = vdwg.mxu0
      %7000 = vmatpush.bf16.msra.mxu0 %v5041
      %7001 = vmatpush.bf16.msra.mxu0 %v5039
      %7002 = vmatpush.bf16.msra.mxu0 %v5037
      %7003 = vmatpush.bf16.msra.mxu0 %v5035
      %7004 = vmatpush.bf16.msra.mxu0 %v5033
      %7005 = vmatpush.bf16.msra.mxu0 %v5031
      %7006 = vmatpush.bf16.msra.mxu0 %v5029
      %7007 = vmatpush.bf16.msra.mxu0 %v5027
      %7008 = vmatmul.bf16.gmra.mxu0 %v1452
      %v7009 = vpop.f32.mrf.mxu0
      %v7010 = vadd.f32 %v6997, %v7009
      %v7011 = vpop.f32.mrf.mxu0
      %7012 = vdwg.mxu0
      %7013 = vmatpush.bf16.msra.mxu0 %v5057
      %7014 = vmatpush.bf16.msra.mxu0 %v5055
      %7015 = vmatpush.bf16.msra.mxu0 %v5053
      %7016 = vmatpush.bf16.msra.mxu0 %v5051
      %7017 = vmatpush.bf16.msra.mxu0 %v5049
      %7018 = vmatpush.bf16.msra.mxu0 %v5047
      %7019 = vmatpush.bf16.msra.mxu0 %v5045
      %7020 = vmatpush.bf16.msra.mxu0 %v5043
      %7021 = vmatmul.bf16.gmra.mxu0 %v1453
      %v7022 = vpop.f32.mrf.mxu0
      %v7023 = vadd.f32 %v7010, %v7022
      %v7024 = vpop.f32.mrf.mxu0
      %7025 = vdwg.mxu0
      %7026 = vmatpush.bf16.msra.mxu0 %v5073
      %7027 = vmatpush.bf16.msra.mxu0 %v5071
      %7028 = vmatpush.bf16.msra.mxu0 %v5069
      %7029 = vmatpush.bf16.msra.mxu0 %v5067
      %7030 = vmatpush.bf16.msra.mxu0 %v5065
      %7031 = vmatpush.bf16.msra.mxu0 %v5063
      %7032 = vmatpush.bf16.msra.mxu0 %v5061
      %7033 = vmatpush.bf16.msra.mxu0 %v5059
      %7034 = vmatmul.bf16.gmra.mxu0 %v1454
      %v7035 = vpop.f32.mrf.mxu0
      %v7036 = vadd.f32 %v7023, %v7035
      %v7037 = vpop.f32.mrf.mxu0
      %7038 = vdwg.mxu0
      %7039 = vmatpush.bf16.msra.mxu0 %v5089
      %7040 = vmatpush.bf16.msra.mxu0 %v5087
      %7041 = vmatpush.bf16.msra.mxu0 %v5085
      %7042 = vmatpush.bf16.msra.mxu0 %v5083
      %7043 = vmatpush.bf16.msra.mxu0 %v5081
      %7044 = vmatpush.bf16.msra.mxu0 %v5079
      %7045 = vmatpush.bf16.msra.mxu0 %v5077
      %7046 = vmatpush.bf16.msra.mxu0 %v5075
      %7047 = vmatmul.bf16.gmra.mxu0 %v1455
      %v7048 = vpop.f32.mrf.mxu0
      %v7049 = vadd.f32 %v7036, %v7048
      %v7050 = vpop.f32.mrf.mxu0
      %7051 = vdwg.mxu0
      %7052 = vmatpush.bf16.msra.mxu0 %v5105
      %7053 = vmatpush.bf16.msra.mxu0 %v5103
      %7054 = vmatpush.bf16.msra.mxu0 %v5101
      %7055 = vmatpush.bf16.msra.mxu0 %v5099
      %7056 = vmatpush.bf16.msra.mxu0 %v5097
      %7057 = vmatpush.bf16.msra.mxu0 %v5095
      %7058 = vmatpush.bf16.msra.mxu0 %v5093
      %7059 = vmatpush.bf16.msra.mxu0 %v5091
      %7060 = vmatmul.bf16.gmra.mxu0 %v1456
      %v7061 = vpop.f32.mrf.mxu0
      %v7062 = vadd.f32 %v7049, %v7061
      %v7063 = vpop.f32.mrf.mxu0
      %7064 = vdwg.mxu0
      %7065 = vmatpush.bf16.msra.mxu0 %v5121
      %7066 = vmatpush.bf16.msra.mxu0 %v5119
      %7067 = vmatpush.bf16.msra.mxu0 %v5117
      %7068 = vmatpush.bf16.msra.mxu0 %v5115
      %7069 = vmatpush.bf16.msra.mxu0 %v5113
      %7070 = vmatpush.bf16.msra.mxu0 %v5111
      %7071 = vmatpush.bf16.msra.mxu0 %v5109
      %7072 = vmatpush.bf16.msra.mxu0 %v5107
      %7073 = vmatmul.bf16.gmra.mxu0 %v1457
      %v7074 = vpop.f32.mrf.mxu0
      %v7075 = vadd.f32 %v7062, %v7074
      %v7076 = vpop.f32.mrf.mxu0
      %7077 = vdwg.mxu0
      %7078 = vmatpush.bf16.msra.mxu0 %v5137
      %7079 = vmatpush.bf16.msra.mxu0 %v5135
      %7080 = vmatpush.bf16.msra.mxu0 %v5133
      %7081 = vmatpush.bf16.msra.mxu0 %v5131
      %7082 = vmatpush.bf16.msra.mxu0 %v5129
      %7083 = vmatpush.bf16.msra.mxu0 %v5127
      %7084 = vmatpush.bf16.msra.mxu0 %v5125
      %7085 = vmatpush.bf16.msra.mxu0 %v5123
      %7086 = vmatmul.bf16.gmra.mxu0 %v1458
      %v7087 = vpop.f32.mrf.mxu0
      %v7088 = vadd.f32 %v7075, %v7087
      %v7089 = vpop.f32.mrf.mxu0
      %7090 = vdwg.mxu0
      %7091 = vmatpush.bf16.msra.mxu0 %v5153
      %7092 = vmatpush.bf16.msra.mxu0 %v5151
      %7093 = vmatpush.bf16.msra.mxu0 %v5149
      %7094 = vmatpush.bf16.msra.mxu0 %v5147
      %7095 = vmatpush.bf16.msra.mxu0 %v5145
      %7096 = vmatpush.bf16.msra.mxu0 %v5143
      %7097 = vmatpush.bf16.msra.mxu0 %v5141
      %7098 = vmatpush.bf16.msra.mxu0 %v5139
      %7099 = vmatmul.bf16.gmra.mxu0 %v1459
      %v7100 = vpop.f32.mrf.mxu0
      %v7101 = vadd.f32 %v7088, %v7100
      %v7102 = vpop.f32.mrf.mxu0
      %7103 = vdwg.mxu0
      %7104 = vmatpush.bf16.msra.mxu0 %v5169
      %7105 = vmatpush.bf16.msra.mxu0 %v5167
      %7106 = vmatpush.bf16.msra.mxu0 %v5165
      %7107 = vmatpush.bf16.msra.mxu0 %v5163
      %7108 = vmatpush.bf16.msra.mxu0 %v5161
      %7109 = vmatpush.bf16.msra.mxu0 %v5159
      %7110 = vmatpush.bf16.msra.mxu0 %v5157
      %7111 = vmatpush.bf16.msra.mxu0 %v5155
      %7112 = vmatmul.bf16.gmra.mxu0 %v1460
      %v7113 = vpop.f32.mrf.mxu0
      %v7114 = vadd.f32 %v7101, %v7113
      %v7115 = vpop.f32.mrf.mxu0
      %7116 = vdwg.mxu0
      %7117 = vmatpush.bf16.msra.mxu0 %v5185
      %7118 = vmatpush.bf16.msra.mxu0 %v5183
      %7119 = vmatpush.bf16.msra.mxu0 %v5181
      %7120 = vmatpush.bf16.msra.mxu0 %v5179
      %7121 = vmatpush.bf16.msra.mxu0 %v5177
      %7122 = vmatpush.bf16.msra.mxu0 %v5175
      %7123 = vmatpush.bf16.msra.mxu0 %v5173
      %7124 = vmatpush.bf16.msra.mxu0 %v5171
      %7125 = vmatmul.bf16.gmra.mxu0 %v1461
      %v7126 = vpop.f32.mrf.mxu0
      %v7127 = vadd.f32 %v7114, %v7126
      %v7128 = vpop.f32.mrf.mxu0
      %7129 = vdwg.mxu0
      %7130 = vmatpush.bf16.msra.mxu0 %v5201
      %7131 = vmatpush.bf16.msra.mxu0 %v5199
      %7132 = vmatpush.bf16.msra.mxu0 %v5197
      %7133 = vmatpush.bf16.msra.mxu0 %v5195
      %7134 = vmatpush.bf16.msra.mxu0 %v5193
      %7135 = vmatpush.bf16.msra.mxu0 %v5191
      %7136 = vmatpush.bf16.msra.mxu0 %v5189
      %7137 = vmatpush.bf16.msra.mxu0 %v5187
      %7138 = vmatmul.bf16.gmra.mxu0 %v1462
      %v7139 = vpop.f32.mrf.mxu0
      %v7140 = vadd.f32 %v7127, %v7139
      %v7141 = vpop.f32.mrf.mxu0
      %7142 = vdwg.mxu0
      %7143 = vmatpush.bf16.msra.mxu0 %v5217
      %7144 = vmatpush.bf16.msra.mxu0 %v5215
      %7145 = vmatpush.bf16.msra.mxu0 %v5213
      %7146 = vmatpush.bf16.msra.mxu0 %v5211
      %7147 = vmatpush.bf16.msra.mxu0 %v5209
      %7148 = vmatpush.bf16.msra.mxu0 %v5207
      %7149 = vmatpush.bf16.msra.mxu0 %v5205
      %7150 = vmatpush.bf16.msra.mxu0 %v5203
      %7151 = vmatmul.bf16.gmra.mxu0 %v1463
      %v7152 = vpop.f32.mrf.mxu0
      %v7153 = vadd.f32 %v7140, %v7152
      %v7154 = vpop.f32.mrf.mxu0
      %7155 = vdwg.mxu0
      %7156 = vmatpush.bf16.msra.mxu0 %v5233
      %7157 = vmatpush.bf16.msra.mxu0 %v5231
      %7158 = vmatpush.bf16.msra.mxu0 %v5229
      %7159 = vmatpush.bf16.msra.mxu0 %v5227
      %7160 = vmatpush.bf16.msra.mxu0 %v5225
      %7161 = vmatpush.bf16.msra.mxu0 %v5223
      %7162 = vmatpush.bf16.msra.mxu0 %v5221
      %7163 = vmatpush.bf16.msra.mxu0 %v5219
      %7164 = vmatmul.bf16.gmra.mxu0 %v1464
      %v7165 = vpop.f32.mrf.mxu0
      %v7166 = vadd.f32 %v7153, %v7165
      %v7167 = vpop.f32.mrf.mxu0
      %7168 = vdwg.mxu0
      %7169 = vmatpush.bf16.msra.mxu0 %v5249
      %7170 = vmatpush.bf16.msra.mxu0 %v5247
      %7171 = vmatpush.bf16.msra.mxu0 %v5245
      %7172 = vmatpush.bf16.msra.mxu0 %v5243
      %7173 = vmatpush.bf16.msra.mxu0 %v5241
      %7174 = vmatpush.bf16.msra.mxu0 %v5239
      %7175 = vmatpush.bf16.msra.mxu0 %v5237
      %7176 = vmatpush.bf16.msra.mxu0 %v5235
      %7177 = vmatmul.bf16.gmra.mxu0 %v1465
      %v7178 = vpop.f32.mrf.mxu0
      %v7179 = vadd.f32 %v7166, %v7178
      %v7180 = vpop.f32.mrf.mxu0
      %7181 = vdwg.mxu0
      %7182 = vmatpush.bf16.msra.mxu0 %v5265
      %7183 = vmatpush.bf16.msra.mxu0 %v5263
      %7184 = vmatpush.bf16.msra.mxu0 %v5261
      %7185 = vmatpush.bf16.msra.mxu0 %v5259
      %7186 = vmatpush.bf16.msra.mxu0 %v5257
      %7187 = vmatpush.bf16.msra.mxu0 %v5255
      %7188 = vmatpush.bf16.msra.mxu0 %v5253
      %7189 = vmatpush.bf16.msra.mxu0 %v5251
      %7190 = vmatmul.bf16.gmra.mxu0 %v1466
      %v7191 = vpop.f32.mrf.mxu0
      %v7192 = vadd.f32 %v7179, %v7191
      %v7193 = vpop.f32.mrf.mxu0
      %7194 = vdwg.mxu0
      %7195 = vmatpush.bf16.msra.mxu0 %v5281
      %7196 = vmatpush.bf16.msra.mxu0 %v5279
      %7197 = vmatpush.bf16.msra.mxu0 %v5277
      %7198 = vmatpush.bf16.msra.mxu0 %v5275
      %7199 = vmatpush.bf16.msra.mxu0 %v5273
      %7200 = vmatpush.bf16.msra.mxu0 %v5271
      %7201 = vmatpush.bf16.msra.mxu0 %v5269
      %7202 = vmatpush.bf16.msra.mxu0 %v5267
      %7203 = vmatmul.bf16.gmra.mxu0 %v1467
      %v7204 = vpop.f32.mrf.mxu0
      %v7205 = vadd.f32 %v7192, %v7204
      %v7206 = vpop.f32.mrf.mxu0
      %7207 = vdwg.mxu0
      %7208 = vmatpush.bf16.msra.mxu0 %v5297
      %7209 = vmatpush.bf16.msra.mxu0 %v5295
      %7210 = vmatpush.bf16.msra.mxu0 %v5293
      %7211 = vmatpush.bf16.msra.mxu0 %v5291
      %7212 = vmatpush.bf16.msra.mxu0 %v5289
      %7213 = vmatpush.bf16.msra.mxu0 %v5287
      %7214 = vmatpush.bf16.msra.mxu0 %v5285
      %7215 = vmatpush.bf16.msra.mxu0 %v5283
      %7216 = vmatmul.bf16.gmra.mxu0 %v1468
      %v7217 = vpop.f32.mrf.mxu0
      %v7218 = vadd.f32 %v7205, %v7217
      %v7219 = vpop.f32.mrf.mxu0
      %7220 = vdwg.mxu0
      %7221 = vmatpush.bf16.msra.mxu0 %v5313
      %7222 = vmatpush.bf16.msra.mxu0 %v5311
      %7223 = vmatpush.bf16.msra.mxu0 %v5309
      %7224 = vmatpush.bf16.msra.mxu0 %v5307
      %7225 = vmatpush.bf16.msra.mxu0 %v5305
      %7226 = vmatpush.bf16.msra.mxu0 %v5303
      %7227 = vmatpush.bf16.msra.mxu0 %v5301
      %7228 = vmatpush.bf16.msra.mxu0 %v5299
      %7229 = vmatmul.bf16.gmra.mxu0 %v1469
      %v7230 = vpop.f32.mrf.mxu0
      %v7231 = vadd.f32 %v7218, %v7230
      %v7232 = vpop.f32.mrf.mxu0
      %7233 = vdwg.mxu0
      %7234 = vmatpush.bf16.msra.mxu0 %v5329
      %7235 = vmatpush.bf16.msra.mxu0 %v5327
      %7236 = vmatpush.bf16.msra.mxu0 %v5325
      %7237 = vmatpush.bf16.msra.mxu0 %v5323
      %7238 = vmatpush.bf16.msra.mxu0 %v5321
      %7239 = vmatpush.bf16.msra.mxu0 %v5319
      %7240 = vmatpush.bf16.msra.mxu0 %v5317
      %7241 = vmatpush.bf16.msra.mxu0 %v5315
      %7242 = vmatmul.bf16.gmra.mxu0 %v1470
      %v7243 = vpop.f32.mrf.mxu0
      %v7244 = vadd.f32 %v7231, %v7243
      %v7245 = vpop.f32.mrf.mxu0
      %7246 = vdwg.mxu0
      %7247 = vmatpush.bf16.msra.mxu0 %v5345
      %7248 = vmatpush.bf16.msra.mxu0 %v5343
      %7249 = vmatpush.bf16.msra.mxu0 %v5341
      %7250 = vmatpush.bf16.msra.mxu0 %v5339
      %7251 = vmatpush.bf16.msra.mxu0 %v5337
      %7252 = vmatpush.bf16.msra.mxu0 %v5335
      %7253 = vmatpush.bf16.msra.mxu0 %v5333
      %7254 = vmatpush.bf16.msra.mxu0 %v5331
      %7255 = vmatmul.bf16.gmra.mxu0 %v1471
      %v7256 = vpop.f32.mrf.mxu0
      %v7257 = vadd.f32 %v7244, %v7256
      %v7258 = vpop.f32.mrf.mxu0
      %7259 = vdwg.mxu0
      %7260 = vmatpush.bf16.msra.mxu0 %v5361
      %7261 = vmatpush.bf16.msra.mxu0 %v5359
      %7262 = vmatpush.bf16.msra.mxu0 %v5357
      %7263 = vmatpush.bf16.msra.mxu0 %v5355
      %7264 = vmatpush.bf16.msra.mxu0 %v5353
      %7265 = vmatpush.bf16.msra.mxu0 %v5351
      %7266 = vmatpush.bf16.msra.mxu0 %v5349
      %7267 = vmatpush.bf16.msra.mxu0 %v5347
      %7268 = vmatmul.bf16.gmra.mxu0 %v1472
      %v7269 = vpop.f32.mrf.mxu0
      %v7270 = vadd.f32 %v7257, %v7269
      %v7271 = vpop.f32.mrf.mxu0
      %7272 = vdwg.mxu0
      %7273 = vmatpush.bf16.msra.mxu0 %v5377
      %7274 = vmatpush.bf16.msra.mxu0 %v5375
      %7275 = vmatpush.bf16.msra.mxu0 %v5373
      %7276 = vmatpush.bf16.msra.mxu0 %v5371
      %7277 = vmatpush.bf16.msra.mxu0 %v5369
      %7278 = vmatpush.bf16.msra.mxu0 %v5367
      %7279 = vmatpush.bf16.msra.mxu0 %v5365
      %7280 = vmatpush.bf16.msra.mxu0 %v5363
      %7281 = vmatmul.bf16.gmra.mxu0 %v1473
      %v7282 = vpop.f32.mrf.mxu0
      %v7283 = vadd.f32 %v7270, %v7282
      %v7284 = vpop.f32.mrf.mxu0
      %7285 = vdwg.mxu0
      %7286 = vmatpush.bf16.msra.mxu0 %v5393
      %7287 = vmatpush.bf16.msra.mxu0 %v5391
      %7288 = vmatpush.bf16.msra.mxu0 %v5389
      %7289 = vmatpush.bf16.msra.mxu0 %v5387
      %7290 = vmatpush.bf16.msra.mxu0 %v5385
      %7291 = vmatpush.bf16.msra.mxu0 %v5383
      %7292 = vmatpush.bf16.msra.mxu0 %v5381
      %7293 = vmatpush.bf16.msra.mxu0 %v5379
      %7294 = vmatmul.bf16.gmra.mxu0 %v1474
      %v7295 = vpop.f32.mrf.mxu0
      %v7296 = vadd.f32 %v7283, %v7295
      %v7297 = vpop.f32.mrf.mxu0
      %7298 = vdwg.mxu0
      %7299 = vmatpush.bf16.msra.mxu0 %v5409
      %7300 = vmatpush.bf16.msra.mxu0 %v5407
      %7301 = vmatpush.bf16.msra.mxu0 %v5405
      %7302 = vmatpush.bf16.msra.mxu0 %v5403
      %7303 = vmatpush.bf16.msra.mxu0 %v5401
      %7304 = vmatpush.bf16.msra.mxu0 %v5399
      %7305 = vmatpush.bf16.msra.mxu0 %v5397
      %7306 = vmatpush.bf16.msra.mxu0 %v5395
      %7307 = vmatmul.bf16.gmra.mxu0 %v1475
      %v7308 = vpop.f32.mrf.mxu0
      %v7309 = vadd.f32 %v7296, %v7308
      %v7310 = vpop.f32.mrf.mxu0
      %7311 = vdwg.mxu0
      %7312 = vmatpush.bf16.msra.mxu0 %v5425
      %7313 = vmatpush.bf16.msra.mxu0 %v5423
      %7314 = vmatpush.bf16.msra.mxu0 %v5421
      %7315 = vmatpush.bf16.msra.mxu0 %v5419
      %7316 = vmatpush.bf16.msra.mxu0 %v5417
      %7317 = vmatpush.bf16.msra.mxu0 %v5415
      %7318 = vmatpush.bf16.msra.mxu0 %v5413
      %7319 = vmatpush.bf16.msra.mxu0 %v5411
      %7320 = vmatmul.bf16.gmra.mxu0 %v1476
      %v7321 = vpop.f32.mrf.mxu0
      %v7322 = vadd.f32 %v7309, %v7321
      %v7323 = vpop.f32.mrf.mxu0
      %7324 = vdwg.mxu0
      %7325 = vmatpush.bf16.msra.mxu0 %v5441
      %7326 = vmatpush.bf16.msra.mxu0 %v5439
      %7327 = vmatpush.bf16.msra.mxu0 %v5437
      %7328 = vmatpush.bf16.msra.mxu0 %v5435
      %7329 = vmatpush.bf16.msra.mxu0 %v5433
      %7330 = vmatpush.bf16.msra.mxu0 %v5431
      %7331 = vmatpush.bf16.msra.mxu0 %v5429
      %7332 = vmatpush.bf16.msra.mxu0 %v5427
      %7333 = vmatmul.bf16.gmra.mxu0 %v1477
      %v7334 = vpop.f32.mrf.mxu0
      %v7335 = vadd.f32 %v7322, %v7334
      %v7336 = vpop.f32.mrf.mxu0
      %7337 = vdwg.mxu0
      %7338 = vmatpush.bf16.msra.mxu0 %v5457
      %7339 = vmatpush.bf16.msra.mxu0 %v5455
      %7340 = vmatpush.bf16.msra.mxu0 %v5453
      %7341 = vmatpush.bf16.msra.mxu0 %v5451
      %7342 = vmatpush.bf16.msra.mxu0 %v5449
      %7343 = vmatpush.bf16.msra.mxu0 %v5447
      %7344 = vmatpush.bf16.msra.mxu0 %v5445
      %7345 = vmatpush.bf16.msra.mxu0 %v5443
      %7346 = vmatmul.bf16.gmra.mxu0 %v1478
      %v7347 = vpop.f32.mrf.mxu0
      %v7348 = vadd.f32 %v7335, %v7347
      %v7349 = vpop.f32.mrf.mxu0
      %7350 = vdwg.mxu0
      %7351 = vmatpush.bf16.msra.mxu0 %v5473
      %7352 = vmatpush.bf16.msra.mxu0 %v5471
      %7353 = vmatpush.bf16.msra.mxu0 %v5469
      %7354 = vmatpush.bf16.msra.mxu0 %v5467
      %7355 = vmatpush.bf16.msra.mxu0 %v5465
      %7356 = vmatpush.bf16.msra.mxu0 %v5463
      %7357 = vmatpush.bf16.msra.mxu0 %v5461
      %7358 = vmatpush.bf16.msra.mxu0 %v5459
      %7359 = vmatmul.bf16.gmra.mxu0 %v1479
      %v7360 = vpop.f32.mrf.mxu0
      %v7361 = vadd.f32 %v7348, %v7360
      %v7362 = vpop.f32.mrf.mxu0
      %7363 = vdwg.mxu0
      %7364 = vmatpush.bf16.msra.mxu0 %v5489
      %7365 = vmatpush.bf16.msra.mxu0 %v5487
      %7366 = vmatpush.bf16.msra.mxu0 %v5485
      %7367 = vmatpush.bf16.msra.mxu0 %v5483
      %7368 = vmatpush.bf16.msra.mxu0 %v5481
      %7369 = vmatpush.bf16.msra.mxu0 %v5479
      %7370 = vmatpush.bf16.msra.mxu0 %v5477
      %7371 = vmatpush.bf16.msra.mxu0 %v5475
      %7372 = vmatmul.bf16.gmra.mxu0 %v1480
      %v7373 = vpop.f32.mrf.mxu0
      %v7374 = vadd.f32 %v7361, %v7373
      %v7375 = vpop.f32.mrf.mxu0
      %7376 = vdwg.mxu0
      %7377 = vmatpush.bf16.msra.mxu0 %v5505
      %7378 = vmatpush.bf16.msra.mxu0 %v5503
      %7379 = vmatpush.bf16.msra.mxu0 %v5501
      %7380 = vmatpush.bf16.msra.mxu0 %v5499
      %7381 = vmatpush.bf16.msra.mxu0 %v5497
      %7382 = vmatpush.bf16.msra.mxu0 %v5495
      %7383 = vmatpush.bf16.msra.mxu0 %v5493
      %7384 = vmatpush.bf16.msra.mxu0 %v5491
      %7385 = vmatmul.bf16.gmra.mxu0 %v1481
      %v7386 = vpop.f32.mrf.mxu0
      %v7387 = vadd.f32 %v7374, %v7386
      %v7388 = vpop.f32.mrf.mxu0
      %7389 = vdwg.mxu0
      %7390 = vmatpush.bf16.msra.mxu0 %v5521
      %7391 = vmatpush.bf16.msra.mxu0 %v5519
      %7392 = vmatpush.bf16.msra.mxu0 %v5517
      %7393 = vmatpush.bf16.msra.mxu0 %v5515
      %7394 = vmatpush.bf16.msra.mxu0 %v5513
      %7395 = vmatpush.bf16.msra.mxu0 %v5511
      %7396 = vmatpush.bf16.msra.mxu0 %v5509
      %7397 = vmatpush.bf16.msra.mxu0 %v5507
      %7398 = vmatmul.bf16.gmra.mxu0 %v1482
      %v7399 = vpop.f32.mrf.mxu0
      %v7400 = vadd.f32 %v7387, %v7399
      %v7401 = vpop.f32.mrf.mxu0
      %7402 = vdwg.mxu0
      %7403 = vmatpush.bf16.msra.mxu0 %v5537
      %7404 = vmatpush.bf16.msra.mxu0 %v5535
      %7405 = vmatpush.bf16.msra.mxu0 %v5533
      %7406 = vmatpush.bf16.msra.mxu0 %v5531
      %7407 = vmatpush.bf16.msra.mxu0 %v5529
      %7408 = vmatpush.bf16.msra.mxu0 %v5527
      %7409 = vmatpush.bf16.msra.mxu0 %v5525
      %7410 = vmatpush.bf16.msra.mxu0 %v5523
      %7411 = vmatmul.bf16.gmra.mxu0 %v1483
      %v7412 = vpop.f32.mrf.mxu0
      %v7413 = vadd.f32 %v7400, %v7412
      %v7414 = vpop.f32.mrf.mxu0
      %7415 = vdwg.mxu0
      %7416 = vmatpush.bf16.msra.mxu0 %v5553
      %7417 = vmatpush.bf16.msra.mxu0 %v5551
      %7418 = vmatpush.bf16.msra.mxu0 %v5549
      %7419 = vmatpush.bf16.msra.mxu0 %v5547
      %7420 = vmatpush.bf16.msra.mxu0 %v5545
      %7421 = vmatpush.bf16.msra.mxu0 %v5543
      %7422 = vmatpush.bf16.msra.mxu0 %v5541
      %7423 = vmatpush.bf16.msra.mxu0 %v5539
      %7424 = vmatmul.bf16.gmra.mxu0 %v1484
      %v7425 = vpop.f32.mrf.mxu0
      %v7426 = vadd.f32 %v7413, %v7425
      %v7427 = vpop.f32.mrf.mxu0
      %7428 = vdwg.mxu0
      %7429 = vmatpush.bf16.msra.mxu0 %v5569
      %7430 = vmatpush.bf16.msra.mxu0 %v5567
      %7431 = vmatpush.bf16.msra.mxu0 %v5565
      %7432 = vmatpush.bf16.msra.mxu0 %v5563
      %7433 = vmatpush.bf16.msra.mxu0 %v5561
      %7434 = vmatpush.bf16.msra.mxu0 %v5559
      %7435 = vmatpush.bf16.msra.mxu0 %v5557
      %7436 = vmatpush.bf16.msra.mxu0 %v5555
      %7437 = vmatmul.bf16.gmra.mxu0 %v1485
      %v7438 = vpop.f32.mrf.mxu0
      %v7439 = vadd.f32 %v7426, %v7438
      %v7440 = vpop.f32.mrf.mxu0
      %7441 = vdwg.mxu0
      %7442 = vmatpush.bf16.msra.mxu0 %v5585
      %7443 = vmatpush.bf16.msra.mxu0 %v5583
      %7444 = vmatpush.bf16.msra.mxu0 %v5581
      %7445 = vmatpush.bf16.msra.mxu0 %v5579
      %7446 = vmatpush.bf16.msra.mxu0 %v5577
      %7447 = vmatpush.bf16.msra.mxu0 %v5575
      %7448 = vmatpush.bf16.msra.mxu0 %v5573
      %7449 = vmatpush.bf16.msra.mxu0 %v5571
      %7450 = vmatmul.bf16.gmra.mxu0 %v1486
      %v7451 = vpop.f32.mrf.mxu0
      %v7452 = vadd.f32 %v7439, %v7451
      %v7453 = vpop.f32.mrf.mxu0
      %7454 = vdwg.mxu0
      %7455 = vmatpush.bf16.msra.mxu0 %v5601
      %7456 = vmatpush.bf16.msra.mxu0 %v5599
      %7457 = vmatpush.bf16.msra.mxu0 %v5597
      %7458 = vmatpush.bf16.msra.mxu0 %v5595
      %7459 = vmatpush.bf16.msra.mxu0 %v5593
      %7460 = vmatpush.bf16.msra.mxu0 %v5591
      %7461 = vmatpush.bf16.msra.mxu0 %v5589
      %7462 = vmatpush.bf16.msra.mxu0 %v5587
      %7463 = vmatmul.bf16.gmra.mxu0 %v1487
      %v7464 = vpop.f32.mrf.mxu0
      %v7465 = vadd.f32 %v7452, %v7464
      %v7466 = vpop.f32.mrf.mxu0
      %7467 = vdwg.mxu0
      %7468 = vmatpush.bf16.msra.mxu0 %v5617
      %7469 = vmatpush.bf16.msra.mxu0 %v5615
      %7470 = vmatpush.bf16.msra.mxu0 %v5613
      %7471 = vmatpush.bf16.msra.mxu0 %v5611
      %7472 = vmatpush.bf16.msra.mxu0 %v5609
      %7473 = vmatpush.bf16.msra.mxu0 %v5607
      %7474 = vmatpush.bf16.msra.mxu0 %v5605
      %7475 = vmatpush.bf16.msra.mxu0 %v5603
      %7476 = vmatmul.bf16.gmra.mxu0 %v1488
      %v7477 = vpop.f32.mrf.mxu0
      %v7478 = vadd.f32 %v7465, %v7477
      %v7479 = vpop.f32.mrf.mxu0
      %7480 = vdwg.mxu0
      %7481 = vmatpush.bf16.msra.mxu0 %v5633
      %7482 = vmatpush.bf16.msra.mxu0 %v5631
      %7483 = vmatpush.bf16.msra.mxu0 %v5629
      %7484 = vmatpush.bf16.msra.mxu0 %v5627
      %7485 = vmatpush.bf16.msra.mxu0 %v5625
      %7486 = vmatpush.bf16.msra.mxu0 %v5623
      %7487 = vmatpush.bf16.msra.mxu0 %v5621
      %7488 = vmatpush.bf16.msra.mxu0 %v5619
      %7489 = vmatmul.bf16.gmra.mxu0 %v1489
      %v7490 = vpop.f32.mrf.mxu0
      %v7491 = vadd.f32 %v7478, %v7490
      %v7492 = vpop.f32.mrf.mxu0
      %7493 = vdwg.mxu0
      %7494 = vmatpush.bf16.msra.mxu0 %v5649
      %7495 = vmatpush.bf16.msra.mxu0 %v5647
      %7496 = vmatpush.bf16.msra.mxu0 %v5645
      %7497 = vmatpush.bf16.msra.mxu0 %v5643
      %7498 = vmatpush.bf16.msra.mxu0 %v5641
      %7499 = vmatpush.bf16.msra.mxu0 %v5639
      %7500 = vmatpush.bf16.msra.mxu0 %v5637
      %7501 = vmatpush.bf16.msra.mxu0 %v5635
      %7502 = vmatmul.bf16.gmra.mxu0 %v1490
      %v7503 = vpop.f32.mrf.mxu0
      %v7504 = vadd.f32 %v7491, %v7503
      %v7505 = vpop.f32.mrf.mxu0
      %7506 = vdwg.mxu0
      %7507 = vmatpush.bf16.msra.mxu0 %v4642
      %7508 = vmatpush.bf16.msra.mxu0 %v4640
      %7509 = vmatpush.bf16.msra.mxu0 %v4638
      %7510 = vmatpush.bf16.msra.mxu0 %v4636
      %7511 = vmatpush.bf16.msra.mxu0 %v4634
      %7512 = vmatpush.bf16.msra.mxu0 %v4632
      %7513 = vmatpush.bf16.msra.mxu0 %v4630
      %7514 = vmatpush.bf16.msra.mxu0 %v4628
      %7515 = vmatmul.bf16.gmra.mxu0 %v1427
      %v7516 = vpop.f32.mrf.mxu0
      %v7517 = vadd.f32 %v1328, %v7516
      %v7518 = vpop.f32.mrf.mxu0
      %7519 = vdwg.mxu0
      %7520 = vmatpush.bf16.msra.mxu0 %v4658
      %7521 = vmatpush.bf16.msra.mxu0 %v4656
      %7522 = vmatpush.bf16.msra.mxu0 %v4654
      %7523 = vmatpush.bf16.msra.mxu0 %v4652
      %7524 = vmatpush.bf16.msra.mxu0 %v4650
      %7525 = vmatpush.bf16.msra.mxu0 %v4648
      %7526 = vmatpush.bf16.msra.mxu0 %v4646
      %7527 = vmatpush.bf16.msra.mxu0 %v4644
      %7528 = vmatmul.bf16.gmra.mxu0 %v1428
      %v7529 = vpop.f32.mrf.mxu0
      %v7530 = vadd.f32 %v7517, %v7529
      %v7531 = vpop.f32.mrf.mxu0
      %7532 = vdwg.mxu0
      %7533 = vmatpush.bf16.msra.mxu0 %v4674
      %7534 = vmatpush.bf16.msra.mxu0 %v4672
      %7535 = vmatpush.bf16.msra.mxu0 %v4670
      %7536 = vmatpush.bf16.msra.mxu0 %v4668
      %7537 = vmatpush.bf16.msra.mxu0 %v4666
      %7538 = vmatpush.bf16.msra.mxu0 %v4664
      %7539 = vmatpush.bf16.msra.mxu0 %v4662
      %7540 = vmatpush.bf16.msra.mxu0 %v4660
      %7541 = vmatmul.bf16.gmra.mxu0 %v1429
      %v7542 = vpop.f32.mrf.mxu0
      %v7543 = vadd.f32 %v7530, %v7542
      %v7544 = vpop.f32.mrf.mxu0
      %7545 = vdwg.mxu0
      %7546 = vmatpush.bf16.msra.mxu0 %v4690
      %7547 = vmatpush.bf16.msra.mxu0 %v4688
      %7548 = vmatpush.bf16.msra.mxu0 %v4686
      %7549 = vmatpush.bf16.msra.mxu0 %v4684
      %7550 = vmatpush.bf16.msra.mxu0 %v4682
      %7551 = vmatpush.bf16.msra.mxu0 %v4680
      %7552 = vmatpush.bf16.msra.mxu0 %v4678
      %7553 = vmatpush.bf16.msra.mxu0 %v4676
      %7554 = vmatmul.bf16.gmra.mxu0 %v1430
      %v7555 = vpop.f32.mrf.mxu0
      %v7556 = vadd.f32 %v7543, %v7555
      %v7557 = vpop.f32.mrf.mxu0
      %7558 = vdwg.mxu0
      %7559 = vmatpush.bf16.msra.mxu0 %v4706
      %7560 = vmatpush.bf16.msra.mxu0 %v4704
      %7561 = vmatpush.bf16.msra.mxu0 %v4702
      %7562 = vmatpush.bf16.msra.mxu0 %v4700
      %7563 = vmatpush.bf16.msra.mxu0 %v4698
      %7564 = vmatpush.bf16.msra.mxu0 %v4696
      %7565 = vmatpush.bf16.msra.mxu0 %v4694
      %7566 = vmatpush.bf16.msra.mxu0 %v4692
      %7567 = vmatmul.bf16.gmra.mxu0 %v1431
      %v7568 = vpop.f32.mrf.mxu0
      %v7569 = vadd.f32 %v7556, %v7568
      %v7570 = vpop.f32.mrf.mxu0
      %7571 = vdwg.mxu0
      %7572 = vmatpush.bf16.msra.mxu0 %v4722
      %7573 = vmatpush.bf16.msra.mxu0 %v4720
      %7574 = vmatpush.bf16.msra.mxu0 %v4718
      %7575 = vmatpush.bf16.msra.mxu0 %v4716
      %7576 = vmatpush.bf16.msra.mxu0 %v4714
      %7577 = vmatpush.bf16.msra.mxu0 %v4712
      %7578 = vmatpush.bf16.msra.mxu0 %v4710
      %7579 = vmatpush.bf16.msra.mxu0 %v4708
      %7580 = vmatmul.bf16.gmra.mxu0 %v1432
      %v7581 = vpop.f32.mrf.mxu0
      %v7582 = vadd.f32 %v7569, %v7581
      %v7583 = vpop.f32.mrf.mxu0
      %7584 = vdwg.mxu0
      %7585 = vmatpush.bf16.msra.mxu0 %v4738
      %7586 = vmatpush.bf16.msra.mxu0 %v4736
      %7587 = vmatpush.bf16.msra.mxu0 %v4734
      %7588 = vmatpush.bf16.msra.mxu0 %v4732
      %7589 = vmatpush.bf16.msra.mxu0 %v4730
      %7590 = vmatpush.bf16.msra.mxu0 %v4728
      %7591 = vmatpush.bf16.msra.mxu0 %v4726
      %7592 = vmatpush.bf16.msra.mxu0 %v4724
      %7593 = vmatmul.bf16.gmra.mxu0 %v1433
      %v7594 = vpop.f32.mrf.mxu0
      %v7595 = vadd.f32 %v7582, %v7594
      %v7596 = vpop.f32.mrf.mxu0
      %7597 = vdwg.mxu0
      %7598 = vmatpush.bf16.msra.mxu0 %v4754
      %7599 = vmatpush.bf16.msra.mxu0 %v4752
      %7600 = vmatpush.bf16.msra.mxu0 %v4750
      %7601 = vmatpush.bf16.msra.mxu0 %v4748
      %7602 = vmatpush.bf16.msra.mxu0 %v4746
      %7603 = vmatpush.bf16.msra.mxu0 %v4744
      %7604 = vmatpush.bf16.msra.mxu0 %v4742
      %7605 = vmatpush.bf16.msra.mxu0 %v4740
      %7606 = vmatmul.bf16.gmra.mxu0 %v1434
      %v7607 = vpop.f32.mrf.mxu0
      %v7608 = vadd.f32 %v7595, %v7607
      %v7609 = vpop.f32.mrf.mxu0
      %7610 = vdwg.mxu0
      %7611 = vmatpush.bf16.msra.mxu0 %v4770
      %7612 = vmatpush.bf16.msra.mxu0 %v4768
      %7613 = vmatpush.bf16.msra.mxu0 %v4766
      %7614 = vmatpush.bf16.msra.mxu0 %v4764
      %7615 = vmatpush.bf16.msra.mxu0 %v4762
      %7616 = vmatpush.bf16.msra.mxu0 %v4760
      %7617 = vmatpush.bf16.msra.mxu0 %v4758
      %7618 = vmatpush.bf16.msra.mxu0 %v4756
      %7619 = vmatmul.bf16.gmra.mxu0 %v1435
      %v7620 = vpop.f32.mrf.mxu0
      %v7621 = vadd.f32 %v7608, %v7620
      %v7622 = vpop.f32.mrf.mxu0
      %7623 = vdwg.mxu0
      %7624 = vmatpush.bf16.msra.mxu0 %v4786
      %7625 = vmatpush.bf16.msra.mxu0 %v4784
      %7626 = vmatpush.bf16.msra.mxu0 %v4782
      %7627 = vmatpush.bf16.msra.mxu0 %v4780
      %7628 = vmatpush.bf16.msra.mxu0 %v4778
      %7629 = vmatpush.bf16.msra.mxu0 %v4776
      %7630 = vmatpush.bf16.msra.mxu0 %v4774
      %7631 = vmatpush.bf16.msra.mxu0 %v4772
      %7632 = vmatmul.bf16.gmra.mxu0 %v1436
      %v7633 = vpop.f32.mrf.mxu0
      %v7634 = vadd.f32 %v7621, %v7633
      %v7635 = vpop.f32.mrf.mxu0
      %7636 = vdwg.mxu0
      %7637 = vmatpush.bf16.msra.mxu0 %v4802
      %7638 = vmatpush.bf16.msra.mxu0 %v4800
      %7639 = vmatpush.bf16.msra.mxu0 %v4798
      %7640 = vmatpush.bf16.msra.mxu0 %v4796
      %7641 = vmatpush.bf16.msra.mxu0 %v4794
      %7642 = vmatpush.bf16.msra.mxu0 %v4792
      %7643 = vmatpush.bf16.msra.mxu0 %v4790
      %7644 = vmatpush.bf16.msra.mxu0 %v4788
      %7645 = vmatmul.bf16.gmra.mxu0 %v1437
      %v7646 = vpop.f32.mrf.mxu0
      %v7647 = vadd.f32 %v7634, %v7646
      %v7648 = vpop.f32.mrf.mxu0
      %7649 = vdwg.mxu0
      %7650 = vmatpush.bf16.msra.mxu0 %v4818
      %7651 = vmatpush.bf16.msra.mxu0 %v4816
      %7652 = vmatpush.bf16.msra.mxu0 %v4814
      %7653 = vmatpush.bf16.msra.mxu0 %v4812
      %7654 = vmatpush.bf16.msra.mxu0 %v4810
      %7655 = vmatpush.bf16.msra.mxu0 %v4808
      %7656 = vmatpush.bf16.msra.mxu0 %v4806
      %7657 = vmatpush.bf16.msra.mxu0 %v4804
      %7658 = vmatmul.bf16.gmra.mxu0 %v1438
      %v7659 = vpop.f32.mrf.mxu0
      %v7660 = vadd.f32 %v7647, %v7659
      %v7661 = vpop.f32.mrf.mxu0
      %7662 = vdwg.mxu0
      %7663 = vmatpush.bf16.msra.mxu0 %v4834
      %7664 = vmatpush.bf16.msra.mxu0 %v4832
      %7665 = vmatpush.bf16.msra.mxu0 %v4830
      %7666 = vmatpush.bf16.msra.mxu0 %v4828
      %7667 = vmatpush.bf16.msra.mxu0 %v4826
      %7668 = vmatpush.bf16.msra.mxu0 %v4824
      %7669 = vmatpush.bf16.msra.mxu0 %v4822
      %7670 = vmatpush.bf16.msra.mxu0 %v4820
      %7671 = vmatmul.bf16.gmra.mxu0 %v1439
      %v7672 = vpop.f32.mrf.mxu0
      %v7673 = vadd.f32 %v7660, %v7672
      %v7674 = vpop.f32.mrf.mxu0
      %7675 = vdwg.mxu0
      %7676 = vmatpush.bf16.msra.mxu0 %v4850
      %7677 = vmatpush.bf16.msra.mxu0 %v4848
      %7678 = vmatpush.bf16.msra.mxu0 %v4846
      %7679 = vmatpush.bf16.msra.mxu0 %v4844
      %7680 = vmatpush.bf16.msra.mxu0 %v4842
      %7681 = vmatpush.bf16.msra.mxu0 %v4840
      %7682 = vmatpush.bf16.msra.mxu0 %v4838
      %7683 = vmatpush.bf16.msra.mxu0 %v4836
      %7684 = vmatmul.bf16.gmra.mxu0 %v1440
      %v7685 = vpop.f32.mrf.mxu0
      %v7686 = vadd.f32 %v7673, %v7685
      %v7687 = vpop.f32.mrf.mxu0
      %7688 = vdwg.mxu0
      %7689 = vmatpush.bf16.msra.mxu0 %v4866
      %7690 = vmatpush.bf16.msra.mxu0 %v4864
      %7691 = vmatpush.bf16.msra.mxu0 %v4862
      %7692 = vmatpush.bf16.msra.mxu0 %v4860
      %7693 = vmatpush.bf16.msra.mxu0 %v4858
      %7694 = vmatpush.bf16.msra.mxu0 %v4856
      %7695 = vmatpush.bf16.msra.mxu0 %v4854
      %7696 = vmatpush.bf16.msra.mxu0 %v4852
      %7697 = vmatmul.bf16.gmra.mxu0 %v1441
      %v7698 = vpop.f32.mrf.mxu0
      %v7699 = vadd.f32 %v7686, %v7698
      %v7700 = vpop.f32.mrf.mxu0
      %7701 = vdwg.mxu0
      %7702 = vmatpush.bf16.msra.mxu0 %v4882
      %7703 = vmatpush.bf16.msra.mxu0 %v4880
      %7704 = vmatpush.bf16.msra.mxu0 %v4878
      %7705 = vmatpush.bf16.msra.mxu0 %v4876
      %7706 = vmatpush.bf16.msra.mxu0 %v4874
      %7707 = vmatpush.bf16.msra.mxu0 %v4872
      %7708 = vmatpush.bf16.msra.mxu0 %v4870
      %7709 = vmatpush.bf16.msra.mxu0 %v4868
      %7710 = vmatmul.bf16.gmra.mxu0 %v1442
      %v7711 = vpop.f32.mrf.mxu0
      %v7712 = vadd.f32 %v7699, %v7711
      %v7713 = vpop.f32.mrf.mxu0
      %7714 = vdwg.mxu0
      %7715 = vmatpush.bf16.msra.mxu0 %v4898
      %7716 = vmatpush.bf16.msra.mxu0 %v4896
      %7717 = vmatpush.bf16.msra.mxu0 %v4894
      %7718 = vmatpush.bf16.msra.mxu0 %v4892
      %7719 = vmatpush.bf16.msra.mxu0 %v4890
      %7720 = vmatpush.bf16.msra.mxu0 %v4888
      %7721 = vmatpush.bf16.msra.mxu0 %v4886
      %7722 = vmatpush.bf16.msra.mxu0 %v4884
      %7723 = vmatmul.bf16.gmra.mxu0 %v1443
      %v7724 = vpop.f32.mrf.mxu0
      %v7725 = vadd.f32 %v7712, %v7724
      %v7726 = vpop.f32.mrf.mxu0
      %7727 = vdwg.mxu0
      %7728 = vmatpush.bf16.msra.mxu0 %v4914
      %7729 = vmatpush.bf16.msra.mxu0 %v4912
      %7730 = vmatpush.bf16.msra.mxu0 %v4910
      %7731 = vmatpush.bf16.msra.mxu0 %v4908
      %7732 = vmatpush.bf16.msra.mxu0 %v4906
      %7733 = vmatpush.bf16.msra.mxu0 %v4904
      %7734 = vmatpush.bf16.msra.mxu0 %v4902
      %7735 = vmatpush.bf16.msra.mxu0 %v4900
      %7736 = vmatmul.bf16.gmra.mxu0 %v1444
      %v7737 = vpop.f32.mrf.mxu0
      %v7738 = vadd.f32 %v7725, %v7737
      %v7739 = vpop.f32.mrf.mxu0
      %7740 = vdwg.mxu0
      %7741 = vmatpush.bf16.msra.mxu0 %v4930
      %7742 = vmatpush.bf16.msra.mxu0 %v4928
      %7743 = vmatpush.bf16.msra.mxu0 %v4926
      %7744 = vmatpush.bf16.msra.mxu0 %v4924
      %7745 = vmatpush.bf16.msra.mxu0 %v4922
      %7746 = vmatpush.bf16.msra.mxu0 %v4920
      %7747 = vmatpush.bf16.msra.mxu0 %v4918
      %7748 = vmatpush.bf16.msra.mxu0 %v4916
      %7749 = vmatmul.bf16.gmra.mxu0 %v1445
      %v7750 = vpop.f32.mrf.mxu0
      %v7751 = vadd.f32 %v7738, %v7750
      %v7752 = vpop.f32.mrf.mxu0
      %7753 = vdwg.mxu0
      %7754 = vmatpush.bf16.msra.mxu0 %v4946
      %7755 = vmatpush.bf16.msra.mxu0 %v4944
      %7756 = vmatpush.bf16.msra.mxu0 %v4942
      %7757 = vmatpush.bf16.msra.mxu0 %v4940
      %7758 = vmatpush.bf16.msra.mxu0 %v4938
      %7759 = vmatpush.bf16.msra.mxu0 %v4936
      %7760 = vmatpush.bf16.msra.mxu0 %v4934
      %7761 = vmatpush.bf16.msra.mxu0 %v4932
      %7762 = vmatmul.bf16.gmra.mxu0 %v1446
      %v7763 = vpop.f32.mrf.mxu0
      %v7764 = vadd.f32 %v7751, %v7763
      %v7765 = vpop.f32.mrf.mxu0
      %7766 = vdwg.mxu0
      %7767 = vmatpush.bf16.msra.mxu0 %v4962
      %7768 = vmatpush.bf16.msra.mxu0 %v4960
      %7769 = vmatpush.bf16.msra.mxu0 %v4958
      %7770 = vmatpush.bf16.msra.mxu0 %v4956
      %7771 = vmatpush.bf16.msra.mxu0 %v4954
      %7772 = vmatpush.bf16.msra.mxu0 %v4952
      %7773 = vmatpush.bf16.msra.mxu0 %v4950
      %7774 = vmatpush.bf16.msra.mxu0 %v4948
      %7775 = vmatmul.bf16.gmra.mxu0 %v1447
      %v7776 = vpop.f32.mrf.mxu0
      %v7777 = vadd.f32 %v7764, %v7776
      %v7778 = vpop.f32.mrf.mxu0
      %7779 = vdwg.mxu0
      %7780 = vmatpush.bf16.msra.mxu0 %v4978
      %7781 = vmatpush.bf16.msra.mxu0 %v4976
      %7782 = vmatpush.bf16.msra.mxu0 %v4974
      %7783 = vmatpush.bf16.msra.mxu0 %v4972
      %7784 = vmatpush.bf16.msra.mxu0 %v4970
      %7785 = vmatpush.bf16.msra.mxu0 %v4968
      %7786 = vmatpush.bf16.msra.mxu0 %v4966
      %7787 = vmatpush.bf16.msra.mxu0 %v4964
      %7788 = vmatmul.bf16.gmra.mxu0 %v1448
      %v7789 = vpop.f32.mrf.mxu0
      %v7790 = vadd.f32 %v7777, %v7789
      %v7791 = vpop.f32.mrf.mxu0
      %7792 = vdwg.mxu0
      %7793 = vmatpush.bf16.msra.mxu0 %v4994
      %7794 = vmatpush.bf16.msra.mxu0 %v4992
      %7795 = vmatpush.bf16.msra.mxu0 %v4990
      %7796 = vmatpush.bf16.msra.mxu0 %v4988
      %7797 = vmatpush.bf16.msra.mxu0 %v4986
      %7798 = vmatpush.bf16.msra.mxu0 %v4984
      %7799 = vmatpush.bf16.msra.mxu0 %v4982
      %7800 = vmatpush.bf16.msra.mxu0 %v4980
      %7801 = vmatmul.bf16.gmra.mxu0 %v1449
      %v7802 = vpop.f32.mrf.mxu0
      %v7803 = vadd.f32 %v7790, %v7802
      %v7804 = vpop.f32.mrf.mxu0
      %7805 = vdwg.mxu0
      %7806 = vmatpush.bf16.msra.mxu0 %v5010
      %7807 = vmatpush.bf16.msra.mxu0 %v5008
      %7808 = vmatpush.bf16.msra.mxu0 %v5006
      %7809 = vmatpush.bf16.msra.mxu0 %v5004
      %7810 = vmatpush.bf16.msra.mxu0 %v5002
      %7811 = vmatpush.bf16.msra.mxu0 %v5000
      %7812 = vmatpush.bf16.msra.mxu0 %v4998
      %7813 = vmatpush.bf16.msra.mxu0 %v4996
      %7814 = vmatmul.bf16.gmra.mxu0 %v1450
      %v7815 = vpop.f32.mrf.mxu0
      %v7816 = vadd.f32 %v7803, %v7815
      %v7817 = vpop.f32.mrf.mxu0
      %7818 = vdwg.mxu0
      %7819 = vmatpush.bf16.msra.mxu0 %v5026
      %7820 = vmatpush.bf16.msra.mxu0 %v5024
      %7821 = vmatpush.bf16.msra.mxu0 %v5022
      %7822 = vmatpush.bf16.msra.mxu0 %v5020
      %7823 = vmatpush.bf16.msra.mxu0 %v5018
      %7824 = vmatpush.bf16.msra.mxu0 %v5016
      %7825 = vmatpush.bf16.msra.mxu0 %v5014
      %7826 = vmatpush.bf16.msra.mxu0 %v5012
      %7827 = vmatmul.bf16.gmra.mxu0 %v1451
      %v7828 = vpop.f32.mrf.mxu0
      %v7829 = vadd.f32 %v7816, %v7828
      %v7830 = vpop.f32.mrf.mxu0
      %7831 = vdwg.mxu0
      %7832 = vmatpush.bf16.msra.mxu0 %v5042
      %7833 = vmatpush.bf16.msra.mxu0 %v5040
      %7834 = vmatpush.bf16.msra.mxu0 %v5038
      %7835 = vmatpush.bf16.msra.mxu0 %v5036
      %7836 = vmatpush.bf16.msra.mxu0 %v5034
      %7837 = vmatpush.bf16.msra.mxu0 %v5032
      %7838 = vmatpush.bf16.msra.mxu0 %v5030
      %7839 = vmatpush.bf16.msra.mxu0 %v5028
      %7840 = vmatmul.bf16.gmra.mxu0 %v1452
      %v7841 = vpop.f32.mrf.mxu0
      %v7842 = vadd.f32 %v7829, %v7841
      %v7843 = vpop.f32.mrf.mxu0
      %7844 = vdwg.mxu0
      %7845 = vmatpush.bf16.msra.mxu0 %v5058
      %7846 = vmatpush.bf16.msra.mxu0 %v5056
      %7847 = vmatpush.bf16.msra.mxu0 %v5054
      %7848 = vmatpush.bf16.msra.mxu0 %v5052
      %7849 = vmatpush.bf16.msra.mxu0 %v5050
      %7850 = vmatpush.bf16.msra.mxu0 %v5048
      %7851 = vmatpush.bf16.msra.mxu0 %v5046
      %7852 = vmatpush.bf16.msra.mxu0 %v5044
      %7853 = vmatmul.bf16.gmra.mxu0 %v1453
      %v7854 = vpop.f32.mrf.mxu0
      %v7855 = vadd.f32 %v7842, %v7854
      %v7856 = vpop.f32.mrf.mxu0
      %7857 = vdwg.mxu0
      %7858 = vmatpush.bf16.msra.mxu0 %v5074
      %7859 = vmatpush.bf16.msra.mxu0 %v5072
      %7860 = vmatpush.bf16.msra.mxu0 %v5070
      %7861 = vmatpush.bf16.msra.mxu0 %v5068
      %7862 = vmatpush.bf16.msra.mxu0 %v5066
      %7863 = vmatpush.bf16.msra.mxu0 %v5064
      %7864 = vmatpush.bf16.msra.mxu0 %v5062
      %7865 = vmatpush.bf16.msra.mxu0 %v5060
      %7866 = vmatmul.bf16.gmra.mxu0 %v1454
      %v7867 = vpop.f32.mrf.mxu0
      %v7868 = vadd.f32 %v7855, %v7867
      %v7869 = vpop.f32.mrf.mxu0
      %7870 = vdwg.mxu0
      %7871 = vmatpush.bf16.msra.mxu0 %v5090
      %7872 = vmatpush.bf16.msra.mxu0 %v5088
      %7873 = vmatpush.bf16.msra.mxu0 %v5086
      %7874 = vmatpush.bf16.msra.mxu0 %v5084
      %7875 = vmatpush.bf16.msra.mxu0 %v5082
      %7876 = vmatpush.bf16.msra.mxu0 %v5080
      %7877 = vmatpush.bf16.msra.mxu0 %v5078
      %7878 = vmatpush.bf16.msra.mxu0 %v5076
      %7879 = vmatmul.bf16.gmra.mxu0 %v1455
      %v7880 = vpop.f32.mrf.mxu0
      %v7881 = vadd.f32 %v7868, %v7880
      %v7882 = vpop.f32.mrf.mxu0
      %7883 = vdwg.mxu0
      %7884 = vmatpush.bf16.msra.mxu0 %v5106
      %7885 = vmatpush.bf16.msra.mxu0 %v5104
      %7886 = vmatpush.bf16.msra.mxu0 %v5102
      %7887 = vmatpush.bf16.msra.mxu0 %v5100
      %7888 = vmatpush.bf16.msra.mxu0 %v5098
      %7889 = vmatpush.bf16.msra.mxu0 %v5096
      %7890 = vmatpush.bf16.msra.mxu0 %v5094
      %7891 = vmatpush.bf16.msra.mxu0 %v5092
      %7892 = vmatmul.bf16.gmra.mxu0 %v1456
      %v7893 = vpop.f32.mrf.mxu0
      %v7894 = vadd.f32 %v7881, %v7893
      %v7895 = vpop.f32.mrf.mxu0
      %7896 = vdwg.mxu0
      %7897 = vmatpush.bf16.msra.mxu0 %v5122
      %7898 = vmatpush.bf16.msra.mxu0 %v5120
      %7899 = vmatpush.bf16.msra.mxu0 %v5118
      %7900 = vmatpush.bf16.msra.mxu0 %v5116
      %7901 = vmatpush.bf16.msra.mxu0 %v5114
      %7902 = vmatpush.bf16.msra.mxu0 %v5112
      %7903 = vmatpush.bf16.msra.mxu0 %v5110
      %7904 = vmatpush.bf16.msra.mxu0 %v5108
      %7905 = vmatmul.bf16.gmra.mxu0 %v1457
      %v7906 = vpop.f32.mrf.mxu0
      %v7907 = vadd.f32 %v7894, %v7906
      %v7908 = vpop.f32.mrf.mxu0
      %7909 = vdwg.mxu0
      %7910 = vmatpush.bf16.msra.mxu0 %v5138
      %7911 = vmatpush.bf16.msra.mxu0 %v5136
      %7912 = vmatpush.bf16.msra.mxu0 %v5134
      %7913 = vmatpush.bf16.msra.mxu0 %v5132
      %7914 = vmatpush.bf16.msra.mxu0 %v5130
      %7915 = vmatpush.bf16.msra.mxu0 %v5128
      %7916 = vmatpush.bf16.msra.mxu0 %v5126
      %7917 = vmatpush.bf16.msra.mxu0 %v5124
      %7918 = vmatmul.bf16.gmra.mxu0 %v1458
      %v7919 = vpop.f32.mrf.mxu0
      %v7920 = vadd.f32 %v7907, %v7919
      %v7921 = vpop.f32.mrf.mxu0
      %7922 = vdwg.mxu0
      %7923 = vmatpush.bf16.msra.mxu0 %v5154
      %7924 = vmatpush.bf16.msra.mxu0 %v5152
      %7925 = vmatpush.bf16.msra.mxu0 %v5150
      %7926 = vmatpush.bf16.msra.mxu0 %v5148
      %7927 = vmatpush.bf16.msra.mxu0 %v5146
      %7928 = vmatpush.bf16.msra.mxu0 %v5144
      %7929 = vmatpush.bf16.msra.mxu0 %v5142
      %7930 = vmatpush.bf16.msra.mxu0 %v5140
      %7931 = vmatmul.bf16.gmra.mxu0 %v1459
      %v7932 = vpop.f32.mrf.mxu0
      %v7933 = vadd.f32 %v7920, %v7932
      %v7934 = vpop.f32.mrf.mxu0
      %7935 = vdwg.mxu0
      %7936 = vmatpush.bf16.msra.mxu0 %v5170
      %7937 = vmatpush.bf16.msra.mxu0 %v5168
      %7938 = vmatpush.bf16.msra.mxu0 %v5166
      %7939 = vmatpush.bf16.msra.mxu0 %v5164
      %7940 = vmatpush.bf16.msra.mxu0 %v5162
      %7941 = vmatpush.bf16.msra.mxu0 %v5160
      %7942 = vmatpush.bf16.msra.mxu0 %v5158
      %7943 = vmatpush.bf16.msra.mxu0 %v5156
      %7944 = vmatmul.bf16.gmra.mxu0 %v1460
      %v7945 = vpop.f32.mrf.mxu0
      %v7946 = vadd.f32 %v7933, %v7945
      %v7947 = vpop.f32.mrf.mxu0
      %7948 = vdwg.mxu0
      %7949 = vmatpush.bf16.msra.mxu0 %v5186
      %7950 = vmatpush.bf16.msra.mxu0 %v5184
      %7951 = vmatpush.bf16.msra.mxu0 %v5182
      %7952 = vmatpush.bf16.msra.mxu0 %v5180
      %7953 = vmatpush.bf16.msra.mxu0 %v5178
      %7954 = vmatpush.bf16.msra.mxu0 %v5176
      %7955 = vmatpush.bf16.msra.mxu0 %v5174
      %7956 = vmatpush.bf16.msra.mxu0 %v5172
      %7957 = vmatmul.bf16.gmra.mxu0 %v1461
      %v7958 = vpop.f32.mrf.mxu0
      %v7959 = vadd.f32 %v7946, %v7958
      %v7960 = vpop.f32.mrf.mxu0
      %7961 = vdwg.mxu0
      %7962 = vmatpush.bf16.msra.mxu0 %v5202
      %7963 = vmatpush.bf16.msra.mxu0 %v5200
      %7964 = vmatpush.bf16.msra.mxu0 %v5198
      %7965 = vmatpush.bf16.msra.mxu0 %v5196
      %7966 = vmatpush.bf16.msra.mxu0 %v5194
      %7967 = vmatpush.bf16.msra.mxu0 %v5192
      %7968 = vmatpush.bf16.msra.mxu0 %v5190
      %7969 = vmatpush.bf16.msra.mxu0 %v5188
      %7970 = vmatmul.bf16.gmra.mxu0 %v1462
      %v7971 = vpop.f32.mrf.mxu0
      %v7972 = vadd.f32 %v7959, %v7971
      %v7973 = vpop.f32.mrf.mxu0
      %7974 = vdwg.mxu0
      %7975 = vmatpush.bf16.msra.mxu0 %v5218
      %7976 = vmatpush.bf16.msra.mxu0 %v5216
      %7977 = vmatpush.bf16.msra.mxu0 %v5214
      %7978 = vmatpush.bf16.msra.mxu0 %v5212
      %7979 = vmatpush.bf16.msra.mxu0 %v5210
      %7980 = vmatpush.bf16.msra.mxu0 %v5208
      %7981 = vmatpush.bf16.msra.mxu0 %v5206
      %7982 = vmatpush.bf16.msra.mxu0 %v5204
      %7983 = vmatmul.bf16.gmra.mxu0 %v1463
      %v7984 = vpop.f32.mrf.mxu0
      %v7985 = vadd.f32 %v7972, %v7984
      %v7986 = vpop.f32.mrf.mxu0
      %7987 = vdwg.mxu0
      %7988 = vmatpush.bf16.msra.mxu0 %v5234
      %7989 = vmatpush.bf16.msra.mxu0 %v5232
      %7990 = vmatpush.bf16.msra.mxu0 %v5230
      %7991 = vmatpush.bf16.msra.mxu0 %v5228
      %7992 = vmatpush.bf16.msra.mxu0 %v5226
      %7993 = vmatpush.bf16.msra.mxu0 %v5224
      %7994 = vmatpush.bf16.msra.mxu0 %v5222
      %7995 = vmatpush.bf16.msra.mxu0 %v5220
      %7996 = vmatmul.bf16.gmra.mxu0 %v1464
      %v7997 = vpop.f32.mrf.mxu0
      %v7998 = vadd.f32 %v7985, %v7997
      %v7999 = vpop.f32.mrf.mxu0
      %8000 = vdwg.mxu0
      %8001 = vmatpush.bf16.msra.mxu0 %v5250
      %8002 = vmatpush.bf16.msra.mxu0 %v5248
      %8003 = vmatpush.bf16.msra.mxu0 %v5246
      %8004 = vmatpush.bf16.msra.mxu0 %v5244
      %8005 = vmatpush.bf16.msra.mxu0 %v5242
      %8006 = vmatpush.bf16.msra.mxu0 %v5240
      %8007 = vmatpush.bf16.msra.mxu0 %v5238
      %8008 = vmatpush.bf16.msra.mxu0 %v5236
      %8009 = vmatmul.bf16.gmra.mxu0 %v1465
      %v8010 = vpop.f32.mrf.mxu0
      %v8011 = vadd.f32 %v7998, %v8010
      %v8012 = vpop.f32.mrf.mxu0
      %8013 = vdwg.mxu0
      %8014 = vmatpush.bf16.msra.mxu0 %v5266
      %8015 = vmatpush.bf16.msra.mxu0 %v5264
      %8016 = vmatpush.bf16.msra.mxu0 %v5262
      %8017 = vmatpush.bf16.msra.mxu0 %v5260
      %8018 = vmatpush.bf16.msra.mxu0 %v5258
      %8019 = vmatpush.bf16.msra.mxu0 %v5256
      %8020 = vmatpush.bf16.msra.mxu0 %v5254
      %8021 = vmatpush.bf16.msra.mxu0 %v5252
      %8022 = vmatmul.bf16.gmra.mxu0 %v1466
      %v8023 = vpop.f32.mrf.mxu0
      %v8024 = vadd.f32 %v8011, %v8023
      %v8025 = vpop.f32.mrf.mxu0
      %8026 = vdwg.mxu0
      %8027 = vmatpush.bf16.msra.mxu0 %v5282
      %8028 = vmatpush.bf16.msra.mxu0 %v5280
      %8029 = vmatpush.bf16.msra.mxu0 %v5278
      %8030 = vmatpush.bf16.msra.mxu0 %v5276
      %8031 = vmatpush.bf16.msra.mxu0 %v5274
      %8032 = vmatpush.bf16.msra.mxu0 %v5272
      %8033 = vmatpush.bf16.msra.mxu0 %v5270
      %8034 = vmatpush.bf16.msra.mxu0 %v5268
      %8035 = vmatmul.bf16.gmra.mxu0 %v1467
      %v8036 = vpop.f32.mrf.mxu0
      %v8037 = vadd.f32 %v8024, %v8036
      %v8038 = vpop.f32.mrf.mxu0
      %8039 = vdwg.mxu0
      %8040 = vmatpush.bf16.msra.mxu0 %v5298
      %8041 = vmatpush.bf16.msra.mxu0 %v5296
      %8042 = vmatpush.bf16.msra.mxu0 %v5294
      %8043 = vmatpush.bf16.msra.mxu0 %v5292
      %8044 = vmatpush.bf16.msra.mxu0 %v5290
      %8045 = vmatpush.bf16.msra.mxu0 %v5288
      %8046 = vmatpush.bf16.msra.mxu0 %v5286
      %8047 = vmatpush.bf16.msra.mxu0 %v5284
      %8048 = vmatmul.bf16.gmra.mxu0 %v1468
      %v8049 = vpop.f32.mrf.mxu0
      %v8050 = vadd.f32 %v8037, %v8049
      %v8051 = vpop.f32.mrf.mxu0
      %8052 = vdwg.mxu0
      %8053 = vmatpush.bf16.msra.mxu0 %v5314
      %8054 = vmatpush.bf16.msra.mxu0 %v5312
      %8055 = vmatpush.bf16.msra.mxu0 %v5310
      %8056 = vmatpush.bf16.msra.mxu0 %v5308
      %8057 = vmatpush.bf16.msra.mxu0 %v5306
      %8058 = vmatpush.bf16.msra.mxu0 %v5304
      %8059 = vmatpush.bf16.msra.mxu0 %v5302
      %8060 = vmatpush.bf16.msra.mxu0 %v5300
      %8061 = vmatmul.bf16.gmra.mxu0 %v1469
      %v8062 = vpop.f32.mrf.mxu0
      %v8063 = vadd.f32 %v8050, %v8062
      %v8064 = vpop.f32.mrf.mxu0
      %8065 = vdwg.mxu0
      %8066 = vmatpush.bf16.msra.mxu0 %v5330
      %8067 = vmatpush.bf16.msra.mxu0 %v5328
      %8068 = vmatpush.bf16.msra.mxu0 %v5326
      %8069 = vmatpush.bf16.msra.mxu0 %v5324
      %8070 = vmatpush.bf16.msra.mxu0 %v5322
      %8071 = vmatpush.bf16.msra.mxu0 %v5320
      %8072 = vmatpush.bf16.msra.mxu0 %v5318
      %8073 = vmatpush.bf16.msra.mxu0 %v5316
      %8074 = vmatmul.bf16.gmra.mxu0 %v1470
      %v8075 = vpop.f32.mrf.mxu0
      %v8076 = vadd.f32 %v8063, %v8075
      %v8077 = vpop.f32.mrf.mxu0
      %8078 = vdwg.mxu0
      %8079 = vmatpush.bf16.msra.mxu0 %v5346
      %8080 = vmatpush.bf16.msra.mxu0 %v5344
      %8081 = vmatpush.bf16.msra.mxu0 %v5342
      %8082 = vmatpush.bf16.msra.mxu0 %v5340
      %8083 = vmatpush.bf16.msra.mxu0 %v5338
      %8084 = vmatpush.bf16.msra.mxu0 %v5336
      %8085 = vmatpush.bf16.msra.mxu0 %v5334
      %8086 = vmatpush.bf16.msra.mxu0 %v5332
      %8087 = vmatmul.bf16.gmra.mxu0 %v1471
      %v8088 = vpop.f32.mrf.mxu0
      %v8089 = vadd.f32 %v8076, %v8088
      %v8090 = vpop.f32.mrf.mxu0
      %8091 = vdwg.mxu0
      %8092 = vmatpush.bf16.msra.mxu0 %v5362
      %8093 = vmatpush.bf16.msra.mxu0 %v5360
      %8094 = vmatpush.bf16.msra.mxu0 %v5358
      %8095 = vmatpush.bf16.msra.mxu0 %v5356
      %8096 = vmatpush.bf16.msra.mxu0 %v5354
      %8097 = vmatpush.bf16.msra.mxu0 %v5352
      %8098 = vmatpush.bf16.msra.mxu0 %v5350
      %8099 = vmatpush.bf16.msra.mxu0 %v5348
      %8100 = vmatmul.bf16.gmra.mxu0 %v1472
      %v8101 = vpop.f32.mrf.mxu0
      %v8102 = vadd.f32 %v8089, %v8101
      %v8103 = vpop.f32.mrf.mxu0
      %8104 = vdwg.mxu0
      %8105 = vmatpush.bf16.msra.mxu0 %v5378
      %8106 = vmatpush.bf16.msra.mxu0 %v5376
      %8107 = vmatpush.bf16.msra.mxu0 %v5374
      %8108 = vmatpush.bf16.msra.mxu0 %v5372
      %8109 = vmatpush.bf16.msra.mxu0 %v5370
      %8110 = vmatpush.bf16.msra.mxu0 %v5368
      %8111 = vmatpush.bf16.msra.mxu0 %v5366
      %8112 = vmatpush.bf16.msra.mxu0 %v5364
      %8113 = vmatmul.bf16.gmra.mxu0 %v1473
      %v8114 = vpop.f32.mrf.mxu0
      %v8115 = vadd.f32 %v8102, %v8114
      %v8116 = vpop.f32.mrf.mxu0
      %8117 = vdwg.mxu0
      %8118 = vmatpush.bf16.msra.mxu0 %v5394
      %8119 = vmatpush.bf16.msra.mxu0 %v5392
      %8120 = vmatpush.bf16.msra.mxu0 %v5390
      %8121 = vmatpush.bf16.msra.mxu0 %v5388
      %8122 = vmatpush.bf16.msra.mxu0 %v5386
      %8123 = vmatpush.bf16.msra.mxu0 %v5384
      %8124 = vmatpush.bf16.msra.mxu0 %v5382
      %8125 = vmatpush.bf16.msra.mxu0 %v5380
      %8126 = vmatmul.bf16.gmra.mxu0 %v1474
      %v8127 = vpop.f32.mrf.mxu0
      %v8128 = vadd.f32 %v8115, %v8127
      %v8129 = vpop.f32.mrf.mxu0
      %8130 = vdwg.mxu0
      %8131 = vmatpush.bf16.msra.mxu0 %v5410
      %8132 = vmatpush.bf16.msra.mxu0 %v5408
      %8133 = vmatpush.bf16.msra.mxu0 %v5406
      %8134 = vmatpush.bf16.msra.mxu0 %v5404
      %8135 = vmatpush.bf16.msra.mxu0 %v5402
      %8136 = vmatpush.bf16.msra.mxu0 %v5400
      %8137 = vmatpush.bf16.msra.mxu0 %v5398
      %8138 = vmatpush.bf16.msra.mxu0 %v5396
      %8139 = vmatmul.bf16.gmra.mxu0 %v1475
      %v8140 = vpop.f32.mrf.mxu0
      %v8141 = vadd.f32 %v8128, %v8140
      %v8142 = vpop.f32.mrf.mxu0
      %8143 = vdwg.mxu0
      %8144 = vmatpush.bf16.msra.mxu0 %v5426
      %8145 = vmatpush.bf16.msra.mxu0 %v5424
      %8146 = vmatpush.bf16.msra.mxu0 %v5422
      %8147 = vmatpush.bf16.msra.mxu0 %v5420
      %8148 = vmatpush.bf16.msra.mxu0 %v5418
      %8149 = vmatpush.bf16.msra.mxu0 %v5416
      %8150 = vmatpush.bf16.msra.mxu0 %v5414
      %8151 = vmatpush.bf16.msra.mxu0 %v5412
      %8152 = vmatmul.bf16.gmra.mxu0 %v1476
      %v8153 = vpop.f32.mrf.mxu0
      %v8154 = vadd.f32 %v8141, %v8153
      %v8155 = vpop.f32.mrf.mxu0
      %8156 = vdwg.mxu0
      %8157 = vmatpush.bf16.msra.mxu0 %v5442
      %8158 = vmatpush.bf16.msra.mxu0 %v5440
      %8159 = vmatpush.bf16.msra.mxu0 %v5438
      %8160 = vmatpush.bf16.msra.mxu0 %v5436
      %8161 = vmatpush.bf16.msra.mxu0 %v5434
      %8162 = vmatpush.bf16.msra.mxu0 %v5432
      %8163 = vmatpush.bf16.msra.mxu0 %v5430
      %8164 = vmatpush.bf16.msra.mxu0 %v5428
      %8165 = vmatmul.bf16.gmra.mxu0 %v1477
      %v8166 = vpop.f32.mrf.mxu0
      %v8167 = vadd.f32 %v8154, %v8166
      %v8168 = vpop.f32.mrf.mxu0
      %8169 = vdwg.mxu0
      %8170 = vmatpush.bf16.msra.mxu0 %v5458
      %8171 = vmatpush.bf16.msra.mxu0 %v5456
      %8172 = vmatpush.bf16.msra.mxu0 %v5454
      %8173 = vmatpush.bf16.msra.mxu0 %v5452
      %8174 = vmatpush.bf16.msra.mxu0 %v5450
      %8175 = vmatpush.bf16.msra.mxu0 %v5448
      %8176 = vmatpush.bf16.msra.mxu0 %v5446
      %8177 = vmatpush.bf16.msra.mxu0 %v5444
      %8178 = vmatmul.bf16.gmra.mxu0 %v1478
      %v8179 = vpop.f32.mrf.mxu0
      %v8180 = vadd.f32 %v8167, %v8179
      %v8181 = vpop.f32.mrf.mxu0
      %8182 = vdwg.mxu0
      %8183 = vmatpush.bf16.msra.mxu0 %v5474
      %8184 = vmatpush.bf16.msra.mxu0 %v5472
      %8185 = vmatpush.bf16.msra.mxu0 %v5470
      %8186 = vmatpush.bf16.msra.mxu0 %v5468
      %8187 = vmatpush.bf16.msra.mxu0 %v5466
      %8188 = vmatpush.bf16.msra.mxu0 %v5464
      %8189 = vmatpush.bf16.msra.mxu0 %v5462
      %8190 = vmatpush.bf16.msra.mxu0 %v5460
      %8191 = vmatmul.bf16.gmra.mxu0 %v1479
      %v8192 = vpop.f32.mrf.mxu0
      %v8193 = vadd.f32 %v8180, %v8192
      %v8194 = vpop.f32.mrf.mxu0
      %8195 = vdwg.mxu0
      %8196 = vmatpush.bf16.msra.mxu0 %v5490
      %8197 = vmatpush.bf16.msra.mxu0 %v5488
      %8198 = vmatpush.bf16.msra.mxu0 %v5486
      %8199 = vmatpush.bf16.msra.mxu0 %v5484
      %8200 = vmatpush.bf16.msra.mxu0 %v5482
      %8201 = vmatpush.bf16.msra.mxu0 %v5480
      %8202 = vmatpush.bf16.msra.mxu0 %v5478
      %8203 = vmatpush.bf16.msra.mxu0 %v5476
      %8204 = vmatmul.bf16.gmra.mxu0 %v1480
      %v8205 = vpop.f32.mrf.mxu0
      %v8206 = vadd.f32 %v8193, %v8205
      %v8207 = vpop.f32.mrf.mxu0
      %8208 = vdwg.mxu0
      %8209 = vmatpush.bf16.msra.mxu0 %v5506
      %8210 = vmatpush.bf16.msra.mxu0 %v5504
      %8211 = vmatpush.bf16.msra.mxu0 %v5502
      %8212 = vmatpush.bf16.msra.mxu0 %v5500
      %8213 = vmatpush.bf16.msra.mxu0 %v5498
      %8214 = vmatpush.bf16.msra.mxu0 %v5496
      %8215 = vmatpush.bf16.msra.mxu0 %v5494
      %8216 = vmatpush.bf16.msra.mxu0 %v5492
      %8217 = vmatmul.bf16.gmra.mxu0 %v1481
      %v8218 = vpop.f32.mrf.mxu0
      %v8219 = vadd.f32 %v8206, %v8218
      %v8220 = vpop.f32.mrf.mxu0
      %8221 = vdwg.mxu0
      %8222 = vmatpush.bf16.msra.mxu0 %v5522
      %8223 = vmatpush.bf16.msra.mxu0 %v5520
      %8224 = vmatpush.bf16.msra.mxu0 %v5518
      %8225 = vmatpush.bf16.msra.mxu0 %v5516
      %8226 = vmatpush.bf16.msra.mxu0 %v5514
      %8227 = vmatpush.bf16.msra.mxu0 %v5512
      %8228 = vmatpush.bf16.msra.mxu0 %v5510
      %8229 = vmatpush.bf16.msra.mxu0 %v5508
      %8230 = vmatmul.bf16.gmra.mxu0 %v1482
      %v8231 = vpop.f32.mrf.mxu0
      %v8232 = vadd.f32 %v8219, %v8231
      %v8233 = vpop.f32.mrf.mxu0
      %8234 = vdwg.mxu0
      %8235 = vmatpush.bf16.msra.mxu0 %v5538
      %8236 = vmatpush.bf16.msra.mxu0 %v5536
      %8237 = vmatpush.bf16.msra.mxu0 %v5534
      %8238 = vmatpush.bf16.msra.mxu0 %v5532
      %8239 = vmatpush.bf16.msra.mxu0 %v5530
      %8240 = vmatpush.bf16.msra.mxu0 %v5528
      %8241 = vmatpush.bf16.msra.mxu0 %v5526
      %8242 = vmatpush.bf16.msra.mxu0 %v5524
      %8243 = vmatmul.bf16.gmra.mxu0 %v1483
      %v8244 = vpop.f32.mrf.mxu0
      %v8245 = vadd.f32 %v8232, %v8244
      %v8246 = vpop.f32.mrf.mxu0
      %8247 = vdwg.mxu0
      %8248 = vmatpush.bf16.msra.mxu0 %v5554
      %8249 = vmatpush.bf16.msra.mxu0 %v5552
      %8250 = vmatpush.bf16.msra.mxu0 %v5550
      %8251 = vmatpush.bf16.msra.mxu0 %v5548
      %8252 = vmatpush.bf16.msra.mxu0 %v5546
      %8253 = vmatpush.bf16.msra.mxu0 %v5544
      %8254 = vmatpush.bf16.msra.mxu0 %v5542
      %8255 = vmatpush.bf16.msra.mxu0 %v5540
      %8256 = vmatmul.bf16.gmra.mxu0 %v1484
      %v8257 = vpop.f32.mrf.mxu0
      %v8258 = vadd.f32 %v8245, %v8257
      %v8259 = vpop.f32.mrf.mxu0
      %8260 = vdwg.mxu0
      %8261 = vmatpush.bf16.msra.mxu0 %v5570
      %8262 = vmatpush.bf16.msra.mxu0 %v5568
      %8263 = vmatpush.bf16.msra.mxu0 %v5566
      %8264 = vmatpush.bf16.msra.mxu0 %v5564
      %8265 = vmatpush.bf16.msra.mxu0 %v5562
      %8266 = vmatpush.bf16.msra.mxu0 %v5560
      %8267 = vmatpush.bf16.msra.mxu0 %v5558
      %8268 = vmatpush.bf16.msra.mxu0 %v5556
      %8269 = vmatmul.bf16.gmra.mxu0 %v1485
      %v8270 = vpop.f32.mrf.mxu0
      %v8271 = vadd.f32 %v8258, %v8270
      %v8272 = vpop.f32.mrf.mxu0
      %8273 = vdwg.mxu0
      %8274 = vmatpush.bf16.msra.mxu0 %v5586
      %8275 = vmatpush.bf16.msra.mxu0 %v5584
      %8276 = vmatpush.bf16.msra.mxu0 %v5582
      %8277 = vmatpush.bf16.msra.mxu0 %v5580
      %8278 = vmatpush.bf16.msra.mxu0 %v5578
      %8279 = vmatpush.bf16.msra.mxu0 %v5576
      %8280 = vmatpush.bf16.msra.mxu0 %v5574
      %8281 = vmatpush.bf16.msra.mxu0 %v5572
      %8282 = vmatmul.bf16.gmra.mxu0 %v1486
      %v8283 = vpop.f32.mrf.mxu0
      %v8284 = vadd.f32 %v8271, %v8283
      %v8285 = vpop.f32.mrf.mxu0
      %8286 = vdwg.mxu0
      %8287 = vmatpush.bf16.msra.mxu0 %v5602
      %8288 = vmatpush.bf16.msra.mxu0 %v5600
      %8289 = vmatpush.bf16.msra.mxu0 %v5598
      %8290 = vmatpush.bf16.msra.mxu0 %v5596
      %8291 = vmatpush.bf16.msra.mxu0 %v5594
      %8292 = vmatpush.bf16.msra.mxu0 %v5592
      %8293 = vmatpush.bf16.msra.mxu0 %v5590
      %8294 = vmatpush.bf16.msra.mxu0 %v5588
      %8295 = vmatmul.bf16.gmra.mxu0 %v1487
      %v8296 = vpop.f32.mrf.mxu0
      %v8297 = vadd.f32 %v8284, %v8296
      %v8298 = vpop.f32.mrf.mxu0
      %8299 = vdwg.mxu0
      %8300 = vmatpush.bf16.msra.mxu0 %v5618
      %8301 = vmatpush.bf16.msra.mxu0 %v5616
      %8302 = vmatpush.bf16.msra.mxu0 %v5614
      %8303 = vmatpush.bf16.msra.mxu0 %v5612
      %8304 = vmatpush.bf16.msra.mxu0 %v5610
      %8305 = vmatpush.bf16.msra.mxu0 %v5608
      %8306 = vmatpush.bf16.msra.mxu0 %v5606
      %8307 = vmatpush.bf16.msra.mxu0 %v5604
      %8308 = vmatmul.bf16.gmra.mxu0 %v1488
      %v8309 = vpop.f32.mrf.mxu0
      %v8310 = vadd.f32 %v8297, %v8309
      %v8311 = vpop.f32.mrf.mxu0
      %8312 = vdwg.mxu0
      %8313 = vmatpush.bf16.msra.mxu0 %v5634
      %8314 = vmatpush.bf16.msra.mxu0 %v5632
      %8315 = vmatpush.bf16.msra.mxu0 %v5630
      %8316 = vmatpush.bf16.msra.mxu0 %v5628
      %8317 = vmatpush.bf16.msra.mxu0 %v5626
      %8318 = vmatpush.bf16.msra.mxu0 %v5624
      %8319 = vmatpush.bf16.msra.mxu0 %v5622
      %8320 = vmatpush.bf16.msra.mxu0 %v5620
      %8321 = vmatmul.bf16.gmra.mxu0 %v1489
      %v8322 = vpop.f32.mrf.mxu0
      %v8323 = vadd.f32 %v8310, %v8322
      %v8324 = vpop.f32.mrf.mxu0
      %8325 = vdwg.mxu0
      %8326 = vmatpush.bf16.msra.mxu0 %v5650
      %8327 = vmatpush.bf16.msra.mxu0 %v5648
      %8328 = vmatpush.bf16.msra.mxu0 %v5646
      %8329 = vmatpush.bf16.msra.mxu0 %v5644
      %8330 = vmatpush.bf16.msra.mxu0 %v5642
      %8331 = vmatpush.bf16.msra.mxu0 %v5640
      %8332 = vmatpush.bf16.msra.mxu0 %v5638
      %8333 = vmatpush.bf16.msra.mxu0 %v5636
      %8334 = vmatmul.bf16.gmra.mxu0 %v1490
      %v8335 = vpop.f32.mrf.mxu0
      %v8336 = vadd.f32 %v8323, %v8335
      %v8337 = vpop.f32.mrf.mxu0
      %8338 = vdwg.mxu0
      %v8339 = vmax.f32 %v7504, 0.0
      %v8340 = vmax.f32 %v8336, 0.0
      %v8341 = vpack.c.bf16 %v8340, %v8339
      %8342 = vst [vmem:[%s268] sm:$0xff] %v8341
      %p8343 = scmp.lt.s32.totalorder %s19, 3
      %s8344 = scalar_select %p8343, %s19, 3
      %p8345 = scmp.lt.s32.totalorder %s20, 0
      %s8346 = scalar_select %p8345, %s20, 0
      %s8347 = smul.addr %s8346, 2
      %s8348 = smul.addr %s8344, 2
      %s8349 = sadd.s32 %s8347, %s8348
      %s8350 = smul.addr %s8349, 4
      %s8351 = scalar_lea.vmem %s3, %s8350
      // Predicated region
      $region33: #{simcc_forward.5} parent=31 // pred_check
        %p8352 = pneg %p132
      $region34: #{simcc_forward.5} parent=31 // pred_check_branch
        %8354 = sbr.rel (%p8352) target = $region36
      $region35: #{simcc_forward.5} parent=31 // pred_region
        _
      $region36: #{simcc_forward.5} parent=31 // pred_fallthru
        _
    $region32: #{simcc_forward.5} parent=5 // pred_fallthru
      _
    %p8355 = scmp.le.s32.totalorder 2, %s9
    // Predicated region
    $region37: #{simcc_forward.5} parent=5 // pred_check
      %p8356 = pneg %p8355
    $region38: #{simcc_forward.5} parent=5 // pred_check_branch
      %8358 = sbr.rel (%p8356) target = $region40
    $region39: #{simcc_forward.5} parent=5 // pred_region
      %s8359 = ssub.s32 %s9, 2
      // Predicated region
      $region41: #{simcc_forward.5} parent=39 // pred_check
        %p8360 = pneg %p138
      $region42: #{simcc_forward.5} parent=39 // pred_check_branch
        %8362 = sbr.rel (%p8360) target = $region44
      $region43: #{simcc_forward.5} parent=39 // pred_region
        %p8363 = scmp.lt.s32.totalorder %s22, 3
        %s8364 = scalar_select %p8363, %s22, 3
        %p8365 = scmp.lt.s32.totalorder %s23, 0
        %s8366 = scalar_select %p8365, %s23, 0
        %s8367 = smul.addr %s8366, 2
        %s8368 = smul.addr %s8364, 2
        %s8369 = sadd.s32 %s8367, %s8368
        %s8370 = smul.addr %s8369, 4
        %s8371 = scalar_lea.vmem %s3, %s8370
      $region44: #{simcc_forward.5} parent=39 // pred_fallthru
        _
    $region40: #{simcc_forward.5} parent=5 // pred_fallthru
      _
  $region6: #{simcc_forward.5} parent=0 // loop_footer
    %s13 = sadd.s32 1, %s9
  $region7: #{simcc_forward.5} parent=0 // loop_footer_branch
    %8 = sbr.rel target = $region3
  $region8: #{simcc_forward.5} parent=0 // loop_exit
    _

// kernel: simcc_forward.7
$region0: #{simcc_forward.7}
  #allocation0 [shape = 'u32[]', space=smem, size = 0x4, offset = 0x4, fixed_abs, tag = 'smem constant byte address 0x4 - core index']
  #allocation1 [shape = 'u32[72,128]{1,0:T(1,128)}', space=vmem, size = 0x9000, scoped, tag = 'internal scratch']
  %s0 = inlined_call_operand.vmem [shape: bf16[4,128,1024], index: 0, kind: input, shape index: {}]
  %s1 = inlined_call_operand.vmem [shape: bf16[4,1024,256], index: 1, kind: input, shape index: {}]
  %s2 = inlined_call_operand.vmem [shape: f32[1,256], index: 2, kind: input, shape index: {}]
  %s3 = inlined_call_operand.vmem [shape: bf16[4,128,256], index: 3, kind: output, shape index: {}]
  %s4 = sld [smem:[#allocation0]]
  $region45: #{simcc_forward.7} parent=0
    _
  %s6 = ssub.s32 1, %s4
  %s7 = scalar_select 0, %s6, %s4
  loop: start=0, step=1, limit=6
  $region2: #{simcc_forward.7} parent=0 // loop_pre_header
    _
  $region3: #{simcc_forward.7} parent=0 // loop_header
    %s9 = sphi 0, %s13
    %p10 = scmp.ge.s32.totalorder %s9, 6
    %s16 = sphi 0, %s35
    %s17 = sphi 0, %s31
    %s18 = sphi 0, %s27
    %s19 = sphi 0, %s16
    %s20 = sphi 0, %s17
    %s21 = sphi 0, %s18
    %s22 = sphi 0, %s19
    %s23 = sphi 0, %s20
    %s24 = sphi 0, %s21
    %s42 = sphi 0, %s44
    %s45 = sphi 0, %s42
    %s46 = sphi 0, %s45
    %s62 = sphi 0, %s46
    %s70 = sphi 0, %s72
    %s73 = sphi 0, %s70
    %s74 = sphi 0, %s73
    %s90 = sphi 0, %s74
    %s94 = sphi 0, %s94
    %s96 = sphi 0, %s94
    %s97 = sphi 0, %s96
    %s111 = sphi 0, %s97
    %s119 = sphi 0, %s121
    %s122 = sphi 0, %s119
    %s123 = sphi 0, %s122
    %s139 = sphi 0, %s123
  $region4: #{simcc_forward.7} parent=0 // loop_header_branch
    %12 = sbr.rel (%p10) target = $region8
  $region5: #{simcc_forward.7} parent=0 // loop_body
    %s14 = ssub.s32 %s9, 1
    %s15 = ssub.s32 %s9, 2
    %s25 = sadd.s32 1, %s18
    %p26 = scmp.ge.s32.totalorder %s25, 1
    %s27 = scalar_select %p26, 0, %s25
    %s28 = sadd.s32 1, %s17
    %s29 = scalar_select %p26, %s28, %s17
    %p30 = scmp.ge.s32.totalorder %s29, 1
    %s31 = scalar_select %p30, 0, %s29
    %s32 = sadd.s32 1, %s16
    %s33 = scalar_select %p30, %s32, %s16
    %p34 = scmp.ge.s32.totalorder %s33, 4
    %s35 = scalar_select %p34, 0, %s33
    %s36 = ssub.s32 %s16, %s35
    %s37 = ssub.s32 %s17, %s31
    %s38 = sor.u32 %s36, %s37
    %s39 = ssub.s32 %s18, %s27
    %s40 = sor.u32 %s38, %s39
    %p41 = scmp.eq.s32.totalorder %s40, 0
    %s43 = sadd.s32 %s42, 1
    %s44 = scalar_select %p41, %s42, %s43
    %p47 = pneg %p41
    %p48 = scmp.eq.s32.totalorder %s9, 3
    %p49 = por %p47, %p48
    %p50 = scmp.ne.s32.totalorder %s42, %s45
    %p51 = scmp.eq.s32.totalorder %s9, 0
    %p52 = por %p50, %p51
    %p53 = scmp.ne.s32.totalorder %s42, %s45
    %p54 = scmp.eq.s32.totalorder %s14, 3
    %p55 = por %p53, %p54
    %p56 = scmp.ne.s32.totalorder %s45, %s46
    %p57 = scmp.eq.s32.totalorder %s14, 0
    %p58 = por %p56, %p57
    %p59 = scmp.ne.s32.totalorder %s45, %s46
    %p60 = scmp.eq.s32.totalorder %s15, 3
    %p61 = por %p59, %p60
    %p63 = scmp.ne.s32.totalorder %s46, %s62
    %p64 = scmp.eq.s32.totalorder %s15, 0
    %p65 = por %p63, %p64
    %s66 = ssub.s32 %s16, %s35
    %s67 = ssub.s32 %s18, %s27
    %s68 = sor.u32 %s66, %s67
    %p69 = scmp.eq.s32.totalorder %s68, 0
    %s71 = sadd.s32 %s70, 1
    %s72 = scalar_select %p69, %s70, %s71
    %p75 = pneg %p69
    %p76 = scmp.eq.s32.totalorder %s9, 3
    %p77 = por %p75, %p76
    %p78 = scmp.ne.s32.totalorder %s70, %s73
    %p79 = scmp.eq.s32.totalorder %s9, 0
    %p80 = por %p78, %p79
    %p81 = scmp.ne.s32.totalorder %s70, %s73
    %p82 = scmp.eq.s32.totalorder %s14, 3
    %p83 = por %p81, %p82
    %p84 = scmp.ne.s32.totalorder %s73, %s74
    %p85 = scmp.eq.s32.totalorder %s14, 0
    %p86 = por %p84, %p85
    %p87 = scmp.ne.s32.totalorder %s73, %s74
    %p88 = scmp.eq.s32.totalorder %s15, 3
    %p89 = por %p87, %p88
    %p91 = scmp.ne.s32.totalorder %s74, %s90
    %p92 = scmp.eq.s32.totalorder %s15, 0
    %p93 = por %p91, %p92
    %s95 = sadd.s32 %s94, 1
    %p98 = scmp.eq.s32.totalorder %s9, 3
    %p99 = scmp.ne.s32.totalorder %s94, %s96
    %p100 = scmp.eq.s32.totalorder %s9, 0
    %p101 = por %p99, %p100
    %p102 = scmp.ne.s32.totalorder %s94, %s96
    %p103 = scmp.eq.s32.totalorder %s14, 3
    %p104 = por %p102, %p103
    %p105 = scmp.ne.s32.totalorder %s96, %s97
    %p106 = scmp.eq.s32.totalorder %s14, 0
    %p107 = por %p105, %p106
    %p108 = scmp.ne.s32.totalorder %s96, %s97
    %p109 = scmp.eq.s32.totalorder %s15, 3
    %p110 = por %p108, %p109
    %p112 = scmp.ne.s32.totalorder %s97, %s111
    %p113 = scmp.eq.s32.totalorder %s15, 0
    %p114 = por %p112, %p113
    %s115 = ssub.s32 %s16, %s35
    %s116 = ssub.s32 %s17, %s31
    %s117 = sor.u32 %s115, %s116
    %p118 = scmp.eq.s32.totalorder %s117, 0
    %s120 = sadd.s32 %s119, 1
    %s121 = scalar_select %p118, %s119, %s120
    %p124 = pneg %p118
    %p125 = scmp.eq.s32.totalorder %s9, 3
    %p126 = por %p124, %p125
    %p127 = scmp.ne.s32.totalorder %s119, %s122
    %p128 = scmp.eq.s32.totalorder %s9, 0
    %p129 = por %p127, %p128
    %p130 = scmp.ne.s32.totalorder %s119, %s122
    %p131 = scmp.eq.s32.totalorder %s14, 3
    %p132 = por %p130, %p131
    %p133 = scmp.ne.s32.totalorder %s122, %s123
    %p134 = scmp.eq.s32.totalorder %s14, 0
    %p135 = por %p133, %p134
    %p136 = scmp.ne.s32.totalorder %s122, %s123
    %p137 = scmp.eq.s32.totalorder %s15, 3
    %p138 = por %p136, %p137
    %p140 = scmp.ne.s32.totalorder %s123, %s139
    %p141 = scmp.eq.s32.totalorder %s15, 0
    %p142 = por %p140, %p141
    %p143 = scmp.le.s32.totalorder 1, %s9
    %p144 = scmp.lt.s32.totalorder %s9, 5
    %p145 = pnand %p143, %p144
    %p146 = pneg %p145
    // Predicated region
    $region9: #{simcc_forward.7} parent=5 // pred_check
      _
    $region10: #{simcc_forward.7} parent=5 // pred_check_branch
      %148 = sbr.rel (%p145) target = $region12
    $region11: #{simcc_forward.7} parent=5 // pred_region
      %s149 = ssub.s32 %s9, 1
      // Predicated region
      $region13: #{simcc_forward.7} parent=11 // pred_check
        %p150 = pneg %p107
      $region14: #{simcc_forward.7} parent=11 // pred_check_branch
        %152 = sbr.rel (%p150) target = $region16
      $region15: #{simcc_forward.7} parent=11 // pred_region
        _
      $region16: #{simcc_forward.7} parent=11 // pred_fallthru
        _
    $region12: #{simcc_forward.7} parent=5 // pred_fallthru
      _
    %p153 = scmp.lt.s32.totalorder %s9, 4
    // Predicated region
    $region17: #{simcc_forward.7} parent=5 // pred_check
      %p154 = pneg %p153
    $region18: #{simcc_forward.7} parent=5 // pred_check_branch
      %156 = sbr.rel (%p154) target = $region20
    $region19: #{simcc_forward.7} parent=5 // pred_region
      // Predicated region
      $region21: #{simcc_forward.7} parent=19 // pred_check
        %p157 = pneg %p52
      $region22: #{simcc_forward.7} parent=19 // pred_check_branch
        %159 = sbr.rel (%p157) target = $region24
      $region23: #{simcc_forward.7} parent=19 // pred_region
        %s160 = smul.u32 16, %s17
        %s161 = smul.u32 8, %s18
        %p162 = scmp.lt.s32.totalorder %s16, 3
        %s163 = scalar_select %p162, %s16, 3
        %p164 = scmp.lt.s32.totalorder %s160, 15
        %s165 = scalar_select %p164, %s160, 15
        %p166 = scmp.lt.s32.totalorder %s161, 7
        %s167 = scalar_select %p166, %s161, 7
        %s168 = smul.addr %s165, 8
        %s169 = sadd.s32 %s167, %s168
        %s170 = smul.addr %s163, 128
        %s171 = sadd.s32 %s169, %s170
        %s172 = smul.addr %s171, 4
        %s173 = scalar_lea.vmem %s0, %s172
        %s174 = smul.u32 16, %s17
        %s175 = smul.u32 8, %s18
      $region24: #{simcc_forward.7} parent=19 // pred_fallthru
        _
      // Predicated region
      $region25: #{simcc_forward.7} parent=19 // pred_check
        %p176 = pneg %p80
      $region26: #{simcc_forward.7} parent=19 // pred_check_branch
        %178 = sbr.rel (%p176) target = $region28
      $region27: #{simcc_forward.7} parent=19 // pred_region
        %s179 = smul.u32 128, %s18
        %p180 = scmp.lt.s32.totalorder %s16, 3
        %s181 = scalar_select %p180, %s16, 3
        %p182 = scmp.lt.s32.totalorder %s179, 127
        %s183 = scalar_select %p182, %s179, 127
        %s184 = smul.addr %s183, 2
        %s185 = smul.addr %s181, 256
        %s186 = sadd.s32 %s184, %s185
        %s187 = smul.addr %s186, 4
        %s188 = scalar_lea.vmem %s1, %s187
        %s189 = smul.u32 128, %s18
      $region28: #{simcc_forward.7} parent=19 // pred_fallthru
        _
    $region20: #{simcc_forward.7} parent=5 // pred_fallthru
      _
    %p190 = scmp.le.s32.totalorder 1, %s9
    %p191 = scmp.lt.s32.totalorder %s9, 5
    %p192 = pnand %p190, %p191
    %p193 = pneg %p192
    // Predicated region
    $region29: #{simcc_forward.7} parent=5 // pred_check
      _
    $region30: #{simcc_forward.7} parent=5 // pred_check_branch
      %195 = sbr.rel (%p192) target = $region32
    $region31: #{simcc_forward.7} parent=5 // pred_region
      %s196 = ssub.s32 %s9, 1
      %s197 = smul.u32 16, %s20
      %s198 = smul.u32 8, %s21
      %p199 = scmp.lt.s32.totalorder %s19, 3
      %s200 = scalar_select %p199, %s19, 3
      %p201 = scmp.lt.s32.totalorder %s197, 15
      %s202 = scalar_select %p201, %s197, 15
      %p203 = scmp.lt.s32.totalorder %s198, 7
      %s204 = scalar_select %p203, %s198, 7
      %s205 = smul.addr %s202, 8
      %s206 = sadd.s32 %s204, %s205
      %s207 = smul.addr %s200, 128
      %s208 = sadd.s32 %s206, %s207
      %s209 = smul.addr %s208, 4
      %s210 = scalar_lea.vmem %s0, %s209
      %p211 = pneg %p58
      %p212 = pneg %p55
      %s213 = smul.u32 128, %s21
      %p214 = scmp.lt.s32.totalorder %s19, 3
      %s215 = scalar_select %p214, %s19, 3
      %p216 = scmp.lt.s32.totalorder %s213, 127
      %s217 = scalar_select %p216, %s213, 127
      %s218 = smul.addr %s217, 2
      %s219 = smul.addr %s215, 256
      %s220 = sadd.s32 %s218, %s219
      %s221 = smul.addr %s220, 4
      %s222 = scalar_lea.vmem %s1, %s221
      %p223 = pneg %p86
      %p224 = pneg %p83
      %p225 = pneg %p107
      %p226 = pneg %p104
      %p227 = pneg %p135
      %p228 = pneg %p132
      %s229 = smul.u32 16, %s20
      %p230 = scmp.lt.s32.totalorder %s19, 3
      %s231 = scalar_select %p230, %s19, 3
      %p232 = scmp.lt.s32.totalorder %s229, 15
      %s233 = scalar_select %p232, %s229, 15
      %s234 = smul.addr %s233, 2
      %s235 = smul.addr %s231, 32
      %s236 = sadd.s32 %s234, %s235
      %s237 = smul.addr %s236, 4
      %s238 = scalar_lea.vmem %s3, %s237
      %s239 = smul.u32 16, %s20
      %s240 = smul.u32 8, %s21
      %p241 = scmp.lt.s32.totalorder %s19, 3
      %s242 = scalar_select %p241, %s19, 3
      %p243 = scmp.lt.s32.totalorder %s239, 15
      %s244 = scalar_select %p243, %s239, 15
      %p245 = scmp.lt.s32.totalorder %s240, 7
      %s246 = scalar_select %p245, %s240, 7
      %s247 = smul.addr %s244, 8
      %s248 = sadd.s32 %s246, %s247
      %s249 = smul.addr %s242, 128
      %s250 = sadd.s32 %s248, %s249
      %s251 = smul.addr %s250, 4
      %s252 = scalar_lea.vmem %s0, %s251
      %s253 = smul.u32 16, %s20
      %s254 = smul.u32 8, %s21
      %s255 = smul.u32 128, %s21
      %p256 = scmp.lt.s32.totalorder %s19, 3
      %s257 = scalar_select %p256, %s19, 3
      %p258 = scmp.lt.s32.totalorder %s255, 127
      %s259 = scalar_select %p258, %s255, 127
      %s260 = smul.addr %s259, 2
      %s261 = smul.addr %s257, 256
      %s262 = sadd.s32 %s260, %s261
      %s263 = smul.addr %s262, 4
      %s264 = scalar_lea.vmem %s1, %s263
      %s265 = smul.u32 128, %s21
      %s266 = smul.u32 16, %s20
      %p267 = scmp.lt.s32.totalorder %s19, 3
      %s268 = scalar_select %p267, %s19, 3
      %p269 = scmp.lt.s32.totalorder %s266, 15
      %s270 = scalar_select %p269, %s266, 15
      %s271 = smul.addr %s270, 2
      %s272 = smul.addr %s268, 32
      %s273 = sadd.s32 %s271, %s272
      %s274 = smul.addr %s273, 4
      %s275 = scalar_lea.vmem %s3, %s274
      %s276 = smul.u32 16, %s20
      %v277 = vld [vmem:[%s252] sm:$0xff]
      %v278 = vld [vmem:[%s252 + $0x8] sm:$0xff]
      %v279 = vld [vmem:[%s252 + $0x10] sm:$0xff]
      %v280 = vld [vmem:[%s252 + $0x18] sm:$0xff]
      %v281 = vld [vmem:[%s252 + $0x20] sm:$0xff]
      %v282 = vld [vmem:[%s252 + $0x28] sm:$0xff]
      %v283 = vld [vmem:[%s252 + $0x30] sm:$0xff]
      %v284 = vld [vmem:[%s252 + $0x38] sm:$0xff]
      %v285 = vld [vmem:[%s252 + $0x40] sm:$0xff]
      %v286 = vld [vmem:[%s252 + $0x48] sm:$0xff]
      %v287 = vld [vmem:[%s252 + $0x50] sm:$0xff]
      %v288 = vld [vmem:[%s252 + $0x58] sm:$0xff]
      %v289 = vld [vmem:[%s252 + $0x60] sm:$0xff]
      %v290 = vld [vmem:[%s252 + $0x68] sm:$0xff]
      %v291 = vld [vmem:[%s252 + $0x70] sm:$0xff]
      %v292 = vld [vmem:[%s252 + $0x78] sm:$0xff]
      %v293 = vld [vmem:[%s252 + $0x80] sm:$0xff]
      %v294 = vld [vmem:[%s252 + $0x88] sm:$0xff]
      %v295 = vld [vmem:[%s252 + $0x90] sm:$0xff]
      %v296 = vld [vmem:[%s252 + $0x98] sm:$0xff]
      %v297 = vld [vmem:[%s252 + $0xa0] sm:$0xff]
      %v298 = vld [vmem:[%s252 + $0xa8] sm:$0xff]
      %v299 = vld [vmem:[%s252 + $0xb0] sm:$0xff]
      %v300 = vld [vmem:[%s252 + $0xb8] sm:$0xff]
      %v301 = vld [vmem:[%s252 + $0xc0] sm:$0xff]
      %v302 = vld [vmem:[%s252 + $0xc8] sm:$0xff]
      %v303 = vld [vmem:[%s252 + $0xd0] sm:$0xff]
      %v304 = vld [vmem:[%s252 + $0xd8] sm:$0xff]
      %v305 = vld [vmem:[%s252 + $0xe0] sm:$0xff]
      %v306 = vld [vmem:[%s252 + $0xe8] sm:$0xff]
      %v307 = vld [vmem:[%s252 + $0xf0] sm:$0xff]
      %v308 = vld [vmem:[%s252 + $0xf8] sm:$0xff]
      %v309 = vld [vmem:[%s252 + $0x100] sm:$0xff]
      %v310 = vld [vmem:[%s252 + $0x108] sm:$0xff]
      %v311 = vld [vmem:[%s252 + $0x110] sm:$0xff]
      %v312 = vld [vmem:[%s252 + $0x118] sm:$0xff]
      %v313 = vld [vmem:[%s252 + $0x120] sm:$0xff]
      %v314 = vld [vmem:[%s252 + $0x128] sm:$0xff]
      %v315 = vld [vmem:[%s252 + $0x130] sm:$0xff]
      %v316 = vld [vmem:[%s252 + $0x138] sm:$0xff]
      %v317 = vld [vmem:[%s252 + $0x140] sm:$0xff]
      %v318 = vld [vmem:[%s252 + $0x148] sm:$0xff]
      %v319 = vld [vmem:[%s252 + $0x150] sm:$0xff]
      %v320 = vld [vmem:[%s252 + $0x158] sm:$0xff]
      %v321 = vld [vmem:[%s252 + $0x160] sm:$0xff]
      %v322 = vld [vmem:[%s252 + $0x168] sm:$0xff]
      %v323 = vld [vmem:[%s252 + $0x170] sm:$0xff]
      %v324 = vld [vmem:[%s252 + $0x178] sm:$0xff]
      %v325 = vld [vmem:[%s252 + $0x180] sm:$0xff]
      %v326 = vld [vmem:[%s252 + $0x188] sm:$0xff]
      %v327 = vld [vmem:[%s252 + $0x190] sm:$0xff]
      %v328 = vld [vmem:[%s252 + $0x198] sm:$0xff]
      %v329 = vld [vmem:[%s252 + $0x1a0] sm:$0xff]
      %v330 = vld [vmem:[%s252 + $0x1a8] sm:$0xff]
      %v331 = vld [vmem:[%s252 + $0x1b0] sm:$0xff]
      %v332 = vld [vmem:[%s252 + $0x1b8] sm:$0xff]
      %v333 = vld [vmem:[%s252 + $0x1c0] sm:$0xff]
      %v334 = vld [vmem:[%s252 + $0x1c8] sm:$0xff]
      %v335 = vld [vmem:[%s252 + $0x1d0] sm:$0xff]
      %v336 = vld [vmem:[%s252 + $0x1d8] sm:$0xff]
      %v337 = vld [vmem:[%s252 + $0x1e0] sm:$0xff]
      %v338 = vld [vmem:[%s252 + $0x1e8] sm:$0xff]
      %v339 = vld [vmem:[%s252 + $0x1f0] sm:$0xff]
      %v340 = vld [vmem:[%s252 + $0x1f8] sm:$0xff]
      %v341 = vld [vmem:[%s264] sm:$0xff]
      %v342 = vld [vmem:[%s264 + $0x8] sm:$0xff]
      %v343 = vld [vmem:[%s264 + $0x10] sm:$0xff]
      %v344 = vld [vmem:[%s264 + $0x18] sm:$0xff]
      %v345 = vld [vmem:[%s264 + $0x20] sm:$0xff]
      %v346 = vld [vmem:[%s264 + $0x28] sm:$0xff]
      %v347 = vld [vmem:[%s264 + $0x30] sm:$0xff]
      %v348 = vld [vmem:[%s264 + $0x38] sm:$0xff]
      %v349 = vld [vmem:[%s264 + $0x40] sm:$0xff]
      %v350 = vld [vmem:[%s264 + $0x48] sm:$0xff]
      %v351 = vld [vmem:[%s264 + $0x50] sm:$0xff]
      %v352 = vld [vmem:[%s264 + $0x58] sm:$0xff]
      %v353 = vld [vmem:[%s264 + $0x60] sm:$0xff]
      %v354 = vld [vmem:[%s264 + $0x68] sm:$0xff]
      %v355 = vld [vmem:[%s264 + $0x70] sm:$0xff]
      %v356 = vld [vmem:[%s264 + $0x78] sm:$0xff]
      %v357 = vld [vmem:[%s264 + $0x80] sm:$0xff]
      %v358 = vld [vmem:[%s264 + $0x88] sm:$0xff]
      %v359 = vld [vmem:[%s264 + $0x90] sm:$0xff]
      %v360 = vld [vmem:[%s264 + $0x98] sm:$0xff]
      %v361 = vld [vmem:[%s264 + $0xa0] sm:$0xff]
      %v362 = vld [vmem:[%s264 + $0xa8] sm:$0xff]
      %v363 = vld [vmem:[%s264 + $0xb0] sm:$0xff]
      %v364 = vld [vmem:[%s264 + $0xb8] sm:$0xff]
      %v365 = vld [vmem:[%s264 + $0xc0] sm:$0xff]
      %v366 = vld [vmem:[%s264 + $0xc8] sm:$0xff]
      %v367 = vld [vmem:[%s264 + $0xd0] sm:$0xff]
      %v368 = vld [vmem:[%s264 + $0xd8] sm:$0xff]
      %v369 = vld [vmem:[%s264 + $0xe0] sm:$0xff]
      %v370 = vld [vmem:[%s264 + $0xe8] sm:$0xff]
      %v371 = vld [vmem:[%s264 + $0xf0] sm:$0xff]
      %v372 = vld [vmem:[%s264 + $0xf8] sm:$0xff]
      %v373 = vld [vmem:[%s264 + $0x100] sm:$0xff]
      %v374 = vld [vmem:[%s264 + $0x108] sm:$0xff]
      %v375 = vld [vmem:[%s264 + $0x110] sm:$0xff]
      %v376 = vld [vmem:[%s264 + $0x118] sm:$0xff]
      %v377 = vld [vmem:[%s264 + $0x120] sm:$0xff]
      %v378 = vld [vmem:[%s264 + $0x128] sm:$0xff]
      %v379 = vld [vmem:[%s264 + $0x130] sm:$0xff]
      %v380 = vld [vmem:[%s264 + $0x138] sm:$0xff]
      %v381 = vld [vmem:[%s264 + $0x140] sm:$0xff]
      %v382 = vld [vmem:[%s264 + $0x148] sm:$0xff]
      %v383 = vld [vmem:[%s264 + $0x150] sm:$0xff]
      %v384 = vld [vmem:[%s264 + $0x158] sm:$0xff]
      %v385 = vld [vmem:[%s264 + $0x160] sm:$0xff]
      %v386 = vld [vmem:[%s264 + $0x168] sm:$0xff]
      %v387 = vld [vmem:[%s264 + $0x170] sm:$0xff]
      %v388 = vld [vmem:[%s264 + $0x178] sm:$0xff]
      %v389 = vld [vmem:[%s264 + $0x180] sm:$0xff]
      %v390 = vld [vmem:[%s264 + $0x188] sm:$0xff]
      %v391 = vld [vmem:[%s264 + $0x190] sm:$0xff]
      %v392 = vld [vmem:[%s264 + $0x198] sm:$0xff]
      %v393 = vld [vmem:[%s264 + $0x1a0] sm:$0xff]
      %v394 = vld [vmem:[%s264 + $0x1a8] sm:$0xff]
      %v395 = vld [vmem:[%s264 + $0x1b0] sm:$0xff]
      %v396 = vld [vmem:[%s264 + $0x1b8] sm:$0xff]
      %v397 = vld [vmem:[%s264 + $0x1c0] sm:$0xff]
      %v398 = vld [vmem:[%s264 + $0x1c8] sm:$0xff]
      %v399 = vld [vmem:[%s264 + $0x1d0] sm:$0xff]
      %v400 = vld [vmem:[%s264 + $0x1d8] sm:$0xff]
      %v401 = vld [vmem:[%s264 + $0x1e0] sm:$0xff]
      %v402 = vld [vmem:[%s264 + $0x1e8] sm:$0xff]
      %v403 = vld [vmem:[%s264 + $0x1f0] sm:$0xff]
      %v404 = vld [vmem:[%s264 + $0x1f8] sm:$0xff]
      %v405 = vld [vmem:[%s264 + $0x200] sm:$0xff]
      %v406 = vld [vmem:[%s264 + $0x208] sm:$0xff]
      %v407 = vld [vmem:[%s264 + $0x210] sm:$0xff]
      %v408 = vld [vmem:[%s264 + $0x218] sm:$0xff]
      %v409 = vld [vmem:[%s264 + $0x220] sm:$0xff]
      %v410 = vld [vmem:[%s264 + $0x228] sm:$0xff]
      %v411 = vld [vmem:[%s264 + $0x230] sm:$0xff]
      %v412 = vld [vmem:[%s264 + $0x238] sm:$0xff]
      %v413 = vld [vmem:[%s264 + $0x240] sm:$0xff]
      %v414 = vld [vmem:[%s264 + $0x248] sm:$0xff]
      %v415 = vld [vmem:[%s264 + $0x250] sm:$0xff]
      %v416 = vld [vmem:[%s264 + $0x258] sm:$0xff]
      %v417 = vld [vmem:[%s264 + $0x260] sm:$0xff]
      %v418 = vld [vmem:[%s264 + $0x268] sm:$0xff]
      %v419 = vld [vmem:[%s264 + $0x270] sm:$0xff]
      %v420 = vld [vmem:[%s264 + $0x278] sm:$0xff]
      %v421 = vld [vmem:[%s264 + $0x280] sm:$0xff]
      %v422 = vld [vmem:[%s264 + $0x288] sm:$0xff]
      %v423 = vld [vmem:[%s264 + $0x290] sm:$0xff]
      %v424 = vld [vmem:[%s264 + $0x298] sm:$0xff]
      %v425 = vld [vmem:[%s264 + $0x2a0] sm:$0xff]
      %v426 = vld [vmem:[%s264 + $0x2a8] sm:$0xff]
      %v427 = vld [vmem:[%s264 + $0x2b0] sm:$0xff]
      %v428 = vld [vmem:[%s264 + $0x2b8] sm:$0xff]
      %v429 = vld [vmem:[%s264 + $0x2c0] sm:$0xff]
      %v430 = vld [vmem:[%s264 + $0x2c8] sm:$0xff]
      %v431 = vld [vmem:[%s264 + $0x2d0] sm:$0xff]
      %v432 = vld [vmem:[%s264 + $0x2d8] sm:$0xff]
      %v433 = vld [vmem:[%s264 + $0x2e0] sm:$0xff]
      %v434 = vld [vmem:[%s264 + $0x2e8] sm:$0xff]
      %v435 = vld [vmem:[%s264 + $0x2f0] sm:$0xff]
      %v436 = vld [vmem:[%s264 + $0x2f8] sm:$0xff]
      %v437 = vld [vmem:[%s264 + $0x300] sm:$0xff]
      %v438 = vld [vmem:[%s264 + $0x308] sm:$0xff]
      %v439 = vld [vmem:[%s264 + $0x310] sm:$0xff]
      %v440 = vld [vmem:[%s264 + $0x318] sm:$0xff]
      %v441 = vld [vmem:[%s264 + $0x320] sm:$0xff]
      %v442 = vld [vmem:[%s264 + $0x328] sm:$0xff]
      %v443 = vld [vmem:[%s264 + $0x330] sm:$0xff]
      %v444 = vld [vmem:[%s264 + $0x338] sm:$0xff]
      %v445 = vld [vmem:[%s264 + $0x340] sm:$0xff]
      %v446 = vld [vmem:[%s264 + $0x348] sm:$0xff]
      %v447 = vld [vmem:[%s264 + $0x350] sm:$0xff]
      %v448 = vld [vmem:[%s264 + $0x358] sm:$0xff]
      %v449 = vld [vmem:[%s264 + $0x360] sm:$0xff]
      %v450 = vld [vmem:[%s264 + $0x368] sm:$0xff]
      %v451 = vld [vmem:[%s264 + $0x370] sm:$0xff]
      %v452 = vld [vmem:[%s264 + $0x378] sm:$0xff]
      %v453 = vld [vmem:[%s264 + $0x380] sm:$0xff]
      %v454 = vld [vmem:[%s264 + $0x388] sm:$0xff]
      %v455 = vld [vmem:[%s264 + $0x390] sm:$0xff]
      %v456 = vld [vmem:[%s264 + $0x398] sm:$0xff]
      %v457 = vld [vmem:[%s264 + $0x3a0] sm:$0xff]
      %v458 = vld [vmem:[%s264 + $0x3a8] sm:$0xff]
      %v459 = vld [vmem:[%s264 + $0x3b0] sm:$0xff]
      %v460 = vld [vmem:[%s264 + $0x3b8] sm:$0xff]
      %v461 = vld [vmem:[%s264 + $0x3c0] sm:$0xff]
      %v462 = vld [vmem:[%s264 + $0x3c8] sm:$0xff]
      %v463 = vld [vmem:[%s264 + $0x3d0] sm:$0xff]
      %v464 = vld [vmem:[%s264 + $0x3d8] sm:$0xff]
      %v465 = vld [vmem:[%s264 + $0x3e0] sm:$0xff]
      %v466 = vld [vmem:[%s264 + $0x3e8] sm:$0xff]
      %v467 = vld [vmem:[%s264 + $0x3f0] sm:$0xff]
      %v468 = vld [vmem:[%s264 + $0x3f8] sm:$0xff]
      %v469 = vld [vmem:[%s2] sm:$0x3]
      %v471 = vperm.slane %v469, 0
      %v472 = vperm.slane %v469, 1
      %v539 = vunpack.c.l.b16 %v277
      %v540 = vunpack.c.h.b16 %v277
      %v541 = vunpack.c.l.b16 %v278
      %v542 = vunpack.c.h.b16 %v278
      %v543 = vunpack.c.l.b16 %v279
      %v544 = vunpack.c.h.b16 %v279
      %v545 = vunpack.c.l.b16 %v280
      %v546 = vunpack.c.h.b16 %v280
      %v547 = vunpack.c.l.b16 %v281
      %v548 = vunpack.c.h.b16 %v281
      %v549 = vunpack.c.l.b16 %v282
      %v550 = vunpack.c.h.b16 %v282
      %v551 = vunpack.c.l.b16 %v283
      %v552 = vunpack.c.h.b16 %v283
      %v553 = vunpack.c.l.b16 %v284
      %v554 = vunpack.c.h.b16 %v284
      %v555 = vunpack.c.l.b16 %v285
      %v556 = vunpack.c.h.b16 %v285
      %v557 = vunpack.c.l.b16 %v286
      %v558 = vunpack.c.h.b16 %v286
      %v559 = vunpack.c.l.b16 %v287
      %v560 = vunpack.c.h.b16 %v287
      %v561 = vunpack.c.l.b16 %v288
      %v562 = vunpack.c.h.b16 %v288
      %v563 = vunpack.c.l.b16 %v289
      %v564 = vunpack.c.h.b16 %v289
      %v565 = vunpack.c.l.b16 %v290
      %v566 = vunpack.c.h.b16 %v290
      %v567 = vunpack.c.l.b16 %v291
      %v568 = vunpack.c.h.b16 %v291
      %v569 = vunpack.c.l.b16 %v292
      %v570 = vunpack.c.h.b16 %v292
      %v571 = vunpack.c.l.b16 %v293
      %v572 = vunpack.c.h.b16 %v293
      %v573 = vunpack.c.l.b16 %v294
      %v574 = vunpack.c.h.b16 %v294
      %v575 = vunpack.c.l.b16 %v295
      %v576 = vunpack.c.h.b16 %v295
      %v577 = vunpack.c.l.b16 %v296
      %v578 = vunpack.c.h.b16 %v296
      %v579 = vunpack.c.l.b16 %v297
      %v580 = vunpack.c.h.b16 %v297
      %v581 = vunpack.c.l.b16 %v298
      %v582 = vunpack.c.h.b16 %v298
      %v583 = vunpack.c.l.b16 %v299
      %v584 = vunpack.c.h.b16 %v299
      %v585 = vunpack.c.l.b16 %v300
      %v586 = vunpack.c.h.b16 %v300
      %v587 = vunpack.c.l.b16 %v301
      %v588 = vunpack.c.h.b16 %v301
      %v589 = vunpack.c.l.b16 %v302
      %v590 = vunpack.c.h.b16 %v302
      %v591 = vunpack.c.l.b16 %v303
      %v592 = vunpack.c.h.b16 %v303
      %v593 = vunpack.c.l.b16 %v304
      %v594 = vunpack.c.h.b16 %v304
      %v595 = vunpack.c.l.b16 %v305
      %v596 = vunpack.c.h.b16 %v305
      %v597 = vunpack.c.l.b16 %v306
      %v598 = vunpack.c.h.b16 %v306
      %v599 = vunpack.c.l.b16 %v307
      %v600 = vunpack.c.h.b16 %v307
      %v601 = vunpack.c.l.b16 %v308
      %v602 = vunpack.c.h.b16 %v308
      %v603 = vunpack.c.l.b16 %v309
      %v604 = vunpack.c.h.b16 %v309
      %v605 = vunpack.c.l.b16 %v310
      %v606 = vunpack.c.h.b16 %v310
      %v607 = vunpack.c.l.b16 %v311
      %v608 = vunpack.c.h.b16 %v311
      %v609 = vunpack.c.l.b16 %v312
      %v610 = vunpack.c.h.b16 %v312
      %v611 = vunpack.c.l.b16 %v313
      %v612 = vunpack.c.h.b16 %v313
      %v613 = vunpack.c.l.b16 %v314
      %v614 = vunpack.c.h.b16 %v314
      %v615 = vunpack.c.l.b16 %v315
      %v616 = vunpack.c.h.b16 %v315
      %v617 = vunpack.c.l.b16 %v316
      %v618 = vunpack.c.h.b16 %v316
      %v619 = vunpack.c.l.b16 %v317
      %v620 = vunpack.c.h.b16 %v317
      %v621 = vunpack.c.l.b16 %v318
      %v622 = vunpack.c.h.b16 %v318
      %v623 = vunpack.c.l.b16 %v319
      %v624 = vunpack.c.h.b16 %v319
      %v625 = vunpack.c.l.b16 %v320
      %v626 = vunpack.c.h.b16 %v320
      %v627 = vunpack.c.l.b16 %v321
      %v628 = vunpack.c.h.b16 %v321
      %v629 = vunpack.c.l.b16 %v322
      %v630 = vunpack.c.h.b16 %v322
      %v631 = vunpack.c.l.b16 %v323
      %v632 = vunpack.c.h.b16 %v323
      %v633 = vunpack.c.l.b16 %v324
      %v634 = vunpack.c.h.b16 %v324
      %v635 = vunpack.c.l.b16 %v325
      %v636 = vunpack.c.h.b16 %v325
      %v637 = vunpack.c.l.b16 %v326
      %v638 = vunpack.c.h.b16 %v326
      %v639 = vunpack.c.l.b16 %v327
      %v640 = vunpack.c.h.b16 %v327
      %v641 = vunpack.c.l.b16 %v328
      %v642 = vunpack.c.h.b16 %v328
      %v643 = vunpack.c.l.b16 %v329
      %v644 = vunpack.c.h.b16 %v329
      %v645 = vunpack.c.l.b16 %v330
      %v646 = vunpack.c.h.b16 %v330
      %v647 = vunpack.c.l.b16 %v331
      %v648 = vunpack.c.h.b16 %v331
      %v649 = vunpack.c.l.b16 %v332
      %v650 = vunpack.c.h.b16 %v332
      %v651 = vunpack.c.l.b16 %v333
      %v652 = vunpack.c.h.b16 %v333
      %v653 = vunpack.c.l.b16 %v334
      %v654 = vunpack.c.h.b16 %v334
      %v655 = vunpack.c.l.b16 %v335
      %v656 = vunpack.c.h.b16 %v335
      %v657 = vunpack.c.l.b16 %v336
      %v658 = vunpack.c.h.b16 %v336
      %v659 = vunpack.c.l.b16 %v337
      %v660 = vunpack.c.h.b16 %v337
      %v661 = vunpack.c.l.b16 %v338
      %v662 = vunpack.c.h.b16 %v338
      %v663 = vunpack.c.l.b16 %v339
      %v664 = vunpack.c.h.b16 %v339
      %v665 = vunpack.c.l.b16 %v340
      %v666 = vunpack.c.h.b16 %v340
      %v667 = vpack.c.b16 %v547, %v539
      %v668 = vpack.c.b16 %v548, %v540
      %v669 = vpack.c.b16 %v549, %v541
      %v670 = vpack.c.b16 %v550, %v542
      %v671 = vpack.c.b16 %v551, %v543
      %v672 = vpack.c.b16 %v552, %v544
      %v673 = vpack.c.b16 %v553, %v545
      %v674 = vpack.c.b16 %v554, %v546
      %v675 = vpack.c.b16 %v563, %v555
      %v676 = vpack.c.b16 %v564, %v556
      %v677 = vpack.c.b16 %v565, %v557
      %v678 = vpack.c.b16 %v566, %v558
      %v679 = vpack.c.b16 %v567, %v559
      %v680 = vpack.c.b16 %v568, %v560
      %v681 = vpack.c.b16 %v569, %v561
      %v682 = vpack.c.b16 %v570, %v562
      %v683 = vpack.c.b16 %v579, %v571
      %v684 = vpack.c.b16 %v580, %v572
      %v685 = vpack.c.b16 %v581, %v573
      %v686 = vpack.c.b16 %v582, %v574
      %v687 = vpack.c.b16 %v583, %v575
      %v688 = vpack.c.b16 %v584, %v576
      %v689 = vpack.c.b16 %v585, %v577
      %v690 = vpack.c.b16 %v586, %v578
      %v691 = vpack.c.b16 %v595, %v587
      %v692 = vpack.c.b16 %v596, %v588
      %v693 = vpack.c.b16 %v597, %v589
      %v694 = vpack.c.b16 %v598, %v590
      %v695 = vpack.c.b16 %v599, %v591
      %v696 = vpack.c.b16 %v600, %v592
      %v697 = vpack.c.b16 %v601, %v593
      %v698 = vpack.c.b16 %v602, %v594
      %v699 = vpack.c.b16 %v611, %v603
      %v700 = vpack.c.b16 %v612, %v604
      %v701 = vpack.c.b16 %v613, %v605
      %v702 = vpack.c.b16 %v614, %v606
      %v703 = vpack.c.b16 %v615, %v607
      %v704 = vpack.c.b16 %v616, %v608
      %v705 = vpack.c.b16 %v617, %v609
      %v706 = vpack.c.b16 %v618, %v610
      %v707 = vpack.c.b16 %v627, %v619
      %v708 = vpack.c.b16 %v628, %v620
      %v709 = vpack.c.b16 %v629, %v621
      %v710 = vpack.c.b16 %v630, %v622
      %v711 = vpack.c.b16 %v631, %v623
      %v712 = vpack.c.b16 %v632, %v624
      %v713 = vpack.c.b16 %v633, %v625
      %v714 = vpack.c.b16 %v634, %v626
      %v715 = vpack.c.b16 %v643, %v635
      %v716 = vpack.c.b16 %v644, %v636
      %v717 = vpack.c.b16 %v645, %v637
      %v718 = vpack.c.b16 %v646, %v638
      %v719 = vpack.c.b16 %v647, %v639
      %v720 = vpack.c.b16 %v648, %v640
      %v721 = vpack.c.b16 %v649, %v641
      %v722 = vpack.c.b16 %v650, %v642
      %v723 = vpack.c.b16 %v659, %v651
      %v724 = vpack.c.b16 %v660, %v652
      %v725 = vpack.c.b16 %v661, %v653
      %v726 = vpack.c.b16 %v662, %v654
      %v727 = vpack.c.b16 %v663, %v655
      %v728 = vpack.c.b16 %v664, %v656
      %v729 = vpack.c.b16 %v665, %v657
      %v730 = vpack.c.b16 %v666, %v658
      %v923 = vunpack.c.l.b16 %v341
      %v924 = vunpack.c.h.b16 %v341
      %v925 = vunpack.c.l.b16 %v342
      %v926 = vunpack.c.h.b16 %v342
      %v927 = vunpack.c.l.b16 %v343
      %v928 = vunpack.c.h.b16 %v343
      %v929 = vunpack.c.l.b16 %v344
      %v930 = vunpack.c.h.b16 %v344
      %v931 = vunpack.c.l.b16 %v345
      %v932 = vunpack.c.h.b16 %v345
      %v933 = vunpack.c.l.b16 %v346
      %v934 = vunpack.c.h.b16 %v346
      %v935 = vunpack.c.l.b16 %v347
      %v936 = vunpack.c.h.b16 %v347
      %v937 = vunpack.c.l.b16 %v348
      %v938 = vunpack.c.h.b16 %v348
      %v939 = vunpack.c.l.b16 %v349
      %v940 = vunpack.c.h.b16 %v349
      %v941 = vunpack.c.l.b16 %v350
      %v942 = vunpack.c.h.b16 %v350
      %v943 = vunpack.c.l.b16 %v351
      %v944 = vunpack.c.h.b16 %v351
      %v945 = vunpack.c.l.b16 %v352
      %v946 = vunpack.c.h.b16 %v352
      %v947 = vunpack.c.l.b16 %v353
      %v948 = vunpack.c.h.b16 %v353
      %v949 = vunpack.c.l.b16 %v354
      %v950 = vunpack.c.h.b16 %v354
      %v951 = vunpack.c.l.b16 %v355
      %v952 = vunpack.c.h.b16 %v355
      %v953 = vunpack.c.l.b16 %v356
      %v954 = vunpack.c.h.b16 %v356
      %v955 = vunpack.c.l.b16 %v357
      %v956 = vunpack.c.h.b16 %v357
      %v957 = vunpack.c.l.b16 %v358
      %v958 = vunpack.c.h.b16 %v358
      %v959 = vunpack.c.l.b16 %v359
      %v960 = vunpack.c.h.b16 %v359
      %v961 = vunpack.c.l.b16 %v360
      %v962 = vunpack.c.h.b16 %v360
      %v963 = vunpack.c.l.b16 %v361
      %v964 = vunpack.c.h.b16 %v361
      %v965 = vunpack.c.l.b16 %v362
      %v966 = vunpack.c.h.b16 %v362
      %v967 = vunpack.c.l.b16 %v363
      %v968 = vunpack.c.h.b16 %v363
      %v969 = vunpack.c.l.b16 %v364
      %v970 = vunpack.c.h.b16 %v364
      %v971 = vunpack.c.l.b16 %v365
      %v972 = vunpack.c.h.b16 %v365
      %v973 = vunpack.c.l.b16 %v366
      %v974 = vunpack.c.h.b16 %v366
      %v975 = vunpack.c.l.b16 %v367
      %v976 = vunpack.c.h.b16 %v367
      %v977 = vunpack.c.l.b16 %v368
      %v978 = vunpack.c.h.b16 %v368
      %v979 = vunpack.c.l.b16 %v369
      %v980 = vunpack.c.h.b16 %v369
      %v981 = vunpack.c.l.b16 %v370
      %v982 = vunpack.c.h.b16 %v370
      %v983 = vunpack.c.l.b16 %v371
      %v984 = vunpack.c.h.b16 %v371
      %v985 = vunpack.c.l.b16 %v372
      %v986 = vunpack.c.h.b16 %v372
      %v987 = vunpack.c.l.b16 %v373
      %v988 = vunpack.c.h.b16 %v373
      %v989 = vunpack.c.l.b16 %v374
      %v990 = vunpack.c.h.b16 %v374
      %v991 = vunpack.c.l.b16 %v375
      %v992 = vunpack.c.h.b16 %v375
      %v993 = vunpack.c.l.b16 %v376
      %v994 = vunpack.c.h.b16 %v376
      %v995 = vunpack.c.l.b16 %v377
      %v996 = vunpack.c.h.b16 %v377
      %v997 = vunpack.c.l.b16 %v378
      %v998 = vunpack.c.h.b16 %v378
      %v999 = vunpack.c.l.b16 %v379
      %v1000 = vunpack.c.h.b16 %v379
      %v1001 = vunpack.c.l.b16 %v380
      %v1002 = vunpack.c.h.b16 %v380
      %v1003 = vunpack.c.l.b16 %v381
      %v1004 = vunpack.c.h.b16 %v381
      %v1005 = vunpack.c.l.b16 %v382
      %v1006 = vunpack.c.h.b16 %v382
      %v1007 = vunpack.c.l.b16 %v383
      %v1008 = vunpack.c.h.b16 %v383
      %v1009 = vunpack.c.l.b16 %v384
      %v1010 = vunpack.c.h.b16 %v384
      %v1011 = vunpack.c.l.b16 %v385
      %v1012 = vunpack.c.h.b16 %v385
      %v1013 = vunpack.c.l.b16 %v386
      %v1014 = vunpack.c.h.b16 %v386
      %v1015 = vunpack.c.l.b16 %v387
      %v1016 = vunpack.c.h.b16 %v387
      %v1017 = vunpack.c.l.b16 %v388
      %v1018 = vunpack.c.h.b16 %v388
      %v1019 = vunpack.c.l.b16 %v389
      %v1020 = vunpack.c.h.b16 %v389
      %v1021 = vunpack.c.l.b16 %v390
      %v1022 = vunpack.c.h.b16 %v390
      %v1023 = vunpack.c.l.b16 %v391
      %v1024 = vunpack.c.h.b16 %v391
      %v1025 = vunpack.c.l.b16 %v392
      %v1026 = vunpack.c.h.b16 %v392
      %v1027 = vunpack.c.l.b16 %v393
      %v1028 = vunpack.c.h.b16 %v393
      %v1029 = vunpack.c.l.b16 %v394
      %v1030 = vunpack.c.h.b16 %v394
      %v1031 = vunpack.c.l.b16 %v395
      %v1032 = vunpack.c.h.b16 %v395
      %v1033 = vunpack.c.l.b16 %v396
      %v1034 = vunpack.c.h.b16 %v396
      %v1035 = vunpack.c.l.b16 %v397
      %v1036 = vunpack.c.h.b16 %v397
      %v1037 = vunpack.c.l.b16 %v398
      %v1038 = vunpack.c.h.b16 %v398
      %v1039 = vunpack.c.l.b16 %v399
      %v1040 = vunpack.c.h.b16 %v399
      %v1041 = vunpack.c.l.b16 %v400
      %v1042 = vunpack.c.h.b16 %v400
      %v1043 = vunpack.c.l.b16 %v401
      %v1044 = vunpack.c.h.b16 %v401
      %v1045 = vunpack.c.l.b16 %v402
      %v1046 = vunpack.c.h.b16 %v402
      %v1047 = vunpack.c.l.b16 %v403
      %v1048 = vunpack.c.h.b16 %v403
      %v1049 = vunpack.c.l.b16 %v404
      %v1050 = vunpack.c.h.b16 %v404
      %v1051 = vunpack.c.l.b16 %v405
      %v1052 = vunpack.c.h.b16 %v405
      %v1053 = vunpack.c.l.b16 %v406
      %v1054 = vunpack.c.h.b16 %v406
      %v1055 = vunpack.c.l.b16 %v407
      %v1056 = vunpack.c.h.b16 %v407
      %v1057 = vunpack.c.l.b16 %v408
      %v1058 = vunpack.c.h.b16 %v408
      %v1059 = vunpack.c.l.b16 %v409
      %v1060 = vunpack.c.h.b16 %v409
      %v1061 = vunpack.c.l.b16 %v410
      %v1062 = vunpack.c.h.b16 %v410
      %v1063 = vunpack.c.l.b16 %v411
      %v1064 = vunpack.c.h.b16 %v411
      %v1065 = vunpack.c.l.b16 %v412
      %v1066 = vunpack.c.h.b16 %v412
      %v1067 = vunpack.c.l.b16 %v413
      %v1068 = vunpack.c.h.b16 %v413
      %v1069 = vunpack.c.l.b16 %v414
      %v1070 = vunpack.c.h.b16 %v414
      %v1071 = vunpack.c.l.b16 %v415
      %v1072 = vunpack.c.h.b16 %v415
      %v1073 = vunpack.c.l.b16 %v416
      %v1074 = vunpack.c.h.b16 %v416
      %v1075 = vunpack.c.l.b16 %v417
      %v1076 = vunpack.c.h.b16 %v417
      %v1077 = vunpack.c.l.b16 %v418
      %v1078 = vunpack.c.h.b16 %v418
      %v1079 = vunpack.c.l.b16 %v419
      %v1080 = vunpack.c.h.b16 %v419
      %v1081 = vunpack.c.l.b16 %v420
      %v1082 = vunpack.c.h.b16 %v420
      %v1083 = vunpack.c.l.b16 %v421
      %v1084 = vunpack.c.h.b16 %v421
      %v1085 = vunpack.c.l.b16 %v422
      %v1086 = vunpack.c.h.b16 %v422
      %v1087 = vunpack.c.l.b16 %v423
      %v1088 = vunpack.c.h.b16 %v423
      %v1089 = vunpack.c.l.b16 %v424
      %v1090 = vunpack.c.h.b16 %v424
      %v1091 = vunpack.c.l.b16 %v425
      %v1092 = vunpack.c.h.b16 %v425
      %v1093 = vunpack.c.l.b16 %v426
      %v1094 = vunpack.c.h.b16 %v426
      %v1095 = vunpack.c.l.b16 %v427
      %v1096 = vunpack.c.h.b16 %v427
      %v1097 = vunpack.c.l.b16 %v428
      %v1098 = vunpack.c.h.b16 %v428
      %v1099 = vunpack.c.l.b16 %v429
      %v1100 = vunpack.c.h.b16 %v429
      %v1101 = vunpack.c.l.b16 %v430
      %v1102 = vunpack.c.h.b16 %v430
      %v1103 = vunpack.c.l.b16 %v431
      %v1104 = vunpack.c.h.b16 %v431
      %v1105 = vunpack.c.l.b16 %v432
      %v1106 = vunpack.c.h.b16 %v432
      %v1107 = vunpack.c.l.b16 %v433
      %v1108 = vunpack.c.h.b16 %v433
      %v1109 = vunpack.c.l.b16 %v434
      %v1110 = vunpack.c.h.b16 %v434
      %v1111 = vunpack.c.l.b16 %v435
      %v1112 = vunpack.c.h.b16 %v435
      %v1113 = vunpack.c.l.b16 %v436
      %v1114 = vunpack.c.h.b16 %v436
      %v1115 = vunpack.c.l.b16 %v437
      %v1116 = vunpack.c.h.b16 %v437
      %v1117 = vunpack.c.l.b16 %v438
      %v1118 = vunpack.c.h.b16 %v438
      %v1119 = vunpack.c.l.b16 %v439
      %v1120 = vunpack.c.h.b16 %v439
      %v1121 = vunpack.c.l.b16 %v440
      %v1122 = vunpack.c.h.b16 %v440
      %v1123 = vunpack.c.l.b16 %v441
      %v1124 = vunpack.c.h.b16 %v441
      %v1125 = vunpack.c.l.b16 %v442
      %v1126 = vunpack.c.h.b16 %v442
      %v1127 = vunpack.c.l.b16 %v443
      %v1128 = vunpack.c.h.b16 %v443
      %v1129 = vunpack.c.l.b16 %v444
      %v1130 = vunpack.c.h.b16 %v444
      %v1131 = vunpack.c.l.b16 %v445
      %v1132 = vunpack.c.h.b16 %v445
      %v1133 = vunpack.c.l.b16 %v446
      %v1134 = vunpack.c.h.b16 %v446
      %v1135 = vunpack.c.l.b16 %v447
      %v1136 = vunpack.c.h.b16 %v447
      %v1137 = vunpack.c.l.b16 %v448
      %v1138 = vunpack.c.h.b16 %v448
      %v1139 = vunpack.c.l.b16 %v449
      %v1140 = vunpack.c.h.b16 %v449
      %v1141 = vunpack.c.l.b16 %v450
      %v1142 = vunpack.c.h.b16 %v450
      %v1143 = vunpack.c.l.b16 %v451
      %v1144 = vunpack.c.h.b16 %v451
      %v1145 = vunpack.c.l.b16 %v452
      %v1146 = vunpack.c.h.b16 %v452
      %v1147 = vunpack.c.l.b16 %v453
      %v1148 = vunpack.c.h.b16 %v453
      %v1149 = vunpack.c.l.b16 %v454
      %v1150 = vunpack.c.h.b16 %v454
      %v1151 = vunpack.c.l.b16 %v455
      %v1152 = vunpack.c.h.b16 %v455
      %v1153 = vunpack.c.l.b16 %v456
      %v1154 = vunpack.c.h.b16 %v456
      %v1155 = vunpack.c.l.b16 %v457
      %v1156 = vunpack.c.h.b16 %v457
      %v1157 = vunpack.c.l.b16 %v458
      %v1158 = vunpack.c.h.b16 %v458
      %v1159 = vunpack.c.l.b16 %v459
      %v1160 = vunpack.c.h.b16 %v459
      %v1161 = vunpack.c.l.b16 %v460
      %v1162 = vunpack.c.h.b16 %v460
      %v1163 = vunpack.c.l.b16 %v461
      %v1164 = vunpack.c.h.b16 %v461
      %v1165 = vunpack.c.l.b16 %v462
      %v1166 = vunpack.c.h.b16 %v462
      %v1167 = vunpack.c.l.b16 %v463
      %v1168 = vunpack.c.h.b16 %v463
      %v1169 = vunpack.c.l.b16 %v464
      %v1170 = vunpack.c.h.b16 %v464
      %v1171 = vunpack.c.l.b16 %v465
      %v1172 = vunpack.c.h.b16 %v465
      %v1173 = vunpack.c.l.b16 %v466
      %v1174 = vunpack.c.h.b16 %v466
      %v1175 = vunpack.c.l.b16 %v467
      %v1176 = vunpack.c.h.b16 %v467
      %v1177 = vunpack.c.l.b16 %v468
      %v1178 = vunpack.c.h.b16 %v468
      %v1179 = vpack.c.b16 %v925, %v923
      %v1180 = vpack.c.b16 %v926, %v924
      %v1181 = vpack.c.b16 %v929, %v927
      %v1182 = vpack.c.b16 %v930, %v928
      %v1183 = vpack.c.b16 %v933, %v931
      %v1184 = vpack.c.b16 %v934, %v932
      %v1185 = vpack.c.b16 %v937, %v935
      %v1186 = vpack.c.b16 %v938, %v936
      %v1187 = vpack.c.b16 %v941, %v939
      %v1188 = vpack.c.b16 %v942, %v940
      %v1189 = vpack.c.b16 %v945, %v943
      %v1190 = vpack.c.b16 %v946, %v944
      %v1191 = vpack.c.b16 %v949, %v947
      %v1192 = vpack.c.b16 %v950, %v948
      %v1193 = vpack.c.b16 %v953, %v951
      %v1194 = vpack.c.b16 %v954, %v952
      %v1195 = vpack.c.b16 %v957, %v955
      %v1196 = vpack.c.b16 %v958, %v956
      %v1197 = vpack.c.b16 %v961, %v959
      %v1198 = vpack.c.b16 %v962, %v960
      %v1199 = vpack.c.b16 %v965, %v963
      %v1200 = vpack.c.b16 %v966, %v964
      %v1201 = vpack.c.b16 %v969, %v967
      %v1202 = vpack.c.b16 %v970, %v968
      %v1203 = vpack.c.b16 %v973, %v971
      %v1204 = vpack.c.b16 %v974, %v972
      %v1205 = vpack.c.b16 %v977, %v975
      %v1206 = vpack.c.b16 %v978, %v976
      %v1207 = vpack.c.b16 %v981, %v979
      %v1208 = vpack.c.b16 %v982, %v980
      %v1209 = vpack.c.b16 %v985, %v983
      %v1210 = vpack.c.b16 %v986, %v984
      %v1211 = vpack.c.b16 %v989, %v987
      %v1212 = vpack.c.b16 %v990, %v988
      %v1213 = vpack.c.b16 %v993, %v991
      %v1214 = vpack.c.b16 %v994, %v992
      %v1215 = vpack.c.b16 %v997, %v995
      %v1216 = vpack.c.b16 %v998, %v996
      %v1217 = vpack.c.b16 %v1001, %v999
      %v1218 = vpack.c.b16 %v1002, %v1000
      %v1219 = vpack.c.b16 %v1005, %v1003
      %v1220 = vpack.c.b16 %v1006, %v1004
      %v1221 = vpack.c.b16 %v1009, %v1007
      %v1222 = vpack.c.b16 %v1010, %v1008
      %v1223 = vpack.c.b16 %v1013, %v1011
      %v1224 = vpack.c.b16 %v1014, %v1012
      %v1225 = vpack.c.b16 %v1017, %v1015
      %v1226 = vpack.c.b16 %v1018, %v1016
      %v1227 = vpack.c.b16 %v1021, %v1019
      %v1228 = vpack.c.b16 %v1022, %v1020
      %v1229 = vpack.c.b16 %v1025, %v1023
      %v1230 = vpack.c.b16 %v1026, %v1024
      %v1231 = vpack.c.b16 %v1029, %v1027
      %v1232 = vpack.c.b16 %v1030, %v1028
      %v1233 = vpack.c.b16 %v1033, %v1031
      %v1234 = vpack.c.b16 %v1034, %v1032
      %v1235 = vpack.c.b16 %v1037, %v1035
      %v1236 = vpack.c.b16 %v1038, %v1036
      %v1237 = vpack.c.b16 %v1041, %v1039
      %v1238 = vpack.c.b16 %v1042, %v1040
      %v1239 = vpack.c.b16 %v1045, %v1043
      %v1240 = vpack.c.b16 %v1046, %v1044
      %v1241 = vpack.c.b16 %v1049, %v1047
      %v1242 = vpack.c.b16 %v1050, %v1048
      %v1243 = vpack.c.b16 %v1053, %v1051
      %v1244 = vpack.c.b16 %v1054, %v1052
      %v1245 = vpack.c.b16 %v1057, %v1055
      %v1246 = vpack.c.b16 %v1058, %v1056
      %v1247 = vpack.c.b16 %v1061, %v1059
      %v1248 = vpack.c.b16 %v1062, %v1060
      %v1249 = vpack.c.b16 %v1065, %v1063
      %v1250 = vpack.c.b16 %v1066, %v1064
      %v1251 = vpack.c.b16 %v1069, %v1067
      %v1252 = vpack.c.b16 %v1070, %v1068
      %v1253 = vpack.c.b16 %v1073, %v1071
      %v1254 = vpack.c.b16 %v1074, %v1072
      %v1255 = vpack.c.b16 %v1077, %v1075
      %v1256 = vpack.c.b16 %v1078, %v1076
      %v1257 = vpack.c.b16 %v1081, %v1079
      %v1258 = vpack.c.b16 %v1082, %v1080
      %v1259 = vpack.c.b16 %v1085, %v1083
      %v1260 = vpack.c.b16 %v1086, %v1084
      %v1261 = vpack.c.b16 %v1089, %v1087
      %v1262 = vpack.c.b16 %v1090, %v1088
      %v1263 = vpack.c.b16 %v1093, %v1091
      %v1264 = vpack.c.b16 %v1094, %v1092
      %v1265 = vpack.c.b16 %v1097, %v1095
      %v1266 = vpack.c.b16 %v1098, %v1096
      %v1267 = vpack.c.b16 %v1101, %v1099
      %v1268 = vpack.c.b16 %v1102, %v1100
      %v1269 = vpack.c.b16 %v1105, %v1103
      %v1270 = vpack.c.b16 %v1106, %v1104
      %v1271 = vpack.c.b16 %v1109, %v1107
      %v1272 = vpack.c.b16 %v1110, %v1108
      %v1273 = vpack.c.b16 %v1113, %v1111
      %v1274 = vpack.c.b16 %v1114, %v1112
      %v1275 = vpack.c.b16 %v1117, %v1115
      %v1276 = vpack.c.b16 %v1118, %v1116
      %v1277 = vpack.c.b16 %v1121, %v1119
      %v1278 = vpack.c.b16 %v1122, %v1120
      %v1279 = vpack.c.b16 %v1125, %v1123
      %v1280 = vpack.c.b16 %v1126, %v1124
      %v1281 = vpack.c.b16 %v1129, %v1127
      %v1282 = vpack.c.b16 %v1130, %v1128
      %v1283 = vpack.c.b16 %v1133, %v1131
      %v1284 = vpack.c.b16 %v1134, %v1132
      %v1285 = vpack.c.b16 %v1137, %v1135
      %v1286 = vpack.c.b16 %v1138, %v1136
      %v1287 = vpack.c.b16 %v1141, %v1139
      %v1288 = vpack.c.b16 %v1142, %v1140
      %v1289 = vpack.c.b16 %v1145, %v1143
      %v1290 = vpack.c.b16 %v1146, %v1144
      %v1291 = vpack.c.b16 %v1149, %v1147
      %v1292 = vpack.c.b16 %v1150, %v1148
      %v1293 = vpack.c.b16 %v1153, %v1151
      %v1294 = vpack.c.b16 %v1154, %v1152
      %v1295 = vpack.c.b16 %v1157, %v1155
      %v1296 = vpack.c.b16 %v1158, %v1156
      %v1297 = vpack.c.b16 %v1161, %v1159
      %v1298 = vpack.c.b16 %v1162, %v1160
      %v1299 = vpack.c.b16 %v1165, %v1163
      %v1300 = vpack.c.b16 %v1166, %v1164
      %v1301 = vpack.c.b16 %v1169, %v1167
      %v1302 = vpack.c.b16 %v1170, %v1168
      %v1303 = vpack.c.b16 %v1173, %v1171
      %v1304 = vpack.c.b16 %v1174, %v1172
      %v1305 = vpack.c.b16 %v1177, %v1175
      %v1306 = vpack.c.b16 %v1178, %v1176
      %1435 = vmatpush.bf16.msra.mxu0 %v1193
      %1436 = vmatpush.bf16.msra.mxu0 %v1191
      %1437 = vmatpush.bf16.msra.mxu0 %v1189
      %1438 = vmatpush.bf16.msra.mxu0 %v1187
      %1439 = vmatpush.bf16.msra.mxu0 %v1185
      %1440 = vmatpush.bf16.msra.mxu0 %v1183
      %1441 = vmatpush.bf16.msra.mxu0 %v1181
      %1442 = vmatpush.bf16.msra.mxu0 %v1179
      %1443 = vmatmul.bf16.gmra.mxu0 %v667
      %v1444 = vpop.f32.mrf.mxu0
      %v1445 = vadd.f32 %v471, %v1444
      %v1446 = vpop.f32.mrf.mxu0
      %v1447 = vadd.f32 %v471, %v1446
      %1448 = vmatmul.bf16.gmra.mxu0 %v675
      %v1449 = vpop.f32.mrf.mxu0
      %v1450 = vadd.f32 %v471, %v1449
      %v1451 = vpop.f32.mrf.mxu0
      %v1452 = vadd.f32 %v471, %v1451
      %1453 = vmatmul.bf16.gmra.mxu0 %v683
      %v1454 = vpop.f32.mrf.mxu0
      %v1455 = vadd.f32 %v471, %v1454
      %v1456 = vpop.f32.mrf.mxu0
      %v1457 = vadd.f32 %v471, %v1456
      %1458 = vmatmul.bf16.gmra.mxu0 %v691
      %v1459 = vpop.f32.mrf.mxu0
      %v1460 = vadd.f32 %v471, %v1459
      %v1461 = vpop.f32.mrf.mxu0
      %v1462 = vadd.f32 %v471, %v1461
      %1463 = vmatmul.bf16.gmra.mxu0 %v699
      %v1464 = vpop.f32.mrf.mxu0
      %v1465 = vadd.f32 %v471, %v1464
      %v1466 = vpop.f32.mrf.mxu0
      %v1467 = vadd.f32 %v471, %v1466
      %1468 = vmatmul.bf16.gmra.mxu0 %v707
      %v1469 = vpop.f32.mrf.mxu0
      %v1470 = vadd.f32 %v471, %v1469
      %v1471 = vpop.f32.mrf.mxu0
      %v1472 = vadd.f32 %v471, %v1471
      %1473 = vmatmul.bf16.gmra.mxu0 %v715
      %v1474 = vpop.f32.mrf.mxu0
      %v1475 = vadd.f32 %v471, %v1474
      %v1476 = vpop.f32.mrf.mxu0
      %v1477 = vadd.f32 %v471, %v1476
      %1478 = vmatmul.bf16.gmra.mxu0 %v723
      %v1479 = vpop.f32.mrf.mxu0
      %v1480 = vadd.f32 %v471, %v1479
      %v1481 = vpop.f32.mrf.mxu0
      %v1482 = vadd.f32 %v471, %v1481
      %1483 = vdwg.mxu0
      %1484 = vmatpush.bf16.msra.mxu0 %v1209
      %1485 = vmatpush.bf16.msra.mxu0 %v1207
      %1486 = vmatpush.bf16.msra.mxu0 %v1205
      %1487 = vmatpush.bf16.msra.mxu0 %v1203
      %1488 = vmatpush.bf16.msra.mxu0 %v1201
      %1489 = vmatpush.bf16.msra.mxu0 %v1199
      %1490 = vmatpush.bf16.msra.mxu0 %v1197
      %1491 = vmatpush.bf16.msra.mxu0 %v1195
      %1492 = vmatmul.bf16.gmra.mxu0 %v668
      %v1493 = vpop.f32.mrf.mxu0
      %v1494 = vadd.f32 %v1445, %v1493
      %v1495 = vpop.f32.mrf.mxu0
      %v1496 = vadd.f32 %v1447, %v1495
      %1497 = vmatmul.bf16.gmra.mxu0 %v676
      %v1498 = vpop.f32.mrf.mxu0
      %v1499 = vadd.f32 %v1450, %v1498
      %v1500 = vpop.f32.mrf.mxu0
      %v1501 = vadd.f32 %v1452, %v1500
      %1502 = vmatmul.bf16.gmra.mxu0 %v684
      %v1503 = vpop.f32.mrf.mxu0
      %v1504 = vadd.f32 %v1455, %v1503
      %v1505 = vpop.f32.mrf.mxu0
      %v1506 = vadd.f32 %v1457, %v1505
      %1507 = vmatmul.bf16.gmra.mxu0 %v692
      %v1508 = vpop.f32.mrf.mxu0
      %v1509 = vadd.f32 %v1460, %v1508
      %v1510 = vpop.f32.mrf.mxu0
      %v1511 = vadd.f32 %v1462, %v1510
      %1512 = vmatmul.bf16.gmra.mxu0 %v700
      %v1513 = vpop.f32.mrf.mxu0
      %v1514 = vadd.f32 %v1465, %v1513
      %v1515 = vpop.f32.mrf.mxu0
      %v1516 = vadd.f32 %v1467, %v1515
      %1517 = vmatmul.bf16.gmra.mxu0 %v708
      %v1518 = vpop.f32.mrf.mxu0
      %v1519 = vadd.f32 %v1470, %v1518
      %v1520 = vpop.f32.mrf.mxu0
      %v1521 = vadd.f32 %v1472, %v1520
      %1522 = vmatmul.bf16.gmra.mxu0 %v716
      %v1523 = vpop.f32.mrf.mxu0
      %v1524 = vadd.f32 %v1475, %v1523
      %v1525 = vpop.f32.mrf.mxu0
      %v1526 = vadd.f32 %v1477, %v1525
      %1527 = vmatmul.bf16.gmra.mxu0 %v724
      %v1528 = vpop.f32.mrf.mxu0
      %v1529 = vadd.f32 %v1480, %v1528
      %v1530 = vpop.f32.mrf.mxu0
      %v1531 = vadd.f32 %v1482, %v1530
      %1532 = vdwg.mxu0
      %1533 = vmatpush.bf16.msra.mxu0 %v1225
      %1534 = vmatpush.bf16.msra.mxu0 %v1223
      %1535 = vmatpush.bf16.msra.mxu0 %v1221
      %1536 = vmatpush.bf16.msra.mxu0 %v1219
      %1537 = vmatpush.bf16.msra.mxu0 %v1217
      %1538 = vmatpush.bf16.msra.mxu0 %v1215
      %1539 = vmatpush.bf16.msra.mxu0 %v1213
      %1540 = vmatpush.bf16.msra.mxu0 %v1211
      %1541 = vmatmul.bf16.gmra.mxu0 %v669
      %v1542 = vpop.f32.mrf.mxu0
      %v1543 = vadd.f32 %v1494, %v1542
      %v1544 = vpop.f32.mrf.mxu0
      %v1545 = vadd.f32 %v1496, %v1544
      %1546 = vmatmul.bf16.gmra.mxu0 %v677
      %v1547 = vpop.f32.mrf.mxu0
      %v1548 = vadd.f32 %v1499, %v1547
      %v1549 = vpop.f32.mrf.mxu0
      %v1550 = vadd.f32 %v1501, %v1549
      %1551 = vmatmul.bf16.gmra.mxu0 %v685
      %v1552 = vpop.f32.mrf.mxu0
      %v1553 = vadd.f32 %v1504, %v1552
      %v1554 = vpop.f32.mrf.mxu0
      %v1555 = vadd.f32 %v1506, %v1554
      %1556 = vmatmul.bf16.gmra.mxu0 %v693
      %v1557 = vpop.f32.mrf.mxu0
      %v1558 = vadd.f32 %v1509, %v1557
      %v1559 = vpop.f32.mrf.mxu0
      %v1560 = vadd.f32 %v1511, %v1559
      %1561 = vmatmul.bf16.gmra.mxu0 %v701
      %v1562 = vpop.f32.mrf.mxu0
      %v1563 = vadd.f32 %v1514, %v1562
      %v1564 = vpop.f32.mrf.mxu0
      %v1565 = vadd.f32 %v1516, %v1564
      %1566 = vmatmul.bf16.gmra.mxu0 %v709
      %v1567 = vpop.f32.mrf.mxu0
      %v1568 = vadd.f32 %v1519, %v1567
      %v1569 = vpop.f32.mrf.mxu0
      %v1570 = vadd.f32 %v1521, %v1569
      %1571 = vmatmul.bf16.gmra.mxu0 %v717
      %v1572 = vpop.f32.mrf.mxu0
      %v1573 = vadd.f32 %v1524, %v1572
      %v1574 = vpop.f32.mrf.mxu0
      %v1575 = vadd.f32 %v1526, %v1574
      %1576 = vmatmul.bf16.gmra.mxu0 %v725
      %v1577 = vpop.f32.mrf.mxu0
      %v1578 = vadd.f32 %v1529, %v1577
      %v1579 = vpop.f32.mrf.mxu0
      %v1580 = vadd.f32 %v1531, %v1579
      %1581 = vdwg.mxu0
      %1582 = vmatpush.bf16.msra.mxu0 %v1241
      %1583 = vmatpush.bf16.msra.mxu0 %v1239
      %1584 = vmatpush.bf16.msra.mxu0 %v1237
      %1585 = vmatpush.bf16.msra.mxu0 %v1235
      %1586 = vmatpush.bf16.msra.mxu0 %v1233
      %1587 = vmatpush.bf16.msra.mxu0 %v1231
      %1588 = vmatpush.bf16.msra.mxu0 %v1229
      %1589 = vmatpush.bf16.msra.mxu0 %v1227
      %1590 = vmatmul.bf16.gmra.mxu0 %v670
      %v1591 = vpop.f32.mrf.mxu0
      %v1592 = vadd.f32 %v1543, %v1591
      %v1593 = vpop.f32.mrf.mxu0
      %v1594 = vadd.f32 %v1545, %v1593
      %1595 = vmatmul.bf16.gmra.mxu0 %v678
      %v1596 = vpop.f32.mrf.mxu0
      %v1597 = vadd.f32 %v1548, %v1596
      %v1598 = vpop.f32.mrf.mxu0
      %v1599 = vadd.f32 %v1550, %v1598
      %1600 = vmatmul.bf16.gmra.mxu0 %v686
      %v1601 = vpop.f32.mrf.mxu0
      %v1602 = vadd.f32 %v1553, %v1601
      %v1603 = vpop.f32.mrf.mxu0
      %v1604 = vadd.f32 %v1555, %v1603
      %1605 = vmatmul.bf16.gmra.mxu0 %v694
      %v1606 = vpop.f32.mrf.mxu0
      %v1607 = vadd.f32 %v1558, %v1606
      %v1608 = vpop.f32.mrf.mxu0
      %v1609 = vadd.f32 %v1560, %v1608
      %1610 = vmatmul.bf16.gmra.mxu0 %v702
      %v1611 = vpop.f32.mrf.mxu0
      %v1612 = vadd.f32 %v1563, %v1611
      %v1613 = vpop.f32.mrf.mxu0
      %v1614 = vadd.f32 %v1565, %v1613
      %1615 = vmatmul.bf16.gmra.mxu0 %v710
      %v1616 = vpop.f32.mrf.mxu0
      %v1617 = vadd.f32 %v1568, %v1616
      %v1618 = vpop.f32.mrf.mxu0
      %v1619 = vadd.f32 %v1570, %v1618
      %1620 = vmatmul.bf16.gmra.mxu0 %v718
      %v1621 = vpop.f32.mrf.mxu0
      %v1622 = vadd.f32 %v1573, %v1621
      %v1623 = vpop.f32.mrf.mxu0
      %v1624 = vadd.f32 %v1575, %v1623
      %1625 = vmatmul.bf16.gmra.mxu0 %v726
      %v1626 = vpop.f32.mrf.mxu0
      %v1627 = vadd.f32 %v1578, %v1626
      %v1628 = vpop.f32.mrf.mxu0
      %v1629 = vadd.f32 %v1580, %v1628
      %1630 = vdwg.mxu0
      %1631 = vmatpush.bf16.msra.mxu0 %v1257
      %1632 = vmatpush.bf16.msra.mxu0 %v1255
      %1633 = vmatpush.bf16.msra.mxu0 %v1253
      %1634 = vmatpush.bf16.msra.mxu0 %v1251
      %1635 = vmatpush.bf16.msra.mxu0 %v1249
      %1636 = vmatpush.bf16.msra.mxu0 %v1247
      %1637 = vmatpush.bf16.msra.mxu0 %v1245
      %1638 = vmatpush.bf16.msra.mxu0 %v1243
      %1639 = vmatmul.bf16.gmra.mxu0 %v671
      %v1640 = vpop.f32.mrf.mxu0
      %v1641 = vadd.f32 %v1592, %v1640
      %v1642 = vpop.f32.mrf.mxu0
      %v1643 = vadd.f32 %v1594, %v1642
      %1644 = vmatmul.bf16.gmra.mxu0 %v679
      %v1645 = vpop.f32.mrf.mxu0
      %v1646 = vadd.f32 %v1597, %v1645
      %v1647 = vpop.f32.mrf.mxu0
      %v1648 = vadd.f32 %v1599, %v1647
      %1649 = vmatmul.bf16.gmra.mxu0 %v687
      %v1650 = vpop.f32.mrf.mxu0
      %v1651 = vadd.f32 %v1602, %v1650
      %v1652 = vpop.f32.mrf.mxu0
      %v1653 = vadd.f32 %v1604, %v1652
      %1654 = vmatmul.bf16.gmra.mxu0 %v695
      %v1655 = vpop.f32.mrf.mxu0
      %v1656 = vadd.f32 %v1607, %v1655
      %v1657 = vpop.f32.mrf.mxu0
      %v1658 = vadd.f32 %v1609, %v1657
      %1659 = vmatmul.bf16.gmra.mxu0 %v703
      %v1660 = vpop.f32.mrf.mxu0
      %v1661 = vadd.f32 %v1612, %v1660
      %v1662 = vpop.f32.mrf.mxu0
      %v1663 = vadd.f32 %v1614, %v1662
      %1664 = vmatmul.bf16.gmra.mxu0 %v711
      %v1665 = vpop.f32.mrf.mxu0
      %v1666 = vadd.f32 %v1617, %v1665
      %v1667 = vpop.f32.mrf.mxu0
      %v1668 = vadd.f32 %v1619, %v1667
      %1669 = vmatmul.bf16.gmra.mxu0 %v719
      %v1670 = vpop.f32.mrf.mxu0
      %v1671 = vadd.f32 %v1622, %v1670
      %v1672 = vpop.f32.mrf.mxu0
      %v1673 = vadd.f32 %v1624, %v1672
      %1674 = vmatmul.bf16.gmra.mxu0 %v727
      %v1675 = vpop.f32.mrf.mxu0
      %v1676 = vadd.f32 %v1627, %v1675
      %v1677 = vpop.f32.mrf.mxu0
      %v1678 = vadd.f32 %v1629, %v1677
      %1679 = vdwg.mxu0
      %1680 = vmatpush.bf16.msra.mxu0 %v1273
      %1681 = vmatpush.bf16.msra.mxu0 %v1271
      %1682 = vmatpush.bf16.msra.mxu0 %v1269
      %1683 = vmatpush.bf16.msra.mxu0 %v1267
      %1684 = vmatpush.bf16.msra.mxu0 %v1265
      %1685 = vmatpush.bf16.msra.mxu0 %v1263
      %1686 = vmatpush.bf16.msra.mxu0 %v1261
      %1687 = vmatpush.bf16.msra.mxu0 %v1259
      %1688 = vmatmul.bf16.gmra.mxu0 %v672
      %v1689 = vpop.f32.mrf.mxu0
      %v1690 = vadd.f32 %v1641, %v1689
      %v1691 = vpop.f32.mrf.mxu0
      %v1692 = vadd.f32 %v1643, %v1691
      %1693 = vmatmul.bf16.gmra.mxu0 %v680
      %v1694 = vpop.f32.mrf.mxu0
      %v1695 = vadd.f32 %v1646, %v1694
      %v1696 = vpop.f32.mrf.mxu0
      %v1697 = vadd.f32 %v1648, %v1696
      %1698 = vmatmul.bf16.gmra.mxu0 %v688
      %v1699 = vpop.f32.mrf.mxu0
      %v1700 = vadd.f32 %v1651, %v1699
      %v1701 = vpop.f32.mrf.mxu0
      %v1702 = vadd.f32 %v1653, %v1701
      %1703 = vmatmul.bf16.gmra.mxu0 %v696
      %v1704 = vpop.f32.mrf.mxu0
      %v1705 = vadd.f32 %v1656, %v1704
      %v1706 = vpop.f32.mrf.mxu0
      %v1707 = vadd.f32 %v1658, %v1706
      %1708 = vmatmul.bf16.gmra.mxu0 %v704
      %v1709 = vpop.f32.mrf.mxu0
      %v1710 = vadd.f32 %v1661, %v1709
      %v1711 = vpop.f32.mrf.mxu0
      %v1712 = vadd.f32 %v1663, %v1711
      %1713 = vmatmul.bf16.gmra.mxu0 %v712
      %v1714 = vpop.f32.mrf.mxu0
      %v1715 = vadd.f32 %v1666, %v1714
      %v1716 = vpop.f32.mrf.mxu0
      %v1717 = vadd.f32 %v1668, %v1716
      %1718 = vmatmul.bf16.gmra.mxu0 %v720
      %v1719 = vpop.f32.mrf.mxu0
      %v1720 = vadd.f32 %v1671, %v1719
      %v1721 = vpop.f32.mrf.mxu0
      %v1722 = vadd.f32 %v1673, %v1721
      %1723 = vmatmul.bf16.gmra.mxu0 %v728
      %v1724 = vpop.f32.mrf.mxu0
      %v1725 = vadd.f32 %v1676, %v1724
      %v1726 = vpop.f32.mrf.mxu0
      %v1727 = vadd.f32 %v1678, %v1726
      %1728 = vdwg.mxu0
      %1729 = vmatpush.bf16.msra.mxu0 %v1289
      %1730 = vmatpush.bf16.msra.mxu0 %v1287
      %1731 = vmatpush.bf16.msra.mxu0 %v1285
      %1732 = vmatpush.bf16.msra.mxu0 %v1283
      %1733 = vmatpush.bf16.msra.mxu0 %v1281
      %1734 = vmatpush.bf16.msra.mxu0 %v1279
      %1735 = vmatpush.bf16.msra.mxu0 %v1277
      %1736 = vmatpush.bf16.msra.mxu0 %v1275
      %1737 = vmatmul.bf16.gmra.mxu0 %v673
      %v1738 = vpop.f32.mrf.mxu0
      %v1739 = vadd.f32 %v1690, %v1738
      %v1740 = vpop.f32.mrf.mxu0
      %v1741 = vadd.f32 %v1692, %v1740
      %1742 = vmatmul.bf16.gmra.mxu0 %v681
      %v1743 = vpop.f32.mrf.mxu0
      %v1744 = vadd.f32 %v1695, %v1743
      %v1745 = vpop.f32.mrf.mxu0
      %v1746 = vadd.f32 %v1697, %v1745
      %1747 = vmatmul.bf16.gmra.mxu0 %v689
      %v1748 = vpop.f32.mrf.mxu0
      %v1749 = vadd.f32 %v1700, %v1748
      %v1750 = vpop.f32.mrf.mxu0
      %v1751 = vadd.f32 %v1702, %v1750
      %1752 = vmatmul.bf16.gmra.mxu0 %v697
      %v1753 = vpop.f32.mrf.mxu0
      %v1754 = vadd.f32 %v1705, %v1753
      %v1755 = vpop.f32.mrf.mxu0
      %v1756 = vadd.f32 %v1707, %v1755
      %1757 = vmatmul.bf16.gmra.mxu0 %v705
      %v1758 = vpop.f32.mrf.mxu0
      %v1759 = vadd.f32 %v1710, %v1758
      %v1760 = vpop.f32.mrf.mxu0
      %v1761 = vadd.f32 %v1712, %v1760
      %1762 = vmatmul.bf16.gmra.mxu0 %v713
      %v1763 = vpop.f32.mrf.mxu0
      %v1764 = vadd.f32 %v1715, %v1763
      %v1765 = vpop.f32.mrf.mxu0
      %v1766 = vadd.f32 %v1717, %v1765
      %1767 = vmatmul.bf16.gmra.mxu0 %v721
      %v1768 = vpop.f32.mrf.mxu0
      %v1769 = vadd.f32 %v1720, %v1768
      %v1770 = vpop.f32.mrf.mxu0
      %v1771 = vadd.f32 %v1722, %v1770
      %1772 = vmatmul.bf16.gmra.mxu0 %v729
      %v1773 = vpop.f32.mrf.mxu0
      %v1774 = vadd.f32 %v1725, %v1773
      %v1775 = vpop.f32.mrf.mxu0
      %v1776 = vadd.f32 %v1727, %v1775
      %1777 = vdwg.mxu0
      %1778 = vmatpush.bf16.msra.mxu0 %v1305
      %1779 = vmatpush.bf16.msra.mxu0 %v1303
      %1780 = vmatpush.bf16.msra.mxu0 %v1301
      %1781 = vmatpush.bf16.msra.mxu0 %v1299
      %1782 = vmatpush.bf16.msra.mxu0 %v1297
      %1783 = vmatpush.bf16.msra.mxu0 %v1295
      %1784 = vmatpush.bf16.msra.mxu0 %v1293
      %1785 = vmatpush.bf16.msra.mxu0 %v1291
      %1786 = vmatmul.bf16.gmra.mxu0 %v674
      %v1787 = vpop.f32.mrf.mxu0
      %v1788 = vadd.f32 %v1739, %v1787
      %v1789 = vpop.f32.mrf.mxu0
      %v1790 = vadd.f32 %v1741, %v1789
      %1791 = vmatmul.bf16.gmra.mxu0 %v682
      %v1792 = vpop.f32.mrf.mxu0
      %v1793 = vadd.f32 %v1744, %v1792
      %v1794 = vpop.f32.mrf.mxu0
      %v1795 = vadd.f32 %v1746, %v1794
      %1796 = vmatmul.bf16.gmra.mxu0 %v690
      %v1797 = vpop.f32.mrf.mxu0
      %v1798 = vadd.f32 %v1749, %v1797
      %v1799 = vpop.f32.mrf.mxu0
      %v1800 = vadd.f32 %v1751, %v1799
      %1801 = vmatmul.bf16.gmra.mxu0 %v698
      %v1802 = vpop.f32.mrf.mxu0
      %v1803 = vadd.f32 %v1754, %v1802
      %v1804 = vpop.f32.mrf.mxu0
      %v1805 = vadd.f32 %v1756, %v1804
      %1806 = vmatmul.bf16.gmra.mxu0 %v706
      %v1807 = vpop.f32.mrf.mxu0
      %v1808 = vadd.f32 %v1759, %v1807
      %v1809 = vpop.f32.mrf.mxu0
      %v1810 = vadd.f32 %v1761, %v1809
      %1811 = vmatmul.bf16.gmra.mxu0 %v714
      %v1812 = vpop.f32.mrf.mxu0
      %v1813 = vadd.f32 %v1764, %v1812
      %v1814 = vpop.f32.mrf.mxu0
      %v1815 = vadd.f32 %v1766, %v1814
      %1816 = vmatmul.bf16.gmra.mxu0 %v722
      %v1817 = vpop.f32.mrf.mxu0
      %v1818 = vadd.f32 %v1769, %v1817
      %v1819 = vpop.f32.mrf.mxu0
      %v1820 = vadd.f32 %v1771, %v1819
      %1821 = vmatmul.bf16.gmra.mxu0 %v730
      %v1822 = vpop.f32.mrf.mxu0
      %v1823 = vadd.f32 %v1774, %v1822
      %v1824 = vpop.f32.mrf.mxu0
      %v1825 = vadd.f32 %v1776, %v1824
      %1826 = vdwg.mxu0
      %1827 = vmatpush.bf16.msra.mxu0 %v1194
      %1828 = vmatpush.bf16.msra.mxu0 %v1192
      %1829 = vmatpush.bf16.msra.mxu0 %v1190
      %1830 = vmatpush.bf16.msra.mxu0 %v1188
      %1831 = vmatpush.bf16.msra.mxu0 %v1186
      %1832 = vmatpush.bf16.msra.mxu0 %v1184
      %1833 = vmatpush.bf16.msra.mxu0 %v1182
      %1834 = vmatpush.bf16.msra.mxu0 %v1180
      %1835 = vmatmul.bf16.gmra.mxu0 %v667
      %v1836 = vpop.f32.mrf.mxu0
      %v1837 = vadd.f32 %v472, %v1836
      %v1838 = vpop.f32.mrf.mxu0
      %v1839 = vadd.f32 %v472, %v1838
      %1840 = vmatmul.bf16.gmra.mxu0 %v675
      %v1841 = vpop.f32.mrf.mxu0
      %v1842 = vadd.f32 %v472, %v1841
      %v1843 = vpop.f32.mrf.mxu0
      %v1844 = vadd.f32 %v472, %v1843
      %1845 = vmatmul.bf16.gmra.mxu0 %v683
      %v1846 = vpop.f32.mrf.mxu0
      %v1847 = vadd.f32 %v472, %v1846
      %v1848 = vpop.f32.mrf.mxu0
      %v1849 = vadd.f32 %v472, %v1848
      %1850 = vmatmul.bf16.gmra.mxu0 %v691
      %v1851 = vpop.f32.mrf.mxu0
      %v1852 = vadd.f32 %v472, %v1851
      %v1853 = vpop.f32.mrf.mxu0
      %v1854 = vadd.f32 %v472, %v1853
      %1855 = vmatmul.bf16.gmra.mxu0 %v699
      %v1856 = vpop.f32.mrf.mxu0
      %v1857 = vadd.f32 %v472, %v1856
      %v1858 = vpop.f32.mrf.mxu0
      %v1859 = vadd.f32 %v472, %v1858
      %1860 = vmatmul.bf16.gmra.mxu0 %v707
      %v1861 = vpop.f32.mrf.mxu0
      %v1862 = vadd.f32 %v472, %v1861
      %v1863 = vpop.f32.mrf.mxu0
      %v1864 = vadd.f32 %v472, %v1863
      %1865 = vmatmul.bf16.gmra.mxu0 %v715
      %v1866 = vpop.f32.mrf.mxu0
      %v1867 = vadd.f32 %v472, %v1866
      %v1868 = vpop.f32.mrf.mxu0
      %v1869 = vadd.f32 %v472, %v1868
      %1870 = vmatmul.bf16.gmra.mxu0 %v723
      %v1871 = vpop.f32.mrf.mxu0
      %v1872 = vadd.f32 %v472, %v1871
      %v1873 = vpop.f32.mrf.mxu0
      %v1874 = vadd.f32 %v472, %v1873
      %1875 = vdwg.mxu0
      %1876 = vmatpush.bf16.msra.mxu0 %v1210
      %1877 = vmatpush.bf16.msra.mxu0 %v1208
      %1878 = vmatpush.bf16.msra.mxu0 %v1206
      %1879 = vmatpush.bf16.msra.mxu0 %v1204
      %1880 = vmatpush.bf16.msra.mxu0 %v1202
      %1881 = vmatpush.bf16.msra.mxu0 %v1200
      %1882 = vmatpush.bf16.msra.mxu0 %v1198
      %1883 = vmatpush.bf16.msra.mxu0 %v1196
      %1884 = vmatmul.bf16.gmra.mxu0 %v668
      %v1885 = vpop.f32.mrf.mxu0
      %v1886 = vadd.f32 %v1837, %v1885
      %v1887 = vpop.f32.mrf.mxu0
      %v1888 = vadd.f32 %v1839, %v1887
      %1889 = vmatmul.bf16.gmra.mxu0 %v676
      %v1890 = vpop.f32.mrf.mxu0
      %v1891 = vadd.f32 %v1842, %v1890
      %v1892 = vpop.f32.mrf.mxu0
      %v1893 = vadd.f32 %v1844, %v1892
      %1894 = vmatmul.bf16.gmra.mxu0 %v684
      %v1895 = vpop.f32.mrf.mxu0
      %v1896 = vadd.f32 %v1847, %v1895
      %v1897 = vpop.f32.mrf.mxu0
      %v1898 = vadd.f32 %v1849, %v1897
      %1899 = vmatmul.bf16.gmra.mxu0 %v692
      %v1900 = vpop.f32.mrf.mxu0
      %v1901 = vadd.f32 %v1852, %v1900
      %v1902 = vpop.f32.mrf.mxu0
      %v1903 = vadd.f32 %v1854, %v1902
      %1904 = vmatmul.bf16.gmra.mxu0 %v700
      %v1905 = vpop.f32.mrf.mxu0
      %v1906 = vadd.f32 %v1857, %v1905
      %v1907 = vpop.f32.mrf.mxu0
      %v1908 = vadd.f32 %v1859, %v1907
      %1909 = vmatmul.bf16.gmra.mxu0 %v708
      %v1910 = vpop.f32.mrf.mxu0
      %v1911 = vadd.f32 %v1862, %v1910
      %v1912 = vpop.f32.mrf.mxu0
      %v1913 = vadd.f32 %v1864, %v1912
      %1914 = vmatmul.bf16.gmra.mxu0 %v716
      %v1915 = vpop.f32.mrf.mxu0
      %v1916 = vadd.f32 %v1867, %v1915
      %v1917 = vpop.f32.mrf.mxu0
      %v1918 = vadd.f32 %v1869, %v1917
      %1919 = vmatmul.bf16.gmra.mxu0 %v724
      %v1920 = vpop.f32.mrf.mxu0
      %v1921 = vadd.f32 %v1872, %v1920
      %v1922 = vpop.f32.mrf.mxu0
      %v1923 = vadd.f32 %v1874, %v1922
      %1924 = vdwg.mxu0
      %1925 = vmatpush.bf16.msra.mxu0 %v1226
      %1926 = vmatpush.bf16.msra.mxu0 %v1224
      %1927 = vmatpush.bf16.msra.mxu0 %v1222
      %1928 = vmatpush.bf16.msra.mxu0 %v1220
      %1929 = vmatpush.bf16.msra.mxu0 %v1218
      %1930 = vmatpush.bf16.msra.mxu0 %v1216
      %1931 = vmatpush.bf16.msra.mxu0 %v1214
      %1932 = vmatpush.bf16.msra.mxu0 %v1212
      %1933 = vmatmul.bf16.gmra.mxu0 %v669
      %v1934 = vpop.f32.mrf.mxu0
      %v1935 = vadd.f32 %v1886, %v1934
      %v1936 = vpop.f32.mrf.mxu0
      %v1937 = vadd.f32 %v1888, %v1936
      %1938 = vmatmul.bf16.gmra.mxu0 %v677
      %v1939 = vpop.f32.mrf.mxu0
      %v1940 = vadd.f32 %v1891, %v1939
      %v1941 = vpop.f32.mrf.mxu0
      %v1942 = vadd.f32 %v1893, %v1941
      %1943 = vmatmul.bf16.gmra.mxu0 %v685
      %v1944 = vpop.f32.mrf.mxu0
      %v1945 = vadd.f32 %v1896, %v1944
      %v1946 = vpop.f32.mrf.mxu0
      %v1947 = vadd.f32 %v1898, %v1946
      %1948 = vmatmul.bf16.gmra.mxu0 %v693
      %v1949 = vpop.f32.mrf.mxu0
      %v1950 = vadd.f32 %v1901, %v1949
      %v1951 = vpop.f32.mrf.mxu0
      %v1952 = vadd.f32 %v1903, %v1951
      %1953 = vmatmul.bf16.gmra.mxu0 %v701
      %v1954 = vpop.f32.mrf.mxu0
      %v1955 = vadd.f32 %v1906, %v1954
      %v1956 = vpop.f32.mrf.mxu0
      %v1957 = vadd.f32 %v1908, %v1956
      %1958 = vmatmul.bf16.gmra.mxu0 %v709
      %v1959 = vpop.f32.mrf.mxu0
      %v1960 = vadd.f32 %v1911, %v1959
      %v1961 = vpop.f32.mrf.mxu0
      %v1962 = vadd.f32 %v1913, %v1961
      %1963 = vmatmul.bf16.gmra.mxu0 %v717
      %v1964 = vpop.f32.mrf.mxu0
      %v1965 = vadd.f32 %v1916, %v1964
      %v1966 = vpop.f32.mrf.mxu0
      %v1967 = vadd.f32 %v1918, %v1966
      %1968 = vmatmul.bf16.gmra.mxu0 %v725
      %v1969 = vpop.f32.mrf.mxu0
      %v1970 = vadd.f32 %v1921, %v1969
      %v1971 = vpop.f32.mrf.mxu0
      %v1972 = vadd.f32 %v1923, %v1971
      %1973 = vdwg.mxu0
      %1974 = vmatpush.bf16.msra.mxu0 %v1242
      %1975 = vmatpush.bf16.msra.mxu0 %v1240
      %1976 = vmatpush.bf16.msra.mxu0 %v1238
      %1977 = vmatpush.bf16.msra.mxu0 %v1236
      %1978 = vmatpush.bf16.msra.mxu0 %v1234
      %1979 = vmatpush.bf16.msra.mxu0 %v1232
      %1980 = vmatpush.bf16.msra.mxu0 %v1230
      %1981 = vmatpush.bf16.msra.mxu0 %v1228
      %1982 = vmatmul.bf16.gmra.mxu0 %v670
      %v1983 = vpop.f32.mrf.mxu0
      %v1984 = vadd.f32 %v1935, %v1983
      %v1985 = vpop.f32.mrf.mxu0
      %v1986 = vadd.f32 %v1937, %v1985
      %1987 = vmatmul.bf16.gmra.mxu0 %v678
      %v1988 = vpop.f32.mrf.mxu0
      %v1989 = vadd.f32 %v1940, %v1988
      %v1990 = vpop.f32.mrf.mxu0
      %v1991 = vadd.f32 %v1942, %v1990
      %1992 = vmatmul.bf16.gmra.mxu0 %v686
      %v1993 = vpop.f32.mrf.mxu0
      %v1994 = vadd.f32 %v1945, %v1993
      %v1995 = vpop.f32.mrf.mxu0
      %v1996 = vadd.f32 %v1947, %v1995
      %1997 = vmatmul.bf16.gmra.mxu0 %v694
      %v1998 = vpop.f32.mrf.mxu0
      %v1999 = vadd.f32 %v1950, %v1998
      %v2000 = vpop.f32.mrf.mxu0
      %v2001 = vadd.f32 %v1952, %v2000
      %2002 = vmatmul.bf16.gmra.mxu0 %v702
      %v2003 = vpop.f32.mrf.mxu0
      %v2004 = vadd.f32 %v1955, %v2003
      %v2005 = vpop.f32.mrf.mxu0
      %v2006 = vadd.f32 %v1957, %v2005
      %2007 = vmatmul.bf16.gmra.mxu0 %v710
      %v2008 = vpop.f32.mrf.mxu0
      %v2009 = vadd.f32 %v1960, %v2008
      %v2010 = vpop.f32.mrf.mxu0
      %v2011 = vadd.f32 %v1962, %v2010
      %2012 = vmatmul.bf16.gmra.mxu0 %v718
      %v2013 = vpop.f32.mrf.mxu0
      %v2014 = vadd.f32 %v1965, %v2013
      %v2015 = vpop.f32.mrf.mxu0
      %v2016 = vadd.f32 %v1967, %v2015
      %2017 = vmatmul.bf16.gmra.mxu0 %v726
      %v2018 = vpop.f32.mrf.mxu0
      %v2019 = vadd.f32 %v1970, %v2018
      %v2020 = vpop.f32.mrf.mxu0
      %v2021 = vadd.f32 %v1972, %v2020
      %2022 = vdwg.mxu0
      %2023 = vmatpush.bf16.msra.mxu0 %v1258
      %2024 = vmatpush.bf16.msra.mxu0 %v1256
      %2025 = vmatpush.bf16.msra.mxu0 %v1254
      %2026 = vmatpush.bf16.msra.mxu0 %v1252
      %2027 = vmatpush.bf16.msra.mxu0 %v1250
      %2028 = vmatpush.bf16.msra.mxu0 %v1248
      %2029 = vmatpush.bf16.msra.mxu0 %v1246
      %2030 = vmatpush.bf16.msra.mxu0 %v1244
      %2031 = vmatmul.bf16.gmra.mxu0 %v671
      %v2032 = vpop.f32.mrf.mxu0
      %v2033 = vadd.f32 %v1984, %v2032
      %v2034 = vpop.f32.mrf.mxu0
      %v2035 = vadd.f32 %v1986, %v2034
      %2036 = vmatmul.bf16.gmra.mxu0 %v679
      %v2037 = vpop.f32.mrf.mxu0
      %v2038 = vadd.f32 %v1989, %v2037
      %v2039 = vpop.f32.mrf.mxu0
      %v2040 = vadd.f32 %v1991, %v2039
      %2041 = vmatmul.bf16.gmra.mxu0 %v687
      %v2042 = vpop.f32.mrf.mxu0
      %v2043 = vadd.f32 %v1994, %v2042
      %v2044 = vpop.f32.mrf.mxu0
      %v2045 = vadd.f32 %v1996, %v2044
      %2046 = vmatmul.bf16.gmra.mxu0 %v695
      %v2047 = vpop.f32.mrf.mxu0
      %v2048 = vadd.f32 %v1999, %v2047
      %v2049 = vpop.f32.mrf.mxu0
      %v2050 = vadd.f32 %v2001, %v2049
      %2051 = vmatmul.bf16.gmra.mxu0 %v703
      %v2052 = vpop.f32.mrf.mxu0
      %v2053 = vadd.f32 %v2004, %v2052
      %v2054 = vpop.f32.mrf.mxu0
      %v2055 = vadd.f32 %v2006, %v2054
      %2056 = vmatmul.bf16.gmra.mxu0 %v711
      %v2057 = vpop.f32.mrf.mxu0
      %v2058 = vadd.f32 %v2009, %v2057
      %v2059 = vpop.f32.mrf.mxu0
      %v2060 = vadd.f32 %v2011, %v2059
      %2061 = vmatmul.bf16.gmra.mxu0 %v719
      %v2062 = vpop.f32.mrf.mxu0
      %v2063 = vadd.f32 %v2014, %v2062
      %v2064 = vpop.f32.mrf.mxu0
      %v2065 = vadd.f32 %v2016, %v2064
      %2066 = vmatmul.bf16.gmra.mxu0 %v727
      %v2067 = vpop.f32.mrf.mxu0
      %v2068 = vadd.f32 %v2019, %v2067
      %v2069 = vpop.f32.mrf.mxu0
      %v2070 = vadd.f32 %v2021, %v2069
      %2071 = vdwg.mxu0
      %2072 = vmatpush.bf16.msra.mxu0 %v1274
      %2073 = vmatpush.bf16.msra.mxu0 %v1272
      %2074 = vmatpush.bf16.msra.mxu0 %v1270
      %2075 = vmatpush.bf16.msra.mxu0 %v1268
      %2076 = vmatpush.bf16.msra.mxu0 %v1266
      %2077 = vmatpush.bf16.msra.mxu0 %v1264
      %2078 = vmatpush.bf16.msra.mxu0 %v1262
      %2079 = vmatpush.bf16.msra.mxu0 %v1260
      %2080 = vmatmul.bf16.gmra.mxu0 %v672
      %v2081 = vpop.f32.mrf.mxu0
      %v2082 = vadd.f32 %v2033, %v2081
      %v2083 = vpop.f32.mrf.mxu0
      %v2084 = vadd.f32 %v2035, %v2083
      %2085 = vmatmul.bf16.gmra.mxu0 %v680
      %v2086 = vpop.f32.mrf.mxu0
      %v2087 = vadd.f32 %v2038, %v2086
      %v2088 = vpop.f32.mrf.mxu0
      %v2089 = vadd.f32 %v2040, %v2088
      %2090 = vmatmul.bf16.gmra.mxu0 %v688
      %v2091 = vpop.f32.mrf.mxu0
      %v2092 = vadd.f32 %v2043, %v2091
      %v2093 = vpop.f32.mrf.mxu0
      %v2094 = vadd.f32 %v2045, %v2093
      %2095 = vmatmul.bf16.gmra.mxu0 %v696
      %v2096 = vpop.f32.mrf.mxu0
      %v2097 = vadd.f32 %v2048, %v2096
      %v2098 = vpop.f32.mrf.mxu0
      %v2099 = vadd.f32 %v2050, %v2098
      %2100 = vmatmul.bf16.gmra.mxu0 %v704
      %v2101 = vpop.f32.mrf.mxu0
      %v2102 = vadd.f32 %v2053, %v2101
      %v2103 = vpop.f32.mrf.mxu0
      %v2104 = vadd.f32 %v2055, %v2103
      %2105 = vmatmul.bf16.gmra.mxu0 %v712
      %v2106 = vpop.f32.mrf.mxu0
      %v2107 = vadd.f32 %v2058, %v2106
      %v2108 = vpop.f32.mrf.mxu0
      %v2109 = vadd.f32 %v2060, %v2108
      %2110 = vmatmul.bf16.gmra.mxu0 %v720
      %v2111 = vpop.f32.mrf.mxu0
      %v2112 = vadd.f32 %v2063, %v2111
      %v2113 = vpop.f32.mrf.mxu0
      %v2114 = vadd.f32 %v2065, %v2113
      %2115 = vmatmul.bf16.gmra.mxu0 %v728
      %v2116 = vpop.f32.mrf.mxu0
      %v2117 = vadd.f32 %v2068, %v2116
      %v2118 = vpop.f32.mrf.mxu0
      %v2119 = vadd.f32 %v2070, %v2118
      %2120 = vdwg.mxu0
      %2121 = vmatpush.bf16.msra.mxu0 %v1290
      %2122 = vmatpush.bf16.msra.mxu0 %v1288
      %2123 = vmatpush.bf16.msra.mxu0 %v1286
      %2124 = vmatpush.bf16.msra.mxu0 %v1284
      %2125 = vmatpush.bf16.msra.mxu0 %v1282
      %2126 = vmatpush.bf16.msra.mxu0 %v1280
      %2127 = vmatpush.bf16.msra.mxu0 %v1278
      %2128 = vmatpush.bf16.msra.mxu0 %v1276
      %2129 = vmatmul.bf16.gmra.mxu0 %v673
      %v2130 = vpop.f32.mrf.mxu0
      %v2131 = vadd.f32 %v2082, %v2130
      %v2132 = vpop.f32.mrf.mxu0
      %v2133 = vadd.f32 %v2084, %v2132
      %2134 = vmatmul.bf16.gmra.mxu0 %v681
      %v2135 = vpop.f32.mrf.mxu0
      %v2136 = vadd.f32 %v2087, %v2135
      %v2137 = vpop.f32.mrf.mxu0
      %v2138 = vadd.f32 %v2089, %v2137
      %2139 = vmatmul.bf16.gmra.mxu0 %v689
      %v2140 = vpop.f32.mrf.mxu0
      %v2141 = vadd.f32 %v2092, %v2140
      %v2142 = vpop.f32.mrf.mxu0
      %v2143 = vadd.f32 %v2094, %v2142
      %2144 = vmatmul.bf16.gmra.mxu0 %v697
      %v2145 = vpop.f32.mrf.mxu0
      %v2146 = vadd.f32 %v2097, %v2145
      %v2147 = vpop.f32.mrf.mxu0
      %v2148 = vadd.f32 %v2099, %v2147
      %2149 = vmatmul.bf16.gmra.mxu0 %v705
      %v2150 = vpop.f32.mrf.mxu0
      %v2151 = vadd.f32 %v2102, %v2150
      %v2152 = vpop.f32.mrf.mxu0
      %v2153 = vadd.f32 %v2104, %v2152
      %2154 = vmatmul.bf16.gmra.mxu0 %v713
      %v2155 = vpop.f32.mrf.mxu0
      %v2156 = vadd.f32 %v2107, %v2155
      %v2157 = vpop.f32.mrf.mxu0
      %v2158 = vadd.f32 %v2109, %v2157
      %2159 = vmatmul.bf16.gmra.mxu0 %v721
      %v2160 = vpop.f32.mrf.mxu0
      %v2161 = vadd.f32 %v2112, %v2160
      %v2162 = vpop.f32.mrf.mxu0
      %v2163 = vadd.f32 %v2114, %v2162
      %2164 = vmatmul.bf16.gmra.mxu0 %v729
      %v2165 = vpop.f32.mrf.mxu0
      %v2166 = vadd.f32 %v2117, %v2165
      %v2167 = vpop.f32.mrf.mxu0
      %v2168 = vadd.f32 %v2119, %v2167
      %2169 = vdwg.mxu0
      %2170 = vmatpush.bf16.msra.mxu0 %v1306
      %2171 = vmatpush.bf16.msra.mxu0 %v1304
      %2172 = vmatpush.bf16.msra.mxu0 %v1302
      %2173 = vmatpush.bf16.msra.mxu0 %v1300
      %2174 = vmatpush.bf16.msra.mxu0 %v1298
      %2175 = vmatpush.bf16.msra.mxu0 %v1296
      %2176 = vmatpush.bf16.msra.mxu0 %v1294
      %2177 = vmatpush.bf16.msra.mxu0 %v1292
      %2178 = vmatmul.bf16.gmra.mxu0 %v674
      %v2179 = vpop.f32.mrf.mxu0
      %v2180 = vadd.f32 %v2131, %v2179
      %v2181 = vpop.f32.mrf.mxu0
      %v2182 = vadd.f32 %v2133, %v2181
      %2183 = vmatmul.bf16.gmra.mxu0 %v682
      %v2184 = vpop.f32.mrf.mxu0
      %v2185 = vadd.f32 %v2136, %v2184
      %v2186 = vpop.f32.mrf.mxu0
      %v2187 = vadd.f32 %v2138, %v2186
      %2188 = vmatmul.bf16.gmra.mxu0 %v690
      %v2189 = vpop.f32.mrf.mxu0
      %v2190 = vadd.f32 %v2141, %v2189
      %v2191 = vpop.f32.mrf.mxu0
      %v2192 = vadd.f32 %v2143, %v2191
      %2193 = vmatmul.bf16.gmra.mxu0 %v698
      %v2194 = vpop.f32.mrf.mxu0
      %v2195 = vadd.f32 %v2146, %v2194
      %v2196 = vpop.f32.mrf.mxu0
      %v2197 = vadd.f32 %v2148, %v2196
      %2198 = vmatmul.bf16.gmra.mxu0 %v706
      %v2199 = vpop.f32.mrf.mxu0
      %v2200 = vadd.f32 %v2151, %v2199
      %v2201 = vpop.f32.mrf.mxu0
      %v2202 = vadd.f32 %v2153, %v2201
      %2203 = vmatmul.bf16.gmra.mxu0 %v714
      %v2204 = vpop.f32.mrf.mxu0
      %v2205 = vadd.f32 %v2156, %v2204
      %v2206 = vpop.f32.mrf.mxu0
      %v2207 = vadd.f32 %v2158, %v2206
      %2208 = vmatmul.bf16.gmra.mxu0 %v722
      %v2209 = vpop.f32.mrf.mxu0
      %v2210 = vadd.f32 %v2161, %v2209
      %v2211 = vpop.f32.mrf.mxu0
      %v2212 = vadd.f32 %v2163, %v2211
      %2213 = vmatmul.bf16.gmra.mxu0 %v730
      %v2214 = vpop.f32.mrf.mxu0
      %v2215 = vadd.f32 %v2166, %v2214
      %v2216 = vpop.f32.mrf.mxu0
      %v2217 = vadd.f32 %v2168, %v2216
      %2218 = vdwg.mxu0
      %v2219 = vmax.f32 %v1788, 0.0
      %v2220 = vmax.f32 %v2180, 0.0
      %v2221 = vmax.f32 %v1790, 0.0
      %v2222 = vmax.f32 %v2182, 0.0
      %v2223 = vmax.f32 %v1793, 0.0
      %v2224 = vmax.f32 %v2185, 0.0
      %v2225 = vmax.f32 %v1795, 0.0
      %v2226 = vmax.f32 %v2187, 0.0
      %v2227 = vmax.f32 %v1798, 0.0
      %v2228 = vmax.f32 %v2190, 0.0
      %v2229 = vmax.f32 %v1800, 0.0
      %v2230 = vmax.f32 %v2192, 0.0
      %v2231 = vmax.f32 %v1803, 0.0
      %v2232 = vmax.f32 %v2195, 0.0
      %v2233 = vmax.f32 %v1805, 0.0
      %v2234 = vmax.f32 %v2197, 0.0
      %v2235 = vmax.f32 %v1808, 0.0
      %v2236 = vmax.f32 %v2200, 0.0
      %v2237 = vmax.f32 %v1810, 0.0
      %v2238 = vmax.f32 %v2202, 0.0
      %v2239 = vmax.f32 %v1813, 0.0
      %v2240 = vmax.f32 %v2205, 0.0
      %v2241 = vmax.f32 %v1815, 0.0
      %v2242 = vmax.f32 %v2207, 0.0
      %v2243 = vmax.f32 %v1818, 0.0
      %v2244 = vmax.f32 %v2210, 0.0
      %v2245 = vmax.f32 %v1820, 0.0
      %v2246 = vmax.f32 %v2212, 0.0
      %v2247 = vmax.f32 %v1823, 0.0
      %v2248 = vmax.f32 %v2215, 0.0
      %v2249 = vmax.f32 %v1825, 0.0
      %v2250 = vmax.f32 %v2217, 0.0
      %v2251 = vpack.c.bf16 %v2220, %v2219
      %v2252 = vpack.c.bf16 %v2222, %v2221
      %v2253 = vpack.c.bf16 %v2224, %v2223
      %v2254 = vpack.c.bf16 %v2226, %v2225
      %v2255 = vpack.c.bf16 %v2228, %v2227
      %v2256 = vpack.c.bf16 %v2230, %v2229
      %v2257 = vpack.c.bf16 %v2232, %v2231
      %v2258 = vpack.c.bf16 %v2234, %v2233
      %v2259 = vpack.c.bf16 %v2236, %v2235
      %v2260 = vpack.c.bf16 %v2238, %v2237
      %v2261 = vpack.c.bf16 %v2240, %v2239
      %v2262 = vpack.c.bf16 %v2242, %v2241
      %v2263 = vpack.c.bf16 %v2244, %v2243
      %v2264 = vpack.c.bf16 %v2246, %v2245
      %v2265 = vpack.c.bf16 %v2248, %v2247
      %v2266 = vpack.c.bf16 %v2250, %v2249
      %2267 = vst [vmem:[%s275] sm:$0xff] %v2251
      %2268 = vst [vmem:[%s275 + $0x8] sm:$0xff] %v2252
      %2269 = vst [vmem:[%s275 + $0x10] sm:$0xff] %v2253
      %2270 = vst [vmem:[%s275 + $0x18] sm:$0xff] %v2254
      %2271 = vst [vmem:[%s275 + $0x20] sm:$0xff] %v2255
      %2272 = vst [vmem:[%s275 + $0x28] sm:$0xff] %v2256
      %2273 = vst [vmem:[%s275 + $0x30] sm:$0xff] %v2257
      %2274 = vst [vmem:[%s275 + $0x38] sm:$0xff] %v2258
      %2275 = vst [vmem:[%s275 + $0x40] sm:$0xff] %v2259
      %2276 = vst [vmem:[%s275 + $0x48] sm:$0xff] %v2260
      %2277 = vst [vmem:[%s275 + $0x50] sm:$0xff] %v2261
      %2278 = vst [vmem:[%s275 + $0x58] sm:$0xff] %v2262
      %2279 = vst [vmem:[%s275 + $0x60] sm:$0xff] %v2263
      %2280 = vst [vmem:[%s275 + $0x68] sm:$0xff] %v2264
      %2281 = vst [vmem:[%s275 + $0x70] sm:$0xff] %v2265
      %2282 = vst [vmem:[%s275 + $0x78] sm:$0xff] %v2266
      %s2283 = smul.u32 16, %s20
      %p2284 = scmp.lt.s32.totalorder %s19, 3
      %s2285 = scalar_select %p2284, %s19, 3
      %p2286 = scmp.lt.s32.totalorder %s2283, 15
      %s2287 = scalar_select %p2286, %s2283, 15
      %s2288 = smul.addr %s2287, 2
      %s2289 = smul.addr %s2285, 32
      %s2290 = sadd.s32 %s2288, %s2289
      %s2291 = smul.addr %s2290, 4
      %s2292 = scalar_lea.vmem %s3, %s2291
      // Predicated region
      $region33: #{simcc_forward.7} parent=31 // pred_check
        %p2293 = pneg %p132
      $region34: #{simcc_forward.7} parent=31 // pred_check_branch
        %2295 = sbr.rel (%p2293) target = $region36
      $region35: #{simcc_forward.7} parent=31 // pred_region
        %s2296 = smul.u32 16, %s20
      $region36: #{simcc_forward.7} parent=31 // pred_fallthru
        _
    $region32: #{simcc_forward.7} parent=5 // pred_fallthru
      _
    %p2297 = scmp.le.s32.totalorder 2, %s9
    // Predicated region
    $region37: #{simcc_forward.7} parent=5 // pred_check
      %p2298 = pneg %p2297
    $region38: #{simcc_forward.7} parent=5 // pred_check_branch
      %2300 = sbr.rel (%p2298) target = $region40
    $region39: #{simcc_forward.7} parent=5 // pred_region
      %s2301 = ssub.s32 %s9, 2
      // Predicated region
      $region41: #{simcc_forward.7} parent=39 // pred_check
        %p2302 = pneg %p138
      $region42: #{simcc_forward.7} parent=39 // pred_check_branch
        %2304 = sbr.rel (%p2302) target = $region44
      $region43: #{simcc_forward.7} parent=39 // pred_region
        %s2305 = smul.u32 16, %s23
        %p2306 = scmp.lt.s32.totalorder %s22, 3
        %s2307 = scalar_select %p2306, %s22, 3
        %p2308 = scmp.lt.s32.totalorder %s2305, 15
        %s2309 = scalar_select %p2308, %s2305, 15
        %s2310 = smul.addr %s2309, 2
        %s2311 = smul.addr %s2307, 32
        %s2312 = sadd.s32 %s2310, %s2311
        %s2313 = smul.addr %s2312, 4
        %s2314 = scalar_lea.vmem %s3, %s2313
      $region44: #{simcc_forward.7} parent=39 // pred_fallthru
        _
    $region40: #{simcc_forward.7} parent=5 // pred_fallthru
      _
  $region6: #{simcc_forward.7} parent=0 // loop_footer
    %s13 = sadd.s32 1, %s9
  $region7: #{simcc_forward.7} parent=0 // loop_footer_branch
    %8 = sbr.rel target = $region3
  $region8: #{simcc_forward.7} parent=0 // loop_exit
    _

// kernel: simcc_forward.8
$region0: #{simcc_forward.8}
  #allocation0 [shape = 'u32[]', space=smem, size = 0x4, offset = 0x4, fixed_abs, tag = 'smem constant byte address 0x4 - core index']
  #allocation1 [shape = 'u32[72,128]{1,0:T(1,128)}', space=vmem, size = 0x9000, scoped, tag = 'internal scratch']
  %s0 = inlined_call_operand.vmem [shape: bf16[16,256], index: 0, kind: input, shape index: {}]
  %s1 = inlined_call_operand.vmem [shape: bf16[2,256,256], index: 1, kind: input, shape index: {}]
  %s2 = inlined_call_operand.vmem [shape: bf16[2,16,256], index: 2, kind: output, shape index: {}]
  %s3 = sld [smem:[#allocation0]]
  $region41: #{simcc_forward.8} parent=0
    _
  %s5 = ssub.s32 1, %s3
  %s6 = scalar_select 0, %s5, %s3
  loop: start=0, step=1, limit=4
  $region2: #{simcc_forward.8} parent=0 // loop_pre_header
    _
  $region3: #{simcc_forward.8} parent=0 // loop_header
    %s8 = sphi 0, %s12
    %p9 = scmp.ge.s32.totalorder %s8, 4
    %s15 = sphi 0, %s34
    %s16 = sphi 0, %s30
    %s17 = sphi 0, %s26
    %s18 = sphi 0, %s15
    %s19 = sphi 0, %s16
    %s20 = sphi 0, %s17
    %s21 = sphi 0, %s18
    %s22 = sphi 0, %s19
    %s23 = sphi 0, %s20
    %s39 = sphi 0, %s41
    %s42 = sphi 0, %s39
    %s43 = sphi 0, %s42
    %s59 = sphi 0, %s43
    %s67 = sphi 0, %s69
    %s70 = sphi 0, %s67
    %s71 = sphi 0, %s70
    %s87 = sphi 0, %s71
    %s95 = sphi 0, %s97
    %s98 = sphi 0, %s95
    %s99 = sphi 0, %s98
    %s115 = sphi 0, %s99
  $region4: #{simcc_forward.8} parent=0 // loop_header_branch
    %11 = sbr.rel (%p9) target = $region8
  $region5: #{simcc_forward.8} parent=0 // loop_body
    %s13 = ssub.s32 %s8, 1
    %s14 = ssub.s32 %s8, 2
    %s24 = sadd.s32 1, %s17
    %p25 = scmp.ge.s32.totalorder %s24, 1
    %s26 = scalar_select %p25, 0, %s24
    %s27 = sadd.s32 1, %s16
    %s28 = scalar_select %p25, %s27, %s16
    %p29 = scmp.ge.s32.totalorder %s28, 1
    %s30 = scalar_select %p29, 0, %s28
    %s31 = sadd.s32 1, %s15
    %s32 = scalar_select %p29, %s31, %s15
    %p33 = scmp.ge.s32.totalorder %s32, 2
    %s34 = scalar_select %p33, 0, %s32
    %s35 = ssub.s32 %s16, %s30
    %s36 = ssub.s32 %s17, %s26
    %s37 = sor.u32 %s35, %s36
    %p38 = scmp.eq.s32.totalorder %s37, 0
    %s40 = sadd.s32 %s39, 1
    %s41 = scalar_select %p38, %s39, %s40
    %p44 = pneg %p38
    %p45 = scmp.eq.s32.totalorder %s8, 1
    %p46 = por %p44, %p45
    %p47 = scmp.ne.s32.totalorder %s39, %s42
    %p48 = scmp.eq.s32.totalorder %s8, 0
    %p49 = por %p47, %p48
    %p50 = scmp.ne.s32.totalorder %s39, %s42
    %p51 = scmp.eq.s32.totalorder %s13, 1
    %p52 = por %p50, %p51
    %p53 = scmp.ne.s32.totalorder %s42, %s43
    %p54 = scmp.eq.s32.totalorder %s13, 0
    %p55 = por %p53, %p54
    %p56 = scmp.ne.s32.totalorder %s42, %s43
    %p57 = scmp.eq.s32.totalorder %s14, 1
    %p58 = por %p56, %p57
    %p60 = scmp.ne.s32.totalorder %s43, %s59
    %p61 = scmp.eq.s32.totalorder %s14, 0
    %p62 = por %p60, %p61
    %s63 = ssub.s32 %s15, %s34
    %s64 = ssub.s32 %s17, %s26
    %s65 = sor.u32 %s63, %s64
    %p66 = scmp.eq.s32.totalorder %s65, 0
    %s68 = sadd.s32 %s67, 1
    %s69 = scalar_select %p66, %s67, %s68
    %p72 = pneg %p66
    %p73 = scmp.eq.s32.totalorder %s8, 1
    %p74 = por %p72, %p73
    %p75 = scmp.ne.s32.totalorder %s67, %s70
    %p76 = scmp.eq.s32.totalorder %s8, 0
    %p77 = por %p75, %p76
    %p78 = scmp.ne.s32.totalorder %s67, %s70
    %p79 = scmp.eq.s32.totalorder %s13, 1
    %p80 = por %p78, %p79
    %p81 = scmp.ne.s32.totalorder %s70, %s71
    %p82 = scmp.eq.s32.totalorder %s13, 0
    %p83 = por %p81, %p82
    %p84 = scmp.ne.s32.totalorder %s70, %s71
    %p85 = scmp.eq.s32.totalorder %s14, 1
    %p86 = por %p84, %p85
    %p88 = scmp.ne.s32.totalorder %s71, %s87
    %p89 = scmp.eq.s32.totalorder %s14, 0
    %p90 = por %p88, %p89
    %s91 = ssub.s32 %s15, %s34
    %s92 = ssub.s32 %s16, %s30
    %s93 = sor.u32 %s91, %s92
    %p94 = scmp.eq.s32.totalorder %s93, 0
    %s96 = sadd.s32 %s95, 1
    %s97 = scalar_select %p94, %s95, %s96
    %p100 = pneg %p94
    %p101 = scmp.eq.s32.totalorder %s8, 1
    %p102 = por %p100, %p101
    %p103 = scmp.ne.s32.totalorder %s95, %s98
    %p104 = scmp.eq.s32.totalorder %s8, 0
    %p105 = por %p103, %p104
    %p106 = scmp.ne.s32.totalorder %s95, %s98
    %p107 = scmp.eq.s32.totalorder %s13, 1
    %p108 = por %p106, %p107
    %p109 = scmp.ne.s32.totalorder %s98, %s99
    %p110 = scmp.eq.s32.totalorder %s13, 0
    %p111 = por %p109, %p110
    %p112 = scmp.ne.s32.totalorder %s98, %s99
    %p113 = scmp.eq.s32.totalorder %s14, 1
    %p114 = por %p112, %p113
    %p116 = scmp.ne.s32.totalorder %s99, %s115
    %p117 = scmp.eq.s32.totalorder %s14, 0
    %p118 = por %p116, %p117
    %p119 = scmp.le.s32.totalorder 1, %s8
    %p120 = scmp.lt.s32.totalorder %s8, 3
    %p121 = pnand %p119, %p120
    %p122 = pneg %p121
    // Predicated region
    $region9: #{simcc_forward.8} parent=5 // pred_check
      _
    $region10: #{simcc_forward.8} parent=5 // pred_check_branch
      %124 = sbr.rel (%p121) target = $region12
    $region11: #{simcc_forward.8} parent=5 // pred_region
      %s125 = ssub.s32 %s8, 1
      // Predicated region
      $region13: #{simcc_forward.8} parent=11 // pred_check
        %p126 = pneg %p55
      $region14: #{simcc_forward.8} parent=11 // pred_check_branch
        %128 = sbr.rel (%p126) target = $region16
      $region15: #{simcc_forward.8} parent=11 // pred_region
        %s129 = smul.u32 2, %s19
        %s130 = smul.u32 2, %s20
        %p131 = scmp.lt.s32.totalorder %s129, 1
        %s132 = scalar_select %p131, %s129, 1
        %p133 = scmp.lt.s32.totalorder %s130, 1
        %s134 = scalar_select %p133, %s130, 1
        %s135 = smul.addr %s132, 2
        %s136 = sadd.s32 %s134, %s135
        %s137 = smul.addr %s136, 4
        %s138 = scalar_lea.vmem %s0, %s137
        %s139 = smul.u32 2, %s19
        %s140 = smul.u32 2, %s20
      $region16: #{simcc_forward.8} parent=11 // pred_fallthru
        _
    $region12: #{simcc_forward.8} parent=5 // pred_fallthru
      _
    %p141 = scmp.lt.s32.totalorder %s8, 2
    // Predicated region
    $region17: #{simcc_forward.8} parent=5 // pred_check
      %p142 = pneg %p141
    $region18: #{simcc_forward.8} parent=5 // pred_check_branch
      %144 = sbr.rel (%p142) target = $region20
    $region19: #{simcc_forward.8} parent=5 // pred_region
      // Predicated region
      $region21: #{simcc_forward.8} parent=19 // pred_check
        %p145 = pneg %p77
      $region22: #{simcc_forward.8} parent=19 // pred_check_branch
        %147 = sbr.rel (%p145) target = $region24
      $region23: #{simcc_forward.8} parent=19 // pred_region
        %s148 = smul.u32 32, %s17
        %p149 = scmp.lt.s32.totalorder %s15, 1
        %s150 = scalar_select %p149, %s15, 1
        %p151 = scmp.lt.s32.totalorder %s148, 31
        %s152 = scalar_select %p151, %s148, 31
        %s153 = smul.addr %s152, 2
        %s154 = smul.addr %s150, 64
        %s155 = sadd.s32 %s153, %s154
        %s156 = smul.addr %s155, 4
        %s157 = scalar_lea.vmem %s1, %s156
        %s158 = smul.u32 32, %s17
      $region24: #{simcc_forward.8} parent=19 // pred_fallthru
        _
    $region20: #{simcc_forward.8} parent=5 // pred_fallthru
      _
    %p159 = scmp.le.s32.totalorder 1, %s8
    %p160 = scmp.lt.s32.totalorder %s8, 3
    %p161 = pnand %p159, %p160
    %p162 = pneg %p161
    // Predicated region
    $region25: #{simcc_forward.8} parent=5 // pred_check
      _
    $region26: #{simcc_forward.8} parent=5 // pred_check_branch
      %164 = sbr.rel (%p161) target = $region28
    $region27: #{simcc_forward.8} parent=5 // pred_region
      %s165 = ssub.s32 %s8, 1
      %s166 = smul.u32 2, %s19
      %s167 = smul.u32 2, %s20
      %p168 = scmp.lt.s32.totalorder %s166, 1
      %s169 = scalar_select %p168, %s166, 1
      %p170 = scmp.lt.s32.totalorder %s167, 1
      %s171 = scalar_select %p170, %s167, 1
      %s172 = smul.addr %s169, 2
      %s173 = sadd.s32 %s171, %s172
      %s174 = smul.addr %s173, 4
      %s175 = scalar_lea.vmem %s0, %s174
      %p176 = pneg %p55
      %p177 = pneg %p52
      %s178 = smul.u32 32, %s20
      %p179 = scmp.lt.s32.totalorder %s18, 1
      %s180 = scalar_select %p179, %s18, 1
      %p181 = scmp.lt.s32.totalorder %s178, 31
      %s182 = scalar_select %p181, %s178, 31
      %s183 = smul.addr %s182, 2
      %s184 = smul.addr %s180, 64
      %s185 = sadd.s32 %s183, %s184
      %s186 = smul.addr %s185, 4
      %s187 = scalar_lea.vmem %s1, %s186
      %p188 = pneg %p83
      %p189 = pneg %p80
      %p190 = pneg %p111
      %p191 = pneg %p108
      %s192 = smul.u32 2, %s19
      %p193 = scmp.lt.s32.totalorder %s18, 1
      %s194 = scalar_select %p193, %s18, 1
      %p195 = scmp.lt.s32.totalorder %s192, 1
      %s196 = scalar_select %p195, %s192, 1
      %s197 = smul.addr %s196, 2
      %s198 = smul.addr %s194, 4
      %s199 = sadd.s32 %s197, %s198
      %s200 = smul.addr %s199, 4
      %s201 = scalar_lea.vmem %s2, %s200
      %s202 = smul.u32 2, %s19
      %s203 = smul.u32 2, %s20
      %p204 = scmp.lt.s32.totalorder %s202, 1
      %s205 = scalar_select %p204, %s202, 1
      %p206 = scmp.lt.s32.totalorder %s203, 1
      %s207 = scalar_select %p206, %s203, 1
      %s208 = smul.addr %s205, 2
      %s209 = sadd.s32 %s207, %s208
      %s210 = smul.addr %s209, 4
      %s211 = scalar_lea.vmem %s0, %s210
      %s212 = smul.u32 2, %s19
      %s213 = smul.u32 2, %s20
      %s214 = smul.u32 32, %s20
      %p215 = scmp.lt.s32.totalorder %s18, 1
      %s216 = scalar_select %p215, %s18, 1
      %p217 = scmp.lt.s32.totalorder %s214, 31
      %s218 = scalar_select %p217, %s214, 31
      %s219 = smul.addr %s218, 2
      %s220 = smul.addr %s216, 64
      %s221 = sadd.s32 %s219, %s220
      %s222 = smul.addr %s221, 4
      %s223 = scalar_lea.vmem %s1, %s222
      %s224 = smul.u32 32, %s20
      %s225 = smul.u32 2, %s19
      %p226 = scmp.lt.s32.totalorder %s18, 1
      %s227 = scalar_select %p226, %s18, 1
      %p228 = scmp.lt.s32.totalorder %s225, 1
      %s229 = scalar_select %p228, %s225, 1
      %s230 = smul.addr %s229, 2
      %s231 = smul.addr %s227, 4
      %s232 = sadd.s32 %s230, %s231
      %s233 = smul.addr %s232, 4
      %s234 = scalar_lea.vmem %s2, %s233
      %s235 = smul.u32 2, %s19
      %v236 = vld [vmem:[%s211] sm:$0xff]
      %v237 = vld [vmem:[%s211 + $0x8] sm:$0xff]
      %v238 = vld [vmem:[%s223] sm:$0xff]
      %v239 = vld [vmem:[%s223 + $0x8] sm:$0xff]
      %v240 = vld [vmem:[%s223 + $0x10] sm:$0xff]
      %v241 = vld [vmem:[%s223 + $0x18] sm:$0xff]
      %v242 = vld [vmem:[%s223 + $0x20] sm:$0xff]
      %v243 = vld [vmem:[%s223 + $0x28] sm:$0xff]
      %v244 = vld [vmem:[%s223 + $0x30] sm:$0xff]
      %v245 = vld [vmem:[%s223 + $0x38] sm:$0xff]
      %v246 = vld [vmem:[%s223 + $0x40] sm:$0xff]
      %v247 = vld [vmem:[%s223 + $0x48] sm:$0xff]
      %v248 = vld [vmem:[%s223 + $0x50] sm:$0xff]
      %v249 = vld [vmem:[%s223 + $0x58] sm:$0xff]
      %v250 = vld [vmem:[%s223 + $0x60] sm:$0xff]
      %v251 = vld [vmem:[%s223 + $0x68] sm:$0xff]
      %v252 = vld [vmem:[%s223 + $0x70] sm:$0xff]
      %v253 = vld [vmem:[%s223 + $0x78] sm:$0xff]
      %v254 = vld [vmem:[%s223 + $0x80] sm:$0xff]
      %v255 = vld [vmem:[%s223 + $0x88] sm:$0xff]
      %v256 = vld [vmem:[%s223 + $0x90] sm:$0xff]
      %v257 = vld [vmem:[%s223 + $0x98] sm:$0xff]
      %v258 = vld [vmem:[%s223 + $0xa0] sm:$0xff]
      %v259 = vld [vmem:[%s223 + $0xa8] sm:$0xff]
      %v260 = vld [vmem:[%s223 + $0xb0] sm:$0xff]
      %v261 = vld [vmem:[%s223 + $0xb8] sm:$0xff]
      %v262 = vld [vmem:[%s223 + $0xc0] sm:$0xff]
      %v263 = vld [vmem:[%s223 + $0xc8] sm:$0xff]
      %v264 = vld [vmem:[%s223 + $0xd0] sm:$0xff]
      %v265 = vld [vmem:[%s223 + $0xd8] sm:$0xff]
      %v266 = vld [vmem:[%s223 + $0xe0] sm:$0xff]
      %v267 = vld [vmem:[%s223 + $0xe8] sm:$0xff]
      %v268 = vld [vmem:[%s223 + $0xf0] sm:$0xff]
      %v269 = vld [vmem:[%s223 + $0xf8] sm:$0xff]
      %v272 = vunpack.c.l.b16 %v236
      %v273 = vunpack.c.h.b16 %v236
      %v274 = vunpack.c.l.b16 %v237
      %v275 = vunpack.c.h.b16 %v237
      %v276 = vpack.c.b16 %v274, %v272
      %v277 = vpack.c.b16 %v275, %v273
      %v312 = vunpack.c.l.b16 %v238
      %v313 = vunpack.c.h.b16 %v238
      %v314 = vunpack.c.l.b16 %v239
      %v315 = vunpack.c.h.b16 %v239
      %v316 = vunpack.c.l.b16 %v240
      %v317 = vunpack.c.h.b16 %v240
      %v318 = vunpack.c.l.b16 %v241
      %v319 = vunpack.c.h.b16 %v241
      %v320 = vunpack.c.l.b16 %v242
      %v321 = vunpack.c.h.b16 %v242
      %v322 = vunpack.c.l.b16 %v243
      %v323 = vunpack.c.h.b16 %v243
      %v324 = vunpack.c.l.b16 %v244
      %v325 = vunpack.c.h.b16 %v244
      %v326 = vunpack.c.l.b16 %v245
      %v327 = vunpack.c.h.b16 %v245
      %v328 = vunpack.c.l.b16 %v246
      %v329 = vunpack.c.h.b16 %v246
      %v330 = vunpack.c.l.b16 %v247
      %v331 = vunpack.c.h.b16 %v247
      %v332 = vunpack.c.l.b16 %v248
      %v333 = vunpack.c.h.b16 %v248
      %v334 = vunpack.c.l.b16 %v249
      %v335 = vunpack.c.h.b16 %v249
      %v336 = vunpack.c.l.b16 %v250
      %v337 = vunpack.c.h.b16 %v250
      %v338 = vunpack.c.l.b16 %v251
      %v339 = vunpack.c.h.b16 %v251
      %v340 = vunpack.c.l.b16 %v252
      %v341 = vunpack.c.h.b16 %v252
      %v342 = vunpack.c.l.b16 %v253
      %v343 = vunpack.c.h.b16 %v253
      %v344 = vunpack.c.l.b16 %v254
      %v345 = vunpack.c.h.b16 %v254
      %v346 = vunpack.c.l.b16 %v255
      %v347 = vunpack.c.h.b16 %v255
      %v348 = vunpack.c.l.b16 %v256
      %v349 = vunpack.c.h.b16 %v256
      %v350 = vunpack.c.l.b16 %v257
      %v351 = vunpack.c.h.b16 %v257
      %v352 = vunpack.c.l.b16 %v258
      %v353 = vunpack.c.h.b16 %v258
      %v354 = vunpack.c.l.b16 %v259
      %v355 = vunpack.c.h.b16 %v259
      %v356 = vunpack.c.l.b16 %v260
      %v357 = vunpack.c.h.b16 %v260
      %v358 = vunpack.c.l.b16 %v261
      %v359 = vunpack.c.h.b16 %v261
      %v360 = vunpack.c.l.b16 %v262
      %v361 = vunpack.c.h.b16 %v262
      %v362 = vunpack.c.l.b16 %v263
      %v363 = vunpack.c.h.b16 %v263
      %v364 = vunpack.c.l.b16 %v264
      %v365 = vunpack.c.h.b16 %v264
      %v366 = vunpack.c.l.b16 %v265
      %v367 = vunpack.c.h.b16 %v265
      %v368 = vunpack.c.l.b16 %v266
      %v369 = vunpack.c.h.b16 %v266
      %v370 = vunpack.c.l.b16 %v267
      %v371 = vunpack.c.h.b16 %v267
      %v372 = vunpack.c.l.b16 %v268
      %v373 = vunpack.c.h.b16 %v268
      %v374 = vunpack.c.l.b16 %v269
      %v375 = vunpack.c.h.b16 %v269
      %v376 = vpack.c.b16 %v314, %v312
      %v377 = vpack.c.b16 %v315, %v313
      %v378 = vpack.c.b16 %v318, %v316
      %v379 = vpack.c.b16 %v319, %v317
      %v380 = vpack.c.b16 %v322, %v320
      %v381 = vpack.c.b16 %v323, %v321
      %v382 = vpack.c.b16 %v326, %v324
      %v383 = vpack.c.b16 %v327, %v325
      %v384 = vpack.c.b16 %v330, %v328
      %v385 = vpack.c.b16 %v331, %v329
      %v386 = vpack.c.b16 %v334, %v332
      %v387 = vpack.c.b16 %v335, %v333
      %v388 = vpack.c.b16 %v338, %v336
      %v389 = vpack.c.b16 %v339, %v337
      %v390 = vpack.c.b16 %v342, %v340
      %v391 = vpack.c.b16 %v343, %v341
      %v392 = vpack.c.b16 %v346, %v344
      %v393 = vpack.c.b16 %v347, %v345
      %v394 = vpack.c.b16 %v350, %v348
      %v395 = vpack.c.b16 %v351, %v349
      %v396 = vpack.c.b16 %v354, %v352
      %v397 = vpack.c.b16 %v355, %v353
      %v398 = vpack.c.b16 %v358, %v356
      %v399 = vpack.c.b16 %v359, %v357
      %v400 = vpack.c.b16 %v362, %v360
      %v401 = vpack.c.b16 %v363, %v361
      %v402 = vpack.c.b16 %v366, %v364
      %v403 = vpack.c.b16 %v367, %v365
      %v404 = vpack.c.b16 %v370, %v368
      %v405 = vpack.c.b16 %v371, %v369
      %v406 = vpack.c.b16 %v374, %v372
      %v407 = vpack.c.b16 %v375, %v373
      %440 = vmatpush.bf16.msra.mxu0 %v390
      %441 = vmatpush.bf16.msra.mxu0 %v388
      %442 = vmatpush.bf16.msra.mxu0 %v386
      %443 = vmatpush.bf16.msra.mxu0 %v384
      %444 = vmatpush.bf16.msra.mxu0 %v382
      %445 = vmatpush.bf16.msra.mxu0 %v380
      %446 = vmatpush.bf16.msra.mxu0 %v378
      %447 = vmatpush.bf16.msra.mxu0 %v376
      %448 = vmatmul.bf16.gmra.mxu0 %v276
      %v449 = vpop.f32.mrf.mxu0
      %v450 = vadd.f32 0.0, %v449
      %v451 = vpop.f32.mrf.mxu0
      %v452 = vadd.f32 0.0, %v451
      %453 = vdwg.mxu0
      %454 = vmatpush.bf16.msra.mxu0 %v406
      %455 = vmatpush.bf16.msra.mxu0 %v404
      %456 = vmatpush.bf16.msra.mxu0 %v402
      %457 = vmatpush.bf16.msra.mxu0 %v400
      %458 = vmatpush.bf16.msra.mxu0 %v398
      %459 = vmatpush.bf16.msra.mxu0 %v396
      %460 = vmatpush.bf16.msra.mxu0 %v394
      %461 = vmatpush.bf16.msra.mxu0 %v392
      %462 = vmatmul.bf16.gmra.mxu0 %v277
      %v463 = vpop.f32.mrf.mxu0
      %v464 = vadd.f32 %v450, %v463
      %v465 = vpop.f32.mrf.mxu0
      %v466 = vadd.f32 %v452, %v465
      %467 = vdwg.mxu0
      %468 = vmatpush.bf16.msra.mxu0 %v391
      %469 = vmatpush.bf16.msra.mxu0 %v389
      %470 = vmatpush.bf16.msra.mxu0 %v387
      %471 = vmatpush.bf16.msra.mxu0 %v385
      %472 = vmatpush.bf16.msra.mxu0 %v383
      %473 = vmatpush.bf16.msra.mxu0 %v381
      %474 = vmatpush.bf16.msra.mxu0 %v379
      %475 = vmatpush.bf16.msra.mxu0 %v377
      %476 = vmatmul.bf16.gmra.mxu0 %v276
      %v477 = vpop.f32.mrf.mxu0
      %v478 = vadd.f32 0.0, %v477
      %v479 = vpop.f32.mrf.mxu0
      %v480 = vadd.f32 0.0, %v479
      %481 = vdwg.mxu0
      %482 = vmatpush.bf16.msra.mxu0 %v407
      %483 = vmatpush.bf16.msra.mxu0 %v405
      %484 = vmatpush.bf16.msra.mxu0 %v403
      %485 = vmatpush.bf16.msra.mxu0 %v401
      %486 = vmatpush.bf16.msra.mxu0 %v399
      %487 = vmatpush.bf16.msra.mxu0 %v397
      %488 = vmatpush.bf16.msra.mxu0 %v395
      %489 = vmatpush.bf16.msra.mxu0 %v393
      %490 = vmatmul.bf16.gmra.mxu0 %v277
      %v491 = vpop.f32.mrf.mxu0
      %v492 = vadd.f32 %v478, %v491
      %v493 = vpop.f32.mrf.mxu0
      %v494 = vadd.f32 %v480, %v493
      %495 = vdwg.mxu0
      %v496 = vpack.c.bf16 %v492, %v464
      %v497 = vpack.c.bf16 %v494, %v466
      %498 = vst [vmem:[%s234] sm:$0xff] %v496
      %499 = vst [vmem:[%s234 + $0x8] sm:$0xff] %v497
      %s500 = smul.u32 2, %s19
      %p501 = scmp.lt.s32.totalorder %s18, 1
      %s502 = scalar_select %p501, %s18, 1
      %p503 = scmp.lt.s32.totalorder %s500, 1
      %s504 = scalar_select %p503, %s500, 1
      %s505 = smul.addr %s504, 2
      %s506 = smul.addr %s502, 4
      %s507 = sadd.s32 %s505, %s506
      %s508 = smul.addr %s507, 4
      %s509 = scalar_lea.vmem %s2, %s508
      // Predicated region
      $region29: #{simcc_forward.8} parent=27 // pred_check
        %p510 = pneg %p108
      $region30: #{simcc_forward.8} parent=27 // pred_check_branch
        %512 = sbr.rel (%p510) target = $region32
      $region31: #{simcc_forward.8} parent=27 // pred_region
        %s513 = smul.u32 2, %s19
      $region32: #{simcc_forward.8} parent=27 // pred_fallthru
        _
    $region28: #{simcc_forward.8} parent=5 // pred_fallthru
      _
    %p514 = scmp.le.s32.totalorder 2, %s8
    // Predicated region
    $region33: #{simcc_forward.8} parent=5 // pred_check
      %p515 = pneg %p514
    $region34: #{simcc_forward.8} parent=5 // pred_check_branch
      %517 = sbr.rel (%p515) target = $region36
    $region35: #{simcc_forward.8} parent=5 // pred_region
      %s518 = ssub.s32 %s8, 2
      // Predicated region
      $region37: #{simcc_forward.8} parent=35 // pred_check
        %p519 = pneg %p114
      $region38: #{simcc_forward.8} parent=35 // pred_check_branch
        %521 = sbr.rel (%p519) target = $region40
      $region39: #{simcc_forward.8} parent=35 // pred_region
        %s522 = smul.u32 2, %s22
        %p523 = scmp.lt.s32.totalorder %s21, 1
        %s524 = scalar_select %p523, %s21, 1
        %p525 = scmp.lt.s32.totalorder %s522, 1
        %s526 = scalar_select %p525, %s522, 1
        %s527 = smul.addr %s526, 2
        %s528 = smul.addr %s524, 4
        %s529 = sadd.s32 %s527, %s528
        %s530 = smul.addr %s529, 4
        %s531 = scalar_lea.vmem %s2, %s530
      $region40: #{simcc_forward.8} parent=35 // pred_fallthru
        _
    $region36: #{simcc_forward.8} parent=5 // pred_fallthru
      _
  $region6: #{simcc_forward.8} parent=0 // loop_footer
    %s12 = sadd.s32 1, %s8
  $region7: #{simcc_forward.8} parent=0 // loop_footer_branch
    %7 = sbr.rel target = $region3
  $region8: #{simcc_forward.8} parent=0 // loop_exit
    _

// kernel: simcc_forward.9
$region0: #{simcc_forward.9}
  #allocation0 [shape = 'u32[]', space=smem, size = 0x4, offset = 0x4, fixed_abs, tag = 'smem constant byte address 0x4 - core index']
  #allocation1 [shape = 'u32[72,128]{1,0:T(1,128)}', space=vmem, size = 0x9000, scoped, tag = 'internal scratch']
  %s0 = inlined_call_operand.vmem [shape: bf16[2,16,256], index: 0, kind: input, shape index: {}]
  %s1 = inlined_call_operand.vmem [shape: bf16[256,128], index: 1, kind: input, shape index: {}]
  %s2 = inlined_call_operand.vmem [shape: f32[16,128], index: 2, kind: input, shape index: {}]
  %s3 = inlined_call_operand.vmem [shape: f32[2,16,128], index: 3, kind: output, shape index: {}]
  %s4 = sld [smem:[#allocation0]]
  $region45: #{simcc_forward.9} parent=0
    _
  %s6 = ssub.s32 1, %s4
  %s7 = scalar_select 0, %s6, %s4
  loop: start=0, step=1, limit=4
  $region2: #{simcc_forward.9} parent=0 // loop_pre_header
    _
  $region3: #{simcc_forward.9} parent=0 // loop_header
    %s9 = sphi 0, %s13
    %p10 = scmp.ge.s32.totalorder %s9, 4
    %s16 = sphi 0, %s35
    %s17 = sphi 0, %s31
    %s18 = sphi 0, %s27
    %s19 = sphi 0, %s16
    %s20 = sphi 0, %s17
    %s21 = sphi 0, %s18
    %s22 = sphi 0, %s19
    %s23 = sphi 0, %s20
    %s24 = sphi 0, %s21
    %s42 = sphi 0, %s44
    %s45 = sphi 0, %s42
    %s46 = sphi 0, %s45
    %s62 = sphi 0, %s46
    %s68 = sphi 0, %s70
    %s71 = sphi 0, %s68
    %s72 = sphi 0, %s71
    %s88 = sphi 0, %s72
    %s94 = sphi 0, %s96
    %s97 = sphi 0, %s94
    %s98 = sphi 0, %s97
    %s114 = sphi 0, %s98
    %s122 = sphi 0, %s124
    %s125 = sphi 0, %s122
    %s126 = sphi 0, %s125
    %s142 = sphi 0, %s126
  $region4: #{simcc_forward.9} parent=0 // loop_header_branch
    %12 = sbr.rel (%p10) target = $region8
  $region5: #{simcc_forward.9} parent=0 // loop_body
    %s14 = ssub.s32 %s9, 1
    %s15 = ssub.s32 %s9, 2
    %s25 = sadd.s32 1, %s18
    %p26 = scmp.ge.s32.totalorder %s25, 1
    %s27 = scalar_select %p26, 0, %s25
    %s28 = sadd.s32 1, %s17
    %s29 = scalar_select %p26, %s28, %s17
    %p30 = scmp.ge.s32.totalorder %s29, 1
    %s31 = scalar_select %p30, 0, %s29
    %s32 = sadd.s32 1, %s16
    %s33 = scalar_select %p30, %s32, %s16
    %p34 = scmp.ge.s32.totalorder %s33, 2
    %s35 = scalar_select %p34, 0, %s33
    %s36 = ssub.s32 %s16, %s35
    %s37 = ssub.s32 %s17, %s31
    %s38 = sor.u32 %s36, %s37
    %s39 = ssub.s32 %s18, %s27
    %s40 = sor.u32 %s38, %s39
    %p41 = scmp.eq.s32.totalorder %s40, 0
    %s43 = sadd.s32 %s42, 1
    %s44 = scalar_select %p41, %s42, %s43
    %p47 = pneg %p41
    %p48 = scmp.eq.s32.totalorder %s9, 1
    %p49 = por %p47, %p48
    %p50 = scmp.ne.s32.totalorder %s42, %s45
    %p51 = scmp.eq.s32.totalorder %s9, 0
    %p52 = por %p50, %p51
    %p53 = scmp.ne.s32.totalorder %s42, %s45
    %p54 = scmp.eq.s32.totalorder %s14, 1
    %p55 = por %p53, %p54
    %p56 = scmp.ne.s32.totalorder %s45, %s46
    %p57 = scmp.eq.s32.totalorder %s14, 0
    %p58 = por %p56, %p57
    %p59 = scmp.ne.s32.totalorder %s45, %s46
    %p60 = scmp.eq.s32.totalorder %s15, 1
    %p61 = por %p59, %p60
    %p63 = scmp.ne.s32.totalorder %s46, %s62
    %p64 = scmp.eq.s32.totalorder %s15, 0
    %p65 = por %p63, %p64
    %s66 = ssub.s32 %s18, %s27
    %p67 = scmp.eq.s32.totalorder %s66, 0
    %s69 = sadd.s32 %s68, 1
    %s70 = scalar_select %p67, %s68, %s69
    %p73 = pneg %p67
    %p74 = scmp.eq.s32.totalorder %s9, 1
    %p75 = por %p73, %p74
    %p76 = scmp.ne.s32.totalorder %s68, %s71
    %p77 = scmp.eq.s32.totalorder %s9, 0
    %p78 = por %p76, %p77
    %p79 = scmp.ne.s32.totalorder %s68, %s71
    %p80 = scmp.eq.s32.totalorder %s14, 1
    %p81 = por %p79, %p80
    %p82 = scmp.ne.s32.totalorder %s71, %s72
    %p83 = scmp.eq.s32.totalorder %s14, 0
    %p84 = por %p82, %p83
    %p85 = scmp.ne.s32.totalorder %s71, %s72
    %p86 = scmp.eq.s32.totalorder %s15, 1
    %p87 = por %p85, %p86
    %p89 = scmp.ne.s32.totalorder %s72, %s88
    %p90 = scmp.eq.s32.totalorder %s15, 0
    %p91 = por %p89, %p90
    %s92 = ssub.s32 %s17, %s31
    %p93 = scmp.eq.s32.totalorder %s92, 0
    %s95 = sadd.s32 %s94, 1
    %s96 = scalar_select %p93, %s94, %s95
    %p99 = pneg %p93
    %p100 = scmp.eq.s32.totalorder %s9, 1
    %p101 = por %p99, %p100
    %p102 = scmp.ne.s32.totalorder %s94, %s97
    %p103 = scmp.eq.s32.totalorder %s9, 0
    %p104 = por %p102, %p103
    %p105 = scmp.ne.s32.totalorder %s94, %s97
    %p106 = scmp.eq.s32.totalorder %s14, 1
    %p107 = por %p105, %p106
    %p108 = scmp.ne.s32.totalorder %s97, %s98
    %p109 = scmp.eq.s32.totalorder %s14, 0
    %p110 = por %p108, %p109
    %p111 = scmp.ne.s32.totalorder %s97, %s98
    %p112 = scmp.eq.s32.totalorder %s15, 1
    %p113 = por %p111, %p112
    %p115 = scmp.ne.s32.totalorder %s98, %s114
    %p116 = scmp.eq.s32.totalorder %s15, 0
    %p117 = por %p115, %p116
    %s118 = ssub.s32 %s16, %s35
    %s119 = ssub.s32 %s17, %s31
    %s120 = sor.u32 %s118, %s119
    %p121 = scmp.eq.s32.totalorder %s120, 0
    %s123 = sadd.s32 %s122, 1
    %s124 = scalar_select %p121, %s122, %s123
    %p127 = pneg %p121
    %p128 = scmp.eq.s32.totalorder %s9, 1
    %p129 = por %p127, %p128
    %p130 = scmp.ne.s32.totalorder %s122, %s125
    %p131 = scmp.eq.s32.totalorder %s9, 0
    %p132 = por %p130, %p131
    %p133 = scmp.ne.s32.totalorder %s122, %s125
    %p134 = scmp.eq.s32.totalorder %s14, 1
    %p135 = por %p133, %p134
    %p136 = scmp.ne.s32.totalorder %s125, %s126
    %p137 = scmp.eq.s32.totalorder %s14, 0
    %p138 = por %p136, %p137
    %p139 = scmp.ne.s32.totalorder %s125, %s126
    %p140 = scmp.eq.s32.totalorder %s15, 1
    %p141 = por %p139, %p140
    %p143 = scmp.ne.s32.totalorder %s126, %s142
    %p144 = scmp.eq.s32.totalorder %s15, 0
    %p145 = por %p143, %p144
    %p146 = scmp.le.s32.totalorder 1, %s9
    %p147 = scmp.lt.s32.totalorder %s9, 3
    %p148 = pnand %p146, %p147
    %p149 = pneg %p148
    // Predicated region
    $region9: #{simcc_forward.9} parent=5 // pred_check
      _
    $region10: #{simcc_forward.9} parent=5 // pred_check_branch
      %151 = sbr.rel (%p148) target = $region12
    $region11: #{simcc_forward.9} parent=5 // pred_region
      %s152 = ssub.s32 %s9, 1
      // Predicated region
      $region13: #{simcc_forward.9} parent=11 // pred_check
        %p153 = pneg %p84
      $region14: #{simcc_forward.9} parent=11 // pred_check_branch
        %155 = sbr.rel (%p153) target = $region16
      $region15: #{simcc_forward.9} parent=11 // pred_region
        %s156 = smul.u32 32, %s21
        %p157 = scmp.lt.s32.totalorder %s156, 31
        %s158 = scalar_select %p157, %s156, 31
        %s159 = smul.addr %s158, 4
        %s160 = scalar_lea.vmem %s1, %s159
        %s161 = smul.u32 32, %s21
      $region16: #{simcc_forward.9} parent=11 // pred_fallthru
        _
      // Predicated region
      $region17: #{simcc_forward.9} parent=11 // pred_check
        %p162 = pneg %p110
      $region18: #{simcc_forward.9} parent=11 // pred_check_branch
        %164 = sbr.rel (%p162) target = $region20
      $region19: #{simcc_forward.9} parent=11 // pred_region
        %s165 = smul.u32 2, %s20
        %p166 = scmp.lt.s32.totalorder %s165, 1
        %s167 = scalar_select %p166, %s165, 1
        %s168 = smul.addr %s167, 8
        %s169 = scalar_lea.vmem %s2, %s168
        %s170 = smul.u32 2, %s20
      $region20: #{simcc_forward.9} parent=11 // pred_fallthru
        _
    $region12: #{simcc_forward.9} parent=5 // pred_fallthru
      _
    %p171 = scmp.lt.s32.totalorder %s9, 2
    // Predicated region
    $region21: #{simcc_forward.9} parent=5 // pred_check
      %p172 = pneg %p171
    $region22: #{simcc_forward.9} parent=5 // pred_check_branch
      %174 = sbr.rel (%p172) target = $region24
    $region23: #{simcc_forward.9} parent=5 // pred_region
      // Predicated region
      $region25: #{simcc_forward.9} parent=23 // pred_check
        %p175 = pneg %p52
      $region26: #{simcc_forward.9} parent=23 // pred_check_branch
        %177 = sbr.rel (%p175) target = $region28
      $region27: #{simcc_forward.9} parent=23 // pred_region
        %s178 = smul.u32 2, %s17
        %s179 = smul.u32 2, %s18
        %p180 = scmp.lt.s32.totalorder %s16, 1
        %s181 = scalar_select %p180, %s16, 1
        %p182 = scmp.lt.s32.totalorder %s178, 1
        %s183 = scalar_select %p182, %s178, 1
        %p184 = scmp.lt.s32.totalorder %s179, 1
        %s185 = scalar_select %p184, %s179, 1
        %s186 = smul.addr %s183, 2
        %s187 = sadd.s32 %s185, %s186
        %s188 = smul.addr %s181, 4
        %s189 = sadd.s32 %s187, %s188
        %s190 = smul.addr %s189, 4
        %s191 = scalar_lea.vmem %s0, %s190
        %s192 = smul.u32 2, %s17
        %s193 = smul.u32 2, %s18
      $region28: #{simcc_forward.9} parent=23 // pred_fallthru
        _
    $region24: #{simcc_forward.9} parent=5 // pred_fallthru
      _
    %p194 = scmp.le.s32.totalorder 1, %s9
    %p195 = scmp.lt.s32.totalorder %s9, 3
    %p196 = pnand %p194, %p195
    %p197 = pneg %p196
    // Predicated region
    $region29: #{simcc_forward.9} parent=5 // pred_check
      _
    $region30: #{simcc_forward.9} parent=5 // pred_check_branch
      %199 = sbr.rel (%p196) target = $region32
    $region31: #{simcc_forward.9} parent=5 // pred_region
      %s200 = ssub.s32 %s9, 1
      %s201 = smul.u32 2, %s20
      %s202 = smul.u32 2, %s21
      %p203 = scmp.lt.s32.totalorder %s19, 1
      %s204 = scalar_select %p203, %s19, 1
      %p205 = scmp.lt.s32.totalorder %s201, 1
      %s206 = scalar_select %p205, %s201, 1
      %p207 = scmp.lt.s32.totalorder %s202, 1
      %s208 = scalar_select %p207, %s202, 1
      %s209 = smul.addr %s206, 2
      %s210 = sadd.s32 %s208, %s209
      %s211 = smul.addr %s204, 4
      %s212 = sadd.s32 %s210, %s211
      %s213 = smul.addr %s212, 4
      %s214 = scalar_lea.vmem %s0, %s213
      %p215 = pneg %p58
      %p216 = pneg %p55
      %s217 = smul.u32 32, %s21
      %p218 = scmp.lt.s32.totalorder %s217, 31
      %s219 = scalar_select %p218, %s217, 31
      %s220 = smul.addr %s219, 4
      %s221 = scalar_lea.vmem %s1, %s220
      %p222 = pneg %p84
      %p223 = pneg %p81
      %s224 = smul.u32 2, %s20
      %p225 = scmp.lt.s32.totalorder %s224, 1
      %s226 = scalar_select %p225, %s224, 1
      %s227 = smul.addr %s226, 8
      %s228 = scalar_lea.vmem %s2, %s227
      %p229 = pneg %p110
      %p230 = pneg %p107
      %p231 = pneg %p138
      %p232 = pneg %p135
      %s233 = smul.u32 2, %s20
      %p234 = scmp.lt.s32.totalorder %s19, 1
      %s235 = scalar_select %p234, %s19, 1
      %p236 = scmp.lt.s32.totalorder %s233, 1
      %s237 = scalar_select %p236, %s233, 1
      %s238 = smul.addr %s235, 2
      %s239 = sadd.s32 %s237, %s238
      %s240 = smul.addr %s239, 8
      %s241 = scalar_lea.vmem %s3, %s240
      %s242 = smul.u32 2, %s20
      %s243 = smul.u32 2, %s21
      %p244 = scmp.lt.s32.totalorder %s19, 1
      %s245 = scalar_select %p244, %s19, 1
      %p246 = scmp.lt.s32.totalorder %s242, 1
      %s247 = scalar_select %p246, %s242, 1
      %p248 = scmp.lt.s32.totalorder %s243, 1
      %s249 = scalar_select %p248, %s243, 1
      %s250 = smul.addr %s247, 2
      %s251 = sadd.s32 %s249, %s250
      %s252 = smul.addr %s245, 4
      %s253 = sadd.s32 %s251, %s252
      %s254 = smul.addr %s253, 4
      %s255 = scalar_lea.vmem %s0, %s254
      %s256 = smul.u32 2, %s20
      %s257 = smul.u32 2, %s21
      %s258 = smul.u32 32, %s21
      %p259 = scmp.lt.s32.totalorder %s258, 31
      %s260 = scalar_select %p259, %s258, 31
      %s261 = smul.addr %s260, 4
      %s262 = scalar_lea.vmem %s1, %s261
      %s263 = smul.u32 32, %s21
      %s264 = smul.u32 2, %s20
      %p265 = scmp.lt.s32.totalorder %s264, 1
      %s266 = scalar_select %p265, %s264, 1
      %s267 = smul.addr %s266, 8
      %s268 = scalar_lea.vmem %s2, %s267
      %s269 = smul.u32 2, %s20
      %s270 = smul.u32 2, %s20
      %p271 = scmp.lt.s32.totalorder %s19, 1
      %s272 = scalar_select %p271, %s19, 1
      %p273 = scmp.lt.s32.totalorder %s270, 1
      %s274 = scalar_select %p273, %s270, 1
      %s275 = smul.addr %s272, 2
      %s276 = sadd.s32 %s274, %s275
      %s277 = smul.addr %s276, 8
      %s278 = scalar_lea.vmem %s3, %s277
      %s279 = smul.u32 2, %s20
      %v280 = vld [vmem:[%s255] sm:$0xff]
      %v281 = vld [vmem:[%s255 + $0x8] sm:$0xff]
      %v282 = vld [vmem:[%s262] sm:$0xf]
      %v283 = vld [vmem:[%s262 + $0x4] sm:$0xf]
      %v284 = vld [vmem:[%s262 + $0x8] sm:$0xf]
      %v285 = vld [vmem:[%s262 + $0xc] sm:$0xf]
      %v286 = vld [vmem:[%s262 + $0x10] sm:$0xf]
      %v287 = vld [vmem:[%s262 + $0x14] sm:$0xf]
      %v288 = vld [vmem:[%s262 + $0x18] sm:$0xf]
      %v289 = vld [vmem:[%s262 + $0x1c] sm:$0xf]
      %v290 = vld [vmem:[%s262 + $0x20] sm:$0xf]
      %v291 = vld [vmem:[%s262 + $0x24] sm:$0xf]
      %v292 = vld [vmem:[%s262 + $0x28] sm:$0xf]
      %v293 = vld [vmem:[%s262 + $0x2c] sm:$0xf]
      %v294 = vld [vmem:[%s262 + $0x30] sm:$0xf]
      %v295 = vld [vmem:[%s262 + $0x34] sm:$0xf]
      %v296 = vld [vmem:[%s262 + $0x38] sm:$0xf]
      %v297 = vld [vmem:[%s262 + $0x3c] sm:$0xf]
      %v298 = vld [vmem:[%s262 + $0x40] sm:$0xf]
      %v299 = vld [vmem:[%s262 + $0x44] sm:$0xf]
      %v300 = vld [vmem:[%s262 + $0x48] sm:$0xf]
      %v301 = vld [vmem:[%s262 + $0x4c] sm:$0xf]
      %v302 = vld [vmem:[%s262 + $0x50] sm:$0xf]
      %v303 = vld [vmem:[%s262 + $0x54] sm:$0xf]
      %v304 = vld [vmem:[%s262 + $0x58] sm:$0xf]
      %v305 = vld [vmem:[%s262 + $0x5c] sm:$0xf]
      %v306 = vld [vmem:[%s262 + $0x60] sm:$0xf]
      %v307 = vld [vmem:[%s262 + $0x64] sm:$0xf]
      %v308 = vld [vmem:[%s262 + $0x68] sm:$0xf]
      %v309 = vld [vmem:[%s262 + $0x6c] sm:$0xf]
      %v310 = vld [vmem:[%s262 + $0x70] sm:$0xf]
      %v311 = vld [vmem:[%s262 + $0x74] sm:$0xf]
      %v312 = vld [vmem:[%s262 + $0x78] sm:$0xf]
      %v313 = vld [vmem:[%s262 + $0x7c] sm:$0xf]
      %v314 = vld [vmem:[%s268] sm:$0xff]
      %v315 = vld [vmem:[%s268 + $0x8] sm:$0xff]
      %v318 = vunpack.c.l.b16 %v280
      %v319 = vunpack.c.h.b16 %v280
      %v320 = vunpack.c.l.b16 %v281
      %v321 = vunpack.c.h.b16 %v281
      %v322 = vpack.c.b16 %v320, %v318
      %v323 = vpack.c.b16 %v321, %v319
      %v358 = vunpack.c.l.b16 %v282
      %v359 = vunpack.c.l.b16 %v283
      %v360 = vunpack.c.l.b16 %v284
      %v361 = vunpack.c.l.b16 %v285
      %v362 = vunpack.c.l.b16 %v286
      %v363 = vunpack.c.l.b16 %v287
      %v364 = vunpack.c.l.b16 %v288
      %v365 = vunpack.c.l.b16 %v289
      %v366 = vunpack.c.l.b16 %v290
      %v367 = vunpack.c.l.b16 %v291
      %v368 = vunpack.c.l.b16 %v292
      %v369 = vunpack.c.l.b16 %v293
      %v370 = vunpack.c.l.b16 %v294
      %v371 = vunpack.c.l.b16 %v295
      %v372 = vunpack.c.l.b16 %v296
      %v373 = vunpack.c.l.b16 %v297
      %v374 = vunpack.c.l.b16 %v298
      %v375 = vunpack.c.l.b16 %v299
      %v376 = vunpack.c.l.b16 %v300
      %v377 = vunpack.c.l.b16 %v301
      %v378 = vunpack.c.l.b16 %v302
      %v379 = vunpack.c.l.b16 %v303
      %v380 = vunpack.c.l.b16 %v304
      %v381 = vunpack.c.l.b16 %v305
      %v382 = vunpack.c.l.b16 %v306
      %v383 = vunpack.c.l.b16 %v307
      %v384 = vunpack.c.l.b16 %v308
      %v385 = vunpack.c.l.b16 %v309
      %v386 = vunpack.c.l.b16 %v310
      %v387 = vunpack.c.l.b16 %v311
      %v388 = vunpack.c.l.b16 %v312
      %v389 = vunpack.c.l.b16 %v313
      %v390 = vpack.c.b16 %v359, %v358
      %v391 = vpack.c.b16 %v361, %v360
      %v392 = vpack.c.b16 %v363, %v362
      %v393 = vpack.c.b16 %v365, %v364
      %v394 = vpack.c.b16 %v367, %v366
      %v395 = vpack.c.b16 %v369, %v368
      %v396 = vpack.c.b16 %v371, %v370
      %v397 = vpack.c.b16 %v373, %v372
      %v398 = vpack.c.b16 %v375, %v374
      %v399 = vpack.c.b16 %v377, %v376
      %v400 = vpack.c.b16 %v379, %v378
      %v401 = vpack.c.b16 %v381, %v380
      %v402 = vpack.c.b16 %v383, %v382
      %v403 = vpack.c.b16 %v385, %v384
      %v404 = vpack.c.b16 %v387, %v386
      %v405 = vpack.c.b16 %v389, %v388
      %422 = vmatpush.bf16.msra.mxu0 %v397
      %423 = vmatpush.bf16.msra.mxu0 %v396
      %424 = vmatpush.bf16.msra.mxu0 %v395
      %425 = vmatpush.bf16.msra.mxu0 %v394
      %426 = vmatpush.bf16.msra.mxu0 %v393
      %427 = vmatpush.bf16.msra.mxu0 %v392
      %428 = vmatpush.bf16.msra.mxu0 %v391
      %429 = vmatpush.bf16.msra.mxu0 %v390
      %430 = vmatmul.bf16.gmra.mxu0 %v322
      %v431 = vpop.f32.mrf.mxu0
      %v432 = vadd.f32 %v314, %v431
      %v433 = vpop.f32.mrf.mxu0
      %v434 = vadd.f32 %v315, %v433
      %435 = vdwg.mxu0
      %436 = vmatpush.bf16.msra.mxu0 %v405
      %437 = vmatpush.bf16.msra.mxu0 %v404
      %438 = vmatpush.bf16.msra.mxu0 %v403
      %439 = vmatpush.bf16.msra.mxu0 %v402
      %440 = vmatpush.bf16.msra.mxu0 %v401
      %441 = vmatpush.bf16.msra.mxu0 %v400
      %442 = vmatpush.bf16.msra.mxu0 %v399
      %443 = vmatpush.bf16.msra.mxu0 %v398
      %444 = vmatmul.bf16.gmra.mxu0 %v323
      %v445 = vpop.f32.mrf.mxu0
      %v446 = vadd.f32 %v432, %v445
      %v447 = vpop.f32.mrf.mxu0
      %v448 = vadd.f32 %v434, %v447
      %449 = vdwg.mxu0
      %450 = vst [vmem:[%s278] sm:$0xff] %v446
      %451 = vst [vmem:[%s278 + $0x8] sm:$0xff] %v448
      %s452 = smul.u32 2, %s20
      %p453 = scmp.lt.s32.totalorder %s19, 1
      %s454 = scalar_select %p453, %s19, 1
      %p455 = scmp.lt.s32.totalorder %s452, 1
      %s456 = scalar_select %p455, %s452, 1
      %s457 = smul.addr %s454, 2
      %s458 = sadd.s32 %s456, %s457
      %s459 = smul.addr %s458, 8
      %s460 = scalar_lea.vmem %s3, %s459
      // Predicated region
      $region33: #{simcc_forward.9} parent=31 // pred_check
        %p461 = pneg %p135
      $region34: #{simcc_forward.9} parent=31 // pred_check_branch
        %463 = sbr.rel (%p461) target = $region36
      $region35: #{simcc_forward.9} parent=31 // pred_region
        %s464 = smul.u32 2, %s20
      $region36: #{simcc_forward.9} parent=31 // pred_fallthru
        _
    $region32: #{simcc_forward.9} parent=5 // pred_fallthru
      _
    %p465 = scmp.le.s32.totalorder 2, %s9
    // Predicated region
    $region37: #{simcc_forward.9} parent=5 // pred_check
      %p466 = pneg %p465
    $region38: #{simcc_forward.9} parent=5 // pred_check_branch
      %468 = sbr.rel (%p466) target = $region40
    $region39: #{simcc_forward.9} parent=5 // pred_region
      %s469 = ssub.s32 %s9, 2
      // Predicated region
      $region41: #{simcc_forward.9} parent=39 // pred_check
        %p470 = pneg %p141
      $region42: #{simcc_forward.9} parent=39 // pred_check_branch
        %472 = sbr.rel (%p470) target = $region44
      $region43: #{simcc_forward.9} parent=39 // pred_region
        %s473 = smul.u32 2, %s23
        %p474 = scmp.lt.s32.totalorder %s22, 1
        %s475 = scalar_select %p474, %s22, 1
        %p476 = scmp.lt.s32.totalorder %s473, 1
        %s477 = scalar_select %p476, %s473, 1
        %s478 = smul.addr %s475, 2
        %s479 = sadd.s32 %s477, %s478
        %s480 = smul.addr %s479, 8
        %s481 = scalar_lea.vmem %s3, %s480
      $region44: #{simcc_forward.9} parent=39 // pred_fallthru
        _
    $region40: #{simcc_forward.9} parent=5 // pred_fallthru
      _
  $region6: #{simcc_forward.9} parent=0 // loop_footer
    %s13 = sadd.s32 1, %s9
  $region7: #{simcc_forward.9} parent=0 // loop_footer_branch
    %8 = sbr.rel target = $region3
  $region8: #{simcc_forward.9} parent=0 // loop_exit
    _

</llo_original>
